<compile_context>
chip_gen: v7x
topology: tpu7x:2x2x1
jax: 0.10.0
libtpu: 0.0.40
codegen_flags: <defaults>
</compile_context>

<pallas_src>
import jax
import jax.numpy as jnp
from jax.experimental import pallas as pl
from jax.experimental.pallas import tpu as pltpu

BN_EPS = 1e-3
FEAT_DIM = 1280          # MobileNetV2 feature width
TAB_HIDDEN = 32          # tabular_dense1 output width


def _pick_tile_hw(hw, max_tile=2048):
    """Tile HW so the (1280, TILE_HW) f32 intermediate stays ~10 MB (fits v7x's
    64 MiB VMEM); 128 MiB parts (v5e/v6e) could take 2-4x larger tiles."""
    if hw <= max_tile:
        return hw
    for cand in range(max_tile, 127, -128):
        if hw % cand == 0:
            return cand
    # TODO(synk): pad HW when no multiple-of-128 divisor exists (odd spatial dims).
    return hw


def multi_input_forward(params, front_img, back_img, tab):
    p = params
    B, C, H, W = front_img.shape
    HW = H * W
    TILE_HW = _pick_tile_hw(HW)
    n_t = HW // TILE_HW
    n_img = 2 * B
    NUM_TAB = tab.shape[1]
    n_out = p["head_w"].shape[1]
    N_PAD = max(128, int(pl.cdiv(n_out, 128)) * 128)   # lane-dense head output

    # (B,C,H,W) -> (B,C,HW) is a free reshape; stacking front/back is one tiny copy.
    imgs = jnp.concatenate([front_img.reshape(B, C, HW),
                            back_img.reshape(B, C, HW)], axis=0)      # (2B, C, HW)

    row = lambda v: v.reshape(1, -1)
    head_w_p = jnp.pad(p["head_w"], ((0, 0), (0, N_PAD - n_out)))     # (2592, N_PAD)
    head_b_p = jnp.pad(p["head_b"], (0, N_PAD - n_out)).reshape(1, N_PAD)

    def kernel(x_ref, w_ref, cb_ref,
               ig_ref, ibt_ref, imu_ref, ivr_ref,
               tab_ref, tw_ref, tb_ref, tg_ref, tbt_ref, tmu_ref, tvr_ref,
               hw_ref, hb_ref,
               out_ref, acc_ref, feats_ref):
        b = pl.program_id(0)          # image index in [0, 2B)
        t = pl.program_id(1)          # HW tile index (reduction axis)

        @pl.when(t == 0)
        def _():
            acc_ref[...] = jnp.zeros_like(acc_ref)

        # Stand-in backbone: 1x1 conv (C -> 1280) + ReLU6, channels-first tile.
        # y[f, s] = sum_c w[f, c] * x[c, s] + bias[f]  — C broadcast FMAs on the
        # VPU (K=C=3 would leave the MXU ~2% utilized).
        x = x_ref[...]                                   # (C, TILE_HW), HW on lanes
        w = w_ref[...]                                   # (FEAT_DIM, C)
        y = w[:, 0:1] * x[0:1, :]
        for c in range(1, C):
            y = y + w[:, c:c + 1] * x[c:c + 1, :]
        y = jnp.clip(y + cb_ref[...], 0.0, 6.0)          # (FEAT_DIM, TILE_HW)

        # Partial global-average-pool as a ones-row matmul on the MXU:
        # (1, TILE_HW) x (FEAT_DIM, TILE_HW)^T -> (1, FEAT_DIM) row accumulator.
        ones_row = jnp.ones((1, TILE_HW), jnp.float32)
        acc_ref[...] += jax.lax.dot_general(
            ones_row, y, (((1,), (1,)), ((), ())),
            preferred_element_type=jnp.float32)

        @pl.when(t == n_t - 1)
        def _finalize_image():
            pooled = acc_ref[...] * (1.0 / HW)           # AdaptiveAvgPool2d((1,1))
            inv = jax.lax.rsqrt(ivr_ref[...] + BN_EPS)   # BatchNorm1d(1280)
            feat = (pooled - imu_ref[...]) * inv * ig_ref[...] + ibt_ref[...]
            feats_ref[pl.ds(b, 1), :] = feat             # keep feature in VMEM

            # Tabular branch + concat + output heads, fused into the last step.
            @pl.when(b == n_img - 1)
            def _fusion():
                th = jnp.dot(tab_ref[...], tw_ref[...],
                             preferred_element_type=jnp.float32) + tb_ref[...]
                th = jnp.maximum(th, 0.0)                # ReLU
                tinv = jax.lax.rsqrt(tvr_ref[...] + BN_EPS)   # BatchNorm1d(32)
                th = (th - tmu_ref[...]) * tinv * tg_ref[...] + tbt_ref[...]

                front = feats_ref[0:B, :]                # (B, FEAT_DIM)
                back = feats_ref[B:2 * B, :]             # (B, FEAT_DIM)
                # concat([front, back, th]) @ head_w  ==  sum of three matmuls
                # (static ref views of head_w, no host-side slicing).
                out = (jnp.dot(front, hw_ref[0:FEAT_DIM, :],
                               preferred_element_type=jnp.float32)
                       + jnp.dot(back, hw_ref[FEAT_DIM:2 * FEAT_DIM, :],
                                 preferred_element_type=jnp.float32)
                       + jnp.dot(th, hw_ref[2 * FEAT_DIM:2 * FEAT_DIM + TAB_HIDDEN, :],
                                 preferred_element_type=jnp.float32)
                       + hb_ref[...])
                out_ref[...] = out                       # (B, N_PAD) lane-dense

    const = lambda shape: pl.BlockSpec(shape, lambda b, t: (0, 0))
    out_padded = pl.pallas_call(
        kernel,
        grid=(n_img, n_t),
        in_specs=[
            pl.BlockSpec((None, C, TILE_HW), lambda b, t: (b, 0, t)),   # images
            const((FEAT_DIM, C)),            # conv weight (PyTorch (out,in) layout)
            const((FEAT_DIM, 1)),            # conv bias (column)
            const((1, FEAT_DIM)), const((1, FEAT_DIM)),                 # image BN g, b
            const((1, FEAT_DIM)), const((1, FEAT_DIM)),                 # image BN mu, var
            const((B, NUM_TAB)),             # tabular input
            const((NUM_TAB, TAB_HIDDEN)),    # tabular_dense1 weight
            const((1, TAB_HIDDEN)), const((1, TAB_HIDDEN)), const((1, TAB_HIDDEN)),
            const((1, TAB_HIDDEN)), const((1, TAB_HIDDEN)),             # tab bias + BN
            const((2 * FEAT_DIM + TAB_HIDDEN, N_PAD)),                  # head W (padded)
            const((1, N_PAD)),                                          # head b (padded)
        ],
        out_specs=pl.BlockSpec((B, N_PAD), lambda b, t: (0, 0)),
        out_shape=jax.ShapeDtypeStruct((B, N_PAD), jnp.float32),
        scratch_shapes=[pltpu.VMEM((1, FEAT_DIM), jnp.float32),      # pooled-sum acc
                        pltpu.VMEM((n_img, FEAT_DIM), jnp.float32)], # per-image feats
        compiler_params=pltpu.CompilerParams(
            dimension_semantics=("arbitrary", "arbitrary"),
            vmem_limit_bytes=48 * 1024 * 1024),
    )(imgs, p["conv_w"], p["conv_b"].reshape(FEAT_DIM, 1),
      row(p["ibn_g"]), row(p["ibn_b"]), row(p["ibn_mu"]), row(p["ibn_var"]),
      tab, p["tab_w"],
      row(p["tab_b"]), row(p["tbn_g"]), row(p["tbn_b"]),
      row(p["tbn_mu"]), row(p["tbn_var"]),
      head_w_p, head_b_p)

    out = out_padded[:, :n_out]
    # nn.ModuleList of Linear(combined, 1) -> list of (B, 1) outputs
    return [out[:, i:i + 1] for i in range(n_out)]


def reference_forward(params, front_img, back_img, tab):
    """Pure-JAX reference for correctness checking."""
    p = params

    def img(x):
        B, C, H, W = x.shape
        xf = x.reshape(B, C, H * W)
        y = jnp.einsum("bcs,fc->bsf", xf, p["conv_w"]) + p["conv_b"]
        y = jnp.clip(y, 0.0, 6.0)
        pooled = jnp.mean(y, axis=1)
        return (pooled - p["ibn_mu"]) * jax.lax.rsqrt(p["ibn_var"] + BN_EPS) \
            * p["ibn_g"] + p["ibn_b"]

    f, b = img(front_img), img(back_img)
    t = jnp.maximum(tab @ p["tab_w"] + p["tab_b"], 0.0)
    t = (t - p["tbn_mu"]) * jax.lax.rsqrt(p["tbn_var"] + BN_EPS) * p["tbn_g"] + p["tbn_b"]
    comb = jnp.concatenate([f, b, t], axis=1)
    out = comb @ p["head_w"] + p["head_b"]
    return [out[:, i:i + 1] for i in range(out.shape[1])]


def init_params(key, num_tabular_features, n_outputs):
    ks = jax.random.split(key, 12)
    cdim = 2 * FEAT_DIM + TAB_HIDDEN
    return {
        # conv weight in PyTorch (out_channels, in_channels) layout (1x1 kernel squeezed)
        "conv_w": jax.random.normal(ks[0], (FEAT_DIM, 3), jnp.float32) * 0.1,
        "conv_b": jax.random.normal(ks[1], (FEAT_DIM,), jnp.float32) * 0.1,
        "ibn_g": 1.0 + 0.1 * jax.random.normal(ks[2], (FEAT_DIM,), jnp.float32),
        "ibn_b": 0.1 * jax.random.normal(ks[3], (FEAT_DIM,), jnp.float32),
        "ibn_mu": 0.1 * jax.random.normal(ks[4], (FEAT_DIM,), jnp.float32),
        "ibn_var": jax.random.uniform(ks[5], (FEAT_DIM,), jnp.float32, 0.5, 1.5),
        "tab_w": jax.random.normal(ks[6], (num_tabular_features, TAB_HIDDEN), jnp.float32) * 0.2,
        "tab_b": 0.1 * jax.random.normal(ks[7], (TAB_HIDDEN,), jnp.float32),
        "tbn_g": 1.0 + 0.1 * jax.random.normal(ks[8], (TAB_HIDDEN,), jnp.float32),
        "tbn_b": 0.1 * jax.random.normal(ks[9], (TAB_HIDDEN,), jnp.float32),
        "tbn_mu": 0.1 * jax.random.normal(ks[10], (TAB_HIDDEN,), jnp.float32),
        "tbn_var": jax.random.uniform(ks[11], (TAB_HIDDEN,), jnp.float32, 0.5, 1.5),
        "head_w": jax.random.normal(jax.random.fold_in(key, 99),
                                    (cdim, n_outputs), jnp.float32) * 0.02,
        "head_b": 0.1 * jax.random.normal(jax.random.fold_in(key, 100),
                                          (n_outputs,), jnp.float32),
    }


if __name__ == "__main__":
    B, C, H, W = 2, 3, 16, 16
    NUM_TAB = 8
    N_OUT = 3

    key = jax.random.PRNGKey(0)
    k_front, k_back, k_tab, k_params = jax.random.split(key, 4)
    front_img = jax.random.normal(k_front, (B, C, H, W), jnp.float32)
    back_img = jax.random.normal(k_back, (B, C, H, W), jnp.float32)
    tabular = jax.random.normal(k_tab, (B, NUM_TAB), jnp.float32)

    params = init_params(k_params, NUM_TAB, N_OUT)

    forward = jax.jit(multi_input_forward)
    outs = forward(params, front_img, back_img, tabular)
    outs = [jax.block_until_ready(o) for o in outs]

    refs = reference_forward(params, front_img, back_img, tabular)
    for o, r in zip(outs, refs):
        assert o.shape == (B, 1)
        assert jnp.allclose(o, r, rtol=1e-3, atol=1e-3), (o, r)

    print("KERNEL_OK")
</pallas_src>

<mosaic_0001>
module attributes {stable_mosaic.version = 11 : i64} {
  func.func @kernel(%arg0: i32, %arg1: i32, %arg2: memref<1x3x256xf32, #tpu.memory_space<vmem>>, %arg3: memref<1280x3xf32, #tpu.memory_space<vmem>>, %arg4: memref<1280x1xf32, #tpu.memory_space<vmem>>, %arg5: memref<1x1280xf32, #tpu.memory_space<vmem>>, %arg6: memref<1x1280xf32, #tpu.memory_space<vmem>>, %arg7: memref<1x1280xf32, #tpu.memory_space<vmem>>, %arg8: memref<1x1280xf32, #tpu.memory_space<vmem>>, %arg9: memref<2x8xf32, #tpu.memory_space<vmem>>, %arg10: memref<8x32xf32, #tpu.memory_space<vmem>>, %arg11: memref<1x32xf32, #tpu.memory_space<vmem>>, %arg12: memref<1x32xf32, #tpu.memory_space<vmem>>, %arg13: memref<1x32xf32, #tpu.memory_space<vmem>>, %arg14: memref<1x32xf32, #tpu.memory_space<vmem>>, %arg15: memref<1x32xf32, #tpu.memory_space<vmem>>, %arg16: memref<2592x128xf32, #tpu.memory_space<vmem>>, %arg17: memref<1x128xf32, #tpu.memory_space<vmem>>, %arg18: memref<2x128xf32, #tpu.memory_space<vmem>>, %arg19: memref<1x1280xf32, #tpu.memory_space<vmem>>, %arg20: memref<4x1280xf32, #tpu.memory_space<vmem>>) attributes {dimension_semantics = [#tpu.dimension_semantics<arbitrary>, #tpu.dimension_semantics<arbitrary>], iteration_bounds = array<i64: 4, 1>, scalar_prefetch = 0 : i64, scratch_operands = 2 : i64, tpu.core_type = #tpu.core_type<tc>, window_params = [{transform_indices = @transform_0, window_bounds = array<i64: 1, 3, 256>}, {pipeline_mode = #tpu.pipeline_mode<synchronous>, transform_indices = @transform_1, window_bounds = array<i64: 1280, 3>}, {pipeline_mode = #tpu.pipeline_mode<synchronous>, transform_indices = @transform_2, window_bounds = array<i64: 1280, 1>}, {pipeline_mode = #tpu.pipeline_mode<synchronous>, transform_indices = @transform_3, window_bounds = array<i64: 1, 1280>}, {pipeline_mode = #tpu.pipeline_mode<synchronous>, transform_indices = @transform_4, window_bounds = array<i64: 1, 1280>}, {pipeline_mode = #tpu.pipeline_mode<synchronous>, transform_indices = @transform_5, window_bounds = array<i64: 1, 1280>}, {pipeline_mode = #tpu.pipeline_mode<synchronous>, transform_indices = @transform_6, window_bounds = array<i64: 1, 1280>}, {pipeline_mode = #tpu.pipeline_mode<synchronous>, transform_indices = @transform_7, window_bounds = array<i64: 2, 8>}, {pipeline_mode = #tpu.pipeline_mode<synchronous>, transform_indices = @transform_8, window_bounds = array<i64: 8, 32>}, {pipeline_mode = #tpu.pipeline_mode<synchronous>, transform_indices = @transform_9, window_bounds = array<i64: 1, 32>}, {pipeline_mode = #tpu.pipeline_mode<synchronous>, transform_indices = @transform_10, window_bounds = array<i64: 1, 32>}, {pipeline_mode = #tpu.pipeline_mode<synchronous>, transform_indices = @transform_11, window_bounds = array<i64: 1, 32>}, {pipeline_mode = #tpu.pipeline_mode<synchronous>, transform_indices = @transform_12, window_bounds = array<i64: 1, 32>}, {pipeline_mode = #tpu.pipeline_mode<synchronous>, transform_indices = @transform_13, window_bounds = array<i64: 1, 32>}, {pipeline_mode = #tpu.pipeline_mode<synchronous>, transform_indices = @transform_14, window_bounds = array<i64: 2592, 128>}, {pipeline_mode = #tpu.pipeline_mode<synchronous>, transform_indices = @transform_15, window_bounds = array<i64: 1, 128>}, {pipeline_mode = #tpu.pipeline_mode<synchronous>, transform_indices = @transform_16, window_bounds = array<i64: 2, 128>}]} {
    %c0_i32 = arith.constant 0 : i32
    %0 = arith.cmpi eq, %arg1, %c0_i32 : i32
    %1 = arith.extui %0 : i1 to i32
    %c0_i32_0 = arith.constant 0 : i32
    %2 = arith.cmpi ne, %1, %c0_i32_0 : i32
    scf.if %2 {
      %cst_16 = arith.constant 0.000000e+00 : f32
      %38 = vector.broadcast %cst_16 : f32 to vector<1x1280xf32>
      %c0_17 = arith.constant 0 : index
      %c0_18 = arith.constant 0 : index
      %39 = vector.load %arg19[%c0_17, %c0_18] : memref<1x1280xf32, #tpu.memory_space<vmem>>, vector<1x1280xf32>
      tpu.vector_store %arg19[%c0_17, %c0_18], %38 {strides = array<i32>} : memref<1x1280xf32, #tpu.memory_space<vmem>>, vector<1x1280xf32>,
    } else {
    }
    %c0 = arith.constant 0 : index
    %c0_1 = arith.constant 0 : index
    %c0_2 = arith.constant 0 : index
    %3 = vector.load %arg2[%c0, %c0_1, %c0_2] : memref<1x3x256xf32, #tpu.memory_space<vmem>>, vector<1x3x256xf32>
    %4 = vector.shape_cast %3 : vector<1x3x256xf32> to vector<3x256xf32>
    %c0_3 = arith.constant 0 : index
    %c0_4 = arith.constant 0 : index
    %5 = vector.load %arg3[%c0_3, %c0_4] : memref<1280x3xf32, #tpu.memory_space<vmem>>, vector<1280x3xf32>
    %6 = vector.extract_strided_slice %5 {offsets = [0, 0], sizes = [1280, 1], strides = [1, 1]} : vector<1280x3xf32> to vector<1280x1xf32>
    %7 = vector.extract_strided_slice %4 {offsets = [0, 0], sizes = [1, 256], strides = [1, 1]} : vector<3x256xf32> to vector<1x256xf32>
    %8 = vector.broadcast %6 : vector<1280x1xf32> to vector<1280x256xf32>
    %9 = vector.broadcast %7 : vector<1x256xf32> to vector<1280x256xf32>
    %10 = arith.mulf %8, %9 : vector<1280x256xf32>
    %11 = vector.extract_strided_slice %5 {offsets = [0, 1], sizes = [1280, 1], strides = [1, 1]} : vector<1280x3xf32> to vector<1280x1xf32>
    %12 = vector.extract_strided_slice %4 {offsets = [1, 0], sizes = [1, 256], strides = [1, 1]} : vector<3x256xf32> to vector<1x256xf32>
    %13 = vector.broadcast %11 : vector<1280x1xf32> to vector<1280x256xf32>
    %14 = vector.broadcast %12 : vector<1x256xf32> to vector<1280x256xf32>
    %15 = arith.mulf %13, %14 : vector<1280x256xf32>
    %16 = arith.addf %10, %15 : vector<1280x256xf32>
    %17 = vector.extract_strided_slice %5 {offsets = [0, 2], sizes = [1280, 1], strides = [1, 1]} : vector<1280x3xf32> to vector<1280x1xf32>
    %18 = vector.extract_strided_slice %4 {offsets = [2, 0], sizes = [1, 256], strides = [1, 1]} : vector<3x256xf32> to vector<1x256xf32>
    %19 = vector.broadcast %17 : vector<1280x1xf32> to vector<1280x256xf32>
    %20 = vector.broadcast %18 : vector<1x256xf32> to vector<1280x256xf32>
    %21 = arith.mulf %19, %20 : vector<1280x256xf32>
    %22 = arith.addf %16, %21 : vector<1280x256xf32>
    %c0_5 = arith.constant 0 : index
    %c0_6 = arith.constant 0 : index
    %23 = vector.load %arg4[%c0_5, %c0_6] : memref<1280x1xf32, #tpu.memory_space<vmem>>, vector<1280x1xf32>
    %24 = vector.broadcast %23 : vector<1280x1xf32> to vector<1280x256xf32>
    %25 = arith.addf %22, %24 : vector<1280x256xf32>
    %cst = arith.constant 0.000000e+00 : f32
    %cst_7 = arith.constant 6.000000e+00 : f32
    %26 = vector.broadcast %cst : f32 to vector<1280x256xf32>
    %27 = arith.maximumf %26, %25 : vector<1280x256xf32>
    %28 = vector.broadcast %cst_7 : f32 to vector<1280x256xf32>
    %29 = arith.minimumf %28, %27 : vector<1280x256xf32>
    %cst_8 = arith.constant 1.000000e+00 : f32
    %30 = vector.broadcast %cst_8 : f32 to vector<1x256xf32>
    %c0_9 = arith.constant 0 : index
    %c0_10 = arith.constant 0 : index
    %31 = vector.load %arg19[%c0_9, %c0_10] : memref<1x1280xf32, #tpu.memory_space<vmem>>, vector<1x1280xf32>
    %cst_11 = arith.constant dense<0.000000e+00> : vector<1x1280xf32>
    %32 = tpu.matmul %30, %29, %cst_11 {dimension_numbers = #tpu.dot_dimension_numbers<[1], [1], [0], [0], [0, 0, 1, 0], [], []>} : vector<1x256xf32>, vector<1280x256xf32>, vector<1x1280xf32> -> vector<1x1280xf32>
    %33 = arith.addf %31, %32 : vector<1x1280xf32>
    %c0_12 = arith.constant 0 : index
    %c0_13 = arith.constant 0 : index
    %34 = vector.load %arg19[%c0_12, %c0_13] : memref<1x1280xf32, #tpu.memory_space<vmem>>, vector<1x1280xf32>
    tpu.vector_store %arg19[%c0_12, %c0_13], %33 {strides = array<i32>} : memref<1x1280xf32, #tpu.memory_space<vmem>>, vector<1x1280xf32>,
    %c0_i32_14 = arith.constant 0 : i32
    %35 = arith.cmpi eq, %arg1, %c0_i32_14 : i32
    %36 = arith.extui %35 : i1 to i32
    %c0_i32_15 = arith.constant 0 : i32
    %37 = arith.cmpi ne, %36, %c0_i32_15 : i32
    scf.if %37 {
      %c0_16 = arith.constant 0 : index
      %c0_17 = arith.constant 0 : index
      %38 = vector.load %arg19[%c0_16, %c0_17] : memref<1x1280xf32, #tpu.memory_space<vmem>>, vector<1x1280xf32>
      %cst_18 = arith.constant 3.906250e-03 : f32
      %39 = vector.broadcast %cst_18 : f32 to vector<1x1280xf32>
      %40 = arith.mulf %38, %39 : vector<1x1280xf32>
      %c0_19 = arith.constant 0 : index
      %c0_20 = arith.constant 0 : index
      %41 = vector.load %arg8[%c0_19, %c0_20] : memref<1x1280xf32, #tpu.memory_space<vmem>>, vector<1x1280xf32>
      %cst_21 = arith.constant 1.000000e-03 : f32
      %42 = vector.broadcast %cst_21 : f32 to vector<1x1280xf32>
      %43 = arith.addf %41, %42 : vector<1x1280xf32>
      %44 = math.rsqrt %43 : vector<1x1280xf32>
      %c0_22 = arith.constant 0 : index
      %c0_23 = arith.constant 0 : index
      %45 = vector.load %arg7[%c0_22, %c0_23] : memref<1x1280xf32, #tpu.memory_space<vmem>>, vector<1x1280xf32>
      %46 = arith.subf %40, %45 : vector<1x1280xf32>
      %47 = arith.mulf %46, %44 : vector<1x1280xf32>
      %c0_24 = arith.constant 0 : index
      %c0_25 = arith.constant 0 : index
      %48 = vector.load %arg5[%c0_24, %c0_25] : memref<1x1280xf32, #tpu.memory_space<vmem>>, vector<1x1280xf32>
      %49 = arith.mulf %47, %48 : vector<1x1280xf32>
      %c0_26 = arith.constant 0 : index
      %c0_27 = arith.constant 0 : index
      %50 = vector.load %arg6[%c0_26, %c0_27] : memref<1x1280xf32, #tpu.memory_space<vmem>>, vector<1x1280xf32>
      %51 = arith.addf %49, %50 : vector<1x1280xf32>
      %52 = arith.index_cast %arg0 : i32 to index
      %c0_28 = arith.constant 0 : index
      %53 = vector.load %arg20[%52, %c0_28] : memref<4x1280xf32, #tpu.memory_space<vmem>>, vector<1x1280xf32>
      tpu.vector_store %arg20[%52, %c0_28], %51 {strides = array<i32>} : memref<4x1280xf32, #tpu.memory_space<vmem>>, vector<1x1280xf32>,
      %c3_i32 = arith.constant 3 : i32
      %54 = arith.cmpi eq, %arg0, %c3_i32 : i32
      %55 = arith.extui %54 : i1 to i32
      %c0_i32_29 = arith.constant 0 : i32
      %56 = arith.cmpi ne, %55, %c0_i32_29 : i32
      scf.if %56 {
        %c0_30 = arith.constant 0 : index
        %c0_31 = arith.constant 0 : index
        %57 = vector.load %arg9[%c0_30, %c0_31] : memref<2x8xf32, #tpu.memory_space<vmem>>, vector<2x8xf32>
        %c0_32 = arith.constant 0 : index
        %c0_33 = arith.constant 0 : index
        %58 = vector.load %arg10[%c0_32, %c0_33] : memref<8x32xf32, #tpu.memory_space<vmem>>, vector<8x32xf32>
        %cst_34 = arith.constant dense<0.000000e+00> : vector<2x32xf32>
        %59 = tpu.matmul %57, %58, %cst_34 {dimension_numbers = #tpu.dot_dimension_numbers<[1], [0], [0], [1], [0, 0, 1, 1], [], []>} : vector<2x8xf32>, vector<8x32xf32>, vector<2x32xf32> -> vector<2x32xf32>
        %c0_35 = arith.constant 0 : index
        %c0_36 = arith.constant 0 : index
        %60 = vector.load %arg11[%c0_35, %c0_36] : memref<1x32xf32, #tpu.memory_space<vmem>>, vector<1x32xf32>
        %61 = vector.broadcast %60 : vector<1x32xf32> to vector<2x32xf32>
        %62 = arith.addf %59, %61 : vector<2x32xf32>
        %cst_37 = arith.constant 0.000000e+00 : f32
        %63 = vector.broadcast %cst_37 : f32 to vector<2x32xf32>
        %64 = arith.maximumf %62, %63 : vector<2x32xf32>
        %c0_38 = arith.constant 0 : index
        %c0_39 = arith.constant 0 : index
        %65 = vector.load %arg15[%c0_38, %c0_39] : memref<1x32xf32, #tpu.memory_space<vmem>>, vector<1x32xf32>
        %cst_40 = arith.constant 1.000000e-03 : f32
        %66 = vector.broadcast %cst_40 : f32 to vector<1x32xf32>
        %67 = arith.addf %65, %66 : vector<1x32xf32>
        %68 = math.rsqrt %67 : vector<1x32xf32>
        %c0_41 = arith.constant 0 : index
        %c0_42 = arith.constant 0 : index
        %69 = vector.load %arg14[%c0_41, %c0_42] : memref<1x32xf32, #tpu.memory_space<vmem>>, vector<1x32xf32>
        %70 = vector.broadcast %69 : vector<1x32xf32> to vector<2x32xf32>
        %71 = arith.subf %64, %70 : vector<2x32xf32>
        %72 = vector.broadcast %68 : vector<1x32xf32> to vector<2x32xf32>
        %73 = arith.mulf %71, %72 : vector<2x32xf32>
        %c0_43 = arith.constant 0 : index
        %c0_44 = arith.constant 0 : index
        %74 = vector.load %arg12[%c0_43, %c0_44] : memref<1x32xf32, #tpu.memory_space<vmem>>, vector<1x32xf32>
        %75 = vector.broadcast %74 : vector<1x32xf32> to vector<2x32xf32>
        %76 = arith.mulf %73, %75 : vector<2x32xf32>
        %c0_45 = arith.constant 0 : index
        %c0_46 = arith.constant 0 : index
        %77 = vector.load %arg13[%c0_45, %c0_46] : memref<1x32xf32, #tpu.memory_space<vmem>>, vector<1x32xf32>
        %78 = vector.broadcast %77 : vector<1x32xf32> to vector<2x32xf32>
        %79 = arith.addf %76, %78 : vector<2x32xf32>
        %c0_47 = arith.constant 0 : index
        %c0_48 = arith.constant 0 : index
        %80 = vector.load %arg20[%c0_47, %c0_48] : memref<4x1280xf32, #tpu.memory_space<vmem>>, vector<2x1280xf32>
        %c2 = arith.constant 2 : index
        %c0_49 = arith.constant 0 : index
        %81 = vector.load %arg20[%c2, %c0_49] : memref<4x1280xf32, #tpu.memory_space<vmem>>, vector<2x1280xf32>
        %c0_50 = arith.constant 0 : index
        %c0_51 = arith.constant 0 : index
        %82 = vector.load %arg16[%c0_50, %c0_51] : memref<2592x128xf32, #tpu.memory_space<vmem>>, vector<1280x128xf32>
        %cst_52 = arith.constant dense<0.000000e+00> : vector<2x128xf32>
        %83 = tpu.matmul %80, %82, %cst_52 {dimension_numbers = #tpu.dot_dimension_numbers<[1], [0], [0], [1], [0, 0, 1, 1], [], []>} : vector<2x1280xf32>, vector<1280x128xf32>, vector<2x128xf32> -> vector<2x128xf32>
        %c1280 = arith.constant 1280 : index
        %c0_53 = arith.constant 0 : index
        %84 = vector.load %arg16[%c1280, %c0_53] : memref<2592x128xf32, #tpu.memory_space<vmem>>, vector<1280x128xf32>
        %cst_54 = arith.constant dense<0.000000e+00> : vector<2x128xf32>
        %85 = tpu.matmul %81, %84, %cst_54 {dimension_numbers = #tpu.dot_dimension_numbers<[1], [0], [0], [1], [0, 0, 1, 1], [], []>} : vector<2x1280xf32>, vector<1280x128xf32>, vector<2x128xf32> -> vector<2x128xf32>
        %86 = arith.addf %83, %85 : vector<2x128xf32>
        %c2560 = arith.constant 2560 : index
        %c0_55 = arith.constant 0 : index
        %87 = vector.load %arg16[%c2560, %c0_55] : memref<2592x128xf32, #tpu.memory_space<vmem>>, vector<32x128xf32>
        %cst_56 = arith.constant dense<0.000000e+00> : vector<2x128xf32>
        %88 = tpu.matmul %79, %87, %cst_56 {dimension_numbers = #tpu.dot_dimension_numbers<[1], [0], [0], [1], [0, 0, 1, 1], [], []>} : vector<2x32xf32>, vector<32x128xf32>, vector<2x128xf32> -> vector<2x128xf32>
        %89 = arith.addf %86, %88 : vector<2x128xf32>
        %c0_57 = arith.constant 0 : index
        %c0_58 = arith.constant 0 : index
        %90 = vector.load %arg17[%c0_57, %c0_58] : memref<1x128xf32, #tpu.memory_space<vmem>>, vector<1x128xf32>
        %91 = vector.broadcast %90 : vector<1x128xf32> to vector<2x128xf32>
        %92 = arith.addf %89, %91 : vector<2x128xf32>
        %c0_59 = arith.constant 0 : index
        %c0_60 = arith.constant 0 : index
        %93 = vector.load %arg18[%c0_59, %c0_60] : memref<2x128xf32, #tpu.memory_space<vmem>>, vector<2x128xf32>
        tpu.vector_store %arg18[%c0_59, %c0_60], %92 {strides = array<i32>} : memref<2x128xf32, #tpu.memory_space<vmem>>, vector<2x128xf32>,
      } else {
      }
    } else {
    }
    return
  }
  func.func @transform_0(%arg0: i32, %arg1: i32) -> (i32, i32, i32) {
    %c0_i32 = arith.constant 0 : i32
    %c0_i32_0 = arith.constant 0 : i32
    return %arg0, %c0_i32, %arg1 : i32, i32, i32
  }
  func.func @transform_1(%arg0: i32, %arg1: i32) -> (i32, i32) {
    %c0_i32 = arith.constant 0 : i32
    %c0_i32_0 = arith.constant 0 : i32
    %c0_i32_1 = arith.constant 0 : i32
    return %c0_i32, %c0_i32_0 : i32, i32
  }
  func.func @transform_2(%arg0: i32, %arg1: i32) -> (i32, i32) {
    %c0_i32 = arith.constant 0 : i32
    %c0_i32_0 = arith.constant 0 : i32
    %c0_i32_1 = arith.constant 0 : i32
    return %c0_i32, %c0_i32_0 : i32, i32
  }
  func.func @transform_3(%arg0: i32, %arg1: i32) -> (i32, i32) {
    %c0_i32 = arith.constant 0 : i32
    %c0_i32_0 = arith.constant 0 : i32
    %c0_i32_1 = arith.constant 0 : i32
    return %c0_i32, %c0_i32_0 : i32, i32
  }
  func.func @transform_4(%arg0: i32, %arg1: i32) -> (i32, i32) {
    %c0_i32 = arith.constant 0 : i32
    %c0_i32_0 = arith.constant 0 : i32
    %c0_i32_1 = arith.constant 0 : i32
    return %c0_i32, %c0_i32_0 : i32, i32
  }
  func.func @transform_5(%arg0: i32, %arg1: i32) -> (i32, i32) {
    %c0_i32 = arith.constant 0 : i32
    %c0_i32_0 = arith.constant 0 : i32
    %c0_i32_1 = arith.constant 0 : i32
    return %c0_i32, %c0_i32_0 : i32, i32
  }
  func.func @transform_6(%arg0: i32, %arg1: i32) -> (i32, i32) {
    %c0_i32 = arith.constant 0 : i32
    %c0_i32_0 = arith.constant 0 : i32
    %c0_i32_1 = arith.constant 0 : i32
    return %c0_i32, %c0_i32_0 : i32, i32
  }
  func.func @transform_7(%arg0: i32, %arg1: i32) -> (i32, i32) {
    %c0_i32 = arith.constant 0 : i32
    %c0_i32_0 = arith.constant 0 : i32
    %c0_i32_1 = arith.constant 0 : i32
    return %c0_i32, %c0_i32_0 : i32, i32
  }
  func.func @transform_8(%arg0: i32, %arg1: i32) -> (i32, i32) {
    %c0_i32 = arith.constant 0 : i32
    %c0_i32_0 = arith.constant 0 : i32
    %c0_i32_1 = arith.constant 0 : i32
    return %c0_i32, %c0_i32_0 : i32, i32
  }
  func.func @transform_9(%arg0: i32, %arg1: i32) -> (i32, i32) {
    %c0_i32 = arith.constant 0 : i32
    %c0_i32_0 = arith.constant 0 : i32
    %c0_i32_1 = arith.constant 0 : i32
    return %c0_i32, %c0_i32_0 : i32, i32
  }
  func.func @transform_10(%arg0: i32, %arg1: i32) -> (i32, i32) {
    %c0_i32 = arith.constant 0 : i32
    %c0_i32_0 = arith.constant 0 : i32
    %c0_i32_1 = arith.constant 0 : i32
    return %c0_i32, %c0_i32_0 : i32, i32
  }
  func.func @transform_11(%arg0: i32, %arg1: i32) -> (i32, i32) {
    %c0_i32 = arith.constant 0 : i32
    %c0_i32_0 = arith.constant 0 : i32
    %c0_i32_1 = arith.constant 0 : i32
    return %c0_i32, %c0_i32_0 : i32, i32
  }
  func.func @transform_12(%arg0: i32, %arg1: i32) -> (i32, i32) {
    %c0_i32 = arith.constant 0 : i32
    %c0_i32_0 = arith.constant 0 : i32
    %c0_i32_1 = arith.constant 0 : i32
    return %c0_i32, %c0_i32_0 : i32, i32
  }
  func.func @transform_13(%arg0: i32, %arg1: i32) -> (i32, i32) {
    %c0_i32 = arith.constant 0 : i32
    %c0_i32_0 = arith.constant 0 : i32
    %c0_i32_1 = arith.constant 0 : i32
    return %c0_i32, %c0_i32_0 : i32, i32
  }
  func.func @transform_14(%arg0: i32, %arg1: i32) -> (i32, i32) {
    %c0_i32 = arith.constant 0 : i32
    %c0_i32_0 = arith.constant 0 : i32
    %c0_i32_1 = arith.constant 0 : i32
    return %c0_i32, %c0_i32_0 : i32, i32
  }
  func.func @transform_15(%arg0: i32, %arg1: i32) -> (i32, i32) {
    %c0_i32 = arith.constant 0 : i32
    %c0_i32_0 = arith.constant 0 : i32
    %c0_i32_1 = arith.constant 0 : i32
    return %c0_i32, %c0_i32_0 : i32, i32
  }
  func.func @transform_16(%arg0: i32, %arg1: i32) -> (i32, i32) {
    %c0_i32 = arith.constant 0 : i32
    %c0_i32_0 = arith.constant 0 : i32
    %c0_i32_1 = arith.constant 0 : i32
    return %c0_i32, %c0_i32_0 : i32, i32
  }
}

</mosaic_0001>

<llo_original>
// kernel: multi_input_forward.1
$region0: #{multi_input_forward.1}
  #allocation0 [shape = 'u32[]', space=smem, size = 0x4, offset = 0x4, fixed_abs, tag = 'smem constant byte address 0x4 - core index']
  #allocation1 [shape = 'u32[144,128]{1,0:T(1,128)}', space=vmem, size = 0x12000, scoped, tag = 'internal scratch']
  #allocation2 [shape = 'f32[1,1280]{1,0:T(1,128)}', space=vmem, size = 0x1400, scoped, tag = 'scratch operand']
  #allocation3 [shape = 'f32[4,1280]{1,0:T(4,128)}', space=vmem, size = 0x5000, scoped, tag = 'scratch operand']
  %s0 = inlined_call_operand.vmem [shape: f32[4,3,256], index: 0, kind: input, shape index: {}]
  %s1 = inlined_call_operand.vmem [shape: f32[1280,3], index: 1, kind: input, shape index: {}]
  %s2 = inlined_call_operand.vmem [shape: f32[1280,1], index: 2, kind: input, shape index: {}]
  %s3 = inlined_call_operand.vmem [shape: f32[1,1280], index: 3, kind: input, shape index: {}]
  %s4 = inlined_call_operand.vmem [shape: f32[1,1280], index: 4, kind: input, shape index: {}]
  %s5 = inlined_call_operand.vmem [shape: f32[1,1280], index: 5, kind: input, shape index: {}]
  %s6 = inlined_call_operand.vmem [shape: f32[1,1280], index: 6, kind: input, shape index: {}]
  %s7 = inlined_call_operand.vmem [shape: f32[2,8], index: 7, kind: input, shape index: {}]
  %s8 = inlined_call_operand.vmem [shape: f32[8,32], index: 8, kind: input, shape index: {}]
  %s9 = inlined_call_operand.vmem [shape: f32[1,32], index: 9, kind: input, shape index: {}]
  %s10 = inlined_call_operand.vmem [shape: f32[1,32], index: 10, kind: input, shape index: {}]
  %s11 = inlined_call_operand.vmem [shape: f32[1,32], index: 11, kind: input, shape index: {}]
  %s12 = inlined_call_operand.vmem [shape: f32[1,32], index: 12, kind: input, shape index: {}]
  %s13 = inlined_call_operand.vmem [shape: f32[1,32], index: 13, kind: input, shape index: {}]
  %s14 = inlined_call_operand.vmem [shape: f32[2592,128], index: 14, kind: input, shape index: {}]
  %s15 = inlined_call_operand.vmem [shape: f32[1,128], index: 15, kind: input, shape index: {}]
  %s16 = inlined_call_operand.vmem [shape: f32[2,128], index: 16, kind: output, shape index: {}]
  %s17 = sld [smem:[#allocation0]]
  $region109: #{multi_input_forward.1} parent=0
    _
  %s19 = ssub.s32 1, %s17
  %s20 = scalar_select 0, %s19, %s17
  loop: start=0, step=1, limit=6
  $region2: #{multi_input_forward.1} parent=0 // loop_pre_header
    _
  $region3: #{multi_input_forward.1} parent=0 // loop_header
    %s22 = sphi 0, %s26
    %p23 = scmp.ge.s32.totalorder %s22, 6
    %s29 = sphi 0, %s41
    %s30 = sphi 0, %s37
    %s31 = sphi 0, %s29
    %s32 = sphi 0, %s30
    %s33 = sphi 0, %s31
    %s34 = sphi 0, %s32
    %s46 = sphi 0, %s48
    %s49 = sphi 0, %s46
    %s50 = sphi 0, %s49
    %s66 = sphi 0, %s50
    %s70 = sphi 0, %s70
    %s72 = sphi 0, %s70
    %s73 = sphi 0, %s72
    %s87 = sphi 0, %s73
    %s91 = sphi 0, %s91
    %s93 = sphi 0, %s91
    %s94 = sphi 0, %s93
    %s108 = sphi 0, %s94
    %s112 = sphi 0, %s112
    %s114 = sphi 0, %s112
    %s115 = sphi 0, %s114
    %s129 = sphi 0, %s115
    %s133 = sphi 0, %s133
    %s135 = sphi 0, %s133
    %s136 = sphi 0, %s135
    %s150 = sphi 0, %s136
    %s154 = sphi 0, %s154
    %s156 = sphi 0, %s154
    %s157 = sphi 0, %s156
    %s171 = sphi 0, %s157
    %s175 = sphi 0, %s175
    %s177 = sphi 0, %s175
    %s178 = sphi 0, %s177
    %s192 = sphi 0, %s178
    %s196 = sphi 0, %s196
    %s198 = sphi 0, %s196
    %s199 = sphi 0, %s198
    %s213 = sphi 0, %s199
    %s217 = sphi 0, %s217
    %s219 = sphi 0, %s217
    %s220 = sphi 0, %s219
    %s234 = sphi 0, %s220
    %s238 = sphi 0, %s238
    %s240 = sphi 0, %s238
    %s241 = sphi 0, %s240
    %s255 = sphi 0, %s241
    %s259 = sphi 0, %s259
    %s261 = sphi 0, %s259
    %s262 = sphi 0, %s261
    %s276 = sphi 0, %s262
    %s280 = sphi 0, %s280
    %s282 = sphi 0, %s280
    %s283 = sphi 0, %s282
    %s297 = sphi 0, %s283
    %s301 = sphi 0, %s301
    %s303 = sphi 0, %s301
    %s304 = sphi 0, %s303
    %s318 = sphi 0, %s304
    %s322 = sphi 0, %s322
    %s324 = sphi 0, %s322
    %s325 = sphi 0, %s324
    %s339 = sphi 0, %s325
    %s343 = sphi 0, %s343
    %s345 = sphi 0, %s343
    %s346 = sphi 0, %s345
    %s360 = sphi 0, %s346
    %s364 = sphi 0, %s364
    %s366 = sphi 0, %s364
    %s367 = sphi 0, %s366
    %s381 = sphi 0, %s367
    %s385 = sphi 0, %s385
    %s387 = sphi 0, %s385
    %s388 = sphi 0, %s387
    %s402 = sphi 0, %s388
  $region4: #{multi_input_forward.1} parent=0 // loop_header_branch
    %25 = sbr.rel (%p23) target = $region8
  $region5: #{multi_input_forward.1} parent=0 // loop_body
    %s27 = ssub.s32 %s22, 1
    %s28 = ssub.s32 %s22, 2
    %s35 = sadd.s32 1, %s30
    %p36 = scmp.ge.s32.totalorder %s35, 1
    %s37 = scalar_select %p36, 0, %s35
    %s38 = sadd.s32 1, %s29
    %s39 = scalar_select %p36, %s38, %s29
    %p40 = scmp.ge.s32.totalorder %s39, 4
    %s41 = scalar_select %p40, 0, %s39
    %s42 = ssub.s32 %s29, %s41
    %s43 = ssub.s32 %s30, %s37
    %s44 = sor.u32 %s42, %s43
    %p45 = scmp.eq.s32.totalorder %s44, 0
    %s47 = sadd.s32 %s46, 1
    %s48 = scalar_select %p45, %s46, %s47
    %p51 = pneg %p45
    %p52 = scmp.eq.s32.totalorder %s22, 3
    %p53 = por %p51, %p52
    %p54 = scmp.ne.s32.totalorder %s46, %s49
    %p55 = scmp.eq.s32.totalorder %s22, 0
    %p56 = por %p54, %p55
    %p57 = scmp.ne.s32.totalorder %s46, %s49
    %p58 = scmp.eq.s32.totalorder %s27, 3
    %p59 = por %p57, %p58
    %p60 = scmp.ne.s32.totalorder %s49, %s50
    %p61 = scmp.eq.s32.totalorder %s27, 0
    %p62 = por %p60, %p61
    %p63 = scmp.ne.s32.totalorder %s49, %s50
    %p64 = scmp.eq.s32.totalorder %s28, 3
    %p65 = por %p63, %p64
    %p67 = scmp.ne.s32.totalorder %s50, %s66
    %p68 = scmp.eq.s32.totalorder %s28, 0
    %p69 = por %p67, %p68
    %s71 = sadd.s32 %s70, 1
    %p74 = scmp.eq.s32.totalorder %s22, 3
    %p75 = scmp.ne.s32.totalorder %s70, %s72
    %p76 = scmp.eq.s32.totalorder %s22, 0
    %p77 = por %p75, %p76
    %p78 = scmp.ne.s32.totalorder %s70, %s72
    %p79 = scmp.eq.s32.totalorder %s27, 3
    %p80 = por %p78, %p79
    %p81 = scmp.ne.s32.totalorder %s72, %s73
    %p82 = scmp.eq.s32.totalorder %s27, 0
    %p83 = por %p81, %p82
    %p84 = scmp.ne.s32.totalorder %s72, %s73
    %p85 = scmp.eq.s32.totalorder %s28, 3
    %p86 = por %p84, %p85
    %p88 = scmp.ne.s32.totalorder %s73, %s87
    %p89 = scmp.eq.s32.totalorder %s28, 0
    %p90 = por %p88, %p89
    %s92 = sadd.s32 %s91, 1
    %p95 = scmp.eq.s32.totalorder %s22, 3
    %p96 = scmp.ne.s32.totalorder %s91, %s93
    %p97 = scmp.eq.s32.totalorder %s22, 0
    %p98 = por %p96, %p97
    %p99 = scmp.ne.s32.totalorder %s91, %s93
    %p100 = scmp.eq.s32.totalorder %s27, 3
    %p101 = por %p99, %p100
    %p102 = scmp.ne.s32.totalorder %s93, %s94
    %p103 = scmp.eq.s32.totalorder %s27, 0
    %p104 = por %p102, %p103
    %p105 = scmp.ne.s32.totalorder %s93, %s94
    %p106 = scmp.eq.s32.totalorder %s28, 3
    %p107 = por %p105, %p106
    %p109 = scmp.ne.s32.totalorder %s94, %s108
    %p110 = scmp.eq.s32.totalorder %s28, 0
    %p111 = por %p109, %p110
    %s113 = sadd.s32 %s112, 1
    %p116 = scmp.eq.s32.totalorder %s22, 3
    %p117 = scmp.ne.s32.totalorder %s112, %s114
    %p118 = scmp.eq.s32.totalorder %s22, 0
    %p119 = por %p117, %p118
    %p120 = scmp.ne.s32.totalorder %s112, %s114
    %p121 = scmp.eq.s32.totalorder %s27, 3
    %p122 = por %p120, %p121
    %p123 = scmp.ne.s32.totalorder %s114, %s115
    %p124 = scmp.eq.s32.totalorder %s27, 0
    %p125 = por %p123, %p124
    %p126 = scmp.ne.s32.totalorder %s114, %s115
    %p127 = scmp.eq.s32.totalorder %s28, 3
    %p128 = por %p126, %p127
    %p130 = scmp.ne.s32.totalorder %s115, %s129
    %p131 = scmp.eq.s32.totalorder %s28, 0
    %p132 = por %p130, %p131
    %s134 = sadd.s32 %s133, 1
    %p137 = scmp.eq.s32.totalorder %s22, 3
    %p138 = scmp.ne.s32.totalorder %s133, %s135
    %p139 = scmp.eq.s32.totalorder %s22, 0
    %p140 = por %p138, %p139
    %p141 = scmp.ne.s32.totalorder %s133, %s135
    %p142 = scmp.eq.s32.totalorder %s27, 3
    %p143 = por %p141, %p142
    %p144 = scmp.ne.s32.totalorder %s135, %s136
    %p145 = scmp.eq.s32.totalorder %s27, 0
    %p146 = por %p144, %p145
    %p147 = scmp.ne.s32.totalorder %s135, %s136
    %p148 = scmp.eq.s32.totalorder %s28, 3
    %p149 = por %p147, %p148
    %p151 = scmp.ne.s32.totalorder %s136, %s150
    %p152 = scmp.eq.s32.totalorder %s28, 0
    %p153 = por %p151, %p152
    %s155 = sadd.s32 %s154, 1
    %p158 = scmp.eq.s32.totalorder %s22, 3
    %p159 = scmp.ne.s32.totalorder %s154, %s156
    %p160 = scmp.eq.s32.totalorder %s22, 0
    %p161 = por %p159, %p160
    %p162 = scmp.ne.s32.totalorder %s154, %s156
    %p163 = scmp.eq.s32.totalorder %s27, 3
    %p164 = por %p162, %p163
    %p165 = scmp.ne.s32.totalorder %s156, %s157
    %p166 = scmp.eq.s32.totalorder %s27, 0
    %p167 = por %p165, %p166
    %p168 = scmp.ne.s32.totalorder %s156, %s157
    %p169 = scmp.eq.s32.totalorder %s28, 3
    %p170 = por %p168, %p169
    %p172 = scmp.ne.s32.totalorder %s157, %s171
    %p173 = scmp.eq.s32.totalorder %s28, 0
    %p174 = por %p172, %p173
    %s176 = sadd.s32 %s175, 1
    %p179 = scmp.eq.s32.totalorder %s22, 3
    %p180 = scmp.ne.s32.totalorder %s175, %s177
    %p181 = scmp.eq.s32.totalorder %s22, 0
    %p182 = por %p180, %p181
    %p183 = scmp.ne.s32.totalorder %s175, %s177
    %p184 = scmp.eq.s32.totalorder %s27, 3
    %p185 = por %p183, %p184
    %p186 = scmp.ne.s32.totalorder %s177, %s178
    %p187 = scmp.eq.s32.totalorder %s27, 0
    %p188 = por %p186, %p187
    %p189 = scmp.ne.s32.totalorder %s177, %s178
    %p190 = scmp.eq.s32.totalorder %s28, 3
    %p191 = por %p189, %p190
    %p193 = scmp.ne.s32.totalorder %s178, %s192
    %p194 = scmp.eq.s32.totalorder %s28, 0
    %p195 = por %p193, %p194
    %s197 = sadd.s32 %s196, 1
    %p200 = scmp.eq.s32.totalorder %s22, 3
    %p201 = scmp.ne.s32.totalorder %s196, %s198
    %p202 = scmp.eq.s32.totalorder %s22, 0
    %p203 = por %p201, %p202
    %p204 = scmp.ne.s32.totalorder %s196, %s198
    %p205 = scmp.eq.s32.totalorder %s27, 3
    %p206 = por %p204, %p205
    %p207 = scmp.ne.s32.totalorder %s198, %s199
    %p208 = scmp.eq.s32.totalorder %s27, 0
    %p209 = por %p207, %p208
    %p210 = scmp.ne.s32.totalorder %s198, %s199
    %p211 = scmp.eq.s32.totalorder %s28, 3
    %p212 = por %p210, %p211
    %p214 = scmp.ne.s32.totalorder %s199, %s213
    %p215 = scmp.eq.s32.totalorder %s28, 0
    %p216 = por %p214, %p215
    %s218 = sadd.s32 %s217, 1
    %p221 = scmp.eq.s32.totalorder %s22, 3
    %p222 = scmp.ne.s32.totalorder %s217, %s219
    %p223 = scmp.eq.s32.totalorder %s22, 0
    %p224 = por %p222, %p223
    %p225 = scmp.ne.s32.totalorder %s217, %s219
    %p226 = scmp.eq.s32.totalorder %s27, 3
    %p227 = por %p225, %p226
    %p228 = scmp.ne.s32.totalorder %s219, %s220
    %p229 = scmp.eq.s32.totalorder %s27, 0
    %p230 = por %p228, %p229
    %p231 = scmp.ne.s32.totalorder %s219, %s220
    %p232 = scmp.eq.s32.totalorder %s28, 3
    %p233 = por %p231, %p232
    %p235 = scmp.ne.s32.totalorder %s220, %s234
    %p236 = scmp.eq.s32.totalorder %s28, 0
    %p237 = por %p235, %p236
    %s239 = sadd.s32 %s238, 1
    %p242 = scmp.eq.s32.totalorder %s22, 3
    %p243 = scmp.ne.s32.totalorder %s238, %s240
    %p244 = scmp.eq.s32.totalorder %s22, 0
    %p245 = por %p243, %p244
    %p246 = scmp.ne.s32.totalorder %s238, %s240
    %p247 = scmp.eq.s32.totalorder %s27, 3
    %p248 = por %p246, %p247
    %p249 = scmp.ne.s32.totalorder %s240, %s241
    %p250 = scmp.eq.s32.totalorder %s27, 0
    %p251 = por %p249, %p250
    %p252 = scmp.ne.s32.totalorder %s240, %s241
    %p253 = scmp.eq.s32.totalorder %s28, 3
    %p254 = por %p252, %p253
    %p256 = scmp.ne.s32.totalorder %s241, %s255
    %p257 = scmp.eq.s32.totalorder %s28, 0
    %p258 = por %p256, %p257
    %s260 = sadd.s32 %s259, 1
    %p263 = scmp.eq.s32.totalorder %s22, 3
    %p264 = scmp.ne.s32.totalorder %s259, %s261
    %p265 = scmp.eq.s32.totalorder %s22, 0
    %p266 = por %p264, %p265
    %p267 = scmp.ne.s32.totalorder %s259, %s261
    %p268 = scmp.eq.s32.totalorder %s27, 3
    %p269 = por %p267, %p268
    %p270 = scmp.ne.s32.totalorder %s261, %s262
    %p271 = scmp.eq.s32.totalorder %s27, 0
    %p272 = por %p270, %p271
    %p273 = scmp.ne.s32.totalorder %s261, %s262
    %p274 = scmp.eq.s32.totalorder %s28, 3
    %p275 = por %p273, %p274
    %p277 = scmp.ne.s32.totalorder %s262, %s276
    %p278 = scmp.eq.s32.totalorder %s28, 0
    %p279 = por %p277, %p278
    %s281 = sadd.s32 %s280, 1
    %p284 = scmp.eq.s32.totalorder %s22, 3
    %p285 = scmp.ne.s32.totalorder %s280, %s282
    %p286 = scmp.eq.s32.totalorder %s22, 0
    %p287 = por %p285, %p286
    %p288 = scmp.ne.s32.totalorder %s280, %s282
    %p289 = scmp.eq.s32.totalorder %s27, 3
    %p290 = por %p288, %p289
    %p291 = scmp.ne.s32.totalorder %s282, %s283
    %p292 = scmp.eq.s32.totalorder %s27, 0
    %p293 = por %p291, %p292
    %p294 = scmp.ne.s32.totalorder %s282, %s283
    %p295 = scmp.eq.s32.totalorder %s28, 3
    %p296 = por %p294, %p295
    %p298 = scmp.ne.s32.totalorder %s283, %s297
    %p299 = scmp.eq.s32.totalorder %s28, 0
    %p300 = por %p298, %p299
    %s302 = sadd.s32 %s301, 1
    %p305 = scmp.eq.s32.totalorder %s22, 3
    %p306 = scmp.ne.s32.totalorder %s301, %s303
    %p307 = scmp.eq.s32.totalorder %s22, 0
    %p308 = por %p306, %p307
    %p309 = scmp.ne.s32.totalorder %s301, %s303
    %p310 = scmp.eq.s32.totalorder %s27, 3
    %p311 = por %p309, %p310
    %p312 = scmp.ne.s32.totalorder %s303, %s304
    %p313 = scmp.eq.s32.totalorder %s27, 0
    %p314 = por %p312, %p313
    %p315 = scmp.ne.s32.totalorder %s303, %s304
    %p316 = scmp.eq.s32.totalorder %s28, 3
    %p317 = por %p315, %p316
    %p319 = scmp.ne.s32.totalorder %s304, %s318
    %p320 = scmp.eq.s32.totalorder %s28, 0
    %p321 = por %p319, %p320
    %s323 = sadd.s32 %s322, 1
    %p326 = scmp.eq.s32.totalorder %s22, 3
    %p327 = scmp.ne.s32.totalorder %s322, %s324
    %p328 = scmp.eq.s32.totalorder %s22, 0
    %p329 = por %p327, %p328
    %p330 = scmp.ne.s32.totalorder %s322, %s324
    %p331 = scmp.eq.s32.totalorder %s27, 3
    %p332 = por %p330, %p331
    %p333 = scmp.ne.s32.totalorder %s324, %s325
    %p334 = scmp.eq.s32.totalorder %s27, 0
    %p335 = por %p333, %p334
    %p336 = scmp.ne.s32.totalorder %s324, %s325
    %p337 = scmp.eq.s32.totalorder %s28, 3
    %p338 = por %p336, %p337
    %p340 = scmp.ne.s32.totalorder %s325, %s339
    %p341 = scmp.eq.s32.totalorder %s28, 0
    %p342 = por %p340, %p341
    %s344 = sadd.s32 %s343, 1
    %p347 = scmp.eq.s32.totalorder %s22, 3
    %p348 = scmp.ne.s32.totalorder %s343, %s345
    %p349 = scmp.eq.s32.totalorder %s22, 0
    %p350 = por %p348, %p349
    %p351 = scmp.ne.s32.totalorder %s343, %s345
    %p352 = scmp.eq.s32.totalorder %s27, 3
    %p353 = por %p351, %p352
    %p354 = scmp.ne.s32.totalorder %s345, %s346
    %p355 = scmp.eq.s32.totalorder %s27, 0
    %p356 = por %p354, %p355
    %p357 = scmp.ne.s32.totalorder %s345, %s346
    %p358 = scmp.eq.s32.totalorder %s28, 3
    %p359 = por %p357, %p358
    %p361 = scmp.ne.s32.totalorder %s346, %s360
    %p362 = scmp.eq.s32.totalorder %s28, 0
    %p363 = por %p361, %p362
    %s365 = sadd.s32 %s364, 1
    %p368 = scmp.eq.s32.totalorder %s22, 3
    %p369 = scmp.ne.s32.totalorder %s364, %s366
    %p370 = scmp.eq.s32.totalorder %s22, 0
    %p371 = por %p369, %p370
    %p372 = scmp.ne.s32.totalorder %s364, %s366
    %p373 = scmp.eq.s32.totalorder %s27, 3
    %p374 = por %p372, %p373
    %p375 = scmp.ne.s32.totalorder %s366, %s367
    %p376 = scmp.eq.s32.totalorder %s27, 0
    %p377 = por %p375, %p376
    %p378 = scmp.ne.s32.totalorder %s366, %s367
    %p379 = scmp.eq.s32.totalorder %s28, 3
    %p380 = por %p378, %p379
    %p382 = scmp.ne.s32.totalorder %s367, %s381
    %p383 = scmp.eq.s32.totalorder %s28, 0
    %p384 = por %p382, %p383
    %s386 = sadd.s32 %s385, 1
    %p389 = scmp.eq.s32.totalorder %s22, 3
    %p390 = scmp.ne.s32.totalorder %s385, %s387
    %p391 = scmp.eq.s32.totalorder %s22, 0
    %p392 = por %p390, %p391
    %p393 = scmp.ne.s32.totalorder %s385, %s387
    %p394 = scmp.eq.s32.totalorder %s27, 3
    %p395 = por %p393, %p394
    %p396 = scmp.ne.s32.totalorder %s387, %s388
    %p397 = scmp.eq.s32.totalorder %s27, 0
    %p398 = por %p396, %p397
    %p399 = scmp.ne.s32.totalorder %s387, %s388
    %p400 = scmp.eq.s32.totalorder %s28, 3
    %p401 = por %p399, %p400
    %p403 = scmp.ne.s32.totalorder %s388, %s402
    %p404 = scmp.eq.s32.totalorder %s28, 0
    %p405 = por %p403, %p404
    %p406 = scmp.le.s32.totalorder 1, %s22
    %p407 = scmp.lt.s32.totalorder %s22, 5
    %p408 = pnand %p406, %p407
    %p409 = pneg %p408
    // Predicated region
    $region9: #{multi_input_forward.1} parent=5 // pred_check
      _
    $region10: #{multi_input_forward.1} parent=5 // pred_check_branch
      %411 = sbr.rel (%p408) target = $region12
    $region11: #{multi_input_forward.1} parent=5 // pred_region
      %s412 = ssub.s32 %s22, 1
      // Predicated region
      $region13: #{multi_input_forward.1} parent=11 // pred_check
        %p413 = pneg %p83
      $region14: #{multi_input_forward.1} parent=11 // pred_check_branch
        %415 = sbr.rel (%p413) target = $region16
      $region15: #{multi_input_forward.1} parent=11 // pred_region
        _
      $region16: #{multi_input_forward.1} parent=11 // pred_fallthru
        _
      // Predicated region
      $region17: #{multi_input_forward.1} parent=11 // pred_check
        %p416 = pneg %p104
      $region18: #{multi_input_forward.1} parent=11 // pred_check_branch
        %418 = sbr.rel (%p416) target = $region20
      $region19: #{multi_input_forward.1} parent=11 // pred_region
        _
      $region20: #{multi_input_forward.1} parent=11 // pred_fallthru
        _
      // Predicated region
      $region21: #{multi_input_forward.1} parent=11 // pred_check
        %p419 = pneg %p125
      $region22: #{multi_input_forward.1} parent=11 // pred_check_branch
        %421 = sbr.rel (%p419) target = $region24
      $region23: #{multi_input_forward.1} parent=11 // pred_region
        _
      $region24: #{multi_input_forward.1} parent=11 // pred_fallthru
        _
      // Predicated region
      $region25: #{multi_input_forward.1} parent=11 // pred_check
        %p422 = pneg %p146
      $region26: #{multi_input_forward.1} parent=11 // pred_check_branch
        %424 = sbr.rel (%p422) target = $region28
      $region27: #{multi_input_forward.1} parent=11 // pred_region
        _
      $region28: #{multi_input_forward.1} parent=11 // pred_fallthru
        _
      // Predicated region
      $region29: #{multi_input_forward.1} parent=11 // pred_check
        %p425 = pneg %p167
      $region30: #{multi_input_forward.1} parent=11 // pred_check_branch
        %427 = sbr.rel (%p425) target = $region32
      $region31: #{multi_input_forward.1} parent=11 // pred_region
        _
      $region32: #{multi_input_forward.1} parent=11 // pred_fallthru
        _
      // Predicated region
      $region33: #{multi_input_forward.1} parent=11 // pred_check
        %p428 = pneg %p188
      $region34: #{multi_input_forward.1} parent=11 // pred_check_branch
        %430 = sbr.rel (%p428) target = $region36
      $region35: #{multi_input_forward.1} parent=11 // pred_region
        _
      $region36: #{multi_input_forward.1} parent=11 // pred_fallthru
        _
      // Predicated region
      $region37: #{multi_input_forward.1} parent=11 // pred_check
        %p431 = pneg %p209
      $region38: #{multi_input_forward.1} parent=11 // pred_check_branch
        %433 = sbr.rel (%p431) target = $region40
      $region39: #{multi_input_forward.1} parent=11 // pred_region
        _
      $region40: #{multi_input_forward.1} parent=11 // pred_fallthru
        _
      // Predicated region
      $region41: #{multi_input_forward.1} parent=11 // pred_check
        %p434 = pneg %p230
      $region42: #{multi_input_forward.1} parent=11 // pred_check_branch
        %436 = sbr.rel (%p434) target = $region44
      $region43: #{multi_input_forward.1} parent=11 // pred_region
        _
      $region44: #{multi_input_forward.1} parent=11 // pred_fallthru
        _
      // Predicated region
      $region45: #{multi_input_forward.1} parent=11 // pred_check
        %p437 = pneg %p251
      $region46: #{multi_input_forward.1} parent=11 // pred_check_branch
        %439 = sbr.rel (%p437) target = $region48
      $region47: #{multi_input_forward.1} parent=11 // pred_region
        _
      $region48: #{multi_input_forward.1} parent=11 // pred_fallthru
        _
      // Predicated region
      $region49: #{multi_input_forward.1} parent=11 // pred_check
        %p440 = pneg %p272
      $region50: #{multi_input_forward.1} parent=11 // pred_check_branch
        %442 = sbr.rel (%p440) target = $region52
      $region51: #{multi_input_forward.1} parent=11 // pred_region
        _
      $region52: #{multi_input_forward.1} parent=11 // pred_fallthru
        _
      // Predicated region
      $region53: #{multi_input_forward.1} parent=11 // pred_check
        %p443 = pneg %p293
      $region54: #{multi_input_forward.1} parent=11 // pred_check_branch
        %445 = sbr.rel (%p443) target = $region56
      $region55: #{multi_input_forward.1} parent=11 // pred_region
        _
      $region56: #{multi_input_forward.1} parent=11 // pred_fallthru
        _
      // Predicated region
      $region57: #{multi_input_forward.1} parent=11 // pred_check
        %p446 = pneg %p314
      $region58: #{multi_input_forward.1} parent=11 // pred_check_branch
        %448 = sbr.rel (%p446) target = $region60
      $region59: #{multi_input_forward.1} parent=11 // pred_region
        _
      $region60: #{multi_input_forward.1} parent=11 // pred_fallthru
        _
      // Predicated region
      $region61: #{multi_input_forward.1} parent=11 // pred_check
        %p449 = pneg %p335
      $region62: #{multi_input_forward.1} parent=11 // pred_check_branch
        %451 = sbr.rel (%p449) target = $region64
      $region63: #{multi_input_forward.1} parent=11 // pred_region
        _
      $region64: #{multi_input_forward.1} parent=11 // pred_fallthru
        _
      // Predicated region
      $region65: #{multi_input_forward.1} parent=11 // pred_check
        %p452 = pneg %p356
      $region66: #{multi_input_forward.1} parent=11 // pred_check_branch
        %454 = sbr.rel (%p452) target = $region68
      $region67: #{multi_input_forward.1} parent=11 // pred_region
        _
      $region68: #{multi_input_forward.1} parent=11 // pred_fallthru
        _
      // Predicated region
      $region69: #{multi_input_forward.1} parent=11 // pred_check
        %p455 = pneg %p377
      $region70: #{multi_input_forward.1} parent=11 // pred_check_branch
        %457 = sbr.rel (%p455) target = $region72
      $region71: #{multi_input_forward.1} parent=11 // pred_region
        _
      $region72: #{multi_input_forward.1} parent=11 // pred_fallthru
        _
    $region12: #{multi_input_forward.1} parent=5 // pred_fallthru
      _
    %p458 = scmp.lt.s32.totalorder %s22, 4
    // Predicated region
    $region73: #{multi_input_forward.1} parent=5 // pred_check
      %p459 = pneg %p458
    $region74: #{multi_input_forward.1} parent=5 // pred_check_branch
      %461 = sbr.rel (%p459) target = $region76
    $region75: #{multi_input_forward.1} parent=5 // pred_region
      // Predicated region
      $region77: #{multi_input_forward.1} parent=75 // pred_check
        %p462 = pneg %p56
      $region78: #{multi_input_forward.1} parent=75 // pred_check_branch
        %464 = sbr.rel (%p462) target = $region80
      $region79: #{multi_input_forward.1} parent=75 // pred_region
        %s465 = smul.u32 2, %s30
        %p466 = scmp.lt.s32.totalorder %s29, 3
        %s467 = scalar_select %p466, %s29, 3
        %p468 = scmp.lt.s32.totalorder %s465, 1
        %s469 = scalar_select %p468, %s465, 1
        %s470 = smul.addr %s467, 2
        %s471 = sadd.s32 %s469, %s470
        %s472 = smul.addr %s471, 4
        %s473 = scalar_lea.vmem %s0, %s472
        %s474 = smul.u32 2, %s30
      $region80: #{multi_input_forward.1} parent=75 // pred_fallthru
        _
    $region76: #{multi_input_forward.1} parent=5 // pred_fallthru
      _
    %p475 = scmp.le.s32.totalorder 1, %s22
    %p476 = scmp.lt.s32.totalorder %s22, 5
    %p477 = pnand %p475, %p476
    %p478 = pneg %p477
    // Predicated region
    $region81: #{multi_input_forward.1} parent=5 // pred_check
      _
    $region82: #{multi_input_forward.1} parent=5 // pred_check_branch
      %480 = sbr.rel (%p477) target = $region84
    $region83: #{multi_input_forward.1} parent=5 // pred_region
      %s481 = ssub.s32 %s22, 1
      %s482 = smul.u32 2, %s32
      %p483 = scmp.lt.s32.totalorder %s31, 3
      %s484 = scalar_select %p483, %s31, 3
      %p485 = scmp.lt.s32.totalorder %s482, 1
      %s486 = scalar_select %p485, %s482, 1
      %s487 = smul.addr %s484, 2
      %s488 = sadd.s32 %s486, %s487
      %s489 = smul.addr %s488, 4
      %s490 = scalar_lea.vmem %s0, %s489
      %p491 = pneg %p62
      %p492 = pneg %p59
      %p493 = pneg %p83
      %p494 = pneg %p80
      %p495 = pneg %p104
      %p496 = pneg %p101
      %p497 = pneg %p125
      %p498 = pneg %p122
      %p499 = pneg %p146
      %p500 = pneg %p143
      %p501 = pneg %p167
      %p502 = pneg %p164
      %p503 = pneg %p188
      %p504 = pneg %p185
      %p505 = pneg %p209
      %p506 = pneg %p206
      %p507 = pneg %p230
      %p508 = pneg %p227
      %p509 = pneg %p251
      %p510 = pneg %p248
      %p511 = pneg %p272
      %p512 = pneg %p269
      %p513 = pneg %p293
      %p514 = pneg %p290
      %p515 = pneg %p314
      %p516 = pneg %p311
      %p517 = pneg %p335
      %p518 = pneg %p332
      %p519 = pneg %p356
      %p520 = pneg %p353
      %p521 = pneg %p377
      %p522 = pneg %p374
      %p523 = pneg %p398
      %p524 = pneg %p395
      %s525 = smul.u32 2, %s32
      %p526 = scmp.lt.s32.totalorder %s31, 3
      %s527 = scalar_select %p526, %s31, 3
      %p528 = scmp.lt.s32.totalorder %s525, 1
      %s529 = scalar_select %p528, %s525, 1
      %s530 = smul.addr %s527, 2
      %s531 = sadd.s32 %s529, %s530
      %s532 = smul.addr %s531, 4
      %s533 = scalar_lea.vmem %s0, %s532
      %s534 = smul.u32 2, %s32
      %p535 = scmp.eq.s32.totalorder %s32, 0
      // Predicated region
      $region85: #{multi_input_forward.1} parent=83 // pred_check
        %p536 = pneg %p535
      $region86: #{multi_input_forward.1} parent=83 // pred_check_branch
        %538 = sbr.rel (%p536) target = $region88
      $region87: #{multi_input_forward.1} parent=83 // pred_region
        %539 = vst [vmem:[#allocation2] sm:$0xff] 0.0
        %v540 = vlaneseq
        %vm541 = vcmp.ge.s32.totalorder %v540, 0
        %vm542 = vcmp.lt.s32.totalorder %v540, 256
        %vm543 = vmand %vm541, %vm542
        %544 = vst.msk [vmem:[#allocation2 + $0x8] sm:$0x3] %vm543, 0.0
      $region88: #{multi_input_forward.1} parent=83 // pred_fallthru
        _
      %v545 = vld [vmem:[%s533] sm:$0x77]
      %v546 = vld [vmem:[%s1] sm:$0xff]
      %v547 = vld [vmem:[%s1 + $0x8] sm:$0xff]
      %v548 = vld [vmem:[%s1 + $0x10] sm:$0xff]
      %v549 = vld [vmem:[%s1 + $0x18] sm:$0xff]
      %v550 = vld [vmem:[%s1 + $0x20] sm:$0xff]
      %v551 = vld [vmem:[%s1 + $0x28] sm:$0xff]
      %v552 = vld [vmem:[%s1 + $0x30] sm:$0xff]
      %v553 = vld [vmem:[%s1 + $0x38] sm:$0xff]
      %v554 = vld [vmem:[%s1 + $0x40] sm:$0xff]
      %v555 = vld [vmem:[%s1 + $0x48] sm:$0xff]
      %v556 = vld [vmem:[%s1 + $0x50] sm:$0xff]
      %v557 = vld [vmem:[%s1 + $0x58] sm:$0xff]
      %v558 = vld [vmem:[%s1 + $0x60] sm:$0xff]
      %v559 = vld [vmem:[%s1 + $0x68] sm:$0xff]
      %v560 = vld [vmem:[%s1 + $0x70] sm:$0xff]
      %v561 = vld [vmem:[%s1 + $0x78] sm:$0xff]
      %v562 = vld [vmem:[%s1 + $0x80] sm:$0xff]
      %v563 = vld [vmem:[%s1 + $0x88] sm:$0xff]
      %v564 = vld [vmem:[%s1 + $0x90] sm:$0xff]
      %v565 = vld [vmem:[%s1 + $0x98] sm:$0xff]
      %v566 = vld [vmem:[%s1 + $0xa0] sm:$0xff]
      %v567 = vld [vmem:[%s1 + $0xa8] sm:$0xff]
      %v568 = vld [vmem:[%s1 + $0xb0] sm:$0xff]
      %v569 = vld [vmem:[%s1 + $0xb8] sm:$0xff]
      %v570 = vld [vmem:[%s1 + $0xc0] sm:$0xff]
      %v571 = vld [vmem:[%s1 + $0xc8] sm:$0xff]
      %v572 = vld [vmem:[%s1 + $0xd0] sm:$0xff]
      %v573 = vld [vmem:[%s1 + $0xd8] sm:$0xff]
      %v574 = vld [vmem:[%s1 + $0xe0] sm:$0xff]
      %v575 = vld [vmem:[%s1 + $0xe8] sm:$0xff]
      %v576 = vld [vmem:[%s1 + $0xf0] sm:$0xff]
      %v577 = vld [vmem:[%s1 + $0xf8] sm:$0xff]
      %v578 = vld [vmem:[%s1 + $0x100] sm:$0xff]
      %v579 = vld [vmem:[%s1 + $0x108] sm:$0xff]
      %v580 = vld [vmem:[%s1 + $0x110] sm:$0xff]
      %v581 = vld [vmem:[%s1 + $0x118] sm:$0xff]
      %v582 = vld [vmem:[%s1 + $0x120] sm:$0xff]
      %v583 = vld [vmem:[%s1 + $0x128] sm:$0xff]
      %v584 = vld [vmem:[%s1 + $0x130] sm:$0xff]
      %v585 = vld [vmem:[%s1 + $0x138] sm:$0xff]
      %v586 = vld [vmem:[%s1 + $0x140] sm:$0xff]
      %v587 = vld [vmem:[%s1 + $0x148] sm:$0xff]
      %v588 = vld [vmem:[%s1 + $0x150] sm:$0xff]
      %v589 = vld [vmem:[%s1 + $0x158] sm:$0xff]
      %v590 = vld [vmem:[%s1 + $0x160] sm:$0xff]
      %v591 = vld [vmem:[%s1 + $0x168] sm:$0xff]
      %v592 = vld [vmem:[%s1 + $0x170] sm:$0xff]
      %v593 = vld [vmem:[%s1 + $0x178] sm:$0xff]
      %v594 = vld [vmem:[%s1 + $0x180] sm:$0xff]
      %v595 = vld [vmem:[%s1 + $0x188] sm:$0xff]
      %v596 = vld [vmem:[%s1 + $0x190] sm:$0xff]
      %v597 = vld [vmem:[%s1 + $0x198] sm:$0xff]
      %v598 = vld [vmem:[%s1 + $0x1a0] sm:$0xff]
      %v599 = vld [vmem:[%s1 + $0x1a8] sm:$0xff]
      %v600 = vld [vmem:[%s1 + $0x1b0] sm:$0xff]
      %v601 = vld [vmem:[%s1 + $0x1b8] sm:$0xff]
      %v602 = vld [vmem:[%s1 + $0x1c0] sm:$0xff]
      %v603 = vld [vmem:[%s1 + $0x1c8] sm:$0xff]
      %v604 = vld [vmem:[%s1 + $0x1d0] sm:$0xff]
      %v605 = vld [vmem:[%s1 + $0x1d8] sm:$0xff]
      %v606 = vld [vmem:[%s1 + $0x1e0] sm:$0xff]
      %v607 = vld [vmem:[%s1 + $0x1e8] sm:$0xff]
      %v608 = vld [vmem:[%s1 + $0x1f0] sm:$0xff]
      %v609 = vld [vmem:[%s1 + $0x1f8] sm:$0xff]
      %v610 = vld [vmem:[%s1 + $0x200] sm:$0xff]
      %v611 = vld [vmem:[%s1 + $0x208] sm:$0xff]
      %v612 = vld [vmem:[%s1 + $0x210] sm:$0xff]
      %v613 = vld [vmem:[%s1 + $0x218] sm:$0xff]
      %v614 = vld [vmem:[%s1 + $0x220] sm:$0xff]
      %v615 = vld [vmem:[%s1 + $0x228] sm:$0xff]
      %v616 = vld [vmem:[%s1 + $0x230] sm:$0xff]
      %v617 = vld [vmem:[%s1 + $0x238] sm:$0xff]
      %v618 = vld [vmem:[%s1 + $0x240] sm:$0xff]
      %v619 = vld [vmem:[%s1 + $0x248] sm:$0xff]
      %v620 = vld [vmem:[%s1 + $0x250] sm:$0xff]
      %v621 = vld [vmem:[%s1 + $0x258] sm:$0xff]
      %v622 = vld [vmem:[%s1 + $0x260] sm:$0xff]
      %v623 = vld [vmem:[%s1 + $0x268] sm:$0xff]
      %v624 = vld [vmem:[%s1 + $0x270] sm:$0xff]
      %v625 = vld [vmem:[%s1 + $0x278] sm:$0xff]
      %v626 = vld [vmem:[%s1 + $0x280] sm:$0xff]
      %v627 = vld [vmem:[%s1 + $0x288] sm:$0xff]
      %v628 = vld [vmem:[%s1 + $0x290] sm:$0xff]
      %v629 = vld [vmem:[%s1 + $0x298] sm:$0xff]
      %v630 = vld [vmem:[%s1 + $0x2a0] sm:$0xff]
      %v631 = vld [vmem:[%s1 + $0x2a8] sm:$0xff]
      %v632 = vld [vmem:[%s1 + $0x2b0] sm:$0xff]
      %v633 = vld [vmem:[%s1 + $0x2b8] sm:$0xff]
      %v634 = vld [vmem:[%s1 + $0x2c0] sm:$0xff]
      %v635 = vld [vmem:[%s1 + $0x2c8] sm:$0xff]
      %v636 = vld [vmem:[%s1 + $0x2d0] sm:$0xff]
      %v637 = vld [vmem:[%s1 + $0x2d8] sm:$0xff]
      %v638 = vld [vmem:[%s1 + $0x2e0] sm:$0xff]
      %v639 = vld [vmem:[%s1 + $0x2e8] sm:$0xff]
      %v640 = vld [vmem:[%s1 + $0x2f0] sm:$0xff]
      %v641 = vld [vmem:[%s1 + $0x2f8] sm:$0xff]
      %v642 = vld [vmem:[%s1 + $0x300] sm:$0xff]
      %v643 = vld [vmem:[%s1 + $0x308] sm:$0xff]
      %v644 = vld [vmem:[%s1 + $0x310] sm:$0xff]
      %v645 = vld [vmem:[%s1 + $0x318] sm:$0xff]
      %v646 = vld [vmem:[%s1 + $0x320] sm:$0xff]
      %v647 = vld [vmem:[%s1 + $0x328] sm:$0xff]
      %v648 = vld [vmem:[%s1 + $0x330] sm:$0xff]
      %v649 = vld [vmem:[%s1 + $0x338] sm:$0xff]
      %v650 = vld [vmem:[%s1 + $0x340] sm:$0xff]
      %v651 = vld [vmem:[%s1 + $0x348] sm:$0xff]
      %v652 = vld [vmem:[%s1 + $0x350] sm:$0xff]
      %v653 = vld [vmem:[%s1 + $0x358] sm:$0xff]
      %v654 = vld [vmem:[%s1 + $0x360] sm:$0xff]
      %v655 = vld [vmem:[%s1 + $0x368] sm:$0xff]
      %v656 = vld [vmem:[%s1 + $0x370] sm:$0xff]
      %v657 = vld [vmem:[%s1 + $0x378] sm:$0xff]
      %v658 = vld [vmem:[%s1 + $0x380] sm:$0xff]
      %v659 = vld [vmem:[%s1 + $0x388] sm:$0xff]
      %v660 = vld [vmem:[%s1 + $0x390] sm:$0xff]
      %v661 = vld [vmem:[%s1 + $0x398] sm:$0xff]
      %v662 = vld [vmem:[%s1 + $0x3a0] sm:$0xff]
      %v663 = vld [vmem:[%s1 + $0x3a8] sm:$0xff]
      %v664 = vld [vmem:[%s1 + $0x3b0] sm:$0xff]
      %v665 = vld [vmem:[%s1 + $0x3b8] sm:$0xff]
      %v666 = vld [vmem:[%s1 + $0x3c0] sm:$0xff]
      %v667 = vld [vmem:[%s1 + $0x3c8] sm:$0xff]
      %v668 = vld [vmem:[%s1 + $0x3d0] sm:$0xff]
      %v669 = vld [vmem:[%s1 + $0x3d8] sm:$0xff]
      %v670 = vld [vmem:[%s1 + $0x3e0] sm:$0xff]
      %v671 = vld [vmem:[%s1 + $0x3e8] sm:$0xff]
      %v672 = vld [vmem:[%s1 + $0x3f0] sm:$0xff]
      %v673 = vld [vmem:[%s1 + $0x3f8] sm:$0xff]
      %v674 = vld [vmem:[%s1 + $0x400] sm:$0xff]
      %v675 = vld [vmem:[%s1 + $0x408] sm:$0xff]
      %v676 = vld [vmem:[%s1 + $0x410] sm:$0xff]
      %v677 = vld [vmem:[%s1 + $0x418] sm:$0xff]
      %v678 = vld [vmem:[%s1 + $0x420] sm:$0xff]
      %v679 = vld [vmem:[%s1 + $0x428] sm:$0xff]
      %v680 = vld [vmem:[%s1 + $0x430] sm:$0xff]
      %v681 = vld [vmem:[%s1 + $0x438] sm:$0xff]
      %v682 = vld [vmem:[%s1 + $0x440] sm:$0xff]
      %v683 = vld [vmem:[%s1 + $0x448] sm:$0xff]
      %v684 = vld [vmem:[%s1 + $0x450] sm:$0xff]
      %v685 = vld [vmem:[%s1 + $0x458] sm:$0xff]
      %v686 = vld [vmem:[%s1 + $0x460] sm:$0xff]
      %v687 = vld [vmem:[%s1 + $0x468] sm:$0xff]
      %v688 = vld [vmem:[%s1 + $0x470] sm:$0xff]
      %v689 = vld [vmem:[%s1 + $0x478] sm:$0xff]
      %v690 = vld [vmem:[%s1 + $0x480] sm:$0xff]
      %v691 = vld [vmem:[%s1 + $0x488] sm:$0xff]
      %v692 = vld [vmem:[%s1 + $0x490] sm:$0xff]
      %v693 = vld [vmem:[%s1 + $0x498] sm:$0xff]
      %v694 = vld [vmem:[%s1 + $0x4a0] sm:$0xff]
      %v695 = vld [vmem:[%s1 + $0x4a8] sm:$0xff]
      %v696 = vld [vmem:[%s1 + $0x4b0] sm:$0xff]
      %v697 = vld [vmem:[%s1 + $0x4b8] sm:$0xff]
      %v698 = vld [vmem:[%s1 + $0x4c0] sm:$0xff]
      %v699 = vld [vmem:[%s1 + $0x4c8] sm:$0xff]
      %v700 = vld [vmem:[%s1 + $0x4d0] sm:$0xff]
      %v701 = vld [vmem:[%s1 + $0x4d8] sm:$0xff]
      %v702 = vld [vmem:[%s1 + $0x4e0] sm:$0xff]
      %v703 = vld [vmem:[%s1 + $0x4e8] sm:$0xff]
      %v704 = vld [vmem:[%s1 + $0x4f0] sm:$0xff]
      %v705 = vld [vmem:[%s1 + $0x4f8] sm:$0xff]
      %707 = vset.pattern.permute.xlu0 0
      %708 = vperm.xlu0 %707, %v546
      %v709 = vpop.permute.xlu0 %708
      %712 = vset.pattern.permute.xlu0 0
      %713 = vperm.xlu0 %712, %v547
      %v714 = vpop.permute.xlu0 %713
      %717 = vset.pattern.permute.xlu0 0
      %718 = vperm.xlu0 %717, %v548
      %v719 = vpop.permute.xlu0 %718
      %722 = vset.pattern.permute.xlu0 0
      %723 = vperm.xlu0 %722, %v549
      %v724 = vpop.permute.xlu0 %723
      %727 = vset.pattern.permute.xlu0 0
      %728 = vperm.xlu0 %727, %v550
      %v729 = vpop.permute.xlu0 %728
      %732 = vset.pattern.permute.xlu0 0
      %733 = vperm.xlu0 %732, %v551
      %v734 = vpop.permute.xlu0 %733
      %737 = vset.pattern.permute.xlu0 0
      %738 = vperm.xlu0 %737, %v552
      %v739 = vpop.permute.xlu0 %738
      %742 = vset.pattern.permute.xlu0 0
      %743 = vperm.xlu0 %742, %v553
      %v744 = vpop.permute.xlu0 %743
      %747 = vset.pattern.permute.xlu0 0
      %748 = vperm.xlu0 %747, %v554
      %v749 = vpop.permute.xlu0 %748
      %752 = vset.pattern.permute.xlu0 0
      %753 = vperm.xlu0 %752, %v555
      %v754 = vpop.permute.xlu0 %753
      %757 = vset.pattern.permute.xlu0 0
      %758 = vperm.xlu0 %757, %v556
      %v759 = vpop.permute.xlu0 %758
      %762 = vset.pattern.permute.xlu0 0
      %763 = vperm.xlu0 %762, %v557
      %v764 = vpop.permute.xlu0 %763
      %767 = vset.pattern.permute.xlu0 0
      %768 = vperm.xlu0 %767, %v558
      %v769 = vpop.permute.xlu0 %768
      %772 = vset.pattern.permute.xlu0 0
      %773 = vperm.xlu0 %772, %v559
      %v774 = vpop.permute.xlu0 %773
      %777 = vset.pattern.permute.xlu0 0
      %778 = vperm.xlu0 %777, %v560
      %v779 = vpop.permute.xlu0 %778
      %782 = vset.pattern.permute.xlu0 0
      %783 = vperm.xlu0 %782, %v561
      %v784 = vpop.permute.xlu0 %783
      %787 = vset.pattern.permute.xlu0 0
      %788 = vperm.xlu0 %787, %v562
      %v789 = vpop.permute.xlu0 %788
      %792 = vset.pattern.permute.xlu0 0
      %793 = vperm.xlu0 %792, %v563
      %v794 = vpop.permute.xlu0 %793
      %797 = vset.pattern.permute.xlu0 0
      %798 = vperm.xlu0 %797, %v564
      %v799 = vpop.permute.xlu0 %798
      %802 = vset.pattern.permute.xlu0 0
      %803 = vperm.xlu0 %802, %v565
      %v804 = vpop.permute.xlu0 %803
      %807 = vset.pattern.permute.xlu0 0
      %808 = vperm.xlu0 %807, %v566
      %v809 = vpop.permute.xlu0 %808
      %812 = vset.pattern.permute.xlu0 0
      %813 = vperm.xlu0 %812, %v567
      %v814 = vpop.permute.xlu0 %813
      %817 = vset.pattern.permute.xlu0 0
      %818 = vperm.xlu0 %817, %v568
      %v819 = vpop.permute.xlu0 %818
      %822 = vset.pattern.permute.xlu0 0
      %823 = vperm.xlu0 %822, %v569
      %v824 = vpop.permute.xlu0 %823
      %827 = vset.pattern.permute.xlu0 0
      %828 = vperm.xlu0 %827, %v570
      %v829 = vpop.permute.xlu0 %828
      %832 = vset.pattern.permute.xlu0 0
      %833 = vperm.xlu0 %832, %v571
      %v834 = vpop.permute.xlu0 %833
      %837 = vset.pattern.permute.xlu0 0
      %838 = vperm.xlu0 %837, %v572
      %v839 = vpop.permute.xlu0 %838
      %842 = vset.pattern.permute.xlu0 0
      %843 = vperm.xlu0 %842, %v573
      %v844 = vpop.permute.xlu0 %843
      %847 = vset.pattern.permute.xlu0 0
      %848 = vperm.xlu0 %847, %v574
      %v849 = vpop.permute.xlu0 %848
      %852 = vset.pattern.permute.xlu0 0
      %853 = vperm.xlu0 %852, %v575
      %v854 = vpop.permute.xlu0 %853
      %857 = vset.pattern.permute.xlu0 0
      %858 = vperm.xlu0 %857, %v576
      %v859 = vpop.permute.xlu0 %858
      %862 = vset.pattern.permute.xlu0 0
      %863 = vperm.xlu0 %862, %v577
      %v864 = vpop.permute.xlu0 %863
      %867 = vset.pattern.permute.xlu0 0
      %868 = vperm.xlu0 %867, %v578
      %v869 = vpop.permute.xlu0 %868
      %872 = vset.pattern.permute.xlu0 0
      %873 = vperm.xlu0 %872, %v579
      %v874 = vpop.permute.xlu0 %873
      %877 = vset.pattern.permute.xlu0 0
      %878 = vperm.xlu0 %877, %v580
      %v879 = vpop.permute.xlu0 %878
      %882 = vset.pattern.permute.xlu0 0
      %883 = vperm.xlu0 %882, %v581
      %v884 = vpop.permute.xlu0 %883
      %887 = vset.pattern.permute.xlu0 0
      %888 = vperm.xlu0 %887, %v582
      %v889 = vpop.permute.xlu0 %888
      %892 = vset.pattern.permute.xlu0 0
      %893 = vperm.xlu0 %892, %v583
      %v894 = vpop.permute.xlu0 %893
      %897 = vset.pattern.permute.xlu0 0
      %898 = vperm.xlu0 %897, %v584
      %v899 = vpop.permute.xlu0 %898
      %902 = vset.pattern.permute.xlu0 0
      %903 = vperm.xlu0 %902, %v585
      %v904 = vpop.permute.xlu0 %903
      %907 = vset.pattern.permute.xlu0 0
      %908 = vperm.xlu0 %907, %v586
      %v909 = vpop.permute.xlu0 %908
      %912 = vset.pattern.permute.xlu0 0
      %913 = vperm.xlu0 %912, %v587
      %v914 = vpop.permute.xlu0 %913
      %917 = vset.pattern.permute.xlu0 0
      %918 = vperm.xlu0 %917, %v588
      %v919 = vpop.permute.xlu0 %918
      %922 = vset.pattern.permute.xlu0 0
      %923 = vperm.xlu0 %922, %v589
      %v924 = vpop.permute.xlu0 %923
      %927 = vset.pattern.permute.xlu0 0
      %928 = vperm.xlu0 %927, %v590
      %v929 = vpop.permute.xlu0 %928
      %932 = vset.pattern.permute.xlu0 0
      %933 = vperm.xlu0 %932, %v591
      %v934 = vpop.permute.xlu0 %933
      %937 = vset.pattern.permute.xlu0 0
      %938 = vperm.xlu0 %937, %v592
      %v939 = vpop.permute.xlu0 %938
      %942 = vset.pattern.permute.xlu0 0
      %943 = vperm.xlu0 %942, %v593
      %v944 = vpop.permute.xlu0 %943
      %947 = vset.pattern.permute.xlu0 0
      %948 = vperm.xlu0 %947, %v594
      %v949 = vpop.permute.xlu0 %948
      %952 = vset.pattern.permute.xlu0 0
      %953 = vperm.xlu0 %952, %v595
      %v954 = vpop.permute.xlu0 %953
      %957 = vset.pattern.permute.xlu0 0
      %958 = vperm.xlu0 %957, %v596
      %v959 = vpop.permute.xlu0 %958
      %962 = vset.pattern.permute.xlu0 0
      %963 = vperm.xlu0 %962, %v597
      %v964 = vpop.permute.xlu0 %963
      %967 = vset.pattern.permute.xlu0 0
      %968 = vperm.xlu0 %967, %v598
      %v969 = vpop.permute.xlu0 %968
      %972 = vset.pattern.permute.xlu0 0
      %973 = vperm.xlu0 %972, %v599
      %v974 = vpop.permute.xlu0 %973
      %977 = vset.pattern.permute.xlu0 0
      %978 = vperm.xlu0 %977, %v600
      %v979 = vpop.permute.xlu0 %978
      %982 = vset.pattern.permute.xlu0 0
      %983 = vperm.xlu0 %982, %v601
      %v984 = vpop.permute.xlu0 %983
      %987 = vset.pattern.permute.xlu0 0
      %988 = vperm.xlu0 %987, %v602
      %v989 = vpop.permute.xlu0 %988
      %992 = vset.pattern.permute.xlu0 0
      %993 = vperm.xlu0 %992, %v603
      %v994 = vpop.permute.xlu0 %993
      %997 = vset.pattern.permute.xlu0 0
      %998 = vperm.xlu0 %997, %v604
      %v999 = vpop.permute.xlu0 %998
      %1002 = vset.pattern.permute.xlu0 0
      %1003 = vperm.xlu0 %1002, %v605
      %v1004 = vpop.permute.xlu0 %1003
      %1007 = vset.pattern.permute.xlu0 0
      %1008 = vperm.xlu0 %1007, %v606
      %v1009 = vpop.permute.xlu0 %1008
      %1012 = vset.pattern.permute.xlu0 0
      %1013 = vperm.xlu0 %1012, %v607
      %v1014 = vpop.permute.xlu0 %1013
      %1017 = vset.pattern.permute.xlu0 0
      %1018 = vperm.xlu0 %1017, %v608
      %v1019 = vpop.permute.xlu0 %1018
      %1022 = vset.pattern.permute.xlu0 0
      %1023 = vperm.xlu0 %1022, %v609
      %v1024 = vpop.permute.xlu0 %1023
      %1027 = vset.pattern.permute.xlu0 0
      %1028 = vperm.xlu0 %1027, %v610
      %v1029 = vpop.permute.xlu0 %1028
      %1032 = vset.pattern.permute.xlu0 0
      %1033 = vperm.xlu0 %1032, %v611
      %v1034 = vpop.permute.xlu0 %1033
      %1037 = vset.pattern.permute.xlu0 0
      %1038 = vperm.xlu0 %1037, %v612
      %v1039 = vpop.permute.xlu0 %1038
      %1042 = vset.pattern.permute.xlu0 0
      %1043 = vperm.xlu0 %1042, %v613
      %v1044 = vpop.permute.xlu0 %1043
      %1047 = vset.pattern.permute.xlu0 0
      %1048 = vperm.xlu0 %1047, %v614
      %v1049 = vpop.permute.xlu0 %1048
      %1052 = vset.pattern.permute.xlu0 0
      %1053 = vperm.xlu0 %1052, %v615
      %v1054 = vpop.permute.xlu0 %1053
      %1057 = vset.pattern.permute.xlu0 0
      %1058 = vperm.xlu0 %1057, %v616
      %v1059 = vpop.permute.xlu0 %1058
      %1062 = vset.pattern.permute.xlu0 0
      %1063 = vperm.xlu0 %1062, %v617
      %v1064 = vpop.permute.xlu0 %1063
      %1067 = vset.pattern.permute.xlu0 0
      %1068 = vperm.xlu0 %1067, %v618
      %v1069 = vpop.permute.xlu0 %1068
      %1072 = vset.pattern.permute.xlu0 0
      %1073 = vperm.xlu0 %1072, %v619
      %v1074 = vpop.permute.xlu0 %1073
      %1077 = vset.pattern.permute.xlu0 0
      %1078 = vperm.xlu0 %1077, %v620
      %v1079 = vpop.permute.xlu0 %1078
      %1082 = vset.pattern.permute.xlu0 0
      %1083 = vperm.xlu0 %1082, %v621
      %v1084 = vpop.permute.xlu0 %1083
      %1087 = vset.pattern.permute.xlu0 0
      %1088 = vperm.xlu0 %1087, %v622
      %v1089 = vpop.permute.xlu0 %1088
      %1092 = vset.pattern.permute.xlu0 0
      %1093 = vperm.xlu0 %1092, %v623
      %v1094 = vpop.permute.xlu0 %1093
      %1097 = vset.pattern.permute.xlu0 0
      %1098 = vperm.xlu0 %1097, %v624
      %v1099 = vpop.permute.xlu0 %1098
      %1102 = vset.pattern.permute.xlu0 0
      %1103 = vperm.xlu0 %1102, %v625
      %v1104 = vpop.permute.xlu0 %1103
      %1107 = vset.pattern.permute.xlu0 0
      %1108 = vperm.xlu0 %1107, %v626
      %v1109 = vpop.permute.xlu0 %1108
      %1112 = vset.pattern.permute.xlu0 0
      %1113 = vperm.xlu0 %1112, %v627
      %v1114 = vpop.permute.xlu0 %1113
      %1117 = vset.pattern.permute.xlu0 0
      %1118 = vperm.xlu0 %1117, %v628
      %v1119 = vpop.permute.xlu0 %1118
      %1122 = vset.pattern.permute.xlu0 0
      %1123 = vperm.xlu0 %1122, %v629
      %v1124 = vpop.permute.xlu0 %1123
      %1127 = vset.pattern.permute.xlu0 0
      %1128 = vperm.xlu0 %1127, %v630
      %v1129 = vpop.permute.xlu0 %1128
      %1132 = vset.pattern.permute.xlu0 0
      %1133 = vperm.xlu0 %1132, %v631
      %v1134 = vpop.permute.xlu0 %1133
      %1137 = vset.pattern.permute.xlu0 0
      %1138 = vperm.xlu0 %1137, %v632
      %v1139 = vpop.permute.xlu0 %1138
      %1142 = vset.pattern.permute.xlu0 0
      %1143 = vperm.xlu0 %1142, %v633
      %v1144 = vpop.permute.xlu0 %1143
      %1147 = vset.pattern.permute.xlu0 0
      %1148 = vperm.xlu0 %1147, %v634
      %v1149 = vpop.permute.xlu0 %1148
      %1152 = vset.pattern.permute.xlu0 0
      %1153 = vperm.xlu0 %1152, %v635
      %v1154 = vpop.permute.xlu0 %1153
      %1157 = vset.pattern.permute.xlu0 0
      %1158 = vperm.xlu0 %1157, %v636
      %v1159 = vpop.permute.xlu0 %1158
      %1162 = vset.pattern.permute.xlu0 0
      %1163 = vperm.xlu0 %1162, %v637
      %v1164 = vpop.permute.xlu0 %1163
      %1167 = vset.pattern.permute.xlu0 0
      %1168 = vperm.xlu0 %1167, %v638
      %v1169 = vpop.permute.xlu0 %1168
      %1172 = vset.pattern.permute.xlu0 0
      %1173 = vperm.xlu0 %1172, %v639
      %v1174 = vpop.permute.xlu0 %1173
      %1177 = vset.pattern.permute.xlu0 0
      %1178 = vperm.xlu0 %1177, %v640
      %v1179 = vpop.permute.xlu0 %1178
      %1182 = vset.pattern.permute.xlu0 0
      %1183 = vperm.xlu0 %1182, %v641
      %v1184 = vpop.permute.xlu0 %1183
      %1187 = vset.pattern.permute.xlu0 0
      %1188 = vperm.xlu0 %1187, %v642
      %v1189 = vpop.permute.xlu0 %1188
      %1192 = vset.pattern.permute.xlu0 0
      %1193 = vperm.xlu0 %1192, %v643
      %v1194 = vpop.permute.xlu0 %1193
      %1197 = vset.pattern.permute.xlu0 0
      %1198 = vperm.xlu0 %1197, %v644
      %v1199 = vpop.permute.xlu0 %1198
      %1202 = vset.pattern.permute.xlu0 0
      %1203 = vperm.xlu0 %1202, %v645
      %v1204 = vpop.permute.xlu0 %1203
      %1207 = vset.pattern.permute.xlu0 0
      %1208 = vperm.xlu0 %1207, %v646
      %v1209 = vpop.permute.xlu0 %1208
      %1212 = vset.pattern.permute.xlu0 0
      %1213 = vperm.xlu0 %1212, %v647
      %v1214 = vpop.permute.xlu0 %1213
      %1217 = vset.pattern.permute.xlu0 0
      %1218 = vperm.xlu0 %1217, %v648
      %v1219 = vpop.permute.xlu0 %1218
      %1222 = vset.pattern.permute.xlu0 0
      %1223 = vperm.xlu0 %1222, %v649
      %v1224 = vpop.permute.xlu0 %1223
      %1227 = vset.pattern.permute.xlu0 0
      %1228 = vperm.xlu0 %1227, %v650
      %v1229 = vpop.permute.xlu0 %1228
      %1232 = vset.pattern.permute.xlu0 0
      %1233 = vperm.xlu0 %1232, %v651
      %v1234 = vpop.permute.xlu0 %1233
      %1237 = vset.pattern.permute.xlu0 0
      %1238 = vperm.xlu0 %1237, %v652
      %v1239 = vpop.permute.xlu0 %1238
      %1242 = vset.pattern.permute.xlu0 0
      %1243 = vperm.xlu0 %1242, %v653
      %v1244 = vpop.permute.xlu0 %1243
      %1247 = vset.pattern.permute.xlu0 0
      %1248 = vperm.xlu0 %1247, %v654
      %v1249 = vpop.permute.xlu0 %1248
      %1252 = vset.pattern.permute.xlu0 0
      %1253 = vperm.xlu0 %1252, %v655
      %v1254 = vpop.permute.xlu0 %1253
      %1257 = vset.pattern.permute.xlu0 0
      %1258 = vperm.xlu0 %1257, %v656
      %v1259 = vpop.permute.xlu0 %1258
      %1262 = vset.pattern.permute.xlu0 0
      %1263 = vperm.xlu0 %1262, %v657
      %v1264 = vpop.permute.xlu0 %1263
      %1267 = vset.pattern.permute.xlu0 0
      %1268 = vperm.xlu0 %1267, %v658
      %v1269 = vpop.permute.xlu0 %1268
      %1272 = vset.pattern.permute.xlu0 0
      %1273 = vperm.xlu0 %1272, %v659
      %v1274 = vpop.permute.xlu0 %1273
      %1277 = vset.pattern.permute.xlu0 0
      %1278 = vperm.xlu0 %1277, %v660
      %v1279 = vpop.permute.xlu0 %1278
      %1282 = vset.pattern.permute.xlu0 0
      %1283 = vperm.xlu0 %1282, %v661
      %v1284 = vpop.permute.xlu0 %1283
      %1287 = vset.pattern.permute.xlu0 0
      %1288 = vperm.xlu0 %1287, %v662
      %v1289 = vpop.permute.xlu0 %1288
      %1292 = vset.pattern.permute.xlu0 0
      %1293 = vperm.xlu0 %1292, %v663
      %v1294 = vpop.permute.xlu0 %1293
      %1297 = vset.pattern.permute.xlu0 0
      %1298 = vperm.xlu0 %1297, %v664
      %v1299 = vpop.permute.xlu0 %1298
      %1302 = vset.pattern.permute.xlu0 0
      %1303 = vperm.xlu0 %1302, %v665
      %v1304 = vpop.permute.xlu0 %1303
      %1307 = vset.pattern.permute.xlu0 0
      %1308 = vperm.xlu0 %1307, %v666
      %v1309 = vpop.permute.xlu0 %1308
      %1312 = vset.pattern.permute.xlu0 0
      %1313 = vperm.xlu0 %1312, %v667
      %v1314 = vpop.permute.xlu0 %1313
      %1317 = vset.pattern.permute.xlu0 0
      %1318 = vperm.xlu0 %1317, %v668
      %v1319 = vpop.permute.xlu0 %1318
      %1322 = vset.pattern.permute.xlu0 0
      %1323 = vperm.xlu0 %1322, %v669
      %v1324 = vpop.permute.xlu0 %1323
      %1327 = vset.pattern.permute.xlu0 0
      %1328 = vperm.xlu0 %1327, %v670
      %v1329 = vpop.permute.xlu0 %1328
      %1332 = vset.pattern.permute.xlu0 0
      %1333 = vperm.xlu0 %1332, %v671
      %v1334 = vpop.permute.xlu0 %1333
      %1337 = vset.pattern.permute.xlu0 0
      %1338 = vperm.xlu0 %1337, %v672
      %v1339 = vpop.permute.xlu0 %1338
      %1342 = vset.pattern.permute.xlu0 0
      %1343 = vperm.xlu0 %1342, %v673
      %v1344 = vpop.permute.xlu0 %1343
      %1347 = vset.pattern.permute.xlu0 0
      %1348 = vperm.xlu0 %1347, %v674
      %v1349 = vpop.permute.xlu0 %1348
      %1352 = vset.pattern.permute.xlu0 0
      %1353 = vperm.xlu0 %1352, %v675
      %v1354 = vpop.permute.xlu0 %1353
      %1357 = vset.pattern.permute.xlu0 0
      %1358 = vperm.xlu0 %1357, %v676
      %v1359 = vpop.permute.xlu0 %1358
      %1362 = vset.pattern.permute.xlu0 0
      %1363 = vperm.xlu0 %1362, %v677
      %v1364 = vpop.permute.xlu0 %1363
      %1367 = vset.pattern.permute.xlu0 0
      %1368 = vperm.xlu0 %1367, %v678
      %v1369 = vpop.permute.xlu0 %1368
      %1372 = vset.pattern.permute.xlu0 0
      %1373 = vperm.xlu0 %1372, %v679
      %v1374 = vpop.permute.xlu0 %1373
      %1377 = vset.pattern.permute.xlu0 0
      %1378 = vperm.xlu0 %1377, %v680
      %v1379 = vpop.permute.xlu0 %1378
      %1382 = vset.pattern.permute.xlu0 0
      %1383 = vperm.xlu0 %1382, %v681
      %v1384 = vpop.permute.xlu0 %1383
      %1387 = vset.pattern.permute.xlu0 0
      %1388 = vperm.xlu0 %1387, %v682
      %v1389 = vpop.permute.xlu0 %1388
      %1392 = vset.pattern.permute.xlu0 0
      %1393 = vperm.xlu0 %1392, %v683
      %v1394 = vpop.permute.xlu0 %1393
      %1397 = vset.pattern.permute.xlu0 0
      %1398 = vperm.xlu0 %1397, %v684
      %v1399 = vpop.permute.xlu0 %1398
      %1402 = vset.pattern.permute.xlu0 0
      %1403 = vperm.xlu0 %1402, %v685
      %v1404 = vpop.permute.xlu0 %1403
      %1407 = vset.pattern.permute.xlu0 0
      %1408 = vperm.xlu0 %1407, %v686
      %v1409 = vpop.permute.xlu0 %1408
      %1412 = vset.pattern.permute.xlu0 0
      %1413 = vperm.xlu0 %1412, %v687
      %v1414 = vpop.permute.xlu0 %1413
      %1417 = vset.pattern.permute.xlu0 0
      %1418 = vperm.xlu0 %1417, %v688
      %v1419 = vpop.permute.xlu0 %1418
      %1422 = vset.pattern.permute.xlu0 0
      %1423 = vperm.xlu0 %1422, %v689
      %v1424 = vpop.permute.xlu0 %1423
      %1427 = vset.pattern.permute.xlu0 0
      %1428 = vperm.xlu0 %1427, %v690
      %v1429 = vpop.permute.xlu0 %1428
      %1432 = vset.pattern.permute.xlu0 0
      %1433 = vperm.xlu0 %1432, %v691
      %v1434 = vpop.permute.xlu0 %1433
      %1437 = vset.pattern.permute.xlu0 0
      %1438 = vperm.xlu0 %1437, %v692
      %v1439 = vpop.permute.xlu0 %1438
      %1442 = vset.pattern.permute.xlu0 0
      %1443 = vperm.xlu0 %1442, %v693
      %v1444 = vpop.permute.xlu0 %1443
      %1447 = vset.pattern.permute.xlu0 0
      %1448 = vperm.xlu0 %1447, %v694
      %v1449 = vpop.permute.xlu0 %1448
      %1452 = vset.pattern.permute.xlu0 0
      %1453 = vperm.xlu0 %1452, %v695
      %v1454 = vpop.permute.xlu0 %1453
      %1457 = vset.pattern.permute.xlu0 0
      %1458 = vperm.xlu0 %1457, %v696
      %v1459 = vpop.permute.xlu0 %1458
      %1462 = vset.pattern.permute.xlu0 0
      %1463 = vperm.xlu0 %1462, %v697
      %v1464 = vpop.permute.xlu0 %1463
      %1467 = vset.pattern.permute.xlu0 0
      %1468 = vperm.xlu0 %1467, %v698
      %v1469 = vpop.permute.xlu0 %1468
      %1472 = vset.pattern.permute.xlu0 0
      %1473 = vperm.xlu0 %1472, %v699
      %v1474 = vpop.permute.xlu0 %1473
      %1477 = vset.pattern.permute.xlu0 0
      %1478 = vperm.xlu0 %1477, %v700
      %v1479 = vpop.permute.xlu0 %1478
      %1482 = vset.pattern.permute.xlu0 0
      %1483 = vperm.xlu0 %1482, %v701
      %v1484 = vpop.permute.xlu0 %1483
      %1487 = vset.pattern.permute.xlu0 0
      %1488 = vperm.xlu0 %1487, %v702
      %v1489 = vpop.permute.xlu0 %1488
      %1492 = vset.pattern.permute.xlu0 0
      %1493 = vperm.xlu0 %1492, %v703
      %v1494 = vpop.permute.xlu0 %1493
      %1497 = vset.pattern.permute.xlu0 0
      %1498 = vperm.xlu0 %1497, %v704
      %v1499 = vpop.permute.xlu0 %1498
      %1502 = vset.pattern.permute.xlu0 0
      %1503 = vperm.xlu0 %1502, %v705
      %v1504 = vpop.permute.xlu0 %1503
      %v1507 = vlaneseq
      %v1508 = vshrl.u32 %v1507, 7
      %v1509 = vsub.s32 0, %v1508
      %v1510 = vrot.slane %v545, %v1509
      %v1511 = vlaneseq
      %v1512 = vshrl.u32 %v1511, 7
      %v1513 = vsub.s32 4, %v1512
      %v1514 = vrot.slane %v545, %v1513
      %v1517 = vlaneseq
      %v1518 = vshrl.u32 %v1517, 7
      %v1519 = vsub.s32 0, %v1518
      %v1520 = vrot.slane %v1510, %v1519
      %v1521 = vlaneseq
      %v1522 = vshrl.u32 %v1521, 7
      %v1523 = vsub.s32 0, %v1522
      %v1524 = vrot.slane %v1514, %v1523
      %v1525 = vmul.f32 %v709, %v1520
      %v1526 = vmul.f32 %v709, %v1524
      %v1527 = vmul.f32 %v714, %v1520
      %v1528 = vmul.f32 %v714, %v1524
      %v1529 = vmul.f32 %v719, %v1520
      %v1530 = vmul.f32 %v719, %v1524
      %v1531 = vmul.f32 %v724, %v1520
      %v1532 = vmul.f32 %v724, %v1524
      %v1533 = vmul.f32 %v729, %v1520
      %v1534 = vmul.f32 %v729, %v1524
      %v1535 = vmul.f32 %v734, %v1520
      %v1536 = vmul.f32 %v734, %v1524
      %v1537 = vmul.f32 %v739, %v1520
      %v1538 = vmul.f32 %v739, %v1524
      %v1539 = vmul.f32 %v744, %v1520
      %v1540 = vmul.f32 %v744, %v1524
      %v1541 = vmul.f32 %v749, %v1520
      %v1542 = vmul.f32 %v749, %v1524
      %v1543 = vmul.f32 %v754, %v1520
      %v1544 = vmul.f32 %v754, %v1524
      %v1545 = vmul.f32 %v759, %v1520
      %v1546 = vmul.f32 %v759, %v1524
      %v1547 = vmul.f32 %v764, %v1520
      %v1548 = vmul.f32 %v764, %v1524
      %v1549 = vmul.f32 %v769, %v1520
      %v1550 = vmul.f32 %v769, %v1524
      %v1551 = vmul.f32 %v774, %v1520
      %v1552 = vmul.f32 %v774, %v1524
      %v1553 = vmul.f32 %v779, %v1520
      %v1554 = vmul.f32 %v779, %v1524
      %v1555 = vmul.f32 %v784, %v1520
      %v1556 = vmul.f32 %v784, %v1524
      %v1557 = vmul.f32 %v789, %v1520
      %v1558 = vmul.f32 %v789, %v1524
      %v1559 = vmul.f32 %v794, %v1520
      %v1560 = vmul.f32 %v794, %v1524
      %v1561 = vmul.f32 %v799, %v1520
      %v1562 = vmul.f32 %v799, %v1524
      %v1563 = vmul.f32 %v804, %v1520
      %v1564 = vmul.f32 %v804, %v1524
      %v1565 = vmul.f32 %v809, %v1520
      %v1566 = vmul.f32 %v809, %v1524
      %v1567 = vmul.f32 %v814, %v1520
      %v1568 = vmul.f32 %v814, %v1524
      %v1569 = vmul.f32 %v819, %v1520
      %v1570 = vmul.f32 %v819, %v1524
      %v1571 = vmul.f32 %v824, %v1520
      %v1572 = vmul.f32 %v824, %v1524
      %v1573 = vmul.f32 %v829, %v1520
      %v1574 = vmul.f32 %v829, %v1524
      %v1575 = vmul.f32 %v834, %v1520
      %v1576 = vmul.f32 %v834, %v1524
      %v1577 = vmul.f32 %v839, %v1520
      %v1578 = vmul.f32 %v839, %v1524
      %v1579 = vmul.f32 %v844, %v1520
      %v1580 = vmul.f32 %v844, %v1524
      %v1581 = vmul.f32 %v849, %v1520
      %v1582 = vmul.f32 %v849, %v1524
      %v1583 = vmul.f32 %v854, %v1520
      %v1584 = vmul.f32 %v854, %v1524
      %v1585 = vmul.f32 %v859, %v1520
      %v1586 = vmul.f32 %v859, %v1524
      %v1587 = vmul.f32 %v864, %v1520
      %v1588 = vmul.f32 %v864, %v1524
      %v1589 = vmul.f32 %v869, %v1520
      %v1590 = vmul.f32 %v869, %v1524
      %v1591 = vmul.f32 %v874, %v1520
      %v1592 = vmul.f32 %v874, %v1524
      %v1593 = vmul.f32 %v879, %v1520
      %v1594 = vmul.f32 %v879, %v1524
      %v1595 = vmul.f32 %v884, %v1520
      %v1596 = vmul.f32 %v884, %v1524
      %v1597 = vmul.f32 %v889, %v1520
      %v1598 = vmul.f32 %v889, %v1524
      %v1599 = vmul.f32 %v894, %v1520
      %v1600 = vmul.f32 %v894, %v1524
      %v1601 = vmul.f32 %v899, %v1520
      %v1602 = vmul.f32 %v899, %v1524
      %v1603 = vmul.f32 %v904, %v1520
      %v1604 = vmul.f32 %v904, %v1524
      %v1605 = vmul.f32 %v909, %v1520
      %v1606 = vmul.f32 %v909, %v1524
      %v1607 = vmul.f32 %v914, %v1520
      %v1608 = vmul.f32 %v914, %v1524
      %v1609 = vmul.f32 %v919, %v1520
      %v1610 = vmul.f32 %v919, %v1524
      %v1611 = vmul.f32 %v924, %v1520
      %v1612 = vmul.f32 %v924, %v1524
      %v1613 = vmul.f32 %v929, %v1520
      %v1614 = vmul.f32 %v929, %v1524
      %v1615 = vmul.f32 %v934, %v1520
      %v1616 = vmul.f32 %v934, %v1524
      %v1617 = vmul.f32 %v939, %v1520
      %v1618 = vmul.f32 %v939, %v1524
      %v1619 = vmul.f32 %v944, %v1520
      %v1620 = vmul.f32 %v944, %v1524
      %v1621 = vmul.f32 %v949, %v1520
      %v1622 = vmul.f32 %v949, %v1524
      %v1623 = vmul.f32 %v954, %v1520
      %v1624 = vmul.f32 %v954, %v1524
      %v1625 = vmul.f32 %v959, %v1520
      %v1626 = vmul.f32 %v959, %v1524
      %v1627 = vmul.f32 %v964, %v1520
      %v1628 = vmul.f32 %v964, %v1524
      %v1629 = vmul.f32 %v969, %v1520
      %v1630 = vmul.f32 %v969, %v1524
      %v1631 = vmul.f32 %v974, %v1520
      %v1632 = vmul.f32 %v974, %v1524
      %v1633 = vmul.f32 %v979, %v1520
      %v1634 = vmul.f32 %v979, %v1524
      %v1635 = vmul.f32 %v984, %v1520
      %v1636 = vmul.f32 %v984, %v1524
      %v1637 = vmul.f32 %v989, %v1520
      %v1638 = vmul.f32 %v989, %v1524
      %v1639 = vmul.f32 %v994, %v1520
      %v1640 = vmul.f32 %v994, %v1524
      %v1641 = vmul.f32 %v999, %v1520
      %v1642 = vmul.f32 %v999, %v1524
      %v1643 = vmul.f32 %v1004, %v1520
      %v1644 = vmul.f32 %v1004, %v1524
      %v1645 = vmul.f32 %v1009, %v1520
      %v1646 = vmul.f32 %v1009, %v1524
      %v1647 = vmul.f32 %v1014, %v1520
      %v1648 = vmul.f32 %v1014, %v1524
      %v1649 = vmul.f32 %v1019, %v1520
      %v1650 = vmul.f32 %v1019, %v1524
      %v1651 = vmul.f32 %v1024, %v1520
      %v1652 = vmul.f32 %v1024, %v1524
      %v1653 = vmul.f32 %v1029, %v1520
      %v1654 = vmul.f32 %v1029, %v1524
      %v1655 = vmul.f32 %v1034, %v1520
      %v1656 = vmul.f32 %v1034, %v1524
      %v1657 = vmul.f32 %v1039, %v1520
      %v1658 = vmul.f32 %v1039, %v1524
      %v1659 = vmul.f32 %v1044, %v1520
      %v1660 = vmul.f32 %v1044, %v1524
      %v1661 = vmul.f32 %v1049, %v1520
      %v1662 = vmul.f32 %v1049, %v1524
      %v1663 = vmul.f32 %v1054, %v1520
      %v1664 = vmul.f32 %v1054, %v1524
      %v1665 = vmul.f32 %v1059, %v1520
      %v1666 = vmul.f32 %v1059, %v1524
      %v1667 = vmul.f32 %v1064, %v1520
      %v1668 = vmul.f32 %v1064, %v1524
      %v1669 = vmul.f32 %v1069, %v1520
      %v1670 = vmul.f32 %v1069, %v1524
      %v1671 = vmul.f32 %v1074, %v1520
      %v1672 = vmul.f32 %v1074, %v1524
      %v1673 = vmul.f32 %v1079, %v1520
      %v1674 = vmul.f32 %v1079, %v1524
      %v1675 = vmul.f32 %v1084, %v1520
      %v1676 = vmul.f32 %v1084, %v1524
      %v1677 = vmul.f32 %v1089, %v1520
      %v1678 = vmul.f32 %v1089, %v1524
      %v1679 = vmul.f32 %v1094, %v1520
      %v1680 = vmul.f32 %v1094, %v1524
      %v1681 = vmul.f32 %v1099, %v1520
      %v1682 = vmul.f32 %v1099, %v1524
      %v1683 = vmul.f32 %v1104, %v1520
      %v1684 = vmul.f32 %v1104, %v1524
      %v1685 = vmul.f32 %v1109, %v1520
      %v1686 = vmul.f32 %v1109, %v1524
      %v1687 = vmul.f32 %v1114, %v1520
      %v1688 = vmul.f32 %v1114, %v1524
      %v1689 = vmul.f32 %v1119, %v1520
      %v1690 = vmul.f32 %v1119, %v1524
      %v1691 = vmul.f32 %v1124, %v1520
      %v1692 = vmul.f32 %v1124, %v1524
      %v1693 = vmul.f32 %v1129, %v1520
      %v1694 = vmul.f32 %v1129, %v1524
      %v1695 = vmul.f32 %v1134, %v1520
      %v1696 = vmul.f32 %v1134, %v1524
      %v1697 = vmul.f32 %v1139, %v1520
      %v1698 = vmul.f32 %v1139, %v1524
      %v1699 = vmul.f32 %v1144, %v1520
      %v1700 = vmul.f32 %v1144, %v1524
      %v1701 = vmul.f32 %v1149, %v1520
      %v1702 = vmul.f32 %v1149, %v1524
      %v1703 = vmul.f32 %v1154, %v1520
      %v1704 = vmul.f32 %v1154, %v1524
      %v1705 = vmul.f32 %v1159, %v1520
      %v1706 = vmul.f32 %v1159, %v1524
      %v1707 = vmul.f32 %v1164, %v1520
      %v1708 = vmul.f32 %v1164, %v1524
      %v1709 = vmul.f32 %v1169, %v1520
      %v1710 = vmul.f32 %v1169, %v1524
      %v1711 = vmul.f32 %v1174, %v1520
      %v1712 = vmul.f32 %v1174, %v1524
      %v1713 = vmul.f32 %v1179, %v1520
      %v1714 = vmul.f32 %v1179, %v1524
      %v1715 = vmul.f32 %v1184, %v1520
      %v1716 = vmul.f32 %v1184, %v1524
      %v1717 = vmul.f32 %v1189, %v1520
      %v1718 = vmul.f32 %v1189, %v1524
      %v1719 = vmul.f32 %v1194, %v1520
      %v1720 = vmul.f32 %v1194, %v1524
      %v1721 = vmul.f32 %v1199, %v1520
      %v1722 = vmul.f32 %v1199, %v1524
      %v1723 = vmul.f32 %v1204, %v1520
      %v1724 = vmul.f32 %v1204, %v1524
      %v1725 = vmul.f32 %v1209, %v1520
      %v1726 = vmul.f32 %v1209, %v1524
      %v1727 = vmul.f32 %v1214, %v1520
      %v1728 = vmul.f32 %v1214, %v1524
      %v1729 = vmul.f32 %v1219, %v1520
      %v1730 = vmul.f32 %v1219, %v1524
      %v1731 = vmul.f32 %v1224, %v1520
      %v1732 = vmul.f32 %v1224, %v1524
      %v1733 = vmul.f32 %v1229, %v1520
      %v1734 = vmul.f32 %v1229, %v1524
      %v1735 = vmul.f32 %v1234, %v1520
      %v1736 = vmul.f32 %v1234, %v1524
      %v1737 = vmul.f32 %v1239, %v1520
      %v1738 = vmul.f32 %v1239, %v1524
      %v1739 = vmul.f32 %v1244, %v1520
      %v1740 = vmul.f32 %v1244, %v1524
      %v1741 = vmul.f32 %v1249, %v1520
      %v1742 = vmul.f32 %v1249, %v1524
      %v1743 = vmul.f32 %v1254, %v1520
      %v1744 = vmul.f32 %v1254, %v1524
      %v1745 = vmul.f32 %v1259, %v1520
      %v1746 = vmul.f32 %v1259, %v1524
      %v1747 = vmul.f32 %v1264, %v1520
      %v1748 = vmul.f32 %v1264, %v1524
      %v1749 = vmul.f32 %v1269, %v1520
      %v1750 = vmul.f32 %v1269, %v1524
      %v1751 = vmul.f32 %v1274, %v1520
      %v1752 = vmul.f32 %v1274, %v1524
      %v1753 = vmul.f32 %v1279, %v1520
      %v1754 = vmul.f32 %v1279, %v1524
      %v1755 = vmul.f32 %v1284, %v1520
      %v1756 = vmul.f32 %v1284, %v1524
      %v1757 = vmul.f32 %v1289, %v1520
      %v1758 = vmul.f32 %v1289, %v1524
      %v1759 = vmul.f32 %v1294, %v1520
      %v1760 = vmul.f32 %v1294, %v1524
      %v1761 = vmul.f32 %v1299, %v1520
      %v1762 = vmul.f32 %v1299, %v1524
      %v1763 = vmul.f32 %v1304, %v1520
      %v1764 = vmul.f32 %v1304, %v1524
      %v1765 = vmul.f32 %v1309, %v1520
      %v1766 = vmul.f32 %v1309, %v1524
      %v1767 = vmul.f32 %v1314, %v1520
      %v1768 = vmul.f32 %v1314, %v1524
      %v1769 = vmul.f32 %v1319, %v1520
      %v1770 = vmul.f32 %v1319, %v1524
      %v1771 = vmul.f32 %v1324, %v1520
      %v1772 = vmul.f32 %v1324, %v1524
      %v1773 = vmul.f32 %v1329, %v1520
      %v1774 = vmul.f32 %v1329, %v1524
      %v1775 = vmul.f32 %v1334, %v1520
      %v1776 = vmul.f32 %v1334, %v1524
      %v1777 = vmul.f32 %v1339, %v1520
      %v1778 = vmul.f32 %v1339, %v1524
      %v1779 = vmul.f32 %v1344, %v1520
      %v1780 = vmul.f32 %v1344, %v1524
      %v1781 = vmul.f32 %v1349, %v1520
      %v1782 = vmul.f32 %v1349, %v1524
      %v1783 = vmul.f32 %v1354, %v1520
      %v1784 = vmul.f32 %v1354, %v1524
      %v1785 = vmul.f32 %v1359, %v1520
      %v1786 = vmul.f32 %v1359, %v1524
      %v1787 = vmul.f32 %v1364, %v1520
      %v1788 = vmul.f32 %v1364, %v1524
      %v1789 = vmul.f32 %v1369, %v1520
      %v1790 = vmul.f32 %v1369, %v1524
      %v1791 = vmul.f32 %v1374, %v1520
      %v1792 = vmul.f32 %v1374, %v1524
      %v1793 = vmul.f32 %v1379, %v1520
      %v1794 = vmul.f32 %v1379, %v1524
      %v1795 = vmul.f32 %v1384, %v1520
      %v1796 = vmul.f32 %v1384, %v1524
      %v1797 = vmul.f32 %v1389, %v1520
      %v1798 = vmul.f32 %v1389, %v1524
      %v1799 = vmul.f32 %v1394, %v1520
      %v1800 = vmul.f32 %v1394, %v1524
      %v1801 = vmul.f32 %v1399, %v1520
      %v1802 = vmul.f32 %v1399, %v1524
      %v1803 = vmul.f32 %v1404, %v1520
      %v1804 = vmul.f32 %v1404, %v1524
      %v1805 = vmul.f32 %v1409, %v1520
      %v1806 = vmul.f32 %v1409, %v1524
      %v1807 = vmul.f32 %v1414, %v1520
      %v1808 = vmul.f32 %v1414, %v1524
      %v1809 = vmul.f32 %v1419, %v1520
      %v1810 = vmul.f32 %v1419, %v1524
      %v1811 = vmul.f32 %v1424, %v1520
      %v1812 = vmul.f32 %v1424, %v1524
      %v1813 = vmul.f32 %v1429, %v1520
      %v1814 = vmul.f32 %v1429, %v1524
      %v1815 = vmul.f32 %v1434, %v1520
      %v1816 = vmul.f32 %v1434, %v1524
      %v1817 = vmul.f32 %v1439, %v1520
      %v1818 = vmul.f32 %v1439, %v1524
      %v1819 = vmul.f32 %v1444, %v1520
      %v1820 = vmul.f32 %v1444, %v1524
      %v1821 = vmul.f32 %v1449, %v1520
      %v1822 = vmul.f32 %v1449, %v1524
      %v1823 = vmul.f32 %v1454, %v1520
      %v1824 = vmul.f32 %v1454, %v1524
      %v1825 = vmul.f32 %v1459, %v1520
      %v1826 = vmul.f32 %v1459, %v1524
      %v1827 = vmul.f32 %v1464, %v1520
      %v1828 = vmul.f32 %v1464, %v1524
      %v1829 = vmul.f32 %v1469, %v1520
      %v1830 = vmul.f32 %v1469, %v1524
      %v1831 = vmul.f32 %v1474, %v1520
      %v1832 = vmul.f32 %v1474, %v1524
      %v1833 = vmul.f32 %v1479, %v1520
      %v1834 = vmul.f32 %v1479, %v1524
      %v1835 = vmul.f32 %v1484, %v1520
      %v1836 = vmul.f32 %v1484, %v1524
      %v1837 = vmul.f32 %v1489, %v1520
      %v1838 = vmul.f32 %v1489, %v1524
      %v1839 = vmul.f32 %v1494, %v1520
      %v1840 = vmul.f32 %v1494, %v1524
      %v1841 = vmul.f32 %v1499, %v1520
      %v1842 = vmul.f32 %v1499, %v1524
      %v1843 = vmul.f32 %v1504, %v1520
      %v1844 = vmul.f32 %v1504, %v1524
      %1845 = vset.pattern.permute.xlu0 1
      %1846 = vperm.xlu0 %1845, %v546
      %v1847 = vpop.permute.xlu0 %1846
      %1849 = vset.pattern.permute.xlu0 1
      %1850 = vperm.xlu0 %1849, %v547
      %v1851 = vpop.permute.xlu0 %1850
      %1853 = vset.pattern.permute.xlu0 1
      %1854 = vperm.xlu0 %1853, %v548
      %v1855 = vpop.permute.xlu0 %1854
      %1857 = vset.pattern.permute.xlu0 1
      %1858 = vperm.xlu0 %1857, %v549
      %v1859 = vpop.permute.xlu0 %1858
      %1861 = vset.pattern.permute.xlu0 1
      %1862 = vperm.xlu0 %1861, %v550
      %v1863 = vpop.permute.xlu0 %1862
      %1865 = vset.pattern.permute.xlu0 1
      %1866 = vperm.xlu0 %1865, %v551
      %v1867 = vpop.permute.xlu0 %1866
      %1869 = vset.pattern.permute.xlu0 1
      %1870 = vperm.xlu0 %1869, %v552
      %v1871 = vpop.permute.xlu0 %1870
      %1873 = vset.pattern.permute.xlu0 1
      %1874 = vperm.xlu0 %1873, %v553
      %v1875 = vpop.permute.xlu0 %1874
      %1877 = vset.pattern.permute.xlu0 1
      %1878 = vperm.xlu0 %1877, %v554
      %v1879 = vpop.permute.xlu0 %1878
      %1881 = vset.pattern.permute.xlu0 1
      %1882 = vperm.xlu0 %1881, %v555
      %v1883 = vpop.permute.xlu0 %1882
      %1885 = vset.pattern.permute.xlu0 1
      %1886 = vperm.xlu0 %1885, %v556
      %v1887 = vpop.permute.xlu0 %1886
      %1889 = vset.pattern.permute.xlu0 1
      %1890 = vperm.xlu0 %1889, %v557
      %v1891 = vpop.permute.xlu0 %1890
      %1893 = vset.pattern.permute.xlu0 1
      %1894 = vperm.xlu0 %1893, %v558
      %v1895 = vpop.permute.xlu0 %1894
      %1897 = vset.pattern.permute.xlu0 1
      %1898 = vperm.xlu0 %1897, %v559
      %v1899 = vpop.permute.xlu0 %1898
      %1901 = vset.pattern.permute.xlu0 1
      %1902 = vperm.xlu0 %1901, %v560
      %v1903 = vpop.permute.xlu0 %1902
      %1905 = vset.pattern.permute.xlu0 1
      %1906 = vperm.xlu0 %1905, %v561
      %v1907 = vpop.permute.xlu0 %1906
      %1909 = vset.pattern.permute.xlu0 1
      %1910 = vperm.xlu0 %1909, %v562
      %v1911 = vpop.permute.xlu0 %1910
      %1913 = vset.pattern.permute.xlu0 1
      %1914 = vperm.xlu0 %1913, %v563
      %v1915 = vpop.permute.xlu0 %1914
      %1917 = vset.pattern.permute.xlu0 1
      %1918 = vperm.xlu0 %1917, %v564
      %v1919 = vpop.permute.xlu0 %1918
      %1921 = vset.pattern.permute.xlu0 1
      %1922 = vperm.xlu0 %1921, %v565
      %v1923 = vpop.permute.xlu0 %1922
      %1925 = vset.pattern.permute.xlu0 1
      %1926 = vperm.xlu0 %1925, %v566
      %v1927 = vpop.permute.xlu0 %1926
      %1929 = vset.pattern.permute.xlu0 1
      %1930 = vperm.xlu0 %1929, %v567
      %v1931 = vpop.permute.xlu0 %1930
      %1933 = vset.pattern.permute.xlu0 1
      %1934 = vperm.xlu0 %1933, %v568
      %v1935 = vpop.permute.xlu0 %1934
      %1937 = vset.pattern.permute.xlu0 1
      %1938 = vperm.xlu0 %1937, %v569
      %v1939 = vpop.permute.xlu0 %1938
      %1941 = vset.pattern.permute.xlu0 1
      %1942 = vperm.xlu0 %1941, %v570
      %v1943 = vpop.permute.xlu0 %1942
      %1945 = vset.pattern.permute.xlu0 1
      %1946 = vperm.xlu0 %1945, %v571
      %v1947 = vpop.permute.xlu0 %1946
      %1949 = vset.pattern.permute.xlu0 1
      %1950 = vperm.xlu0 %1949, %v572
      %v1951 = vpop.permute.xlu0 %1950
      %1953 = vset.pattern.permute.xlu0 1
      %1954 = vperm.xlu0 %1953, %v573
      %v1955 = vpop.permute.xlu0 %1954
      %1957 = vset.pattern.permute.xlu0 1
      %1958 = vperm.xlu0 %1957, %v574
      %v1959 = vpop.permute.xlu0 %1958
      %1961 = vset.pattern.permute.xlu0 1
      %1962 = vperm.xlu0 %1961, %v575
      %v1963 = vpop.permute.xlu0 %1962
      %1965 = vset.pattern.permute.xlu0 1
      %1966 = vperm.xlu0 %1965, %v576
      %v1967 = vpop.permute.xlu0 %1966
      %1969 = vset.pattern.permute.xlu0 1
      %1970 = vperm.xlu0 %1969, %v577
      %v1971 = vpop.permute.xlu0 %1970
      %1973 = vset.pattern.permute.xlu0 1
      %1974 = vperm.xlu0 %1973, %v578
      %v1975 = vpop.permute.xlu0 %1974
      %1977 = vset.pattern.permute.xlu0 1
      %1978 = vperm.xlu0 %1977, %v579
      %v1979 = vpop.permute.xlu0 %1978
      %1981 = vset.pattern.permute.xlu0 1
      %1982 = vperm.xlu0 %1981, %v580
      %v1983 = vpop.permute.xlu0 %1982
      %1985 = vset.pattern.permute.xlu0 1
      %1986 = vperm.xlu0 %1985, %v581
      %v1987 = vpop.permute.xlu0 %1986
      %1989 = vset.pattern.permute.xlu0 1
      %1990 = vperm.xlu0 %1989, %v582
      %v1991 = vpop.permute.xlu0 %1990
      %1993 = vset.pattern.permute.xlu0 1
      %1994 = vperm.xlu0 %1993, %v583
      %v1995 = vpop.permute.xlu0 %1994
      %1997 = vset.pattern.permute.xlu0 1
      %1998 = vperm.xlu0 %1997, %v584
      %v1999 = vpop.permute.xlu0 %1998
      %2001 = vset.pattern.permute.xlu0 1
      %2002 = vperm.xlu0 %2001, %v585
      %v2003 = vpop.permute.xlu0 %2002
      %2005 = vset.pattern.permute.xlu0 1
      %2006 = vperm.xlu0 %2005, %v586
      %v2007 = vpop.permute.xlu0 %2006
      %2009 = vset.pattern.permute.xlu0 1
      %2010 = vperm.xlu0 %2009, %v587
      %v2011 = vpop.permute.xlu0 %2010
      %2013 = vset.pattern.permute.xlu0 1
      %2014 = vperm.xlu0 %2013, %v588
      %v2015 = vpop.permute.xlu0 %2014
      %2017 = vset.pattern.permute.xlu0 1
      %2018 = vperm.xlu0 %2017, %v589
      %v2019 = vpop.permute.xlu0 %2018
      %2021 = vset.pattern.permute.xlu0 1
      %2022 = vperm.xlu0 %2021, %v590
      %v2023 = vpop.permute.xlu0 %2022
      %2025 = vset.pattern.permute.xlu0 1
      %2026 = vperm.xlu0 %2025, %v591
      %v2027 = vpop.permute.xlu0 %2026
      %2029 = vset.pattern.permute.xlu0 1
      %2030 = vperm.xlu0 %2029, %v592
      %v2031 = vpop.permute.xlu0 %2030
      %2033 = vset.pattern.permute.xlu0 1
      %2034 = vperm.xlu0 %2033, %v593
      %v2035 = vpop.permute.xlu0 %2034
      %2037 = vset.pattern.permute.xlu0 1
      %2038 = vperm.xlu0 %2037, %v594
      %v2039 = vpop.permute.xlu0 %2038
      %2041 = vset.pattern.permute.xlu0 1
      %2042 = vperm.xlu0 %2041, %v595
      %v2043 = vpop.permute.xlu0 %2042
      %2045 = vset.pattern.permute.xlu0 1
      %2046 = vperm.xlu0 %2045, %v596
      %v2047 = vpop.permute.xlu0 %2046
      %2049 = vset.pattern.permute.xlu0 1
      %2050 = vperm.xlu0 %2049, %v597
      %v2051 = vpop.permute.xlu0 %2050
      %2053 = vset.pattern.permute.xlu0 1
      %2054 = vperm.xlu0 %2053, %v598
      %v2055 = vpop.permute.xlu0 %2054
      %2057 = vset.pattern.permute.xlu0 1
      %2058 = vperm.xlu0 %2057, %v599
      %v2059 = vpop.permute.xlu0 %2058
      %2061 = vset.pattern.permute.xlu0 1
      %2062 = vperm.xlu0 %2061, %v600
      %v2063 = vpop.permute.xlu0 %2062
      %2065 = vset.pattern.permute.xlu0 1
      %2066 = vperm.xlu0 %2065, %v601
      %v2067 = vpop.permute.xlu0 %2066
      %2069 = vset.pattern.permute.xlu0 1
      %2070 = vperm.xlu0 %2069, %v602
      %v2071 = vpop.permute.xlu0 %2070
      %2073 = vset.pattern.permute.xlu0 1
      %2074 = vperm.xlu0 %2073, %v603
      %v2075 = vpop.permute.xlu0 %2074
      %2077 = vset.pattern.permute.xlu0 1
      %2078 = vperm.xlu0 %2077, %v604
      %v2079 = vpop.permute.xlu0 %2078
      %2081 = vset.pattern.permute.xlu0 1
      %2082 = vperm.xlu0 %2081, %v605
      %v2083 = vpop.permute.xlu0 %2082
      %2085 = vset.pattern.permute.xlu0 1
      %2086 = vperm.xlu0 %2085, %v606
      %v2087 = vpop.permute.xlu0 %2086
      %2089 = vset.pattern.permute.xlu0 1
      %2090 = vperm.xlu0 %2089, %v607
      %v2091 = vpop.permute.xlu0 %2090
      %2093 = vset.pattern.permute.xlu0 1
      %2094 = vperm.xlu0 %2093, %v608
      %v2095 = vpop.permute.xlu0 %2094
      %2097 = vset.pattern.permute.xlu0 1
      %2098 = vperm.xlu0 %2097, %v609
      %v2099 = vpop.permute.xlu0 %2098
      %2101 = vset.pattern.permute.xlu0 1
      %2102 = vperm.xlu0 %2101, %v610
      %v2103 = vpop.permute.xlu0 %2102
      %2105 = vset.pattern.permute.xlu0 1
      %2106 = vperm.xlu0 %2105, %v611
      %v2107 = vpop.permute.xlu0 %2106
      %2109 = vset.pattern.permute.xlu0 1
      %2110 = vperm.xlu0 %2109, %v612
      %v2111 = vpop.permute.xlu0 %2110
      %2113 = vset.pattern.permute.xlu0 1
      %2114 = vperm.xlu0 %2113, %v613
      %v2115 = vpop.permute.xlu0 %2114
      %2117 = vset.pattern.permute.xlu0 1
      %2118 = vperm.xlu0 %2117, %v614
      %v2119 = vpop.permute.xlu0 %2118
      %2121 = vset.pattern.permute.xlu0 1
      %2122 = vperm.xlu0 %2121, %v615
      %v2123 = vpop.permute.xlu0 %2122
      %2125 = vset.pattern.permute.xlu0 1
      %2126 = vperm.xlu0 %2125, %v616
      %v2127 = vpop.permute.xlu0 %2126
      %2129 = vset.pattern.permute.xlu0 1
      %2130 = vperm.xlu0 %2129, %v617
      %v2131 = vpop.permute.xlu0 %2130
      %2133 = vset.pattern.permute.xlu0 1
      %2134 = vperm.xlu0 %2133, %v618
      %v2135 = vpop.permute.xlu0 %2134
      %2137 = vset.pattern.permute.xlu0 1
      %2138 = vperm.xlu0 %2137, %v619
      %v2139 = vpop.permute.xlu0 %2138
      %2141 = vset.pattern.permute.xlu0 1
      %2142 = vperm.xlu0 %2141, %v620
      %v2143 = vpop.permute.xlu0 %2142
      %2145 = vset.pattern.permute.xlu0 1
      %2146 = vperm.xlu0 %2145, %v621
      %v2147 = vpop.permute.xlu0 %2146
      %2149 = vset.pattern.permute.xlu0 1
      %2150 = vperm.xlu0 %2149, %v622
      %v2151 = vpop.permute.xlu0 %2150
      %2153 = vset.pattern.permute.xlu0 1
      %2154 = vperm.xlu0 %2153, %v623
      %v2155 = vpop.permute.xlu0 %2154
      %2157 = vset.pattern.permute.xlu0 1
      %2158 = vperm.xlu0 %2157, %v624
      %v2159 = vpop.permute.xlu0 %2158
      %2161 = vset.pattern.permute.xlu0 1
      %2162 = vperm.xlu0 %2161, %v625
      %v2163 = vpop.permute.xlu0 %2162
      %2165 = vset.pattern.permute.xlu0 1
      %2166 = vperm.xlu0 %2165, %v626
      %v2167 = vpop.permute.xlu0 %2166
      %2169 = vset.pattern.permute.xlu0 1
      %2170 = vperm.xlu0 %2169, %v627
      %v2171 = vpop.permute.xlu0 %2170
      %2173 = vset.pattern.permute.xlu0 1
      %2174 = vperm.xlu0 %2173, %v628
      %v2175 = vpop.permute.xlu0 %2174
      %2177 = vset.pattern.permute.xlu0 1
      %2178 = vperm.xlu0 %2177, %v629
      %v2179 = vpop.permute.xlu0 %2178
      %2181 = vset.pattern.permute.xlu0 1
      %2182 = vperm.xlu0 %2181, %v630
      %v2183 = vpop.permute.xlu0 %2182
      %2185 = vset.pattern.permute.xlu0 1
      %2186 = vperm.xlu0 %2185, %v631
      %v2187 = vpop.permute.xlu0 %2186
      %2189 = vset.pattern.permute.xlu0 1
      %2190 = vperm.xlu0 %2189, %v632
      %v2191 = vpop.permute.xlu0 %2190
      %2193 = vset.pattern.permute.xlu0 1
      %2194 = vperm.xlu0 %2193, %v633
      %v2195 = vpop.permute.xlu0 %2194
      %2197 = vset.pattern.permute.xlu0 1
      %2198 = vperm.xlu0 %2197, %v634
      %v2199 = vpop.permute.xlu0 %2198
      %2201 = vset.pattern.permute.xlu0 1
      %2202 = vperm.xlu0 %2201, %v635
      %v2203 = vpop.permute.xlu0 %2202
      %2205 = vset.pattern.permute.xlu0 1
      %2206 = vperm.xlu0 %2205, %v636
      %v2207 = vpop.permute.xlu0 %2206
      %2209 = vset.pattern.permute.xlu0 1
      %2210 = vperm.xlu0 %2209, %v637
      %v2211 = vpop.permute.xlu0 %2210
      %2213 = vset.pattern.permute.xlu0 1
      %2214 = vperm.xlu0 %2213, %v638
      %v2215 = vpop.permute.xlu0 %2214
      %2217 = vset.pattern.permute.xlu0 1
      %2218 = vperm.xlu0 %2217, %v639
      %v2219 = vpop.permute.xlu0 %2218
      %2221 = vset.pattern.permute.xlu0 1
      %2222 = vperm.xlu0 %2221, %v640
      %v2223 = vpop.permute.xlu0 %2222
      %2225 = vset.pattern.permute.xlu0 1
      %2226 = vperm.xlu0 %2225, %v641
      %v2227 = vpop.permute.xlu0 %2226
      %2229 = vset.pattern.permute.xlu0 1
      %2230 = vperm.xlu0 %2229, %v642
      %v2231 = vpop.permute.xlu0 %2230
      %2233 = vset.pattern.permute.xlu0 1
      %2234 = vperm.xlu0 %2233, %v643
      %v2235 = vpop.permute.xlu0 %2234
      %2237 = vset.pattern.permute.xlu0 1
      %2238 = vperm.xlu0 %2237, %v644
      %v2239 = vpop.permute.xlu0 %2238
      %2241 = vset.pattern.permute.xlu0 1
      %2242 = vperm.xlu0 %2241, %v645
      %v2243 = vpop.permute.xlu0 %2242
      %2245 = vset.pattern.permute.xlu0 1
      %2246 = vperm.xlu0 %2245, %v646
      %v2247 = vpop.permute.xlu0 %2246
      %2249 = vset.pattern.permute.xlu0 1
      %2250 = vperm.xlu0 %2249, %v647
      %v2251 = vpop.permute.xlu0 %2250
      %2253 = vset.pattern.permute.xlu0 1
      %2254 = vperm.xlu0 %2253, %v648
      %v2255 = vpop.permute.xlu0 %2254
      %2257 = vset.pattern.permute.xlu0 1
      %2258 = vperm.xlu0 %2257, %v649
      %v2259 = vpop.permute.xlu0 %2258
      %2261 = vset.pattern.permute.xlu0 1
      %2262 = vperm.xlu0 %2261, %v650
      %v2263 = vpop.permute.xlu0 %2262
      %2265 = vset.pattern.permute.xlu0 1
      %2266 = vperm.xlu0 %2265, %v651
      %v2267 = vpop.permute.xlu0 %2266
      %2269 = vset.pattern.permute.xlu0 1
      %2270 = vperm.xlu0 %2269, %v652
      %v2271 = vpop.permute.xlu0 %2270
      %2273 = vset.pattern.permute.xlu0 1
      %2274 = vperm.xlu0 %2273, %v653
      %v2275 = vpop.permute.xlu0 %2274
      %2277 = vset.pattern.permute.xlu0 1
      %2278 = vperm.xlu0 %2277, %v654
      %v2279 = vpop.permute.xlu0 %2278
      %2281 = vset.pattern.permute.xlu0 1
      %2282 = vperm.xlu0 %2281, %v655
      %v2283 = vpop.permute.xlu0 %2282
      %2285 = vset.pattern.permute.xlu0 1
      %2286 = vperm.xlu0 %2285, %v656
      %v2287 = vpop.permute.xlu0 %2286
      %2289 = vset.pattern.permute.xlu0 1
      %2290 = vperm.xlu0 %2289, %v657
      %v2291 = vpop.permute.xlu0 %2290
      %2293 = vset.pattern.permute.xlu0 1
      %2294 = vperm.xlu0 %2293, %v658
      %v2295 = vpop.permute.xlu0 %2294
      %2297 = vset.pattern.permute.xlu0 1
      %2298 = vperm.xlu0 %2297, %v659
      %v2299 = vpop.permute.xlu0 %2298
      %2301 = vset.pattern.permute.xlu0 1
      %2302 = vperm.xlu0 %2301, %v660
      %v2303 = vpop.permute.xlu0 %2302
      %2305 = vset.pattern.permute.xlu0 1
      %2306 = vperm.xlu0 %2305, %v661
      %v2307 = vpop.permute.xlu0 %2306
      %2309 = vset.pattern.permute.xlu0 1
      %2310 = vperm.xlu0 %2309, %v662
      %v2311 = vpop.permute.xlu0 %2310
      %2313 = vset.pattern.permute.xlu0 1
      %2314 = vperm.xlu0 %2313, %v663
      %v2315 = vpop.permute.xlu0 %2314
      %2317 = vset.pattern.permute.xlu0 1
      %2318 = vperm.xlu0 %2317, %v664
      %v2319 = vpop.permute.xlu0 %2318
      %2321 = vset.pattern.permute.xlu0 1
      %2322 = vperm.xlu0 %2321, %v665
      %v2323 = vpop.permute.xlu0 %2322
      %2325 = vset.pattern.permute.xlu0 1
      %2326 = vperm.xlu0 %2325, %v666
      %v2327 = vpop.permute.xlu0 %2326
      %2329 = vset.pattern.permute.xlu0 1
      %2330 = vperm.xlu0 %2329, %v667
      %v2331 = vpop.permute.xlu0 %2330
      %2333 = vset.pattern.permute.xlu0 1
      %2334 = vperm.xlu0 %2333, %v668
      %v2335 = vpop.permute.xlu0 %2334
      %2337 = vset.pattern.permute.xlu0 1
      %2338 = vperm.xlu0 %2337, %v669
      %v2339 = vpop.permute.xlu0 %2338
      %2341 = vset.pattern.permute.xlu0 1
      %2342 = vperm.xlu0 %2341, %v670
      %v2343 = vpop.permute.xlu0 %2342
      %2345 = vset.pattern.permute.xlu0 1
      %2346 = vperm.xlu0 %2345, %v671
      %v2347 = vpop.permute.xlu0 %2346
      %2349 = vset.pattern.permute.xlu0 1
      %2350 = vperm.xlu0 %2349, %v672
      %v2351 = vpop.permute.xlu0 %2350
      %2353 = vset.pattern.permute.xlu0 1
      %2354 = vperm.xlu0 %2353, %v673
      %v2355 = vpop.permute.xlu0 %2354
      %2357 = vset.pattern.permute.xlu0 1
      %2358 = vperm.xlu0 %2357, %v674
      %v2359 = vpop.permute.xlu0 %2358
      %2361 = vset.pattern.permute.xlu0 1
      %2362 = vperm.xlu0 %2361, %v675
      %v2363 = vpop.permute.xlu0 %2362
      %2365 = vset.pattern.permute.xlu0 1
      %2366 = vperm.xlu0 %2365, %v676
      %v2367 = vpop.permute.xlu0 %2366
      %2369 = vset.pattern.permute.xlu0 1
      %2370 = vperm.xlu0 %2369, %v677
      %v2371 = vpop.permute.xlu0 %2370
      %2373 = vset.pattern.permute.xlu0 1
      %2374 = vperm.xlu0 %2373, %v678
      %v2375 = vpop.permute.xlu0 %2374
      %2377 = vset.pattern.permute.xlu0 1
      %2378 = vperm.xlu0 %2377, %v679
      %v2379 = vpop.permute.xlu0 %2378
      %2381 = vset.pattern.permute.xlu0 1
      %2382 = vperm.xlu0 %2381, %v680
      %v2383 = vpop.permute.xlu0 %2382
      %2385 = vset.pattern.permute.xlu0 1
      %2386 = vperm.xlu0 %2385, %v681
      %v2387 = vpop.permute.xlu0 %2386
      %2389 = vset.pattern.permute.xlu0 1
      %2390 = vperm.xlu0 %2389, %v682
      %v2391 = vpop.permute.xlu0 %2390
      %2393 = vset.pattern.permute.xlu0 1
      %2394 = vperm.xlu0 %2393, %v683
      %v2395 = vpop.permute.xlu0 %2394
      %2397 = vset.pattern.permute.xlu0 1
      %2398 = vperm.xlu0 %2397, %v684
      %v2399 = vpop.permute.xlu0 %2398
      %2401 = vset.pattern.permute.xlu0 1
      %2402 = vperm.xlu0 %2401, %v685
      %v2403 = vpop.permute.xlu0 %2402
      %2405 = vset.pattern.permute.xlu0 1
      %2406 = vperm.xlu0 %2405, %v686
      %v2407 = vpop.permute.xlu0 %2406
      %2409 = vset.pattern.permute.xlu0 1
      %2410 = vperm.xlu0 %2409, %v687
      %v2411 = vpop.permute.xlu0 %2410
      %2413 = vset.pattern.permute.xlu0 1
      %2414 = vperm.xlu0 %2413, %v688
      %v2415 = vpop.permute.xlu0 %2414
      %2417 = vset.pattern.permute.xlu0 1
      %2418 = vperm.xlu0 %2417, %v689
      %v2419 = vpop.permute.xlu0 %2418
      %2421 = vset.pattern.permute.xlu0 1
      %2422 = vperm.xlu0 %2421, %v690
      %v2423 = vpop.permute.xlu0 %2422
      %2425 = vset.pattern.permute.xlu0 1
      %2426 = vperm.xlu0 %2425, %v691
      %v2427 = vpop.permute.xlu0 %2426
      %2429 = vset.pattern.permute.xlu0 1
      %2430 = vperm.xlu0 %2429, %v692
      %v2431 = vpop.permute.xlu0 %2430
      %2433 = vset.pattern.permute.xlu0 1
      %2434 = vperm.xlu0 %2433, %v693
      %v2435 = vpop.permute.xlu0 %2434
      %2437 = vset.pattern.permute.xlu0 1
      %2438 = vperm.xlu0 %2437, %v694
      %v2439 = vpop.permute.xlu0 %2438
      %2441 = vset.pattern.permute.xlu0 1
      %2442 = vperm.xlu0 %2441, %v695
      %v2443 = vpop.permute.xlu0 %2442
      %2445 = vset.pattern.permute.xlu0 1
      %2446 = vperm.xlu0 %2445, %v696
      %v2447 = vpop.permute.xlu0 %2446
      %2449 = vset.pattern.permute.xlu0 1
      %2450 = vperm.xlu0 %2449, %v697
      %v2451 = vpop.permute.xlu0 %2450
      %2453 = vset.pattern.permute.xlu0 1
      %2454 = vperm.xlu0 %2453, %v698
      %v2455 = vpop.permute.xlu0 %2454
      %2457 = vset.pattern.permute.xlu0 1
      %2458 = vperm.xlu0 %2457, %v699
      %v2459 = vpop.permute.xlu0 %2458
      %2461 = vset.pattern.permute.xlu0 1
      %2462 = vperm.xlu0 %2461, %v700
      %v2463 = vpop.permute.xlu0 %2462
      %2465 = vset.pattern.permute.xlu0 1
      %2466 = vperm.xlu0 %2465, %v701
      %v2467 = vpop.permute.xlu0 %2466
      %2469 = vset.pattern.permute.xlu0 1
      %2470 = vperm.xlu0 %2469, %v702
      %v2471 = vpop.permute.xlu0 %2470
      %2473 = vset.pattern.permute.xlu0 1
      %2474 = vperm.xlu0 %2473, %v703
      %v2475 = vpop.permute.xlu0 %2474
      %2477 = vset.pattern.permute.xlu0 1
      %2478 = vperm.xlu0 %2477, %v704
      %v2479 = vpop.permute.xlu0 %2478
      %2481 = vset.pattern.permute.xlu0 1
      %2482 = vperm.xlu0 %2481, %v705
      %v2483 = vpop.permute.xlu0 %2482
      %v2485 = vlaneseq
      %v2486 = vshrl.u32 %v2485, 7
      %v2487 = vsub.s32 1, %v2486
      %v2488 = vrot.slane %v545, %v2487
      %v2489 = vlaneseq
      %v2490 = vshrl.u32 %v2489, 7
      %v2491 = vsub.s32 5, %v2490
      %v2492 = vrot.slane %v545, %v2491
      %v2495 = vlaneseq
      %v2496 = vshrl.u32 %v2495, 7
      %v2497 = vsub.s32 1, %v2496
      %v2498 = vrot.slane %v2488, %v2497
      %v2499 = vlaneseq
      %v2500 = vshrl.u32 %v2499, 7
      %v2501 = vsub.s32 1, %v2500
      %v2502 = vrot.slane %v2492, %v2501
      %v2503 = vmul.f32 %v1847, %v2498
      %v2504 = vmul.f32 %v1847, %v2502
      %v2505 = vmul.f32 %v1851, %v2498
      %v2506 = vmul.f32 %v1851, %v2502
      %v2507 = vmul.f32 %v1855, %v2498
      %v2508 = vmul.f32 %v1855, %v2502
      %v2509 = vmul.f32 %v1859, %v2498
      %v2510 = vmul.f32 %v1859, %v2502
      %v2511 = vmul.f32 %v1863, %v2498
      %v2512 = vmul.f32 %v1863, %v2502
      %v2513 = vmul.f32 %v1867, %v2498
      %v2514 = vmul.f32 %v1867, %v2502
      %v2515 = vmul.f32 %v1871, %v2498
      %v2516 = vmul.f32 %v1871, %v2502
      %v2517 = vmul.f32 %v1875, %v2498
      %v2518 = vmul.f32 %v1875, %v2502
      %v2519 = vmul.f32 %v1879, %v2498
      %v2520 = vmul.f32 %v1879, %v2502
      %v2521 = vmul.f32 %v1883, %v2498
      %v2522 = vmul.f32 %v1883, %v2502
      %v2523 = vmul.f32 %v1887, %v2498
      %v2524 = vmul.f32 %v1887, %v2502
      %v2525 = vmul.f32 %v1891, %v2498
      %v2526 = vmul.f32 %v1891, %v2502
      %v2527 = vmul.f32 %v1895, %v2498
      %v2528 = vmul.f32 %v1895, %v2502
      %v2529 = vmul.f32 %v1899, %v2498
      %v2530 = vmul.f32 %v1899, %v2502
      %v2531 = vmul.f32 %v1903, %v2498
      %v2532 = vmul.f32 %v1903, %v2502
      %v2533 = vmul.f32 %v1907, %v2498
      %v2534 = vmul.f32 %v1907, %v2502
      %v2535 = vmul.f32 %v1911, %v2498
      %v2536 = vmul.f32 %v1911, %v2502
      %v2537 = vmul.f32 %v1915, %v2498
      %v2538 = vmul.f32 %v1915, %v2502
      %v2539 = vmul.f32 %v1919, %v2498
      %v2540 = vmul.f32 %v1919, %v2502
      %v2541 = vmul.f32 %v1923, %v2498
      %v2542 = vmul.f32 %v1923, %v2502
      %v2543 = vmul.f32 %v1927, %v2498
      %v2544 = vmul.f32 %v1927, %v2502
      %v2545 = vmul.f32 %v1931, %v2498
      %v2546 = vmul.f32 %v1931, %v2502
      %v2547 = vmul.f32 %v1935, %v2498
      %v2548 = vmul.f32 %v1935, %v2502
      %v2549 = vmul.f32 %v1939, %v2498
      %v2550 = vmul.f32 %v1939, %v2502
      %v2551 = vmul.f32 %v1943, %v2498
      %v2552 = vmul.f32 %v1943, %v2502
      %v2553 = vmul.f32 %v1947, %v2498
      %v2554 = vmul.f32 %v1947, %v2502
      %v2555 = vmul.f32 %v1951, %v2498
      %v2556 = vmul.f32 %v1951, %v2502
      %v2557 = vmul.f32 %v1955, %v2498
      %v2558 = vmul.f32 %v1955, %v2502
      %v2559 = vmul.f32 %v1959, %v2498
      %v2560 = vmul.f32 %v1959, %v2502
      %v2561 = vmul.f32 %v1963, %v2498
      %v2562 = vmul.f32 %v1963, %v2502
      %v2563 = vmul.f32 %v1967, %v2498
      %v2564 = vmul.f32 %v1967, %v2502
      %v2565 = vmul.f32 %v1971, %v2498
      %v2566 = vmul.f32 %v1971, %v2502
      %v2567 = vmul.f32 %v1975, %v2498
      %v2568 = vmul.f32 %v1975, %v2502
      %v2569 = vmul.f32 %v1979, %v2498
      %v2570 = vmul.f32 %v1979, %v2502
      %v2571 = vmul.f32 %v1983, %v2498
      %v2572 = vmul.f32 %v1983, %v2502
      %v2573 = vmul.f32 %v1987, %v2498
      %v2574 = vmul.f32 %v1987, %v2502
      %v2575 = vmul.f32 %v1991, %v2498
      %v2576 = vmul.f32 %v1991, %v2502
      %v2577 = vmul.f32 %v1995, %v2498
      %v2578 = vmul.f32 %v1995, %v2502
      %v2579 = vmul.f32 %v1999, %v2498
      %v2580 = vmul.f32 %v1999, %v2502
      %v2581 = vmul.f32 %v2003, %v2498
      %v2582 = vmul.f32 %v2003, %v2502
      %v2583 = vmul.f32 %v2007, %v2498
      %v2584 = vmul.f32 %v2007, %v2502
      %v2585 = vmul.f32 %v2011, %v2498
      %v2586 = vmul.f32 %v2011, %v2502
      %v2587 = vmul.f32 %v2015, %v2498
      %v2588 = vmul.f32 %v2015, %v2502
      %v2589 = vmul.f32 %v2019, %v2498
      %v2590 = vmul.f32 %v2019, %v2502
      %v2591 = vmul.f32 %v2023, %v2498
      %v2592 = vmul.f32 %v2023, %v2502
      %v2593 = vmul.f32 %v2027, %v2498
      %v2594 = vmul.f32 %v2027, %v2502
      %v2595 = vmul.f32 %v2031, %v2498
      %v2596 = vmul.f32 %v2031, %v2502
      %v2597 = vmul.f32 %v2035, %v2498
      %v2598 = vmul.f32 %v2035, %v2502
      %v2599 = vmul.f32 %v2039, %v2498
      %v2600 = vmul.f32 %v2039, %v2502
      %v2601 = vmul.f32 %v2043, %v2498
      %v2602 = vmul.f32 %v2043, %v2502
      %v2603 = vmul.f32 %v2047, %v2498
      %v2604 = vmul.f32 %v2047, %v2502
      %v2605 = vmul.f32 %v2051, %v2498
      %v2606 = vmul.f32 %v2051, %v2502
      %v2607 = vmul.f32 %v2055, %v2498
      %v2608 = vmul.f32 %v2055, %v2502
      %v2609 = vmul.f32 %v2059, %v2498
      %v2610 = vmul.f32 %v2059, %v2502
      %v2611 = vmul.f32 %v2063, %v2498
      %v2612 = vmul.f32 %v2063, %v2502
      %v2613 = vmul.f32 %v2067, %v2498
      %v2614 = vmul.f32 %v2067, %v2502
      %v2615 = vmul.f32 %v2071, %v2498
      %v2616 = vmul.f32 %v2071, %v2502
      %v2617 = vmul.f32 %v2075, %v2498
      %v2618 = vmul.f32 %v2075, %v2502
      %v2619 = vmul.f32 %v2079, %v2498
      %v2620 = vmul.f32 %v2079, %v2502
      %v2621 = vmul.f32 %v2083, %v2498
      %v2622 = vmul.f32 %v2083, %v2502
      %v2623 = vmul.f32 %v2087, %v2498
      %v2624 = vmul.f32 %v2087, %v2502
      %v2625 = vmul.f32 %v2091, %v2498
      %v2626 = vmul.f32 %v2091, %v2502
      %v2627 = vmul.f32 %v2095, %v2498
      %v2628 = vmul.f32 %v2095, %v2502
      %v2629 = vmul.f32 %v2099, %v2498
      %v2630 = vmul.f32 %v2099, %v2502
      %v2631 = vmul.f32 %v2103, %v2498
      %v2632 = vmul.f32 %v2103, %v2502
      %v2633 = vmul.f32 %v2107, %v2498
      %v2634 = vmul.f32 %v2107, %v2502
      %v2635 = vmul.f32 %v2111, %v2498
      %v2636 = vmul.f32 %v2111, %v2502
      %v2637 = vmul.f32 %v2115, %v2498
      %v2638 = vmul.f32 %v2115, %v2502
      %v2639 = vmul.f32 %v2119, %v2498
      %v2640 = vmul.f32 %v2119, %v2502
      %v2641 = vmul.f32 %v2123, %v2498
      %v2642 = vmul.f32 %v2123, %v2502
      %v2643 = vmul.f32 %v2127, %v2498
      %v2644 = vmul.f32 %v2127, %v2502
      %v2645 = vmul.f32 %v2131, %v2498
      %v2646 = vmul.f32 %v2131, %v2502
      %v2647 = vmul.f32 %v2135, %v2498
      %v2648 = vmul.f32 %v2135, %v2502
      %v2649 = vmul.f32 %v2139, %v2498
      %v2650 = vmul.f32 %v2139, %v2502
      %v2651 = vmul.f32 %v2143, %v2498
      %v2652 = vmul.f32 %v2143, %v2502
      %v2653 = vmul.f32 %v2147, %v2498
      %v2654 = vmul.f32 %v2147, %v2502
      %v2655 = vmul.f32 %v2151, %v2498
      %v2656 = vmul.f32 %v2151, %v2502
      %v2657 = vmul.f32 %v2155, %v2498
      %v2658 = vmul.f32 %v2155, %v2502
      %v2659 = vmul.f32 %v2159, %v2498
      %v2660 = vmul.f32 %v2159, %v2502
      %v2661 = vmul.f32 %v2163, %v2498
      %v2662 = vmul.f32 %v2163, %v2502
      %v2663 = vmul.f32 %v2167, %v2498
      %v2664 = vmul.f32 %v2167, %v2502
      %v2665 = vmul.f32 %v2171, %v2498
      %v2666 = vmul.f32 %v2171, %v2502
      %v2667 = vmul.f32 %v2175, %v2498
      %v2668 = vmul.f32 %v2175, %v2502
      %v2669 = vmul.f32 %v2179, %v2498
      %v2670 = vmul.f32 %v2179, %v2502
      %v2671 = vmul.f32 %v2183, %v2498
      %v2672 = vmul.f32 %v2183, %v2502
      %v2673 = vmul.f32 %v2187, %v2498
      %v2674 = vmul.f32 %v2187, %v2502
      %v2675 = vmul.f32 %v2191, %v2498
      %v2676 = vmul.f32 %v2191, %v2502
      %v2677 = vmul.f32 %v2195, %v2498
      %v2678 = vmul.f32 %v2195, %v2502
      %v2679 = vmul.f32 %v2199, %v2498
      %v2680 = vmul.f32 %v2199, %v2502
      %v2681 = vmul.f32 %v2203, %v2498
      %v2682 = vmul.f32 %v2203, %v2502
      %v2683 = vmul.f32 %v2207, %v2498
      %v2684 = vmul.f32 %v2207, %v2502
      %v2685 = vmul.f32 %v2211, %v2498
      %v2686 = vmul.f32 %v2211, %v2502
      %v2687 = vmul.f32 %v2215, %v2498
      %v2688 = vmul.f32 %v2215, %v2502
      %v2689 = vmul.f32 %v2219, %v2498
      %v2690 = vmul.f32 %v2219, %v2502
      %v2691 = vmul.f32 %v2223, %v2498
      %v2692 = vmul.f32 %v2223, %v2502
      %v2693 = vmul.f32 %v2227, %v2498
      %v2694 = vmul.f32 %v2227, %v2502
      %v2695 = vmul.f32 %v2231, %v2498
      %v2696 = vmul.f32 %v2231, %v2502
      %v2697 = vmul.f32 %v2235, %v2498
      %v2698 = vmul.f32 %v2235, %v2502
      %v2699 = vmul.f32 %v2239, %v2498
      %v2700 = vmul.f32 %v2239, %v2502
      %v2701 = vmul.f32 %v2243, %v2498
      %v2702 = vmul.f32 %v2243, %v2502
      %v2703 = vmul.f32 %v2247, %v2498
      %v2704 = vmul.f32 %v2247, %v2502
      %v2705 = vmul.f32 %v2251, %v2498
      %v2706 = vmul.f32 %v2251, %v2502
      %v2707 = vmul.f32 %v2255, %v2498
      %v2708 = vmul.f32 %v2255, %v2502
      %v2709 = vmul.f32 %v2259, %v2498
      %v2710 = vmul.f32 %v2259, %v2502
      %v2711 = vmul.f32 %v2263, %v2498
      %v2712 = vmul.f32 %v2263, %v2502
      %v2713 = vmul.f32 %v2267, %v2498
      %v2714 = vmul.f32 %v2267, %v2502
      %v2715 = vmul.f32 %v2271, %v2498
      %v2716 = vmul.f32 %v2271, %v2502
      %v2717 = vmul.f32 %v2275, %v2498
      %v2718 = vmul.f32 %v2275, %v2502
      %v2719 = vmul.f32 %v2279, %v2498
      %v2720 = vmul.f32 %v2279, %v2502
      %v2721 = vmul.f32 %v2283, %v2498
      %v2722 = vmul.f32 %v2283, %v2502
      %v2723 = vmul.f32 %v2287, %v2498
      %v2724 = vmul.f32 %v2287, %v2502
      %v2725 = vmul.f32 %v2291, %v2498
      %v2726 = vmul.f32 %v2291, %v2502
      %v2727 = vmul.f32 %v2295, %v2498
      %v2728 = vmul.f32 %v2295, %v2502
      %v2729 = vmul.f32 %v2299, %v2498
      %v2730 = vmul.f32 %v2299, %v2502
      %v2731 = vmul.f32 %v2303, %v2498
      %v2732 = vmul.f32 %v2303, %v2502
      %v2733 = vmul.f32 %v2307, %v2498
      %v2734 = vmul.f32 %v2307, %v2502
      %v2735 = vmul.f32 %v2311, %v2498
      %v2736 = vmul.f32 %v2311, %v2502
      %v2737 = vmul.f32 %v2315, %v2498
      %v2738 = vmul.f32 %v2315, %v2502
      %v2739 = vmul.f32 %v2319, %v2498
      %v2740 = vmul.f32 %v2319, %v2502
      %v2741 = vmul.f32 %v2323, %v2498
      %v2742 = vmul.f32 %v2323, %v2502
      %v2743 = vmul.f32 %v2327, %v2498
      %v2744 = vmul.f32 %v2327, %v2502
      %v2745 = vmul.f32 %v2331, %v2498
      %v2746 = vmul.f32 %v2331, %v2502
      %v2747 = vmul.f32 %v2335, %v2498
      %v2748 = vmul.f32 %v2335, %v2502
      %v2749 = vmul.f32 %v2339, %v2498
      %v2750 = vmul.f32 %v2339, %v2502
      %v2751 = vmul.f32 %v2343, %v2498
      %v2752 = vmul.f32 %v2343, %v2502
      %v2753 = vmul.f32 %v2347, %v2498
      %v2754 = vmul.f32 %v2347, %v2502
      %v2755 = vmul.f32 %v2351, %v2498
      %v2756 = vmul.f32 %v2351, %v2502
      %v2757 = vmul.f32 %v2355, %v2498
      %v2758 = vmul.f32 %v2355, %v2502
      %v2759 = vmul.f32 %v2359, %v2498
      %v2760 = vmul.f32 %v2359, %v2502
      %v2761 = vmul.f32 %v2363, %v2498
      %v2762 = vmul.f32 %v2363, %v2502
      %v2763 = vmul.f32 %v2367, %v2498
      %v2764 = vmul.f32 %v2367, %v2502
      %v2765 = vmul.f32 %v2371, %v2498
      %v2766 = vmul.f32 %v2371, %v2502
      %v2767 = vmul.f32 %v2375, %v2498
      %v2768 = vmul.f32 %v2375, %v2502
      %v2769 = vmul.f32 %v2379, %v2498
      %v2770 = vmul.f32 %v2379, %v2502
      %v2771 = vmul.f32 %v2383, %v2498
      %v2772 = vmul.f32 %v2383, %v2502
      %v2773 = vmul.f32 %v2387, %v2498
      %v2774 = vmul.f32 %v2387, %v2502
      %v2775 = vmul.f32 %v2391, %v2498
      %v2776 = vmul.f32 %v2391, %v2502
      %v2777 = vmul.f32 %v2395, %v2498
      %v2778 = vmul.f32 %v2395, %v2502
      %v2779 = vmul.f32 %v2399, %v2498
      %v2780 = vmul.f32 %v2399, %v2502
      %v2781 = vmul.f32 %v2403, %v2498
      %v2782 = vmul.f32 %v2403, %v2502
      %v2783 = vmul.f32 %v2407, %v2498
      %v2784 = vmul.f32 %v2407, %v2502
      %v2785 = vmul.f32 %v2411, %v2498
      %v2786 = vmul.f32 %v2411, %v2502
      %v2787 = vmul.f32 %v2415, %v2498
      %v2788 = vmul.f32 %v2415, %v2502
      %v2789 = vmul.f32 %v2419, %v2498
      %v2790 = vmul.f32 %v2419, %v2502
      %v2791 = vmul.f32 %v2423, %v2498
      %v2792 = vmul.f32 %v2423, %v2502
      %v2793 = vmul.f32 %v2427, %v2498
      %v2794 = vmul.f32 %v2427, %v2502
      %v2795 = vmul.f32 %v2431, %v2498
      %v2796 = vmul.f32 %v2431, %v2502
      %v2797 = vmul.f32 %v2435, %v2498
      %v2798 = vmul.f32 %v2435, %v2502
      %v2799 = vmul.f32 %v2439, %v2498
      %v2800 = vmul.f32 %v2439, %v2502
      %v2801 = vmul.f32 %v2443, %v2498
      %v2802 = vmul.f32 %v2443, %v2502
      %v2803 = vmul.f32 %v2447, %v2498
      %v2804 = vmul.f32 %v2447, %v2502
      %v2805 = vmul.f32 %v2451, %v2498
      %v2806 = vmul.f32 %v2451, %v2502
      %v2807 = vmul.f32 %v2455, %v2498
      %v2808 = vmul.f32 %v2455, %v2502
      %v2809 = vmul.f32 %v2459, %v2498
      %v2810 = vmul.f32 %v2459, %v2502
      %v2811 = vmul.f32 %v2463, %v2498
      %v2812 = vmul.f32 %v2463, %v2502
      %v2813 = vmul.f32 %v2467, %v2498
      %v2814 = vmul.f32 %v2467, %v2502
      %v2815 = vmul.f32 %v2471, %v2498
      %v2816 = vmul.f32 %v2471, %v2502
      %v2817 = vmul.f32 %v2475, %v2498
      %v2818 = vmul.f32 %v2475, %v2502
      %v2819 = vmul.f32 %v2479, %v2498
      %v2820 = vmul.f32 %v2479, %v2502
      %v2821 = vmul.f32 %v2483, %v2498
      %v2822 = vmul.f32 %v2483, %v2502
      %v2823 = vadd.f32 %v1525, %v2503
      %v2824 = vadd.f32 %v1526, %v2504
      %v2825 = vadd.f32 %v1527, %v2505
      %v2826 = vadd.f32 %v1528, %v2506
      %v2827 = vadd.f32 %v1529, %v2507
      %v2828 = vadd.f32 %v1530, %v2508
      %v2829 = vadd.f32 %v1531, %v2509
      %v2830 = vadd.f32 %v1532, %v2510
      %v2831 = vadd.f32 %v1533, %v2511
      %v2832 = vadd.f32 %v1534, %v2512
      %v2833 = vadd.f32 %v1535, %v2513
      %v2834 = vadd.f32 %v1536, %v2514
      %v2835 = vadd.f32 %v1537, %v2515
      %v2836 = vadd.f32 %v1538, %v2516
      %v2837 = vadd.f32 %v1539, %v2517
      %v2838 = vadd.f32 %v1540, %v2518
      %v2839 = vadd.f32 %v1541, %v2519
      %v2840 = vadd.f32 %v1542, %v2520
      %v2841 = vadd.f32 %v1543, %v2521
      %v2842 = vadd.f32 %v1544, %v2522
      %v2843 = vadd.f32 %v1545, %v2523
      %v2844 = vadd.f32 %v1546, %v2524
      %v2845 = vadd.f32 %v1547, %v2525
      %v2846 = vadd.f32 %v1548, %v2526
      %v2847 = vadd.f32 %v1549, %v2527
      %v2848 = vadd.f32 %v1550, %v2528
      %v2849 = vadd.f32 %v1551, %v2529
      %v2850 = vadd.f32 %v1552, %v2530
      %v2851 = vadd.f32 %v1553, %v2531
      %v2852 = vadd.f32 %v1554, %v2532
      %v2853 = vadd.f32 %v1555, %v2533
      %v2854 = vadd.f32 %v1556, %v2534
      %v2855 = vadd.f32 %v1557, %v2535
      %v2856 = vadd.f32 %v1558, %v2536
      %v2857 = vadd.f32 %v1559, %v2537
      %v2858 = vadd.f32 %v1560, %v2538
      %v2859 = vadd.f32 %v1561, %v2539
      %v2860 = vadd.f32 %v1562, %v2540
      %v2861 = vadd.f32 %v1563, %v2541
      %v2862 = vadd.f32 %v1564, %v2542
      %v2863 = vadd.f32 %v1565, %v2543
      %v2864 = vadd.f32 %v1566, %v2544
      %v2865 = vadd.f32 %v1567, %v2545
      %v2866 = vadd.f32 %v1568, %v2546
      %v2867 = vadd.f32 %v1569, %v2547
      %v2868 = vadd.f32 %v1570, %v2548
      %v2869 = vadd.f32 %v1571, %v2549
      %v2870 = vadd.f32 %v1572, %v2550
      %v2871 = vadd.f32 %v1573, %v2551
      %v2872 = vadd.f32 %v1574, %v2552
      %v2873 = vadd.f32 %v1575, %v2553
      %v2874 = vadd.f32 %v1576, %v2554
      %v2875 = vadd.f32 %v1577, %v2555
      %v2876 = vadd.f32 %v1578, %v2556
      %v2877 = vadd.f32 %v1579, %v2557
      %v2878 = vadd.f32 %v1580, %v2558
      %v2879 = vadd.f32 %v1581, %v2559
      %v2880 = vadd.f32 %v1582, %v2560
      %v2881 = vadd.f32 %v1583, %v2561
      %v2882 = vadd.f32 %v1584, %v2562
      %v2883 = vadd.f32 %v1585, %v2563
      %v2884 = vadd.f32 %v1586, %v2564
      %v2885 = vadd.f32 %v1587, %v2565
      %v2886 = vadd.f32 %v1588, %v2566
      %v2887 = vadd.f32 %v1589, %v2567
      %v2888 = vadd.f32 %v1590, %v2568
      %v2889 = vadd.f32 %v1591, %v2569
      %v2890 = vadd.f32 %v1592, %v2570
      %v2891 = vadd.f32 %v1593, %v2571
      %v2892 = vadd.f32 %v1594, %v2572
      %v2893 = vadd.f32 %v1595, %v2573
      %v2894 = vadd.f32 %v1596, %v2574
      %v2895 = vadd.f32 %v1597, %v2575
      %v2896 = vadd.f32 %v1598, %v2576
      %v2897 = vadd.f32 %v1599, %v2577
      %v2898 = vadd.f32 %v1600, %v2578
      %v2899 = vadd.f32 %v1601, %v2579
      %v2900 = vadd.f32 %v1602, %v2580
      %v2901 = vadd.f32 %v1603, %v2581
      %v2902 = vadd.f32 %v1604, %v2582
      %v2903 = vadd.f32 %v1605, %v2583
      %v2904 = vadd.f32 %v1606, %v2584
      %v2905 = vadd.f32 %v1607, %v2585
      %v2906 = vadd.f32 %v1608, %v2586
      %v2907 = vadd.f32 %v1609, %v2587
      %v2908 = vadd.f32 %v1610, %v2588
      %v2909 = vadd.f32 %v1611, %v2589
      %v2910 = vadd.f32 %v1612, %v2590
      %v2911 = vadd.f32 %v1613, %v2591
      %v2912 = vadd.f32 %v1614, %v2592
      %v2913 = vadd.f32 %v1615, %v2593
      %v2914 = vadd.f32 %v1616, %v2594
      %v2915 = vadd.f32 %v1617, %v2595
      %v2916 = vadd.f32 %v1618, %v2596
      %v2917 = vadd.f32 %v1619, %v2597
      %v2918 = vadd.f32 %v1620, %v2598
      %v2919 = vadd.f32 %v1621, %v2599
      %v2920 = vadd.f32 %v1622, %v2600
      %v2921 = vadd.f32 %v1623, %v2601
      %v2922 = vadd.f32 %v1624, %v2602
      %v2923 = vadd.f32 %v1625, %v2603
      %v2924 = vadd.f32 %v1626, %v2604
      %v2925 = vadd.f32 %v1627, %v2605
      %v2926 = vadd.f32 %v1628, %v2606
      %v2927 = vadd.f32 %v1629, %v2607
      %v2928 = vadd.f32 %v1630, %v2608
      %v2929 = vadd.f32 %v1631, %v2609
      %v2930 = vadd.f32 %v1632, %v2610
      %v2931 = vadd.f32 %v1633, %v2611
      %v2932 = vadd.f32 %v1634, %v2612
      %v2933 = vadd.f32 %v1635, %v2613
      %v2934 = vadd.f32 %v1636, %v2614
      %v2935 = vadd.f32 %v1637, %v2615
      %v2936 = vadd.f32 %v1638, %v2616
      %v2937 = vadd.f32 %v1639, %v2617
      %v2938 = vadd.f32 %v1640, %v2618
      %v2939 = vadd.f32 %v1641, %v2619
      %v2940 = vadd.f32 %v1642, %v2620
      %v2941 = vadd.f32 %v1643, %v2621
      %v2942 = vadd.f32 %v1644, %v2622
      %v2943 = vadd.f32 %v1645, %v2623
      %v2944 = vadd.f32 %v1646, %v2624
      %v2945 = vadd.f32 %v1647, %v2625
      %v2946 = vadd.f32 %v1648, %v2626
      %v2947 = vadd.f32 %v1649, %v2627
      %v2948 = vadd.f32 %v1650, %v2628
      %v2949 = vadd.f32 %v1651, %v2629
      %v2950 = vadd.f32 %v1652, %v2630
      %v2951 = vadd.f32 %v1653, %v2631
      %v2952 = vadd.f32 %v1654, %v2632
      %v2953 = vadd.f32 %v1655, %v2633
      %v2954 = vadd.f32 %v1656, %v2634
      %v2955 = vadd.f32 %v1657, %v2635
      %v2956 = vadd.f32 %v1658, %v2636
      %v2957 = vadd.f32 %v1659, %v2637
      %v2958 = vadd.f32 %v1660, %v2638
      %v2959 = vadd.f32 %v1661, %v2639
      %v2960 = vadd.f32 %v1662, %v2640
      %v2961 = vadd.f32 %v1663, %v2641
      %v2962 = vadd.f32 %v1664, %v2642
      %v2963 = vadd.f32 %v1665, %v2643
      %v2964 = vadd.f32 %v1666, %v2644
      %v2965 = vadd.f32 %v1667, %v2645
      %v2966 = vadd.f32 %v1668, %v2646
      %v2967 = vadd.f32 %v1669, %v2647
      %v2968 = vadd.f32 %v1670, %v2648
      %v2969 = vadd.f32 %v1671, %v2649
      %v2970 = vadd.f32 %v1672, %v2650
      %v2971 = vadd.f32 %v1673, %v2651
      %v2972 = vadd.f32 %v1674, %v2652
      %v2973 = vadd.f32 %v1675, %v2653
      %v2974 = vadd.f32 %v1676, %v2654
      %v2975 = vadd.f32 %v1677, %v2655
      %v2976 = vadd.f32 %v1678, %v2656
      %v2977 = vadd.f32 %v1679, %v2657
      %v2978 = vadd.f32 %v1680, %v2658
      %v2979 = vadd.f32 %v1681, %v2659
      %v2980 = vadd.f32 %v1682, %v2660
      %v2981 = vadd.f32 %v1683, %v2661
      %v2982 = vadd.f32 %v1684, %v2662
      %v2983 = vadd.f32 %v1685, %v2663
      %v2984 = vadd.f32 %v1686, %v2664
      %v2985 = vadd.f32 %v1687, %v2665
      %v2986 = vadd.f32 %v1688, %v2666
      %v2987 = vadd.f32 %v1689, %v2667
      %v2988 = vadd.f32 %v1690, %v2668
      %v2989 = vadd.f32 %v1691, %v2669
      %v2990 = vadd.f32 %v1692, %v2670
      %v2991 = vadd.f32 %v1693, %v2671
      %v2992 = vadd.f32 %v1694, %v2672
      %v2993 = vadd.f32 %v1695, %v2673
      %v2994 = vadd.f32 %v1696, %v2674
      %v2995 = vadd.f32 %v1697, %v2675
      %v2996 = vadd.f32 %v1698, %v2676
      %v2997 = vadd.f32 %v1699, %v2677
      %v2998 = vadd.f32 %v1700, %v2678
      %v2999 = vadd.f32 %v1701, %v2679
      %v3000 = vadd.f32 %v1702, %v2680
      %v3001 = vadd.f32 %v1703, %v2681
      %v3002 = vadd.f32 %v1704, %v2682
      %v3003 = vadd.f32 %v1705, %v2683
      %v3004 = vadd.f32 %v1706, %v2684
      %v3005 = vadd.f32 %v1707, %v2685
      %v3006 = vadd.f32 %v1708, %v2686
      %v3007 = vadd.f32 %v1709, %v2687
      %v3008 = vadd.f32 %v1710, %v2688
      %v3009 = vadd.f32 %v1711, %v2689
      %v3010 = vadd.f32 %v1712, %v2690
      %v3011 = vadd.f32 %v1713, %v2691
      %v3012 = vadd.f32 %v1714, %v2692
      %v3013 = vadd.f32 %v1715, %v2693
      %v3014 = vadd.f32 %v1716, %v2694
      %v3015 = vadd.f32 %v1717, %v2695
      %v3016 = vadd.f32 %v1718, %v2696
      %v3017 = vadd.f32 %v1719, %v2697
      %v3018 = vadd.f32 %v1720, %v2698
      %v3019 = vadd.f32 %v1721, %v2699
      %v3020 = vadd.f32 %v1722, %v2700
      %v3021 = vadd.f32 %v1723, %v2701
      %v3022 = vadd.f32 %v1724, %v2702
      %v3023 = vadd.f32 %v1725, %v2703
      %v3024 = vadd.f32 %v1726, %v2704
      %v3025 = vadd.f32 %v1727, %v2705
      %v3026 = vadd.f32 %v1728, %v2706
      %v3027 = vadd.f32 %v1729, %v2707
      %v3028 = vadd.f32 %v1730, %v2708
      %v3029 = vadd.f32 %v1731, %v2709
      %v3030 = vadd.f32 %v1732, %v2710
      %v3031 = vadd.f32 %v1733, %v2711
      %v3032 = vadd.f32 %v1734, %v2712
      %v3033 = vadd.f32 %v1735, %v2713
      %v3034 = vadd.f32 %v1736, %v2714
      %v3035 = vadd.f32 %v1737, %v2715
      %v3036 = vadd.f32 %v1738, %v2716
      %v3037 = vadd.f32 %v1739, %v2717
      %v3038 = vadd.f32 %v1740, %v2718
      %v3039 = vadd.f32 %v1741, %v2719
      %v3040 = vadd.f32 %v1742, %v2720
      %v3041 = vadd.f32 %v1743, %v2721
      %v3042 = vadd.f32 %v1744, %v2722
      %v3043 = vadd.f32 %v1745, %v2723
      %v3044 = vadd.f32 %v1746, %v2724
      %v3045 = vadd.f32 %v1747, %v2725
      %v3046 = vadd.f32 %v1748, %v2726
      %v3047 = vadd.f32 %v1749, %v2727
      %v3048 = vadd.f32 %v1750, %v2728
      %v3049 = vadd.f32 %v1751, %v2729
      %v3050 = vadd.f32 %v1752, %v2730
      %v3051 = vadd.f32 %v1753, %v2731
      %v3052 = vadd.f32 %v1754, %v2732
      %v3053 = vadd.f32 %v1755, %v2733
      %v3054 = vadd.f32 %v1756, %v2734
      %v3055 = vadd.f32 %v1757, %v2735
      %v3056 = vadd.f32 %v1758, %v2736
      %v3057 = vadd.f32 %v1759, %v2737
      %v3058 = vadd.f32 %v1760, %v2738
      %v3059 = vadd.f32 %v1761, %v2739
      %v3060 = vadd.f32 %v1762, %v2740
      %v3061 = vadd.f32 %v1763, %v2741
      %v3062 = vadd.f32 %v1764, %v2742
      %v3063 = vadd.f32 %v1765, %v2743
      %v3064 = vadd.f32 %v1766, %v2744
      %v3065 = vadd.f32 %v1767, %v2745
      %v3066 = vadd.f32 %v1768, %v2746
      %v3067 = vadd.f32 %v1769, %v2747
      %v3068 = vadd.f32 %v1770, %v2748
      %v3069 = vadd.f32 %v1771, %v2749
      %v3070 = vadd.f32 %v1772, %v2750
      %v3071 = vadd.f32 %v1773, %v2751
      %v3072 = vadd.f32 %v1774, %v2752
      %v3073 = vadd.f32 %v1775, %v2753
      %v3074 = vadd.f32 %v1776, %v2754
      %v3075 = vadd.f32 %v1777, %v2755
      %v3076 = vadd.f32 %v1778, %v2756
      %v3077 = vadd.f32 %v1779, %v2757
      %v3078 = vadd.f32 %v1780, %v2758
      %v3079 = vadd.f32 %v1781, %v2759
      %v3080 = vadd.f32 %v1782, %v2760
      %v3081 = vadd.f32 %v1783, %v2761
      %v3082 = vadd.f32 %v1784, %v2762
      %v3083 = vadd.f32 %v1785, %v2763
      %v3084 = vadd.f32 %v1786, %v2764
      %v3085 = vadd.f32 %v1787, %v2765
      %v3086 = vadd.f32 %v1788, %v2766
      %v3087 = vadd.f32 %v1789, %v2767
      %v3088 = vadd.f32 %v1790, %v2768
      %v3089 = vadd.f32 %v1791, %v2769
      %v3090 = vadd.f32 %v1792, %v2770
      %v3091 = vadd.f32 %v1793, %v2771
      %v3092 = vadd.f32 %v1794, %v2772
      %v3093 = vadd.f32 %v1795, %v2773
      %v3094 = vadd.f32 %v1796, %v2774
      %v3095 = vadd.f32 %v1797, %v2775
      %v3096 = vadd.f32 %v1798, %v2776
      %v3097 = vadd.f32 %v1799, %v2777
      %v3098 = vadd.f32 %v1800, %v2778
      %v3099 = vadd.f32 %v1801, %v2779
      %v3100 = vadd.f32 %v1802, %v2780
      %v3101 = vadd.f32 %v1803, %v2781
      %v3102 = vadd.f32 %v1804, %v2782
      %v3103 = vadd.f32 %v1805, %v2783
      %v3104 = vadd.f32 %v1806, %v2784
      %v3105 = vadd.f32 %v1807, %v2785
      %v3106 = vadd.f32 %v1808, %v2786
      %v3107 = vadd.f32 %v1809, %v2787
      %v3108 = vadd.f32 %v1810, %v2788
      %v3109 = vadd.f32 %v1811, %v2789
      %v3110 = vadd.f32 %v1812, %v2790
      %v3111 = vadd.f32 %v1813, %v2791
      %v3112 = vadd.f32 %v1814, %v2792
      %v3113 = vadd.f32 %v1815, %v2793
      %v3114 = vadd.f32 %v1816, %v2794
      %v3115 = vadd.f32 %v1817, %v2795
      %v3116 = vadd.f32 %v1818, %v2796
      %v3117 = vadd.f32 %v1819, %v2797
      %v3118 = vadd.f32 %v1820, %v2798
      %v3119 = vadd.f32 %v1821, %v2799
      %v3120 = vadd.f32 %v1822, %v2800
      %v3121 = vadd.f32 %v1823, %v2801
      %v3122 = vadd.f32 %v1824, %v2802
      %v3123 = vadd.f32 %v1825, %v2803
      %v3124 = vadd.f32 %v1826, %v2804
      %v3125 = vadd.f32 %v1827, %v2805
      %v3126 = vadd.f32 %v1828, %v2806
      %v3127 = vadd.f32 %v1829, %v2807
      %v3128 = vadd.f32 %v1830, %v2808
      %v3129 = vadd.f32 %v1831, %v2809
      %v3130 = vadd.f32 %v1832, %v2810
      %v3131 = vadd.f32 %v1833, %v2811
      %v3132 = vadd.f32 %v1834, %v2812
      %v3133 = vadd.f32 %v1835, %v2813
      %v3134 = vadd.f32 %v1836, %v2814
      %v3135 = vadd.f32 %v1837, %v2815
      %v3136 = vadd.f32 %v1838, %v2816
      %v3137 = vadd.f32 %v1839, %v2817
      %v3138 = vadd.f32 %v1840, %v2818
      %v3139 = vadd.f32 %v1841, %v2819
      %v3140 = vadd.f32 %v1842, %v2820
      %v3141 = vadd.f32 %v1843, %v2821
      %v3142 = vadd.f32 %v1844, %v2822
      %3143 = vset.pattern.permute.xlu0 2
      %3144 = vperm.xlu0 %3143, %v546
      %v3145 = vpop.permute.xlu0 %3144
      %3147 = vset.pattern.permute.xlu0 2
      %3148 = vperm.xlu0 %3147, %v547
      %v3149 = vpop.permute.xlu0 %3148
      %3151 = vset.pattern.permute.xlu0 2
      %3152 = vperm.xlu0 %3151, %v548
      %v3153 = vpop.permute.xlu0 %3152
      %3155 = vset.pattern.permute.xlu0 2
      %3156 = vperm.xlu0 %3155, %v549
      %v3157 = vpop.permute.xlu0 %3156
      %3159 = vset.pattern.permute.xlu0 2
      %3160 = vperm.xlu0 %3159, %v550
      %v3161 = vpop.permute.xlu0 %3160
      %3163 = vset.pattern.permute.xlu0 2
      %3164 = vperm.xlu0 %3163, %v551
      %v3165 = vpop.permute.xlu0 %3164
      %3167 = vset.pattern.permute.xlu0 2
      %3168 = vperm.xlu0 %3167, %v552
      %v3169 = vpop.permute.xlu0 %3168
      %3171 = vset.pattern.permute.xlu0 2
      %3172 = vperm.xlu0 %3171, %v553
      %v3173 = vpop.permute.xlu0 %3172
      %3175 = vset.pattern.permute.xlu0 2
      %3176 = vperm.xlu0 %3175, %v554
      %v3177 = vpop.permute.xlu0 %3176
      %3179 = vset.pattern.permute.xlu0 2
      %3180 = vperm.xlu0 %3179, %v555
      %v3181 = vpop.permute.xlu0 %3180
      %3183 = vset.pattern.permute.xlu0 2
      %3184 = vperm.xlu0 %3183, %v556
      %v3185 = vpop.permute.xlu0 %3184
      %3187 = vset.pattern.permute.xlu0 2
      %3188 = vperm.xlu0 %3187, %v557
      %v3189 = vpop.permute.xlu0 %3188
      %3191 = vset.pattern.permute.xlu0 2
      %3192 = vperm.xlu0 %3191, %v558
      %v3193 = vpop.permute.xlu0 %3192
      %3195 = vset.pattern.permute.xlu0 2
      %3196 = vperm.xlu0 %3195, %v559
      %v3197 = vpop.permute.xlu0 %3196
      %3199 = vset.pattern.permute.xlu0 2
      %3200 = vperm.xlu0 %3199, %v560
      %v3201 = vpop.permute.xlu0 %3200
      %3203 = vset.pattern.permute.xlu0 2
      %3204 = vperm.xlu0 %3203, %v561
      %v3205 = vpop.permute.xlu0 %3204
      %3207 = vset.pattern.permute.xlu0 2
      %3208 = vperm.xlu0 %3207, %v562
      %v3209 = vpop.permute.xlu0 %3208
      %3211 = vset.pattern.permute.xlu0 2
      %3212 = vperm.xlu0 %3211, %v563
      %v3213 = vpop.permute.xlu0 %3212
      %3215 = vset.pattern.permute.xlu0 2
      %3216 = vperm.xlu0 %3215, %v564
      %v3217 = vpop.permute.xlu0 %3216
      %3219 = vset.pattern.permute.xlu0 2
      %3220 = vperm.xlu0 %3219, %v565
      %v3221 = vpop.permute.xlu0 %3220
      %3223 = vset.pattern.permute.xlu0 2
      %3224 = vperm.xlu0 %3223, %v566
      %v3225 = vpop.permute.xlu0 %3224
      %3227 = vset.pattern.permute.xlu0 2
      %3228 = vperm.xlu0 %3227, %v567
      %v3229 = vpop.permute.xlu0 %3228
      %3231 = vset.pattern.permute.xlu0 2
      %3232 = vperm.xlu0 %3231, %v568
      %v3233 = vpop.permute.xlu0 %3232
      %3235 = vset.pattern.permute.xlu0 2
      %3236 = vperm.xlu0 %3235, %v569
      %v3237 = vpop.permute.xlu0 %3236
      %3239 = vset.pattern.permute.xlu0 2
      %3240 = vperm.xlu0 %3239, %v570
      %v3241 = vpop.permute.xlu0 %3240
      %3243 = vset.pattern.permute.xlu0 2
      %3244 = vperm.xlu0 %3243, %v571
      %v3245 = vpop.permute.xlu0 %3244
      %3247 = vset.pattern.permute.xlu0 2
      %3248 = vperm.xlu0 %3247, %v572
      %v3249 = vpop.permute.xlu0 %3248
      %3251 = vset.pattern.permute.xlu0 2
      %3252 = vperm.xlu0 %3251, %v573
      %v3253 = vpop.permute.xlu0 %3252
      %3255 = vset.pattern.permute.xlu0 2
      %3256 = vperm.xlu0 %3255, %v574
      %v3257 = vpop.permute.xlu0 %3256
      %3259 = vset.pattern.permute.xlu0 2
      %3260 = vperm.xlu0 %3259, %v575
      %v3261 = vpop.permute.xlu0 %3260
      %3263 = vset.pattern.permute.xlu0 2
      %3264 = vperm.xlu0 %3263, %v576
      %v3265 = vpop.permute.xlu0 %3264
      %3267 = vset.pattern.permute.xlu0 2
      %3268 = vperm.xlu0 %3267, %v577
      %v3269 = vpop.permute.xlu0 %3268
      %3271 = vset.pattern.permute.xlu0 2
      %3272 = vperm.xlu0 %3271, %v578
      %v3273 = vpop.permute.xlu0 %3272
      %3275 = vset.pattern.permute.xlu0 2
      %3276 = vperm.xlu0 %3275, %v579
      %v3277 = vpop.permute.xlu0 %3276
      %3279 = vset.pattern.permute.xlu0 2
      %3280 = vperm.xlu0 %3279, %v580
      %v3281 = vpop.permute.xlu0 %3280
      %3283 = vset.pattern.permute.xlu0 2
      %3284 = vperm.xlu0 %3283, %v581
      %v3285 = vpop.permute.xlu0 %3284
      %3287 = vset.pattern.permute.xlu0 2
      %3288 = vperm.xlu0 %3287, %v582
      %v3289 = vpop.permute.xlu0 %3288
      %3291 = vset.pattern.permute.xlu0 2
      %3292 = vperm.xlu0 %3291, %v583
      %v3293 = vpop.permute.xlu0 %3292
      %3295 = vset.pattern.permute.xlu0 2
      %3296 = vperm.xlu0 %3295, %v584
      %v3297 = vpop.permute.xlu0 %3296
      %3299 = vset.pattern.permute.xlu0 2
      %3300 = vperm.xlu0 %3299, %v585
      %v3301 = vpop.permute.xlu0 %3300
      %3303 = vset.pattern.permute.xlu0 2
      %3304 = vperm.xlu0 %3303, %v586
      %v3305 = vpop.permute.xlu0 %3304
      %3307 = vset.pattern.permute.xlu0 2
      %3308 = vperm.xlu0 %3307, %v587
      %v3309 = vpop.permute.xlu0 %3308
      %3311 = vset.pattern.permute.xlu0 2
      %3312 = vperm.xlu0 %3311, %v588
      %v3313 = vpop.permute.xlu0 %3312
      %3315 = vset.pattern.permute.xlu0 2
      %3316 = vperm.xlu0 %3315, %v589
      %v3317 = vpop.permute.xlu0 %3316
      %3319 = vset.pattern.permute.xlu0 2
      %3320 = vperm.xlu0 %3319, %v590
      %v3321 = vpop.permute.xlu0 %3320
      %3323 = vset.pattern.permute.xlu0 2
      %3324 = vperm.xlu0 %3323, %v591
      %v3325 = vpop.permute.xlu0 %3324
      %3327 = vset.pattern.permute.xlu0 2
      %3328 = vperm.xlu0 %3327, %v592
      %v3329 = vpop.permute.xlu0 %3328
      %3331 = vset.pattern.permute.xlu0 2
      %3332 = vperm.xlu0 %3331, %v593
      %v3333 = vpop.permute.xlu0 %3332
      %3335 = vset.pattern.permute.xlu0 2
      %3336 = vperm.xlu0 %3335, %v594
      %v3337 = vpop.permute.xlu0 %3336
      %3339 = vset.pattern.permute.xlu0 2
      %3340 = vperm.xlu0 %3339, %v595
      %v3341 = vpop.permute.xlu0 %3340
      %3343 = vset.pattern.permute.xlu0 2
      %3344 = vperm.xlu0 %3343, %v596
      %v3345 = vpop.permute.xlu0 %3344
      %3347 = vset.pattern.permute.xlu0 2
      %3348 = vperm.xlu0 %3347, %v597
      %v3349 = vpop.permute.xlu0 %3348
      %3351 = vset.pattern.permute.xlu0 2
      %3352 = vperm.xlu0 %3351, %v598
      %v3353 = vpop.permute.xlu0 %3352
      %3355 = vset.pattern.permute.xlu0 2
      %3356 = vperm.xlu0 %3355, %v599
      %v3357 = vpop.permute.xlu0 %3356
      %3359 = vset.pattern.permute.xlu0 2
      %3360 = vperm.xlu0 %3359, %v600
      %v3361 = vpop.permute.xlu0 %3360
      %3363 = vset.pattern.permute.xlu0 2
      %3364 = vperm.xlu0 %3363, %v601
      %v3365 = vpop.permute.xlu0 %3364
      %3367 = vset.pattern.permute.xlu0 2
      %3368 = vperm.xlu0 %3367, %v602
      %v3369 = vpop.permute.xlu0 %3368
      %3371 = vset.pattern.permute.xlu0 2
      %3372 = vperm.xlu0 %3371, %v603
      %v3373 = vpop.permute.xlu0 %3372
      %3375 = vset.pattern.permute.xlu0 2
      %3376 = vperm.xlu0 %3375, %v604
      %v3377 = vpop.permute.xlu0 %3376
      %3379 = vset.pattern.permute.xlu0 2
      %3380 = vperm.xlu0 %3379, %v605
      %v3381 = vpop.permute.xlu0 %3380
      %3383 = vset.pattern.permute.xlu0 2
      %3384 = vperm.xlu0 %3383, %v606
      %v3385 = vpop.permute.xlu0 %3384
      %3387 = vset.pattern.permute.xlu0 2
      %3388 = vperm.xlu0 %3387, %v607
      %v3389 = vpop.permute.xlu0 %3388
      %3391 = vset.pattern.permute.xlu0 2
      %3392 = vperm.xlu0 %3391, %v608
      %v3393 = vpop.permute.xlu0 %3392
      %3395 = vset.pattern.permute.xlu0 2
      %3396 = vperm.xlu0 %3395, %v609
      %v3397 = vpop.permute.xlu0 %3396
      %3399 = vset.pattern.permute.xlu0 2
      %3400 = vperm.xlu0 %3399, %v610
      %v3401 = vpop.permute.xlu0 %3400
      %3403 = vset.pattern.permute.xlu0 2
      %3404 = vperm.xlu0 %3403, %v611
      %v3405 = vpop.permute.xlu0 %3404
      %3407 = vset.pattern.permute.xlu0 2
      %3408 = vperm.xlu0 %3407, %v612
      %v3409 = vpop.permute.xlu0 %3408
      %3411 = vset.pattern.permute.xlu0 2
      %3412 = vperm.xlu0 %3411, %v613
      %v3413 = vpop.permute.xlu0 %3412
      %3415 = vset.pattern.permute.xlu0 2
      %3416 = vperm.xlu0 %3415, %v614
      %v3417 = vpop.permute.xlu0 %3416
      %3419 = vset.pattern.permute.xlu0 2
      %3420 = vperm.xlu0 %3419, %v615
      %v3421 = vpop.permute.xlu0 %3420
      %3423 = vset.pattern.permute.xlu0 2
      %3424 = vperm.xlu0 %3423, %v616
      %v3425 = vpop.permute.xlu0 %3424
      %3427 = vset.pattern.permute.xlu0 2
      %3428 = vperm.xlu0 %3427, %v617
      %v3429 = vpop.permute.xlu0 %3428
      %3431 = vset.pattern.permute.xlu0 2
      %3432 = vperm.xlu0 %3431, %v618
      %v3433 = vpop.permute.xlu0 %3432
      %3435 = vset.pattern.permute.xlu0 2
      %3436 = vperm.xlu0 %3435, %v619
      %v3437 = vpop.permute.xlu0 %3436
      %3439 = vset.pattern.permute.xlu0 2
      %3440 = vperm.xlu0 %3439, %v620
      %v3441 = vpop.permute.xlu0 %3440
      %3443 = vset.pattern.permute.xlu0 2
      %3444 = vperm.xlu0 %3443, %v621
      %v3445 = vpop.permute.xlu0 %3444
      %3447 = vset.pattern.permute.xlu0 2
      %3448 = vperm.xlu0 %3447, %v622
      %v3449 = vpop.permute.xlu0 %3448
      %3451 = vset.pattern.permute.xlu0 2
      %3452 = vperm.xlu0 %3451, %v623
      %v3453 = vpop.permute.xlu0 %3452
      %3455 = vset.pattern.permute.xlu0 2
      %3456 = vperm.xlu0 %3455, %v624
      %v3457 = vpop.permute.xlu0 %3456
      %3459 = vset.pattern.permute.xlu0 2
      %3460 = vperm.xlu0 %3459, %v625
      %v3461 = vpop.permute.xlu0 %3460
      %3463 = vset.pattern.permute.xlu0 2
      %3464 = vperm.xlu0 %3463, %v626
      %v3465 = vpop.permute.xlu0 %3464
      %3467 = vset.pattern.permute.xlu0 2
      %3468 = vperm.xlu0 %3467, %v627
      %v3469 = vpop.permute.xlu0 %3468
      %3471 = vset.pattern.permute.xlu0 2
      %3472 = vperm.xlu0 %3471, %v628
      %v3473 = vpop.permute.xlu0 %3472
      %3475 = vset.pattern.permute.xlu0 2
      %3476 = vperm.xlu0 %3475, %v629
      %v3477 = vpop.permute.xlu0 %3476
      %3479 = vset.pattern.permute.xlu0 2
      %3480 = vperm.xlu0 %3479, %v630
      %v3481 = vpop.permute.xlu0 %3480
      %3483 = vset.pattern.permute.xlu0 2
      %3484 = vperm.xlu0 %3483, %v631
      %v3485 = vpop.permute.xlu0 %3484
      %3487 = vset.pattern.permute.xlu0 2
      %3488 = vperm.xlu0 %3487, %v632
      %v3489 = vpop.permute.xlu0 %3488
      %3491 = vset.pattern.permute.xlu0 2
      %3492 = vperm.xlu0 %3491, %v633
      %v3493 = vpop.permute.xlu0 %3492
      %3495 = vset.pattern.permute.xlu0 2
      %3496 = vperm.xlu0 %3495, %v634
      %v3497 = vpop.permute.xlu0 %3496
      %3499 = vset.pattern.permute.xlu0 2
      %3500 = vperm.xlu0 %3499, %v635
      %v3501 = vpop.permute.xlu0 %3500
      %3503 = vset.pattern.permute.xlu0 2
      %3504 = vperm.xlu0 %3503, %v636
      %v3505 = vpop.permute.xlu0 %3504
      %3507 = vset.pattern.permute.xlu0 2
      %3508 = vperm.xlu0 %3507, %v637
      %v3509 = vpop.permute.xlu0 %3508
      %3511 = vset.pattern.permute.xlu0 2
      %3512 = vperm.xlu0 %3511, %v638
      %v3513 = vpop.permute.xlu0 %3512
      %3515 = vset.pattern.permute.xlu0 2
      %3516 = vperm.xlu0 %3515, %v639
      %v3517 = vpop.permute.xlu0 %3516
      %3519 = vset.pattern.permute.xlu0 2
      %3520 = vperm.xlu0 %3519, %v640
      %v3521 = vpop.permute.xlu0 %3520
      %3523 = vset.pattern.permute.xlu0 2
      %3524 = vperm.xlu0 %3523, %v641
      %v3525 = vpop.permute.xlu0 %3524
      %3527 = vset.pattern.permute.xlu0 2
      %3528 = vperm.xlu0 %3527, %v642
      %v3529 = vpop.permute.xlu0 %3528
      %3531 = vset.pattern.permute.xlu0 2
      %3532 = vperm.xlu0 %3531, %v643
      %v3533 = vpop.permute.xlu0 %3532
      %3535 = vset.pattern.permute.xlu0 2
      %3536 = vperm.xlu0 %3535, %v644
      %v3537 = vpop.permute.xlu0 %3536
      %3539 = vset.pattern.permute.xlu0 2
      %3540 = vperm.xlu0 %3539, %v645
      %v3541 = vpop.permute.xlu0 %3540
      %3543 = vset.pattern.permute.xlu0 2
      %3544 = vperm.xlu0 %3543, %v646
      %v3545 = vpop.permute.xlu0 %3544
      %3547 = vset.pattern.permute.xlu0 2
      %3548 = vperm.xlu0 %3547, %v647
      %v3549 = vpop.permute.xlu0 %3548
      %3551 = vset.pattern.permute.xlu0 2
      %3552 = vperm.xlu0 %3551, %v648
      %v3553 = vpop.permute.xlu0 %3552
      %3555 = vset.pattern.permute.xlu0 2
      %3556 = vperm.xlu0 %3555, %v649
      %v3557 = vpop.permute.xlu0 %3556
      %3559 = vset.pattern.permute.xlu0 2
      %3560 = vperm.xlu0 %3559, %v650
      %v3561 = vpop.permute.xlu0 %3560
      %3563 = vset.pattern.permute.xlu0 2
      %3564 = vperm.xlu0 %3563, %v651
      %v3565 = vpop.permute.xlu0 %3564
      %3567 = vset.pattern.permute.xlu0 2
      %3568 = vperm.xlu0 %3567, %v652
      %v3569 = vpop.permute.xlu0 %3568
      %3571 = vset.pattern.permute.xlu0 2
      %3572 = vperm.xlu0 %3571, %v653
      %v3573 = vpop.permute.xlu0 %3572
      %3575 = vset.pattern.permute.xlu0 2
      %3576 = vperm.xlu0 %3575, %v654
      %v3577 = vpop.permute.xlu0 %3576
      %3579 = vset.pattern.permute.xlu0 2
      %3580 = vperm.xlu0 %3579, %v655
      %v3581 = vpop.permute.xlu0 %3580
      %3583 = vset.pattern.permute.xlu0 2
      %3584 = vperm.xlu0 %3583, %v656
      %v3585 = vpop.permute.xlu0 %3584
      %3587 = vset.pattern.permute.xlu0 2
      %3588 = vperm.xlu0 %3587, %v657
      %v3589 = vpop.permute.xlu0 %3588
      %3591 = vset.pattern.permute.xlu0 2
      %3592 = vperm.xlu0 %3591, %v658
      %v3593 = vpop.permute.xlu0 %3592
      %3595 = vset.pattern.permute.xlu0 2
      %3596 = vperm.xlu0 %3595, %v659
      %v3597 = vpop.permute.xlu0 %3596
      %3599 = vset.pattern.permute.xlu0 2
      %3600 = vperm.xlu0 %3599, %v660
      %v3601 = vpop.permute.xlu0 %3600
      %3603 = vset.pattern.permute.xlu0 2
      %3604 = vperm.xlu0 %3603, %v661
      %v3605 = vpop.permute.xlu0 %3604
      %3607 = vset.pattern.permute.xlu0 2
      %3608 = vperm.xlu0 %3607, %v662
      %v3609 = vpop.permute.xlu0 %3608
      %3611 = vset.pattern.permute.xlu0 2
      %3612 = vperm.xlu0 %3611, %v663
      %v3613 = vpop.permute.xlu0 %3612
      %3615 = vset.pattern.permute.xlu0 2
      %3616 = vperm.xlu0 %3615, %v664
      %v3617 = vpop.permute.xlu0 %3616
      %3619 = vset.pattern.permute.xlu0 2
      %3620 = vperm.xlu0 %3619, %v665
      %v3621 = vpop.permute.xlu0 %3620
      %3623 = vset.pattern.permute.xlu0 2
      %3624 = vperm.xlu0 %3623, %v666
      %v3625 = vpop.permute.xlu0 %3624
      %3627 = vset.pattern.permute.xlu0 2
      %3628 = vperm.xlu0 %3627, %v667
      %v3629 = vpop.permute.xlu0 %3628
      %3631 = vset.pattern.permute.xlu0 2
      %3632 = vperm.xlu0 %3631, %v668
      %v3633 = vpop.permute.xlu0 %3632
      %3635 = vset.pattern.permute.xlu0 2
      %3636 = vperm.xlu0 %3635, %v669
      %v3637 = vpop.permute.xlu0 %3636
      %3639 = vset.pattern.permute.xlu0 2
      %3640 = vperm.xlu0 %3639, %v670
      %v3641 = vpop.permute.xlu0 %3640
      %3643 = vset.pattern.permute.xlu0 2
      %3644 = vperm.xlu0 %3643, %v671
      %v3645 = vpop.permute.xlu0 %3644
      %3647 = vset.pattern.permute.xlu0 2
      %3648 = vperm.xlu0 %3647, %v672
      %v3649 = vpop.permute.xlu0 %3648
      %3651 = vset.pattern.permute.xlu0 2
      %3652 = vperm.xlu0 %3651, %v673
      %v3653 = vpop.permute.xlu0 %3652
      %3655 = vset.pattern.permute.xlu0 2
      %3656 = vperm.xlu0 %3655, %v674
      %v3657 = vpop.permute.xlu0 %3656
      %3659 = vset.pattern.permute.xlu0 2
      %3660 = vperm.xlu0 %3659, %v675
      %v3661 = vpop.permute.xlu0 %3660
      %3663 = vset.pattern.permute.xlu0 2
      %3664 = vperm.xlu0 %3663, %v676
      %v3665 = vpop.permute.xlu0 %3664
      %3667 = vset.pattern.permute.xlu0 2
      %3668 = vperm.xlu0 %3667, %v677
      %v3669 = vpop.permute.xlu0 %3668
      %3671 = vset.pattern.permute.xlu0 2
      %3672 = vperm.xlu0 %3671, %v678
      %v3673 = vpop.permute.xlu0 %3672
      %3675 = vset.pattern.permute.xlu0 2
      %3676 = vperm.xlu0 %3675, %v679
      %v3677 = vpop.permute.xlu0 %3676
      %3679 = vset.pattern.permute.xlu0 2
      %3680 = vperm.xlu0 %3679, %v680
      %v3681 = vpop.permute.xlu0 %3680
      %3683 = vset.pattern.permute.xlu0 2
      %3684 = vperm.xlu0 %3683, %v681
      %v3685 = vpop.permute.xlu0 %3684
      %3687 = vset.pattern.permute.xlu0 2
      %3688 = vperm.xlu0 %3687, %v682
      %v3689 = vpop.permute.xlu0 %3688
      %3691 = vset.pattern.permute.xlu0 2
      %3692 = vperm.xlu0 %3691, %v683
      %v3693 = vpop.permute.xlu0 %3692
      %3695 = vset.pattern.permute.xlu0 2
      %3696 = vperm.xlu0 %3695, %v684
      %v3697 = vpop.permute.xlu0 %3696
      %3699 = vset.pattern.permute.xlu0 2
      %3700 = vperm.xlu0 %3699, %v685
      %v3701 = vpop.permute.xlu0 %3700
      %3703 = vset.pattern.permute.xlu0 2
      %3704 = vperm.xlu0 %3703, %v686
      %v3705 = vpop.permute.xlu0 %3704
      %3707 = vset.pattern.permute.xlu0 2
      %3708 = vperm.xlu0 %3707, %v687
      %v3709 = vpop.permute.xlu0 %3708
      %3711 = vset.pattern.permute.xlu0 2
      %3712 = vperm.xlu0 %3711, %v688
      %v3713 = vpop.permute.xlu0 %3712
      %3715 = vset.pattern.permute.xlu0 2
      %3716 = vperm.xlu0 %3715, %v689
      %v3717 = vpop.permute.xlu0 %3716
      %3719 = vset.pattern.permute.xlu0 2
      %3720 = vperm.xlu0 %3719, %v690
      %v3721 = vpop.permute.xlu0 %3720
      %3723 = vset.pattern.permute.xlu0 2
      %3724 = vperm.xlu0 %3723, %v691
      %v3725 = vpop.permute.xlu0 %3724
      %3727 = vset.pattern.permute.xlu0 2
      %3728 = vperm.xlu0 %3727, %v692
      %v3729 = vpop.permute.xlu0 %3728
      %3731 = vset.pattern.permute.xlu0 2
      %3732 = vperm.xlu0 %3731, %v693
      %v3733 = vpop.permute.xlu0 %3732
      %3735 = vset.pattern.permute.xlu0 2
      %3736 = vperm.xlu0 %3735, %v694
      %v3737 = vpop.permute.xlu0 %3736
      %3739 = vset.pattern.permute.xlu0 2
      %3740 = vperm.xlu0 %3739, %v695
      %v3741 = vpop.permute.xlu0 %3740
      %3743 = vset.pattern.permute.xlu0 2
      %3744 = vperm.xlu0 %3743, %v696
      %v3745 = vpop.permute.xlu0 %3744
      %3747 = vset.pattern.permute.xlu0 2
      %3748 = vperm.xlu0 %3747, %v697
      %v3749 = vpop.permute.xlu0 %3748
      %3751 = vset.pattern.permute.xlu0 2
      %3752 = vperm.xlu0 %3751, %v698
      %v3753 = vpop.permute.xlu0 %3752
      %3755 = vset.pattern.permute.xlu0 2
      %3756 = vperm.xlu0 %3755, %v699
      %v3757 = vpop.permute.xlu0 %3756
      %3759 = vset.pattern.permute.xlu0 2
      %3760 = vperm.xlu0 %3759, %v700
      %v3761 = vpop.permute.xlu0 %3760
      %3763 = vset.pattern.permute.xlu0 2
      %3764 = vperm.xlu0 %3763, %v701
      %v3765 = vpop.permute.xlu0 %3764
      %3767 = vset.pattern.permute.xlu0 2
      %3768 = vperm.xlu0 %3767, %v702
      %v3769 = vpop.permute.xlu0 %3768
      %3771 = vset.pattern.permute.xlu0 2
      %3772 = vperm.xlu0 %3771, %v703
      %v3773 = vpop.permute.xlu0 %3772
      %3775 = vset.pattern.permute.xlu0 2
      %3776 = vperm.xlu0 %3775, %v704
      %v3777 = vpop.permute.xlu0 %3776
      %3779 = vset.pattern.permute.xlu0 2
      %3780 = vperm.xlu0 %3779, %v705
      %v3781 = vpop.permute.xlu0 %3780
      %v3783 = vlaneseq
      %v3784 = vshrl.u32 %v3783, 7
      %v3785 = vsub.s32 2, %v3784
      %v3786 = vrot.slane %v545, %v3785
      %v3787 = vlaneseq
      %v3788 = vshrl.u32 %v3787, 7
      %v3789 = vsub.s32 6, %v3788
      %v3790 = vrot.slane %v545, %v3789
      %v3793 = vlaneseq
      %v3794 = vshrl.u32 %v3793, 7
      %v3795 = vsub.s32 2, %v3794
      %v3796 = vrot.slane %v3786, %v3795
      %v3797 = vlaneseq
      %v3798 = vshrl.u32 %v3797, 7
      %v3799 = vsub.s32 2, %v3798
      %v3800 = vrot.slane %v3790, %v3799
      %v3801 = vmul.f32 %v3145, %v3796
      %v3802 = vmul.f32 %v3145, %v3800
      %v3803 = vmul.f32 %v3149, %v3796
      %v3804 = vmul.f32 %v3149, %v3800
      %v3805 = vmul.f32 %v3153, %v3796
      %v3806 = vmul.f32 %v3153, %v3800
      %v3807 = vmul.f32 %v3157, %v3796
      %v3808 = vmul.f32 %v3157, %v3800
      %v3809 = vmul.f32 %v3161, %v3796
      %v3810 = vmul.f32 %v3161, %v3800
      %v3811 = vmul.f32 %v3165, %v3796
      %v3812 = vmul.f32 %v3165, %v3800
      %v3813 = vmul.f32 %v3169, %v3796
      %v3814 = vmul.f32 %v3169, %v3800
      %v3815 = vmul.f32 %v3173, %v3796
      %v3816 = vmul.f32 %v3173, %v3800
      %v3817 = vmul.f32 %v3177, %v3796
      %v3818 = vmul.f32 %v3177, %v3800
      %v3819 = vmul.f32 %v3181, %v3796
      %v3820 = vmul.f32 %v3181, %v3800
      %v3821 = vmul.f32 %v3185, %v3796
      %v3822 = vmul.f32 %v3185, %v3800
      %v3823 = vmul.f32 %v3189, %v3796
      %v3824 = vmul.f32 %v3189, %v3800
      %v3825 = vmul.f32 %v3193, %v3796
      %v3826 = vmul.f32 %v3193, %v3800
      %v3827 = vmul.f32 %v3197, %v3796
      %v3828 = vmul.f32 %v3197, %v3800
      %v3829 = vmul.f32 %v3201, %v3796
      %v3830 = vmul.f32 %v3201, %v3800
      %v3831 = vmul.f32 %v3205, %v3796
      %v3832 = vmul.f32 %v3205, %v3800
      %v3833 = vmul.f32 %v3209, %v3796
      %v3834 = vmul.f32 %v3209, %v3800
      %v3835 = vmul.f32 %v3213, %v3796
      %v3836 = vmul.f32 %v3213, %v3800
      %v3837 = vmul.f32 %v3217, %v3796
      %v3838 = vmul.f32 %v3217, %v3800
      %v3839 = vmul.f32 %v3221, %v3796
      %v3840 = vmul.f32 %v3221, %v3800
      %v3841 = vmul.f32 %v3225, %v3796
      %v3842 = vmul.f32 %v3225, %v3800
      %v3843 = vmul.f32 %v3229, %v3796
      %v3844 = vmul.f32 %v3229, %v3800
      %v3845 = vmul.f32 %v3233, %v3796
      %v3846 = vmul.f32 %v3233, %v3800
      %v3847 = vmul.f32 %v3237, %v3796
      %v3848 = vmul.f32 %v3237, %v3800
      %v3849 = vmul.f32 %v3241, %v3796
      %v3850 = vmul.f32 %v3241, %v3800
      %v3851 = vmul.f32 %v3245, %v3796
      %v3852 = vmul.f32 %v3245, %v3800
      %v3853 = vmul.f32 %v3249, %v3796
      %v3854 = vmul.f32 %v3249, %v3800
      %v3855 = vmul.f32 %v3253, %v3796
      %v3856 = vmul.f32 %v3253, %v3800
      %v3857 = vmul.f32 %v3257, %v3796
      %v3858 = vmul.f32 %v3257, %v3800
      %v3859 = vmul.f32 %v3261, %v3796
      %v3860 = vmul.f32 %v3261, %v3800
      %v3861 = vmul.f32 %v3265, %v3796
      %v3862 = vmul.f32 %v3265, %v3800
      %v3863 = vmul.f32 %v3269, %v3796
      %v3864 = vmul.f32 %v3269, %v3800
      %v3865 = vmul.f32 %v3273, %v3796
      %v3866 = vmul.f32 %v3273, %v3800
      %v3867 = vmul.f32 %v3277, %v3796
      %v3868 = vmul.f32 %v3277, %v3800
      %v3869 = vmul.f32 %v3281, %v3796
      %v3870 = vmul.f32 %v3281, %v3800
      %v3871 = vmul.f32 %v3285, %v3796
      %v3872 = vmul.f32 %v3285, %v3800
      %v3873 = vmul.f32 %v3289, %v3796
      %v3874 = vmul.f32 %v3289, %v3800
      %v3875 = vmul.f32 %v3293, %v3796
      %v3876 = vmul.f32 %v3293, %v3800
      %v3877 = vmul.f32 %v3297, %v3796
      %v3878 = vmul.f32 %v3297, %v3800
      %v3879 = vmul.f32 %v3301, %v3796
      %v3880 = vmul.f32 %v3301, %v3800
      %v3881 = vmul.f32 %v3305, %v3796
      %v3882 = vmul.f32 %v3305, %v3800
      %v3883 = vmul.f32 %v3309, %v3796
      %v3884 = vmul.f32 %v3309, %v3800
      %v3885 = vmul.f32 %v3313, %v3796
      %v3886 = vmul.f32 %v3313, %v3800
      %v3887 = vmul.f32 %v3317, %v3796
      %v3888 = vmul.f32 %v3317, %v3800
      %v3889 = vmul.f32 %v3321, %v3796
      %v3890 = vmul.f32 %v3321, %v3800
      %v3891 = vmul.f32 %v3325, %v3796
      %v3892 = vmul.f32 %v3325, %v3800
      %v3893 = vmul.f32 %v3329, %v3796
      %v3894 = vmul.f32 %v3329, %v3800
      %v3895 = vmul.f32 %v3333, %v3796
      %v3896 = vmul.f32 %v3333, %v3800
      %v3897 = vmul.f32 %v3337, %v3796
      %v3898 = vmul.f32 %v3337, %v3800
      %v3899 = vmul.f32 %v3341, %v3796
      %v3900 = vmul.f32 %v3341, %v3800
      %v3901 = vmul.f32 %v3345, %v3796
      %v3902 = vmul.f32 %v3345, %v3800
      %v3903 = vmul.f32 %v3349, %v3796
      %v3904 = vmul.f32 %v3349, %v3800
      %v3905 = vmul.f32 %v3353, %v3796
      %v3906 = vmul.f32 %v3353, %v3800
      %v3907 = vmul.f32 %v3357, %v3796
      %v3908 = vmul.f32 %v3357, %v3800
      %v3909 = vmul.f32 %v3361, %v3796
      %v3910 = vmul.f32 %v3361, %v3800
      %v3911 = vmul.f32 %v3365, %v3796
      %v3912 = vmul.f32 %v3365, %v3800
      %v3913 = vmul.f32 %v3369, %v3796
      %v3914 = vmul.f32 %v3369, %v3800
      %v3915 = vmul.f32 %v3373, %v3796
      %v3916 = vmul.f32 %v3373, %v3800
      %v3917 = vmul.f32 %v3377, %v3796
      %v3918 = vmul.f32 %v3377, %v3800
      %v3919 = vmul.f32 %v3381, %v3796
      %v3920 = vmul.f32 %v3381, %v3800
      %v3921 = vmul.f32 %v3385, %v3796
      %v3922 = vmul.f32 %v3385, %v3800
      %v3923 = vmul.f32 %v3389, %v3796
      %v3924 = vmul.f32 %v3389, %v3800
      %v3925 = vmul.f32 %v3393, %v3796
      %v3926 = vmul.f32 %v3393, %v3800
      %v3927 = vmul.f32 %v3397, %v3796
      %v3928 = vmul.f32 %v3397, %v3800
      %v3929 = vmul.f32 %v3401, %v3796
      %v3930 = vmul.f32 %v3401, %v3800
      %v3931 = vmul.f32 %v3405, %v3796
      %v3932 = vmul.f32 %v3405, %v3800
      %v3933 = vmul.f32 %v3409, %v3796
      %v3934 = vmul.f32 %v3409, %v3800
      %v3935 = vmul.f32 %v3413, %v3796
      %v3936 = vmul.f32 %v3413, %v3800
      %v3937 = vmul.f32 %v3417, %v3796
      %v3938 = vmul.f32 %v3417, %v3800
      %v3939 = vmul.f32 %v3421, %v3796
      %v3940 = vmul.f32 %v3421, %v3800
      %v3941 = vmul.f32 %v3425, %v3796
      %v3942 = vmul.f32 %v3425, %v3800
      %v3943 = vmul.f32 %v3429, %v3796
      %v3944 = vmul.f32 %v3429, %v3800
      %v3945 = vmul.f32 %v3433, %v3796
      %v3946 = vmul.f32 %v3433, %v3800
      %v3947 = vmul.f32 %v3437, %v3796
      %v3948 = vmul.f32 %v3437, %v3800
      %v3949 = vmul.f32 %v3441, %v3796
      %v3950 = vmul.f32 %v3441, %v3800
      %v3951 = vmul.f32 %v3445, %v3796
      %v3952 = vmul.f32 %v3445, %v3800
      %v3953 = vmul.f32 %v3449, %v3796
      %v3954 = vmul.f32 %v3449, %v3800
      %v3955 = vmul.f32 %v3453, %v3796
      %v3956 = vmul.f32 %v3453, %v3800
      %v3957 = vmul.f32 %v3457, %v3796
      %v3958 = vmul.f32 %v3457, %v3800
      %v3959 = vmul.f32 %v3461, %v3796
      %v3960 = vmul.f32 %v3461, %v3800
      %v3961 = vmul.f32 %v3465, %v3796
      %v3962 = vmul.f32 %v3465, %v3800
      %v3963 = vmul.f32 %v3469, %v3796
      %v3964 = vmul.f32 %v3469, %v3800
      %v3965 = vmul.f32 %v3473, %v3796
      %v3966 = vmul.f32 %v3473, %v3800
      %v3967 = vmul.f32 %v3477, %v3796
      %v3968 = vmul.f32 %v3477, %v3800
      %v3969 = vmul.f32 %v3481, %v3796
      %v3970 = vmul.f32 %v3481, %v3800
      %v3971 = vmul.f32 %v3485, %v3796
      %v3972 = vmul.f32 %v3485, %v3800
      %v3973 = vmul.f32 %v3489, %v3796
      %v3974 = vmul.f32 %v3489, %v3800
      %v3975 = vmul.f32 %v3493, %v3796
      %v3976 = vmul.f32 %v3493, %v3800
      %v3977 = vmul.f32 %v3497, %v3796
      %v3978 = vmul.f32 %v3497, %v3800
      %v3979 = vmul.f32 %v3501, %v3796
      %v3980 = vmul.f32 %v3501, %v3800
      %v3981 = vmul.f32 %v3505, %v3796
      %v3982 = vmul.f32 %v3505, %v3800
      %v3983 = vmul.f32 %v3509, %v3796
      %v3984 = vmul.f32 %v3509, %v3800
      %v3985 = vmul.f32 %v3513, %v3796
      %v3986 = vmul.f32 %v3513, %v3800
      %v3987 = vmul.f32 %v3517, %v3796
      %v3988 = vmul.f32 %v3517, %v3800
      %v3989 = vmul.f32 %v3521, %v3796
      %v3990 = vmul.f32 %v3521, %v3800
      %v3991 = vmul.f32 %v3525, %v3796
      %v3992 = vmul.f32 %v3525, %v3800
      %v3993 = vmul.f32 %v3529, %v3796
      %v3994 = vmul.f32 %v3529, %v3800
      %v3995 = vmul.f32 %v3533, %v3796
      %v3996 = vmul.f32 %v3533, %v3800
      %v3997 = vmul.f32 %v3537, %v3796
      %v3998 = vmul.f32 %v3537, %v3800
      %v3999 = vmul.f32 %v3541, %v3796
      %v4000 = vmul.f32 %v3541, %v3800
      %v4001 = vmul.f32 %v3545, %v3796
      %v4002 = vmul.f32 %v3545, %v3800
      %v4003 = vmul.f32 %v3549, %v3796
      %v4004 = vmul.f32 %v3549, %v3800
      %v4005 = vmul.f32 %v3553, %v3796
      %v4006 = vmul.f32 %v3553, %v3800
      %v4007 = vmul.f32 %v3557, %v3796
      %v4008 = vmul.f32 %v3557, %v3800
      %v4009 = vmul.f32 %v3561, %v3796
      %v4010 = vmul.f32 %v3561, %v3800
      %v4011 = vmul.f32 %v3565, %v3796
      %v4012 = vmul.f32 %v3565, %v3800
      %v4013 = vmul.f32 %v3569, %v3796
      %v4014 = vmul.f32 %v3569, %v3800
      %v4015 = vmul.f32 %v3573, %v3796
      %v4016 = vmul.f32 %v3573, %v3800
      %v4017 = vmul.f32 %v3577, %v3796
      %v4018 = vmul.f32 %v3577, %v3800
      %v4019 = vmul.f32 %v3581, %v3796
      %v4020 = vmul.f32 %v3581, %v3800
      %v4021 = vmul.f32 %v3585, %v3796
      %v4022 = vmul.f32 %v3585, %v3800
      %v4023 = vmul.f32 %v3589, %v3796
      %v4024 = vmul.f32 %v3589, %v3800
      %v4025 = vmul.f32 %v3593, %v3796
      %v4026 = vmul.f32 %v3593, %v3800
      %v4027 = vmul.f32 %v3597, %v3796
      %v4028 = vmul.f32 %v3597, %v3800
      %v4029 = vmul.f32 %v3601, %v3796
      %v4030 = vmul.f32 %v3601, %v3800
      %v4031 = vmul.f32 %v3605, %v3796
      %v4032 = vmul.f32 %v3605, %v3800
      %v4033 = vmul.f32 %v3609, %v3796
      %v4034 = vmul.f32 %v3609, %v3800
      %v4035 = vmul.f32 %v3613, %v3796
      %v4036 = vmul.f32 %v3613, %v3800
      %v4037 = vmul.f32 %v3617, %v3796
      %v4038 = vmul.f32 %v3617, %v3800
      %v4039 = vmul.f32 %v3621, %v3796
      %v4040 = vmul.f32 %v3621, %v3800
      %v4041 = vmul.f32 %v3625, %v3796
      %v4042 = vmul.f32 %v3625, %v3800
      %v4043 = vmul.f32 %v3629, %v3796
      %v4044 = vmul.f32 %v3629, %v3800
      %v4045 = vmul.f32 %v3633, %v3796
      %v4046 = vmul.f32 %v3633, %v3800
      %v4047 = vmul.f32 %v3637, %v3796
      %v4048 = vmul.f32 %v3637, %v3800
      %v4049 = vmul.f32 %v3641, %v3796
      %v4050 = vmul.f32 %v3641, %v3800
      %v4051 = vmul.f32 %v3645, %v3796
      %v4052 = vmul.f32 %v3645, %v3800
      %v4053 = vmul.f32 %v3649, %v3796
      %v4054 = vmul.f32 %v3649, %v3800
      %v4055 = vmul.f32 %v3653, %v3796
      %v4056 = vmul.f32 %v3653, %v3800
      %v4057 = vmul.f32 %v3657, %v3796
      %v4058 = vmul.f32 %v3657, %v3800
      %v4059 = vmul.f32 %v3661, %v3796
      %v4060 = vmul.f32 %v3661, %v3800
      %v4061 = vmul.f32 %v3665, %v3796
      %v4062 = vmul.f32 %v3665, %v3800
      %v4063 = vmul.f32 %v3669, %v3796
      %v4064 = vmul.f32 %v3669, %v3800
      %v4065 = vmul.f32 %v3673, %v3796
      %v4066 = vmul.f32 %v3673, %v3800
      %v4067 = vmul.f32 %v3677, %v3796
      %v4068 = vmul.f32 %v3677, %v3800
      %v4069 = vmul.f32 %v3681, %v3796
      %v4070 = vmul.f32 %v3681, %v3800
      %v4071 = vmul.f32 %v3685, %v3796
      %v4072 = vmul.f32 %v3685, %v3800
      %v4073 = vmul.f32 %v3689, %v3796
      %v4074 = vmul.f32 %v3689, %v3800
      %v4075 = vmul.f32 %v3693, %v3796
      %v4076 = vmul.f32 %v3693, %v3800
      %v4077 = vmul.f32 %v3697, %v3796
      %v4078 = vmul.f32 %v3697, %v3800
      %v4079 = vmul.f32 %v3701, %v3796
      %v4080 = vmul.f32 %v3701, %v3800
      %v4081 = vmul.f32 %v3705, %v3796
      %v4082 = vmul.f32 %v3705, %v3800
      %v4083 = vmul.f32 %v3709, %v3796
      %v4084 = vmul.f32 %v3709, %v3800
      %v4085 = vmul.f32 %v3713, %v3796
      %v4086 = vmul.f32 %v3713, %v3800
      %v4087 = vmul.f32 %v3717, %v3796
      %v4088 = vmul.f32 %v3717, %v3800
      %v4089 = vmul.f32 %v3721, %v3796
      %v4090 = vmul.f32 %v3721, %v3800
      %v4091 = vmul.f32 %v3725, %v3796
      %v4092 = vmul.f32 %v3725, %v3800
      %v4093 = vmul.f32 %v3729, %v3796
      %v4094 = vmul.f32 %v3729, %v3800
      %v4095 = vmul.f32 %v3733, %v3796
      %v4096 = vmul.f32 %v3733, %v3800
      %v4097 = vmul.f32 %v3737, %v3796
      %v4098 = vmul.f32 %v3737, %v3800
      %v4099 = vmul.f32 %v3741, %v3796
      %v4100 = vmul.f32 %v3741, %v3800
      %v4101 = vmul.f32 %v3745, %v3796
      %v4102 = vmul.f32 %v3745, %v3800
      %v4103 = vmul.f32 %v3749, %v3796
      %v4104 = vmul.f32 %v3749, %v3800
      %v4105 = vmul.f32 %v3753, %v3796
      %v4106 = vmul.f32 %v3753, %v3800
      %v4107 = vmul.f32 %v3757, %v3796
      %v4108 = vmul.f32 %v3757, %v3800
      %v4109 = vmul.f32 %v3761, %v3796
      %v4110 = vmul.f32 %v3761, %v3800
      %v4111 = vmul.f32 %v3765, %v3796
      %v4112 = vmul.f32 %v3765, %v3800
      %v4113 = vmul.f32 %v3769, %v3796
      %v4114 = vmul.f32 %v3769, %v3800
      %v4115 = vmul.f32 %v3773, %v3796
      %v4116 = vmul.f32 %v3773, %v3800
      %v4117 = vmul.f32 %v3777, %v3796
      %v4118 = vmul.f32 %v3777, %v3800
      %v4119 = vmul.f32 %v3781, %v3796
      %v4120 = vmul.f32 %v3781, %v3800
      %v4121 = vadd.f32 %v2823, %v3801
      %v4122 = vadd.f32 %v2824, %v3802
      %v4123 = vadd.f32 %v2825, %v3803
      %v4124 = vadd.f32 %v2826, %v3804
      %v4125 = vadd.f32 %v2827, %v3805
      %v4126 = vadd.f32 %v2828, %v3806
      %v4127 = vadd.f32 %v2829, %v3807
      %v4128 = vadd.f32 %v2830, %v3808
      %v4129 = vadd.f32 %v2831, %v3809
      %v4130 = vadd.f32 %v2832, %v3810
      %v4131 = vadd.f32 %v2833, %v3811
      %v4132 = vadd.f32 %v2834, %v3812
      %v4133 = vadd.f32 %v2835, %v3813
      %v4134 = vadd.f32 %v2836, %v3814
      %v4135 = vadd.f32 %v2837, %v3815
      %v4136 = vadd.f32 %v2838, %v3816
      %v4137 = vadd.f32 %v2839, %v3817
      %v4138 = vadd.f32 %v2840, %v3818
      %v4139 = vadd.f32 %v2841, %v3819
      %v4140 = vadd.f32 %v2842, %v3820
      %v4141 = vadd.f32 %v2843, %v3821
      %v4142 = vadd.f32 %v2844, %v3822
      %v4143 = vadd.f32 %v2845, %v3823
      %v4144 = vadd.f32 %v2846, %v3824
      %v4145 = vadd.f32 %v2847, %v3825
      %v4146 = vadd.f32 %v2848, %v3826
      %v4147 = vadd.f32 %v2849, %v3827
      %v4148 = vadd.f32 %v2850, %v3828
      %v4149 = vadd.f32 %v2851, %v3829
      %v4150 = vadd.f32 %v2852, %v3830
      %v4151 = vadd.f32 %v2853, %v3831
      %v4152 = vadd.f32 %v2854, %v3832
      %v4153 = vadd.f32 %v2855, %v3833
      %v4154 = vadd.f32 %v2856, %v3834
      %v4155 = vadd.f32 %v2857, %v3835
      %v4156 = vadd.f32 %v2858, %v3836
      %v4157 = vadd.f32 %v2859, %v3837
      %v4158 = vadd.f32 %v2860, %v3838
      %v4159 = vadd.f32 %v2861, %v3839
      %v4160 = vadd.f32 %v2862, %v3840
      %v4161 = vadd.f32 %v2863, %v3841
      %v4162 = vadd.f32 %v2864, %v3842
      %v4163 = vadd.f32 %v2865, %v3843
      %v4164 = vadd.f32 %v2866, %v3844
      %v4165 = vadd.f32 %v2867, %v3845
      %v4166 = vadd.f32 %v2868, %v3846
      %v4167 = vadd.f32 %v2869, %v3847
      %v4168 = vadd.f32 %v2870, %v3848
      %v4169 = vadd.f32 %v2871, %v3849
      %v4170 = vadd.f32 %v2872, %v3850
      %v4171 = vadd.f32 %v2873, %v3851
      %v4172 = vadd.f32 %v2874, %v3852
      %v4173 = vadd.f32 %v2875, %v3853
      %v4174 = vadd.f32 %v2876, %v3854
      %v4175 = vadd.f32 %v2877, %v3855
      %v4176 = vadd.f32 %v2878, %v3856
      %v4177 = vadd.f32 %v2879, %v3857
      %v4178 = vadd.f32 %v2880, %v3858
      %v4179 = vadd.f32 %v2881, %v3859
      %v4180 = vadd.f32 %v2882, %v3860
      %v4181 = vadd.f32 %v2883, %v3861
      %v4182 = vadd.f32 %v2884, %v3862
      %v4183 = vadd.f32 %v2885, %v3863
      %v4184 = vadd.f32 %v2886, %v3864
      %v4185 = vadd.f32 %v2887, %v3865
      %v4186 = vadd.f32 %v2888, %v3866
      %v4187 = vadd.f32 %v2889, %v3867
      %v4188 = vadd.f32 %v2890, %v3868
      %v4189 = vadd.f32 %v2891, %v3869
      %v4190 = vadd.f32 %v2892, %v3870
      %v4191 = vadd.f32 %v2893, %v3871
      %v4192 = vadd.f32 %v2894, %v3872
      %v4193 = vadd.f32 %v2895, %v3873
      %v4194 = vadd.f32 %v2896, %v3874
      %v4195 = vadd.f32 %v2897, %v3875
      %v4196 = vadd.f32 %v2898, %v3876
      %v4197 = vadd.f32 %v2899, %v3877
      %v4198 = vadd.f32 %v2900, %v3878
      %v4199 = vadd.f32 %v2901, %v3879
      %v4200 = vadd.f32 %v2902, %v3880
      %v4201 = vadd.f32 %v2903, %v3881
      %v4202 = vadd.f32 %v2904, %v3882
      %v4203 = vadd.f32 %v2905, %v3883
      %v4204 = vadd.f32 %v2906, %v3884
      %v4205 = vadd.f32 %v2907, %v3885
      %v4206 = vadd.f32 %v2908, %v3886
      %v4207 = vadd.f32 %v2909, %v3887
      %v4208 = vadd.f32 %v2910, %v3888
      %v4209 = vadd.f32 %v2911, %v3889
      %v4210 = vadd.f32 %v2912, %v3890
      %v4211 = vadd.f32 %v2913, %v3891
      %v4212 = vadd.f32 %v2914, %v3892
      %v4213 = vadd.f32 %v2915, %v3893
      %v4214 = vadd.f32 %v2916, %v3894
      %v4215 = vadd.f32 %v2917, %v3895
      %v4216 = vadd.f32 %v2918, %v3896
      %v4217 = vadd.f32 %v2919, %v3897
      %v4218 = vadd.f32 %v2920, %v3898
      %v4219 = vadd.f32 %v2921, %v3899
      %v4220 = vadd.f32 %v2922, %v3900
      %v4221 = vadd.f32 %v2923, %v3901
      %v4222 = vadd.f32 %v2924, %v3902
      %v4223 = vadd.f32 %v2925, %v3903
      %v4224 = vadd.f32 %v2926, %v3904
      %v4225 = vadd.f32 %v2927, %v3905
      %v4226 = vadd.f32 %v2928, %v3906
      %v4227 = vadd.f32 %v2929, %v3907
      %v4228 = vadd.f32 %v2930, %v3908
      %v4229 = vadd.f32 %v2931, %v3909
      %v4230 = vadd.f32 %v2932, %v3910
      %v4231 = vadd.f32 %v2933, %v3911
      %v4232 = vadd.f32 %v2934, %v3912
      %v4233 = vadd.f32 %v2935, %v3913
      %v4234 = vadd.f32 %v2936, %v3914
      %v4235 = vadd.f32 %v2937, %v3915
      %v4236 = vadd.f32 %v2938, %v3916
      %v4237 = vadd.f32 %v2939, %v3917
      %v4238 = vadd.f32 %v2940, %v3918
      %v4239 = vadd.f32 %v2941, %v3919
      %v4240 = vadd.f32 %v2942, %v3920
      %v4241 = vadd.f32 %v2943, %v3921
      %v4242 = vadd.f32 %v2944, %v3922
      %v4243 = vadd.f32 %v2945, %v3923
      %v4244 = vadd.f32 %v2946, %v3924
      %v4245 = vadd.f32 %v2947, %v3925
      %v4246 = vadd.f32 %v2948, %v3926
      %v4247 = vadd.f32 %v2949, %v3927
      %v4248 = vadd.f32 %v2950, %v3928
      %v4249 = vadd.f32 %v2951, %v3929
      %v4250 = vadd.f32 %v2952, %v3930
      %v4251 = vadd.f32 %v2953, %v3931
      %v4252 = vadd.f32 %v2954, %v3932
      %v4253 = vadd.f32 %v2955, %v3933
      %v4254 = vadd.f32 %v2956, %v3934
      %v4255 = vadd.f32 %v2957, %v3935
      %v4256 = vadd.f32 %v2958, %v3936
      %v4257 = vadd.f32 %v2959, %v3937
      %v4258 = vadd.f32 %v2960, %v3938
      %v4259 = vadd.f32 %v2961, %v3939
      %v4260 = vadd.f32 %v2962, %v3940
      %v4261 = vadd.f32 %v2963, %v3941
      %v4262 = vadd.f32 %v2964, %v3942
      %v4263 = vadd.f32 %v2965, %v3943
      %v4264 = vadd.f32 %v2966, %v3944
      %v4265 = vadd.f32 %v2967, %v3945
      %v4266 = vadd.f32 %v2968, %v3946
      %v4267 = vadd.f32 %v2969, %v3947
      %v4268 = vadd.f32 %v2970, %v3948
      %v4269 = vadd.f32 %v2971, %v3949
      %v4270 = vadd.f32 %v2972, %v3950
      %v4271 = vadd.f32 %v2973, %v3951
      %v4272 = vadd.f32 %v2974, %v3952
      %v4273 = vadd.f32 %v2975, %v3953
      %v4274 = vadd.f32 %v2976, %v3954
      %v4275 = vadd.f32 %v2977, %v3955
      %v4276 = vadd.f32 %v2978, %v3956
      %v4277 = vadd.f32 %v2979, %v3957
      %v4278 = vadd.f32 %v2980, %v3958
      %v4279 = vadd.f32 %v2981, %v3959
      %v4280 = vadd.f32 %v2982, %v3960
      %v4281 = vadd.f32 %v2983, %v3961
      %v4282 = vadd.f32 %v2984, %v3962
      %v4283 = vadd.f32 %v2985, %v3963
      %v4284 = vadd.f32 %v2986, %v3964
      %v4285 = vadd.f32 %v2987, %v3965
      %v4286 = vadd.f32 %v2988, %v3966
      %v4287 = vadd.f32 %v2989, %v3967
      %v4288 = vadd.f32 %v2990, %v3968
      %v4289 = vadd.f32 %v2991, %v3969
      %v4290 = vadd.f32 %v2992, %v3970
      %v4291 = vadd.f32 %v2993, %v3971
      %v4292 = vadd.f32 %v2994, %v3972
      %v4293 = vadd.f32 %v2995, %v3973
      %v4294 = vadd.f32 %v2996, %v3974
      %v4295 = vadd.f32 %v2997, %v3975
      %v4296 = vadd.f32 %v2998, %v3976
      %v4297 = vadd.f32 %v2999, %v3977
      %v4298 = vadd.f32 %v3000, %v3978
      %v4299 = vadd.f32 %v3001, %v3979
      %v4300 = vadd.f32 %v3002, %v3980
      %v4301 = vadd.f32 %v3003, %v3981
      %v4302 = vadd.f32 %v3004, %v3982
      %v4303 = vadd.f32 %v3005, %v3983
      %v4304 = vadd.f32 %v3006, %v3984
      %v4305 = vadd.f32 %v3007, %v3985
      %v4306 = vadd.f32 %v3008, %v3986
      %v4307 = vadd.f32 %v3009, %v3987
      %v4308 = vadd.f32 %v3010, %v3988
      %v4309 = vadd.f32 %v3011, %v3989
      %v4310 = vadd.f32 %v3012, %v3990
      %v4311 = vadd.f32 %v3013, %v3991
      %v4312 = vadd.f32 %v3014, %v3992
      %v4313 = vadd.f32 %v3015, %v3993
      %v4314 = vadd.f32 %v3016, %v3994
      %v4315 = vadd.f32 %v3017, %v3995
      %v4316 = vadd.f32 %v3018, %v3996
      %v4317 = vadd.f32 %v3019, %v3997
      %v4318 = vadd.f32 %v3020, %v3998
      %v4319 = vadd.f32 %v3021, %v3999
      %v4320 = vadd.f32 %v3022, %v4000
      %v4321 = vadd.f32 %v3023, %v4001
      %v4322 = vadd.f32 %v3024, %v4002
      %v4323 = vadd.f32 %v3025, %v4003
      %v4324 = vadd.f32 %v3026, %v4004
      %v4325 = vadd.f32 %v3027, %v4005
      %v4326 = vadd.f32 %v3028, %v4006
      %v4327 = vadd.f32 %v3029, %v4007
      %v4328 = vadd.f32 %v3030, %v4008
      %v4329 = vadd.f32 %v3031, %v4009
      %v4330 = vadd.f32 %v3032, %v4010
      %v4331 = vadd.f32 %v3033, %v4011
      %v4332 = vadd.f32 %v3034, %v4012
      %v4333 = vadd.f32 %v3035, %v4013
      %v4334 = vadd.f32 %v3036, %v4014
      %v4335 = vadd.f32 %v3037, %v4015
      %v4336 = vadd.f32 %v3038, %v4016
      %v4337 = vadd.f32 %v3039, %v4017
      %v4338 = vadd.f32 %v3040, %v4018
      %v4339 = vadd.f32 %v3041, %v4019
      %v4340 = vadd.f32 %v3042, %v4020
      %v4341 = vadd.f32 %v3043, %v4021
      %v4342 = vadd.f32 %v3044, %v4022
      %v4343 = vadd.f32 %v3045, %v4023
      %v4344 = vadd.f32 %v3046, %v4024
      %v4345 = vadd.f32 %v3047, %v4025
      %v4346 = vadd.f32 %v3048, %v4026
      %v4347 = vadd.f32 %v3049, %v4027
      %v4348 = vadd.f32 %v3050, %v4028
      %v4349 = vadd.f32 %v3051, %v4029
      %v4350 = vadd.f32 %v3052, %v4030
      %v4351 = vadd.f32 %v3053, %v4031
      %v4352 = vadd.f32 %v3054, %v4032
      %v4353 = vadd.f32 %v3055, %v4033
      %v4354 = vadd.f32 %v3056, %v4034
      %v4355 = vadd.f32 %v3057, %v4035
      %v4356 = vadd.f32 %v3058, %v4036
      %v4357 = vadd.f32 %v3059, %v4037
      %v4358 = vadd.f32 %v3060, %v4038
      %v4359 = vadd.f32 %v3061, %v4039
      %v4360 = vadd.f32 %v3062, %v4040
      %v4361 = vadd.f32 %v3063, %v4041
      %v4362 = vadd.f32 %v3064, %v4042
      %v4363 = vadd.f32 %v3065, %v4043
      %v4364 = vadd.f32 %v3066, %v4044
      %v4365 = vadd.f32 %v3067, %v4045
      %v4366 = vadd.f32 %v3068, %v4046
      %v4367 = vadd.f32 %v3069, %v4047
      %v4368 = vadd.f32 %v3070, %v4048
      %v4369 = vadd.f32 %v3071, %v4049
      %v4370 = vadd.f32 %v3072, %v4050
      %v4371 = vadd.f32 %v3073, %v4051
      %v4372 = vadd.f32 %v3074, %v4052
      %v4373 = vadd.f32 %v3075, %v4053
      %v4374 = vadd.f32 %v3076, %v4054
      %v4375 = vadd.f32 %v3077, %v4055
      %v4376 = vadd.f32 %v3078, %v4056
      %v4377 = vadd.f32 %v3079, %v4057
      %v4378 = vadd.f32 %v3080, %v4058
      %v4379 = vadd.f32 %v3081, %v4059
      %v4380 = vadd.f32 %v3082, %v4060
      %v4381 = vadd.f32 %v3083, %v4061
      %v4382 = vadd.f32 %v3084, %v4062
      %v4383 = vadd.f32 %v3085, %v4063
      %v4384 = vadd.f32 %v3086, %v4064
      %v4385 = vadd.f32 %v3087, %v4065
      %v4386 = vadd.f32 %v3088, %v4066
      %v4387 = vadd.f32 %v3089, %v4067
      %v4388 = vadd.f32 %v3090, %v4068
      %v4389 = vadd.f32 %v3091, %v4069
      %v4390 = vadd.f32 %v3092, %v4070
      %v4391 = vadd.f32 %v3093, %v4071
      %v4392 = vadd.f32 %v3094, %v4072
      %v4393 = vadd.f32 %v3095, %v4073
      %v4394 = vadd.f32 %v3096, %v4074
      %v4395 = vadd.f32 %v3097, %v4075
      %v4396 = vadd.f32 %v3098, %v4076
      %v4397 = vadd.f32 %v3099, %v4077
      %v4398 = vadd.f32 %v3100, %v4078
      %v4399 = vadd.f32 %v3101, %v4079
      %v4400 = vadd.f32 %v3102, %v4080
      %v4401 = vadd.f32 %v3103, %v4081
      %v4402 = vadd.f32 %v3104, %v4082
      %v4403 = vadd.f32 %v3105, %v4083
      %v4404 = vadd.f32 %v3106, %v4084
      %v4405 = vadd.f32 %v3107, %v4085
      %v4406 = vadd.f32 %v3108, %v4086
      %v4407 = vadd.f32 %v3109, %v4087
      %v4408 = vadd.f32 %v3110, %v4088
      %v4409 = vadd.f32 %v3111, %v4089
      %v4410 = vadd.f32 %v3112, %v4090
      %v4411 = vadd.f32 %v3113, %v4091
      %v4412 = vadd.f32 %v3114, %v4092
      %v4413 = vadd.f32 %v3115, %v4093
      %v4414 = vadd.f32 %v3116, %v4094
      %v4415 = vadd.f32 %v3117, %v4095
      %v4416 = vadd.f32 %v3118, %v4096
      %v4417 = vadd.f32 %v3119, %v4097
      %v4418 = vadd.f32 %v3120, %v4098
      %v4419 = vadd.f32 %v3121, %v4099
      %v4420 = vadd.f32 %v3122, %v4100
      %v4421 = vadd.f32 %v3123, %v4101
      %v4422 = vadd.f32 %v3124, %v4102
      %v4423 = vadd.f32 %v3125, %v4103
      %v4424 = vadd.f32 %v3126, %v4104
      %v4425 = vadd.f32 %v3127, %v4105
      %v4426 = vadd.f32 %v3128, %v4106
      %v4427 = vadd.f32 %v3129, %v4107
      %v4428 = vadd.f32 %v3130, %v4108
      %v4429 = vadd.f32 %v3131, %v4109
      %v4430 = vadd.f32 %v3132, %v4110
      %v4431 = vadd.f32 %v3133, %v4111
      %v4432 = vadd.f32 %v3134, %v4112
      %v4433 = vadd.f32 %v3135, %v4113
      %v4434 = vadd.f32 %v3136, %v4114
      %v4435 = vadd.f32 %v3137, %v4115
      %v4436 = vadd.f32 %v3138, %v4116
      %v4437 = vadd.f32 %v3139, %v4117
      %v4438 = vadd.f32 %v3140, %v4118
      %v4439 = vadd.f32 %v3141, %v4119
      %v4440 = vadd.f32 %v3142, %v4120
      %v4441 = vld [vmem:[%s2] sm:$0xff]
      %v4442 = vld [vmem:[%s2 + $0x8] sm:$0xff]
      %v4443 = vld [vmem:[%s2 + $0x10] sm:$0xff]
      %v4444 = vld [vmem:[%s2 + $0x18] sm:$0xff]
      %v4445 = vld [vmem:[%s2 + $0x20] sm:$0xff]
      %v4446 = vld [vmem:[%s2 + $0x28] sm:$0xff]
      %v4447 = vld [vmem:[%s2 + $0x30] sm:$0xff]
      %v4448 = vld [vmem:[%s2 + $0x38] sm:$0xff]
      %v4449 = vld [vmem:[%s2 + $0x40] sm:$0xff]
      %v4450 = vld [vmem:[%s2 + $0x48] sm:$0xff]
      %v4451 = vld [vmem:[%s2 + $0x50] sm:$0xff]
      %v4452 = vld [vmem:[%s2 + $0x58] sm:$0xff]
      %v4453 = vld [vmem:[%s2 + $0x60] sm:$0xff]
      %v4454 = vld [vmem:[%s2 + $0x68] sm:$0xff]
      %v4455 = vld [vmem:[%s2 + $0x70] sm:$0xff]
      %v4456 = vld [vmem:[%s2 + $0x78] sm:$0xff]
      %v4457 = vld [vmem:[%s2 + $0x80] sm:$0xff]
      %v4458 = vld [vmem:[%s2 + $0x88] sm:$0xff]
      %v4459 = vld [vmem:[%s2 + $0x90] sm:$0xff]
      %v4460 = vld [vmem:[%s2 + $0x98] sm:$0xff]
      %v4461 = vld [vmem:[%s2 + $0xa0] sm:$0xff]
      %v4462 = vld [vmem:[%s2 + $0xa8] sm:$0xff]
      %v4463 = vld [vmem:[%s2 + $0xb0] sm:$0xff]
      %v4464 = vld [vmem:[%s2 + $0xb8] sm:$0xff]
      %v4465 = vld [vmem:[%s2 + $0xc0] sm:$0xff]
      %v4466 = vld [vmem:[%s2 + $0xc8] sm:$0xff]
      %v4467 = vld [vmem:[%s2 + $0xd0] sm:$0xff]
      %v4468 = vld [vmem:[%s2 + $0xd8] sm:$0xff]
      %v4469 = vld [vmem:[%s2 + $0xe0] sm:$0xff]
      %v4470 = vld [vmem:[%s2 + $0xe8] sm:$0xff]
      %v4471 = vld [vmem:[%s2 + $0xf0] sm:$0xff]
      %v4472 = vld [vmem:[%s2 + $0xf8] sm:$0xff]
      %v4473 = vld [vmem:[%s2 + $0x100] sm:$0xff]
      %v4474 = vld [vmem:[%s2 + $0x108] sm:$0xff]
      %v4475 = vld [vmem:[%s2 + $0x110] sm:$0xff]
      %v4476 = vld [vmem:[%s2 + $0x118] sm:$0xff]
      %v4477 = vld [vmem:[%s2 + $0x120] sm:$0xff]
      %v4478 = vld [vmem:[%s2 + $0x128] sm:$0xff]
      %v4479 = vld [vmem:[%s2 + $0x130] sm:$0xff]
      %v4480 = vld [vmem:[%s2 + $0x138] sm:$0xff]
      %v4481 = vld [vmem:[%s2 + $0x140] sm:$0xff]
      %v4482 = vld [vmem:[%s2 + $0x148] sm:$0xff]
      %v4483 = vld [vmem:[%s2 + $0x150] sm:$0xff]
      %v4484 = vld [vmem:[%s2 + $0x158] sm:$0xff]
      %v4485 = vld [vmem:[%s2 + $0x160] sm:$0xff]
      %v4486 = vld [vmem:[%s2 + $0x168] sm:$0xff]
      %v4487 = vld [vmem:[%s2 + $0x170] sm:$0xff]
      %v4488 = vld [vmem:[%s2 + $0x178] sm:$0xff]
      %v4489 = vld [vmem:[%s2 + $0x180] sm:$0xff]
      %v4490 = vld [vmem:[%s2 + $0x188] sm:$0xff]
      %v4491 = vld [vmem:[%s2 + $0x190] sm:$0xff]
      %v4492 = vld [vmem:[%s2 + $0x198] sm:$0xff]
      %v4493 = vld [vmem:[%s2 + $0x1a0] sm:$0xff]
      %v4494 = vld [vmem:[%s2 + $0x1a8] sm:$0xff]
      %v4495 = vld [vmem:[%s2 + $0x1b0] sm:$0xff]
      %v4496 = vld [vmem:[%s2 + $0x1b8] sm:$0xff]
      %v4497 = vld [vmem:[%s2 + $0x1c0] sm:$0xff]
      %v4498 = vld [vmem:[%s2 + $0x1c8] sm:$0xff]
      %v4499 = vld [vmem:[%s2 + $0x1d0] sm:$0xff]
      %v4500 = vld [vmem:[%s2 + $0x1d8] sm:$0xff]
      %v4501 = vld [vmem:[%s2 + $0x1e0] sm:$0xff]
      %v4502 = vld [vmem:[%s2 + $0x1e8] sm:$0xff]
      %v4503 = vld [vmem:[%s2 + $0x1f0] sm:$0xff]
      %v4504 = vld [vmem:[%s2 + $0x1f8] sm:$0xff]
      %v4505 = vld [vmem:[%s2 + $0x200] sm:$0xff]
      %v4506 = vld [vmem:[%s2 + $0x208] sm:$0xff]
      %v4507 = vld [vmem:[%s2 + $0x210] sm:$0xff]
      %v4508 = vld [vmem:[%s2 + $0x218] sm:$0xff]
      %v4509 = vld [vmem:[%s2 + $0x220] sm:$0xff]
      %v4510 = vld [vmem:[%s2 + $0x228] sm:$0xff]
      %v4511 = vld [vmem:[%s2 + $0x230] sm:$0xff]
      %v4512 = vld [vmem:[%s2 + $0x238] sm:$0xff]
      %v4513 = vld [vmem:[%s2 + $0x240] sm:$0xff]
      %v4514 = vld [vmem:[%s2 + $0x248] sm:$0xff]
      %v4515 = vld [vmem:[%s2 + $0x250] sm:$0xff]
      %v4516 = vld [vmem:[%s2 + $0x258] sm:$0xff]
      %v4517 = vld [vmem:[%s2 + $0x260] sm:$0xff]
      %v4518 = vld [vmem:[%s2 + $0x268] sm:$0xff]
      %v4519 = vld [vmem:[%s2 + $0x270] sm:$0xff]
      %v4520 = vld [vmem:[%s2 + $0x278] sm:$0xff]
      %v4521 = vld [vmem:[%s2 + $0x280] sm:$0xff]
      %v4522 = vld [vmem:[%s2 + $0x288] sm:$0xff]
      %v4523 = vld [vmem:[%s2 + $0x290] sm:$0xff]
      %v4524 = vld [vmem:[%s2 + $0x298] sm:$0xff]
      %v4525 = vld [vmem:[%s2 + $0x2a0] sm:$0xff]
      %v4526 = vld [vmem:[%s2 + $0x2a8] sm:$0xff]
      %v4527 = vld [vmem:[%s2 + $0x2b0] sm:$0xff]
      %v4528 = vld [vmem:[%s2 + $0x2b8] sm:$0xff]
      %v4529 = vld [vmem:[%s2 + $0x2c0] sm:$0xff]
      %v4530 = vld [vmem:[%s2 + $0x2c8] sm:$0xff]
      %v4531 = vld [vmem:[%s2 + $0x2d0] sm:$0xff]
      %v4532 = vld [vmem:[%s2 + $0x2d8] sm:$0xff]
      %v4533 = vld [vmem:[%s2 + $0x2e0] sm:$0xff]
      %v4534 = vld [vmem:[%s2 + $0x2e8] sm:$0xff]
      %v4535 = vld [vmem:[%s2 + $0x2f0] sm:$0xff]
      %v4536 = vld [vmem:[%s2 + $0x2f8] sm:$0xff]
      %v4537 = vld [vmem:[%s2 + $0x300] sm:$0xff]
      %v4538 = vld [vmem:[%s2 + $0x308] sm:$0xff]
      %v4539 = vld [vmem:[%s2 + $0x310] sm:$0xff]
      %v4540 = vld [vmem:[%s2 + $0x318] sm:$0xff]
      %v4541 = vld [vmem:[%s2 + $0x320] sm:$0xff]
      %v4542 = vld [vmem:[%s2 + $0x328] sm:$0xff]
      %v4543 = vld [vmem:[%s2 + $0x330] sm:$0xff]
      %v4544 = vld [vmem:[%s2 + $0x338] sm:$0xff]
      %v4545 = vld [vmem:[%s2 + $0x340] sm:$0xff]
      %v4546 = vld [vmem:[%s2 + $0x348] sm:$0xff]
      %v4547 = vld [vmem:[%s2 + $0x350] sm:$0xff]
      %v4548 = vld [vmem:[%s2 + $0x358] sm:$0xff]
      %v4549 = vld [vmem:[%s2 + $0x360] sm:$0xff]
      %v4550 = vld [vmem:[%s2 + $0x368] sm:$0xff]
      %v4551 = vld [vmem:[%s2 + $0x370] sm:$0xff]
      %v4552 = vld [vmem:[%s2 + $0x378] sm:$0xff]
      %v4553 = vld [vmem:[%s2 + $0x380] sm:$0xff]
      %v4554 = vld [vmem:[%s2 + $0x388] sm:$0xff]
      %v4555 = vld [vmem:[%s2 + $0x390] sm:$0xff]
      %v4556 = vld [vmem:[%s2 + $0x398] sm:$0xff]
      %v4557 = vld [vmem:[%s2 + $0x3a0] sm:$0xff]
      %v4558 = vld [vmem:[%s2 + $0x3a8] sm:$0xff]
      %v4559 = vld [vmem:[%s2 + $0x3b0] sm:$0xff]
      %v4560 = vld [vmem:[%s2 + $0x3b8] sm:$0xff]
      %v4561 = vld [vmem:[%s2 + $0x3c0] sm:$0xff]
      %v4562 = vld [vmem:[%s2 + $0x3c8] sm:$0xff]
      %v4563 = vld [vmem:[%s2 + $0x3d0] sm:$0xff]
      %v4564 = vld [vmem:[%s2 + $0x3d8] sm:$0xff]
      %v4565 = vld [vmem:[%s2 + $0x3e0] sm:$0xff]
      %v4566 = vld [vmem:[%s2 + $0x3e8] sm:$0xff]
      %v4567 = vld [vmem:[%s2 + $0x3f0] sm:$0xff]
      %v4568 = vld [vmem:[%s2 + $0x3f8] sm:$0xff]
      %v4569 = vld [vmem:[%s2 + $0x400] sm:$0xff]
      %v4570 = vld [vmem:[%s2 + $0x408] sm:$0xff]
      %v4571 = vld [vmem:[%s2 + $0x410] sm:$0xff]
      %v4572 = vld [vmem:[%s2 + $0x418] sm:$0xff]
      %v4573 = vld [vmem:[%s2 + $0x420] sm:$0xff]
      %v4574 = vld [vmem:[%s2 + $0x428] sm:$0xff]
      %v4575 = vld [vmem:[%s2 + $0x430] sm:$0xff]
      %v4576 = vld [vmem:[%s2 + $0x438] sm:$0xff]
      %v4577 = vld [vmem:[%s2 + $0x440] sm:$0xff]
      %v4578 = vld [vmem:[%s2 + $0x448] sm:$0xff]
      %v4579 = vld [vmem:[%s2 + $0x450] sm:$0xff]
      %v4580 = vld [vmem:[%s2 + $0x458] sm:$0xff]
      %v4581 = vld [vmem:[%s2 + $0x460] sm:$0xff]
      %v4582 = vld [vmem:[%s2 + $0x468] sm:$0xff]
      %v4583 = vld [vmem:[%s2 + $0x470] sm:$0xff]
      %v4584 = vld [vmem:[%s2 + $0x478] sm:$0xff]
      %v4585 = vld [vmem:[%s2 + $0x480] sm:$0xff]
      %v4586 = vld [vmem:[%s2 + $0x488] sm:$0xff]
      %v4587 = vld [vmem:[%s2 + $0x490] sm:$0xff]
      %v4588 = vld [vmem:[%s2 + $0x498] sm:$0xff]
      %v4589 = vld [vmem:[%s2 + $0x4a0] sm:$0xff]
      %v4590 = vld [vmem:[%s2 + $0x4a8] sm:$0xff]
      %v4591 = vld [vmem:[%s2 + $0x4b0] sm:$0xff]
      %v4592 = vld [vmem:[%s2 + $0x4b8] sm:$0xff]
      %v4593 = vld [vmem:[%s2 + $0x4c0] sm:$0xff]
      %v4594 = vld [vmem:[%s2 + $0x4c8] sm:$0xff]
      %v4595 = vld [vmem:[%s2 + $0x4d0] sm:$0xff]
      %v4596 = vld [vmem:[%s2 + $0x4d8] sm:$0xff]
      %v4597 = vld [vmem:[%s2 + $0x4e0] sm:$0xff]
      %v4598 = vld [vmem:[%s2 + $0x4e8] sm:$0xff]
      %v4599 = vld [vmem:[%s2 + $0x4f0] sm:$0xff]
      %v4600 = vld [vmem:[%s2 + $0x4f8] sm:$0xff]
      %4602 = vset.pattern.permute.xlu0 0
      %4603 = vperm.xlu0 %4602, %v4441
      %v4604 = vpop.permute.xlu0 %4603
      %4607 = vset.pattern.permute.xlu0 0
      %4608 = vperm.xlu0 %4607, %v4442
      %v4609 = vpop.permute.xlu0 %4608
      %4612 = vset.pattern.permute.xlu0 0
      %4613 = vperm.xlu0 %4612, %v4443
      %v4614 = vpop.permute.xlu0 %4613
      %4617 = vset.pattern.permute.xlu0 0
      %4618 = vperm.xlu0 %4617, %v4444
      %v4619 = vpop.permute.xlu0 %4618
      %4622 = vset.pattern.permute.xlu0 0
      %4623 = vperm.xlu0 %4622, %v4445
      %v4624 = vpop.permute.xlu0 %4623
      %4627 = vset.pattern.permute.xlu0 0
      %4628 = vperm.xlu0 %4627, %v4446
      %v4629 = vpop.permute.xlu0 %4628
      %4632 = vset.pattern.permute.xlu0 0
      %4633 = vperm.xlu0 %4632, %v4447
      %v4634 = vpop.permute.xlu0 %4633
      %4637 = vset.pattern.permute.xlu0 0
      %4638 = vperm.xlu0 %4637, %v4448
      %v4639 = vpop.permute.xlu0 %4638
      %4642 = vset.pattern.permute.xlu0 0
      %4643 = vperm.xlu0 %4642, %v4449
      %v4644 = vpop.permute.xlu0 %4643
      %4647 = vset.pattern.permute.xlu0 0
      %4648 = vperm.xlu0 %4647, %v4450
      %v4649 = vpop.permute.xlu0 %4648
      %4652 = vset.pattern.permute.xlu0 0
      %4653 = vperm.xlu0 %4652, %v4451
      %v4654 = vpop.permute.xlu0 %4653
      %4657 = vset.pattern.permute.xlu0 0
      %4658 = vperm.xlu0 %4657, %v4452
      %v4659 = vpop.permute.xlu0 %4658
      %4662 = vset.pattern.permute.xlu0 0
      %4663 = vperm.xlu0 %4662, %v4453
      %v4664 = vpop.permute.xlu0 %4663
      %4667 = vset.pattern.permute.xlu0 0
      %4668 = vperm.xlu0 %4667, %v4454
      %v4669 = vpop.permute.xlu0 %4668
      %4672 = vset.pattern.permute.xlu0 0
      %4673 = vperm.xlu0 %4672, %v4455
      %v4674 = vpop.permute.xlu0 %4673
      %4677 = vset.pattern.permute.xlu0 0
      %4678 = vperm.xlu0 %4677, %v4456
      %v4679 = vpop.permute.xlu0 %4678
      %4682 = vset.pattern.permute.xlu0 0
      %4683 = vperm.xlu0 %4682, %v4457
      %v4684 = vpop.permute.xlu0 %4683
      %4687 = vset.pattern.permute.xlu0 0
      %4688 = vperm.xlu0 %4687, %v4458
      %v4689 = vpop.permute.xlu0 %4688
      %4692 = vset.pattern.permute.xlu0 0
      %4693 = vperm.xlu0 %4692, %v4459
      %v4694 = vpop.permute.xlu0 %4693
      %4697 = vset.pattern.permute.xlu0 0
      %4698 = vperm.xlu0 %4697, %v4460
      %v4699 = vpop.permute.xlu0 %4698
      %4702 = vset.pattern.permute.xlu0 0
      %4703 = vperm.xlu0 %4702, %v4461
      %v4704 = vpop.permute.xlu0 %4703
      %4707 = vset.pattern.permute.xlu0 0
      %4708 = vperm.xlu0 %4707, %v4462
      %v4709 = vpop.permute.xlu0 %4708
      %4712 = vset.pattern.permute.xlu0 0
      %4713 = vperm.xlu0 %4712, %v4463
      %v4714 = vpop.permute.xlu0 %4713
      %4717 = vset.pattern.permute.xlu0 0
      %4718 = vperm.xlu0 %4717, %v4464
      %v4719 = vpop.permute.xlu0 %4718
      %4722 = vset.pattern.permute.xlu0 0
      %4723 = vperm.xlu0 %4722, %v4465
      %v4724 = vpop.permute.xlu0 %4723
      %4727 = vset.pattern.permute.xlu0 0
      %4728 = vperm.xlu0 %4727, %v4466
      %v4729 = vpop.permute.xlu0 %4728
      %4732 = vset.pattern.permute.xlu0 0
      %4733 = vperm.xlu0 %4732, %v4467
      %v4734 = vpop.permute.xlu0 %4733
      %4737 = vset.pattern.permute.xlu0 0
      %4738 = vperm.xlu0 %4737, %v4468
      %v4739 = vpop.permute.xlu0 %4738
      %4742 = vset.pattern.permute.xlu0 0
      %4743 = vperm.xlu0 %4742, %v4469
      %v4744 = vpop.permute.xlu0 %4743
      %4747 = vset.pattern.permute.xlu0 0
      %4748 = vperm.xlu0 %4747, %v4470
      %v4749 = vpop.permute.xlu0 %4748
      %4752 = vset.pattern.permute.xlu0 0
      %4753 = vperm.xlu0 %4752, %v4471
      %v4754 = vpop.permute.xlu0 %4753
      %4757 = vset.pattern.permute.xlu0 0
      %4758 = vperm.xlu0 %4757, %v4472
      %v4759 = vpop.permute.xlu0 %4758
      %4762 = vset.pattern.permute.xlu0 0
      %4763 = vperm.xlu0 %4762, %v4473
      %v4764 = vpop.permute.xlu0 %4763
      %4767 = vset.pattern.permute.xlu0 0
      %4768 = vperm.xlu0 %4767, %v4474
      %v4769 = vpop.permute.xlu0 %4768
      %4772 = vset.pattern.permute.xlu0 0
      %4773 = vperm.xlu0 %4772, %v4475
      %v4774 = vpop.permute.xlu0 %4773
      %4777 = vset.pattern.permute.xlu0 0
      %4778 = vperm.xlu0 %4777, %v4476
      %v4779 = vpop.permute.xlu0 %4778
      %4782 = vset.pattern.permute.xlu0 0
      %4783 = vperm.xlu0 %4782, %v4477
      %v4784 = vpop.permute.xlu0 %4783
      %4787 = vset.pattern.permute.xlu0 0
      %4788 = vperm.xlu0 %4787, %v4478
      %v4789 = vpop.permute.xlu0 %4788
      %4792 = vset.pattern.permute.xlu0 0
      %4793 = vperm.xlu0 %4792, %v4479
      %v4794 = vpop.permute.xlu0 %4793
      %4797 = vset.pattern.permute.xlu0 0
      %4798 = vperm.xlu0 %4797, %v4480
      %v4799 = vpop.permute.xlu0 %4798
      %4802 = vset.pattern.permute.xlu0 0
      %4803 = vperm.xlu0 %4802, %v4481
      %v4804 = vpop.permute.xlu0 %4803
      %4807 = vset.pattern.permute.xlu0 0
      %4808 = vperm.xlu0 %4807, %v4482
      %v4809 = vpop.permute.xlu0 %4808
      %4812 = vset.pattern.permute.xlu0 0
      %4813 = vperm.xlu0 %4812, %v4483
      %v4814 = vpop.permute.xlu0 %4813
      %4817 = vset.pattern.permute.xlu0 0
      %4818 = vperm.xlu0 %4817, %v4484
      %v4819 = vpop.permute.xlu0 %4818
      %4822 = vset.pattern.permute.xlu0 0
      %4823 = vperm.xlu0 %4822, %v4485
      %v4824 = vpop.permute.xlu0 %4823
      %4827 = vset.pattern.permute.xlu0 0
      %4828 = vperm.xlu0 %4827, %v4486
      %v4829 = vpop.permute.xlu0 %4828
      %4832 = vset.pattern.permute.xlu0 0
      %4833 = vperm.xlu0 %4832, %v4487
      %v4834 = vpop.permute.xlu0 %4833
      %4837 = vset.pattern.permute.xlu0 0
      %4838 = vperm.xlu0 %4837, %v4488
      %v4839 = vpop.permute.xlu0 %4838
      %4842 = vset.pattern.permute.xlu0 0
      %4843 = vperm.xlu0 %4842, %v4489
      %v4844 = vpop.permute.xlu0 %4843
      %4847 = vset.pattern.permute.xlu0 0
      %4848 = vperm.xlu0 %4847, %v4490
      %v4849 = vpop.permute.xlu0 %4848
      %4852 = vset.pattern.permute.xlu0 0
      %4853 = vperm.xlu0 %4852, %v4491
      %v4854 = vpop.permute.xlu0 %4853
      %4857 = vset.pattern.permute.xlu0 0
      %4858 = vperm.xlu0 %4857, %v4492
      %v4859 = vpop.permute.xlu0 %4858
      %4862 = vset.pattern.permute.xlu0 0
      %4863 = vperm.xlu0 %4862, %v4493
      %v4864 = vpop.permute.xlu0 %4863
      %4867 = vset.pattern.permute.xlu0 0
      %4868 = vperm.xlu0 %4867, %v4494
      %v4869 = vpop.permute.xlu0 %4868
      %4872 = vset.pattern.permute.xlu0 0
      %4873 = vperm.xlu0 %4872, %v4495
      %v4874 = vpop.permute.xlu0 %4873
      %4877 = vset.pattern.permute.xlu0 0
      %4878 = vperm.xlu0 %4877, %v4496
      %v4879 = vpop.permute.xlu0 %4878
      %4882 = vset.pattern.permute.xlu0 0
      %4883 = vperm.xlu0 %4882, %v4497
      %v4884 = vpop.permute.xlu0 %4883
      %4887 = vset.pattern.permute.xlu0 0
      %4888 = vperm.xlu0 %4887, %v4498
      %v4889 = vpop.permute.xlu0 %4888
      %4892 = vset.pattern.permute.xlu0 0
      %4893 = vperm.xlu0 %4892, %v4499
      %v4894 = vpop.permute.xlu0 %4893
      %4897 = vset.pattern.permute.xlu0 0
      %4898 = vperm.xlu0 %4897, %v4500
      %v4899 = vpop.permute.xlu0 %4898
      %4902 = vset.pattern.permute.xlu0 0
      %4903 = vperm.xlu0 %4902, %v4501
      %v4904 = vpop.permute.xlu0 %4903
      %4907 = vset.pattern.permute.xlu0 0
      %4908 = vperm.xlu0 %4907, %v4502
      %v4909 = vpop.permute.xlu0 %4908
      %4912 = vset.pattern.permute.xlu0 0
      %4913 = vperm.xlu0 %4912, %v4503
      %v4914 = vpop.permute.xlu0 %4913
      %4917 = vset.pattern.permute.xlu0 0
      %4918 = vperm.xlu0 %4917, %v4504
      %v4919 = vpop.permute.xlu0 %4918
      %4922 = vset.pattern.permute.xlu0 0
      %4923 = vperm.xlu0 %4922, %v4505
      %v4924 = vpop.permute.xlu0 %4923
      %4927 = vset.pattern.permute.xlu0 0
      %4928 = vperm.xlu0 %4927, %v4506
      %v4929 = vpop.permute.xlu0 %4928
      %4932 = vset.pattern.permute.xlu0 0
      %4933 = vperm.xlu0 %4932, %v4507
      %v4934 = vpop.permute.xlu0 %4933
      %4937 = vset.pattern.permute.xlu0 0
      %4938 = vperm.xlu0 %4937, %v4508
      %v4939 = vpop.permute.xlu0 %4938
      %4942 = vset.pattern.permute.xlu0 0
      %4943 = vperm.xlu0 %4942, %v4509
      %v4944 = vpop.permute.xlu0 %4943
      %4947 = vset.pattern.permute.xlu0 0
      %4948 = vperm.xlu0 %4947, %v4510
      %v4949 = vpop.permute.xlu0 %4948
      %4952 = vset.pattern.permute.xlu0 0
      %4953 = vperm.xlu0 %4952, %v4511
      %v4954 = vpop.permute.xlu0 %4953
      %4957 = vset.pattern.permute.xlu0 0
      %4958 = vperm.xlu0 %4957, %v4512
      %v4959 = vpop.permute.xlu0 %4958
      %4962 = vset.pattern.permute.xlu0 0
      %4963 = vperm.xlu0 %4962, %v4513
      %v4964 = vpop.permute.xlu0 %4963
      %4967 = vset.pattern.permute.xlu0 0
      %4968 = vperm.xlu0 %4967, %v4514
      %v4969 = vpop.permute.xlu0 %4968
      %4972 = vset.pattern.permute.xlu0 0
      %4973 = vperm.xlu0 %4972, %v4515
      %v4974 = vpop.permute.xlu0 %4973
      %4977 = vset.pattern.permute.xlu0 0
      %4978 = vperm.xlu0 %4977, %v4516
      %v4979 = vpop.permute.xlu0 %4978
      %4982 = vset.pattern.permute.xlu0 0
      %4983 = vperm.xlu0 %4982, %v4517
      %v4984 = vpop.permute.xlu0 %4983
      %4987 = vset.pattern.permute.xlu0 0
      %4988 = vperm.xlu0 %4987, %v4518
      %v4989 = vpop.permute.xlu0 %4988
      %4992 = vset.pattern.permute.xlu0 0
      %4993 = vperm.xlu0 %4992, %v4519
      %v4994 = vpop.permute.xlu0 %4993
      %4997 = vset.pattern.permute.xlu0 0
      %4998 = vperm.xlu0 %4997, %v4520
      %v4999 = vpop.permute.xlu0 %4998
      %5002 = vset.pattern.permute.xlu0 0
      %5003 = vperm.xlu0 %5002, %v4521
      %v5004 = vpop.permute.xlu0 %5003
      %5007 = vset.pattern.permute.xlu0 0
      %5008 = vperm.xlu0 %5007, %v4522
      %v5009 = vpop.permute.xlu0 %5008
      %5012 = vset.pattern.permute.xlu0 0
      %5013 = vperm.xlu0 %5012, %v4523
      %v5014 = vpop.permute.xlu0 %5013
      %5017 = vset.pattern.permute.xlu0 0
      %5018 = vperm.xlu0 %5017, %v4524
      %v5019 = vpop.permute.xlu0 %5018
      %5022 = vset.pattern.permute.xlu0 0
      %5023 = vperm.xlu0 %5022, %v4525
      %v5024 = vpop.permute.xlu0 %5023
      %5027 = vset.pattern.permute.xlu0 0
      %5028 = vperm.xlu0 %5027, %v4526
      %v5029 = vpop.permute.xlu0 %5028
      %5032 = vset.pattern.permute.xlu0 0
      %5033 = vperm.xlu0 %5032, %v4527
      %v5034 = vpop.permute.xlu0 %5033
      %5037 = vset.pattern.permute.xlu0 0
      %5038 = vperm.xlu0 %5037, %v4528
      %v5039 = vpop.permute.xlu0 %5038
      %5042 = vset.pattern.permute.xlu0 0
      %5043 = vperm.xlu0 %5042, %v4529
      %v5044 = vpop.permute.xlu0 %5043
      %5047 = vset.pattern.permute.xlu0 0
      %5048 = vperm.xlu0 %5047, %v4530
      %v5049 = vpop.permute.xlu0 %5048
      %5052 = vset.pattern.permute.xlu0 0
      %5053 = vperm.xlu0 %5052, %v4531
      %v5054 = vpop.permute.xlu0 %5053
      %5057 = vset.pattern.permute.xlu0 0
      %5058 = vperm.xlu0 %5057, %v4532
      %v5059 = vpop.permute.xlu0 %5058
      %5062 = vset.pattern.permute.xlu0 0
      %5063 = vperm.xlu0 %5062, %v4533
      %v5064 = vpop.permute.xlu0 %5063
      %5067 = vset.pattern.permute.xlu0 0
      %5068 = vperm.xlu0 %5067, %v4534
      %v5069 = vpop.permute.xlu0 %5068
      %5072 = vset.pattern.permute.xlu0 0
      %5073 = vperm.xlu0 %5072, %v4535
      %v5074 = vpop.permute.xlu0 %5073
      %5077 = vset.pattern.permute.xlu0 0
      %5078 = vperm.xlu0 %5077, %v4536
      %v5079 = vpop.permute.xlu0 %5078
      %5082 = vset.pattern.permute.xlu0 0
      %5083 = vperm.xlu0 %5082, %v4537
      %v5084 = vpop.permute.xlu0 %5083
      %5087 = vset.pattern.permute.xlu0 0
      %5088 = vperm.xlu0 %5087, %v4538
      %v5089 = vpop.permute.xlu0 %5088
      %5092 = vset.pattern.permute.xlu0 0
      %5093 = vperm.xlu0 %5092, %v4539
      %v5094 = vpop.permute.xlu0 %5093
      %5097 = vset.pattern.permute.xlu0 0
      %5098 = vperm.xlu0 %5097, %v4540
      %v5099 = vpop.permute.xlu0 %5098
      %5102 = vset.pattern.permute.xlu0 0
      %5103 = vperm.xlu0 %5102, %v4541
      %v5104 = vpop.permute.xlu0 %5103
      %5107 = vset.pattern.permute.xlu0 0
      %5108 = vperm.xlu0 %5107, %v4542
      %v5109 = vpop.permute.xlu0 %5108
      %5112 = vset.pattern.permute.xlu0 0
      %5113 = vperm.xlu0 %5112, %v4543
      %v5114 = vpop.permute.xlu0 %5113
      %5117 = vset.pattern.permute.xlu0 0
      %5118 = vperm.xlu0 %5117, %v4544
      %v5119 = vpop.permute.xlu0 %5118
      %5122 = vset.pattern.permute.xlu0 0
      %5123 = vperm.xlu0 %5122, %v4545
      %v5124 = vpop.permute.xlu0 %5123
      %5127 = vset.pattern.permute.xlu0 0
      %5128 = vperm.xlu0 %5127, %v4546
      %v5129 = vpop.permute.xlu0 %5128
      %5132 = vset.pattern.permute.xlu0 0
      %5133 = vperm.xlu0 %5132, %v4547
      %v5134 = vpop.permute.xlu0 %5133
      %5137 = vset.pattern.permute.xlu0 0
      %5138 = vperm.xlu0 %5137, %v4548
      %v5139 = vpop.permute.xlu0 %5138
      %5142 = vset.pattern.permute.xlu0 0
      %5143 = vperm.xlu0 %5142, %v4549
      %v5144 = vpop.permute.xlu0 %5143
      %5147 = vset.pattern.permute.xlu0 0
      %5148 = vperm.xlu0 %5147, %v4550
      %v5149 = vpop.permute.xlu0 %5148
      %5152 = vset.pattern.permute.xlu0 0
      %5153 = vperm.xlu0 %5152, %v4551
      %v5154 = vpop.permute.xlu0 %5153
      %5157 = vset.pattern.permute.xlu0 0
      %5158 = vperm.xlu0 %5157, %v4552
      %v5159 = vpop.permute.xlu0 %5158
      %5162 = vset.pattern.permute.xlu0 0
      %5163 = vperm.xlu0 %5162, %v4553
      %v5164 = vpop.permute.xlu0 %5163
      %5167 = vset.pattern.permute.xlu0 0
      %5168 = vperm.xlu0 %5167, %v4554
      %v5169 = vpop.permute.xlu0 %5168
      %5172 = vset.pattern.permute.xlu0 0
      %5173 = vperm.xlu0 %5172, %v4555
      %v5174 = vpop.permute.xlu0 %5173
      %5177 = vset.pattern.permute.xlu0 0
      %5178 = vperm.xlu0 %5177, %v4556
      %v5179 = vpop.permute.xlu0 %5178
      %5182 = vset.pattern.permute.xlu0 0
      %5183 = vperm.xlu0 %5182, %v4557
      %v5184 = vpop.permute.xlu0 %5183
      %5187 = vset.pattern.permute.xlu0 0
      %5188 = vperm.xlu0 %5187, %v4558
      %v5189 = vpop.permute.xlu0 %5188
      %5192 = vset.pattern.permute.xlu0 0
      %5193 = vperm.xlu0 %5192, %v4559
      %v5194 = vpop.permute.xlu0 %5193
      %5197 = vset.pattern.permute.xlu0 0
      %5198 = vperm.xlu0 %5197, %v4560
      %v5199 = vpop.permute.xlu0 %5198
      %5202 = vset.pattern.permute.xlu0 0
      %5203 = vperm.xlu0 %5202, %v4561
      %v5204 = vpop.permute.xlu0 %5203
      %5207 = vset.pattern.permute.xlu0 0
      %5208 = vperm.xlu0 %5207, %v4562
      %v5209 = vpop.permute.xlu0 %5208
      %5212 = vset.pattern.permute.xlu0 0
      %5213 = vperm.xlu0 %5212, %v4563
      %v5214 = vpop.permute.xlu0 %5213
      %5217 = vset.pattern.permute.xlu0 0
      %5218 = vperm.xlu0 %5217, %v4564
      %v5219 = vpop.permute.xlu0 %5218
      %5222 = vset.pattern.permute.xlu0 0
      %5223 = vperm.xlu0 %5222, %v4565
      %v5224 = vpop.permute.xlu0 %5223
      %5227 = vset.pattern.permute.xlu0 0
      %5228 = vperm.xlu0 %5227, %v4566
      %v5229 = vpop.permute.xlu0 %5228
      %5232 = vset.pattern.permute.xlu0 0
      %5233 = vperm.xlu0 %5232, %v4567
      %v5234 = vpop.permute.xlu0 %5233
      %5237 = vset.pattern.permute.xlu0 0
      %5238 = vperm.xlu0 %5237, %v4568
      %v5239 = vpop.permute.xlu0 %5238
      %5242 = vset.pattern.permute.xlu0 0
      %5243 = vperm.xlu0 %5242, %v4569
      %v5244 = vpop.permute.xlu0 %5243
      %5247 = vset.pattern.permute.xlu0 0
      %5248 = vperm.xlu0 %5247, %v4570
      %v5249 = vpop.permute.xlu0 %5248
      %5252 = vset.pattern.permute.xlu0 0
      %5253 = vperm.xlu0 %5252, %v4571
      %v5254 = vpop.permute.xlu0 %5253
      %5257 = vset.pattern.permute.xlu0 0
      %5258 = vperm.xlu0 %5257, %v4572
      %v5259 = vpop.permute.xlu0 %5258
      %5262 = vset.pattern.permute.xlu0 0
      %5263 = vperm.xlu0 %5262, %v4573
      %v5264 = vpop.permute.xlu0 %5263
      %5267 = vset.pattern.permute.xlu0 0
      %5268 = vperm.xlu0 %5267, %v4574
      %v5269 = vpop.permute.xlu0 %5268
      %5272 = vset.pattern.permute.xlu0 0
      %5273 = vperm.xlu0 %5272, %v4575
      %v5274 = vpop.permute.xlu0 %5273
      %5277 = vset.pattern.permute.xlu0 0
      %5278 = vperm.xlu0 %5277, %v4576
      %v5279 = vpop.permute.xlu0 %5278
      %5282 = vset.pattern.permute.xlu0 0
      %5283 = vperm.xlu0 %5282, %v4577
      %v5284 = vpop.permute.xlu0 %5283
      %5287 = vset.pattern.permute.xlu0 0
      %5288 = vperm.xlu0 %5287, %v4578
      %v5289 = vpop.permute.xlu0 %5288
      %5292 = vset.pattern.permute.xlu0 0
      %5293 = vperm.xlu0 %5292, %v4579
      %v5294 = vpop.permute.xlu0 %5293
      %5297 = vset.pattern.permute.xlu0 0
      %5298 = vperm.xlu0 %5297, %v4580
      %v5299 = vpop.permute.xlu0 %5298
      %5302 = vset.pattern.permute.xlu0 0
      %5303 = vperm.xlu0 %5302, %v4581
      %v5304 = vpop.permute.xlu0 %5303
      %5307 = vset.pattern.permute.xlu0 0
      %5308 = vperm.xlu0 %5307, %v4582
      %v5309 = vpop.permute.xlu0 %5308
      %5312 = vset.pattern.permute.xlu0 0
      %5313 = vperm.xlu0 %5312, %v4583
      %v5314 = vpop.permute.xlu0 %5313
      %5317 = vset.pattern.permute.xlu0 0
      %5318 = vperm.xlu0 %5317, %v4584
      %v5319 = vpop.permute.xlu0 %5318
      %5322 = vset.pattern.permute.xlu0 0
      %5323 = vperm.xlu0 %5322, %v4585
      %v5324 = vpop.permute.xlu0 %5323
      %5327 = vset.pattern.permute.xlu0 0
      %5328 = vperm.xlu0 %5327, %v4586
      %v5329 = vpop.permute.xlu0 %5328
      %5332 = vset.pattern.permute.xlu0 0
      %5333 = vperm.xlu0 %5332, %v4587
      %v5334 = vpop.permute.xlu0 %5333
      %5337 = vset.pattern.permute.xlu0 0
      %5338 = vperm.xlu0 %5337, %v4588
      %v5339 = vpop.permute.xlu0 %5338
      %5342 = vset.pattern.permute.xlu0 0
      %5343 = vperm.xlu0 %5342, %v4589
      %v5344 = vpop.permute.xlu0 %5343
      %5347 = vset.pattern.permute.xlu0 0
      %5348 = vperm.xlu0 %5347, %v4590
      %v5349 = vpop.permute.xlu0 %5348
      %5352 = vset.pattern.permute.xlu0 0
      %5353 = vperm.xlu0 %5352, %v4591
      %v5354 = vpop.permute.xlu0 %5353
      %5357 = vset.pattern.permute.xlu0 0
      %5358 = vperm.xlu0 %5357, %v4592
      %v5359 = vpop.permute.xlu0 %5358
      %5362 = vset.pattern.permute.xlu0 0
      %5363 = vperm.xlu0 %5362, %v4593
      %v5364 = vpop.permute.xlu0 %5363
      %5367 = vset.pattern.permute.xlu0 0
      %5368 = vperm.xlu0 %5367, %v4594
      %v5369 = vpop.permute.xlu0 %5368
      %5372 = vset.pattern.permute.xlu0 0
      %5373 = vperm.xlu0 %5372, %v4595
      %v5374 = vpop.permute.xlu0 %5373
      %5377 = vset.pattern.permute.xlu0 0
      %5378 = vperm.xlu0 %5377, %v4596
      %v5379 = vpop.permute.xlu0 %5378
      %5382 = vset.pattern.permute.xlu0 0
      %5383 = vperm.xlu0 %5382, %v4597
      %v5384 = vpop.permute.xlu0 %5383
      %5387 = vset.pattern.permute.xlu0 0
      %5388 = vperm.xlu0 %5387, %v4598
      %v5389 = vpop.permute.xlu0 %5388
      %5392 = vset.pattern.permute.xlu0 0
      %5393 = vperm.xlu0 %5392, %v4599
      %v5394 = vpop.permute.xlu0 %5393
      %5397 = vset.pattern.permute.xlu0 0
      %5398 = vperm.xlu0 %5397, %v4600
      %v5399 = vpop.permute.xlu0 %5398
      %v5401 = vadd.f32 %v4121, %v4604
      %v5402 = vadd.f32 %v4122, %v4604
      %v5403 = vadd.f32 %v4123, %v4609
      %v5404 = vadd.f32 %v4124, %v4609
      %v5405 = vadd.f32 %v4125, %v4614
      %v5406 = vadd.f32 %v4126, %v4614
      %v5407 = vadd.f32 %v4127, %v4619
      %v5408 = vadd.f32 %v4128, %v4619
      %v5409 = vadd.f32 %v4129, %v4624
      %v5410 = vadd.f32 %v4130, %v4624
      %v5411 = vadd.f32 %v4131, %v4629
      %v5412 = vadd.f32 %v4132, %v4629
      %v5413 = vadd.f32 %v4133, %v4634
      %v5414 = vadd.f32 %v4134, %v4634
      %v5415 = vadd.f32 %v4135, %v4639
      %v5416 = vadd.f32 %v4136, %v4639
      %v5417 = vadd.f32 %v4137, %v4644
      %v5418 = vadd.f32 %v4138, %v4644
      %v5419 = vadd.f32 %v4139, %v4649
      %v5420 = vadd.f32 %v4140, %v4649
      %v5421 = vadd.f32 %v4141, %v4654
      %v5422 = vadd.f32 %v4142, %v4654
      %v5423 = vadd.f32 %v4143, %v4659
      %v5424 = vadd.f32 %v4144, %v4659
      %v5425 = vadd.f32 %v4145, %v4664
      %v5426 = vadd.f32 %v4146, %v4664
      %v5427 = vadd.f32 %v4147, %v4669
      %v5428 = vadd.f32 %v4148, %v4669
      %v5429 = vadd.f32 %v4149, %v4674
      %v5430 = vadd.f32 %v4150, %v4674
      %v5431 = vadd.f32 %v4151, %v4679
      %v5432 = vadd.f32 %v4152, %v4679
      %v5433 = vadd.f32 %v4153, %v4684
      %v5434 = vadd.f32 %v4154, %v4684
      %v5435 = vadd.f32 %v4155, %v4689
      %v5436 = vadd.f32 %v4156, %v4689
      %v5437 = vadd.f32 %v4157, %v4694
      %v5438 = vadd.f32 %v4158, %v4694
      %v5439 = vadd.f32 %v4159, %v4699
      %v5440 = vadd.f32 %v4160, %v4699
      %v5441 = vadd.f32 %v4161, %v4704
      %v5442 = vadd.f32 %v4162, %v4704
      %v5443 = vadd.f32 %v4163, %v4709
      %v5444 = vadd.f32 %v4164, %v4709
      %v5445 = vadd.f32 %v4165, %v4714
      %v5446 = vadd.f32 %v4166, %v4714
      %v5447 = vadd.f32 %v4167, %v4719
      %v5448 = vadd.f32 %v4168, %v4719
      %v5449 = vadd.f32 %v4169, %v4724
      %v5450 = vadd.f32 %v4170, %v4724
      %v5451 = vadd.f32 %v4171, %v4729
      %v5452 = vadd.f32 %v4172, %v4729
      %v5453 = vadd.f32 %v4173, %v4734
      %v5454 = vadd.f32 %v4174, %v4734
      %v5455 = vadd.f32 %v4175, %v4739
      %v5456 = vadd.f32 %v4176, %v4739
      %v5457 = vadd.f32 %v4177, %v4744
      %v5458 = vadd.f32 %v4178, %v4744
      %v5459 = vadd.f32 %v4179, %v4749
      %v5460 = vadd.f32 %v4180, %v4749
      %v5461 = vadd.f32 %v4181, %v4754
      %v5462 = vadd.f32 %v4182, %v4754
      %v5463 = vadd.f32 %v4183, %v4759
      %v5464 = vadd.f32 %v4184, %v4759
      %v5465 = vadd.f32 %v4185, %v4764
      %v5466 = vadd.f32 %v4186, %v4764
      %v5467 = vadd.f32 %v4187, %v4769
      %v5468 = vadd.f32 %v4188, %v4769
      %v5469 = vadd.f32 %v4189, %v4774
      %v5470 = vadd.f32 %v4190, %v4774
      %v5471 = vadd.f32 %v4191, %v4779
      %v5472 = vadd.f32 %v4192, %v4779
      %v5473 = vadd.f32 %v4193, %v4784
      %v5474 = vadd.f32 %v4194, %v4784
      %v5475 = vadd.f32 %v4195, %v4789
      %v5476 = vadd.f32 %v4196, %v4789
      %v5477 = vadd.f32 %v4197, %v4794
      %v5478 = vadd.f32 %v4198, %v4794
      %v5479 = vadd.f32 %v4199, %v4799
      %v5480 = vadd.f32 %v4200, %v4799
      %v5481 = vadd.f32 %v4201, %v4804
      %v5482 = vadd.f32 %v4202, %v4804
      %v5483 = vadd.f32 %v4203, %v4809
      %v5484 = vadd.f32 %v4204, %v4809
      %v5485 = vadd.f32 %v4205, %v4814
      %v5486 = vadd.f32 %v4206, %v4814
      %v5487 = vadd.f32 %v4207, %v4819
      %v5488 = vadd.f32 %v4208, %v4819
      %v5489 = vadd.f32 %v4209, %v4824
      %v5490 = vadd.f32 %v4210, %v4824
      %v5491 = vadd.f32 %v4211, %v4829
      %v5492 = vadd.f32 %v4212, %v4829
      %v5493 = vadd.f32 %v4213, %v4834
      %v5494 = vadd.f32 %v4214, %v4834
      %v5495 = vadd.f32 %v4215, %v4839
      %v5496 = vadd.f32 %v4216, %v4839
      %v5497 = vadd.f32 %v4217, %v4844
      %v5498 = vadd.f32 %v4218, %v4844
      %v5499 = vadd.f32 %v4219, %v4849
      %v5500 = vadd.f32 %v4220, %v4849
      %v5501 = vadd.f32 %v4221, %v4854
      %v5502 = vadd.f32 %v4222, %v4854
      %v5503 = vadd.f32 %v4223, %v4859
      %v5504 = vadd.f32 %v4224, %v4859
      %v5505 = vadd.f32 %v4225, %v4864
      %v5506 = vadd.f32 %v4226, %v4864
      %v5507 = vadd.f32 %v4227, %v4869
      %v5508 = vadd.f32 %v4228, %v4869
      %v5509 = vadd.f32 %v4229, %v4874
      %v5510 = vadd.f32 %v4230, %v4874
      %v5511 = vadd.f32 %v4231, %v4879
      %v5512 = vadd.f32 %v4232, %v4879
      %v5513 = vadd.f32 %v4233, %v4884
      %v5514 = vadd.f32 %v4234, %v4884
      %v5515 = vadd.f32 %v4235, %v4889
      %v5516 = vadd.f32 %v4236, %v4889
      %v5517 = vadd.f32 %v4237, %v4894
      %v5518 = vadd.f32 %v4238, %v4894
      %v5519 = vadd.f32 %v4239, %v4899
      %v5520 = vadd.f32 %v4240, %v4899
      %v5521 = vadd.f32 %v4241, %v4904
      %v5522 = vadd.f32 %v4242, %v4904
      %v5523 = vadd.f32 %v4243, %v4909
      %v5524 = vadd.f32 %v4244, %v4909
      %v5525 = vadd.f32 %v4245, %v4914
      %v5526 = vadd.f32 %v4246, %v4914
      %v5527 = vadd.f32 %v4247, %v4919
      %v5528 = vadd.f32 %v4248, %v4919
      %v5529 = vadd.f32 %v4249, %v4924
      %v5530 = vadd.f32 %v4250, %v4924
      %v5531 = vadd.f32 %v4251, %v4929
      %v5532 = vadd.f32 %v4252, %v4929
      %v5533 = vadd.f32 %v4253, %v4934
      %v5534 = vadd.f32 %v4254, %v4934
      %v5535 = vadd.f32 %v4255, %v4939
      %v5536 = vadd.f32 %v4256, %v4939
      %v5537 = vadd.f32 %v4257, %v4944
      %v5538 = vadd.f32 %v4258, %v4944
      %v5539 = vadd.f32 %v4259, %v4949
      %v5540 = vadd.f32 %v4260, %v4949
      %v5541 = vadd.f32 %v4261, %v4954
      %v5542 = vadd.f32 %v4262, %v4954
      %v5543 = vadd.f32 %v4263, %v4959
      %v5544 = vadd.f32 %v4264, %v4959
      %v5545 = vadd.f32 %v4265, %v4964
      %v5546 = vadd.f32 %v4266, %v4964
      %v5547 = vadd.f32 %v4267, %v4969
      %v5548 = vadd.f32 %v4268, %v4969
      %v5549 = vadd.f32 %v4269, %v4974
      %v5550 = vadd.f32 %v4270, %v4974
      %v5551 = vadd.f32 %v4271, %v4979
      %v5552 = vadd.f32 %v4272, %v4979
      %v5553 = vadd.f32 %v4273, %v4984
      %v5554 = vadd.f32 %v4274, %v4984
      %v5555 = vadd.f32 %v4275, %v4989
      %v5556 = vadd.f32 %v4276, %v4989
      %v5557 = vadd.f32 %v4277, %v4994
      %v5558 = vadd.f32 %v4278, %v4994
      %v5559 = vadd.f32 %v4279, %v4999
      %v5560 = vadd.f32 %v4280, %v4999
      %v5561 = vadd.f32 %v4281, %v5004
      %v5562 = vadd.f32 %v4282, %v5004
      %v5563 = vadd.f32 %v4283, %v5009
      %v5564 = vadd.f32 %v4284, %v5009
      %v5565 = vadd.f32 %v4285, %v5014
      %v5566 = vadd.f32 %v4286, %v5014
      %v5567 = vadd.f32 %v4287, %v5019
      %v5568 = vadd.f32 %v4288, %v5019
      %v5569 = vadd.f32 %v4289, %v5024
      %v5570 = vadd.f32 %v4290, %v5024
      %v5571 = vadd.f32 %v4291, %v5029
      %v5572 = vadd.f32 %v4292, %v5029
      %v5573 = vadd.f32 %v4293, %v5034
      %v5574 = vadd.f32 %v4294, %v5034
      %v5575 = vadd.f32 %v4295, %v5039
      %v5576 = vadd.f32 %v4296, %v5039
      %v5577 = vadd.f32 %v4297, %v5044
      %v5578 = vadd.f32 %v4298, %v5044
      %v5579 = vadd.f32 %v4299, %v5049
      %v5580 = vadd.f32 %v4300, %v5049
      %v5581 = vadd.f32 %v4301, %v5054
      %v5582 = vadd.f32 %v4302, %v5054
      %v5583 = vadd.f32 %v4303, %v5059
      %v5584 = vadd.f32 %v4304, %v5059
      %v5585 = vadd.f32 %v4305, %v5064
      %v5586 = vadd.f32 %v4306, %v5064
      %v5587 = vadd.f32 %v4307, %v5069
      %v5588 = vadd.f32 %v4308, %v5069
      %v5589 = vadd.f32 %v4309, %v5074
      %v5590 = vadd.f32 %v4310, %v5074
      %v5591 = vadd.f32 %v4311, %v5079
      %v5592 = vadd.f32 %v4312, %v5079
      %v5593 = vadd.f32 %v4313, %v5084
      %v5594 = vadd.f32 %v4314, %v5084
      %v5595 = vadd.f32 %v4315, %v5089
      %v5596 = vadd.f32 %v4316, %v5089
      %v5597 = vadd.f32 %v4317, %v5094
      %v5598 = vadd.f32 %v4318, %v5094
      %v5599 = vadd.f32 %v4319, %v5099
      %v5600 = vadd.f32 %v4320, %v5099
      %v5601 = vadd.f32 %v4321, %v5104
      %v5602 = vadd.f32 %v4322, %v5104
      %v5603 = vadd.f32 %v4323, %v5109
      %v5604 = vadd.f32 %v4324, %v5109
      %v5605 = vadd.f32 %v4325, %v5114
      %v5606 = vadd.f32 %v4326, %v5114
      %v5607 = vadd.f32 %v4327, %v5119
      %v5608 = vadd.f32 %v4328, %v5119
      %v5609 = vadd.f32 %v4329, %v5124
      %v5610 = vadd.f32 %v4330, %v5124
      %v5611 = vadd.f32 %v4331, %v5129
      %v5612 = vadd.f32 %v4332, %v5129
      %v5613 = vadd.f32 %v4333, %v5134
      %v5614 = vadd.f32 %v4334, %v5134
      %v5615 = vadd.f32 %v4335, %v5139
      %v5616 = vadd.f32 %v4336, %v5139
      %v5617 = vadd.f32 %v4337, %v5144
      %v5618 = vadd.f32 %v4338, %v5144
      %v5619 = vadd.f32 %v4339, %v5149
      %v5620 = vadd.f32 %v4340, %v5149
      %v5621 = vadd.f32 %v4341, %v5154
      %v5622 = vadd.f32 %v4342, %v5154
      %v5623 = vadd.f32 %v4343, %v5159
      %v5624 = vadd.f32 %v4344, %v5159
      %v5625 = vadd.f32 %v4345, %v5164
      %v5626 = vadd.f32 %v4346, %v5164
      %v5627 = vadd.f32 %v4347, %v5169
      %v5628 = vadd.f32 %v4348, %v5169
      %v5629 = vadd.f32 %v4349, %v5174
      %v5630 = vadd.f32 %v4350, %v5174
      %v5631 = vadd.f32 %v4351, %v5179
      %v5632 = vadd.f32 %v4352, %v5179
      %v5633 = vadd.f32 %v4353, %v5184
      %v5634 = vadd.f32 %v4354, %v5184
      %v5635 = vadd.f32 %v4355, %v5189
      %v5636 = vadd.f32 %v4356, %v5189
      %v5637 = vadd.f32 %v4357, %v5194
      %v5638 = vadd.f32 %v4358, %v5194
      %v5639 = vadd.f32 %v4359, %v5199
      %v5640 = vadd.f32 %v4360, %v5199
      %v5641 = vadd.f32 %v4361, %v5204
      %v5642 = vadd.f32 %v4362, %v5204
      %v5643 = vadd.f32 %v4363, %v5209
      %v5644 = vadd.f32 %v4364, %v5209
      %v5645 = vadd.f32 %v4365, %v5214
      %v5646 = vadd.f32 %v4366, %v5214
      %v5647 = vadd.f32 %v4367, %v5219
      %v5648 = vadd.f32 %v4368, %v5219
      %v5649 = vadd.f32 %v4369, %v5224
      %v5650 = vadd.f32 %v4370, %v5224
      %v5651 = vadd.f32 %v4371, %v5229
      %v5652 = vadd.f32 %v4372, %v5229
      %v5653 = vadd.f32 %v4373, %v5234
      %v5654 = vadd.f32 %v4374, %v5234
      %v5655 = vadd.f32 %v4375, %v5239
      %v5656 = vadd.f32 %v4376, %v5239
      %v5657 = vadd.f32 %v4377, %v5244
      %v5658 = vadd.f32 %v4378, %v5244
      %v5659 = vadd.f32 %v4379, %v5249
      %v5660 = vadd.f32 %v4380, %v5249
      %v5661 = vadd.f32 %v4381, %v5254
      %v5662 = vadd.f32 %v4382, %v5254
      %v5663 = vadd.f32 %v4383, %v5259
      %v5664 = vadd.f32 %v4384, %v5259
      %v5665 = vadd.f32 %v4385, %v5264
      %v5666 = vadd.f32 %v4386, %v5264
      %v5667 = vadd.f32 %v4387, %v5269
      %v5668 = vadd.f32 %v4388, %v5269
      %v5669 = vadd.f32 %v4389, %v5274
      %v5670 = vadd.f32 %v4390, %v5274
      %v5671 = vadd.f32 %v4391, %v5279
      %v5672 = vadd.f32 %v4392, %v5279
      %v5673 = vadd.f32 %v4393, %v5284
      %v5674 = vadd.f32 %v4394, %v5284
      %v5675 = vadd.f32 %v4395, %v5289
      %v5676 = vadd.f32 %v4396, %v5289
      %v5677 = vadd.f32 %v4397, %v5294
      %v5678 = vadd.f32 %v4398, %v5294
      %v5679 = vadd.f32 %v4399, %v5299
      %v5680 = vadd.f32 %v4400, %v5299
      %v5681 = vadd.f32 %v4401, %v5304
      %v5682 = vadd.f32 %v4402, %v5304
      %v5683 = vadd.f32 %v4403, %v5309
      %v5684 = vadd.f32 %v4404, %v5309
      %v5685 = vadd.f32 %v4405, %v5314
      %v5686 = vadd.f32 %v4406, %v5314
      %v5687 = vadd.f32 %v4407, %v5319
      %v5688 = vadd.f32 %v4408, %v5319
      %v5689 = vadd.f32 %v4409, %v5324
      %v5690 = vadd.f32 %v4410, %v5324
      %v5691 = vadd.f32 %v4411, %v5329
      %v5692 = vadd.f32 %v4412, %v5329
      %v5693 = vadd.f32 %v4413, %v5334
      %v5694 = vadd.f32 %v4414, %v5334
      %v5695 = vadd.f32 %v4415, %v5339
      %v5696 = vadd.f32 %v4416, %v5339
      %v5697 = vadd.f32 %v4417, %v5344
      %v5698 = vadd.f32 %v4418, %v5344
      %v5699 = vadd.f32 %v4419, %v5349
      %v5700 = vadd.f32 %v4420, %v5349
      %v5701 = vadd.f32 %v4421, %v5354
      %v5702 = vadd.f32 %v4422, %v5354
      %v5703 = vadd.f32 %v4423, %v5359
      %v5704 = vadd.f32 %v4424, %v5359
      %v5705 = vadd.f32 %v4425, %v5364
      %v5706 = vadd.f32 %v4426, %v5364
      %v5707 = vadd.f32 %v4427, %v5369
      %v5708 = vadd.f32 %v4428, %v5369
      %v5709 = vadd.f32 %v4429, %v5374
      %v5710 = vadd.f32 %v4430, %v5374
      %v5711 = vadd.f32 %v4431, %v5379
      %v5712 = vadd.f32 %v4432, %v5379
      %v5713 = vadd.f32 %v4433, %v5384
      %v5714 = vadd.f32 %v4434, %v5384
      %v5715 = vadd.f32 %v4435, %v5389
      %v5716 = vadd.f32 %v4436, %v5389
      %v5717 = vadd.f32 %v4437, %v5394
      %v5718 = vadd.f32 %v4438, %v5394
      %v5719 = vadd.f32 %v4439, %v5399
      %v5720 = vadd.f32 %v4440, %v5399
      %v5721 = vmax.f32 %v5401, 0.0
      %v5722 = vmax.f32 %v5402, 0.0
      %v5723 = vmax.f32 %v5403, 0.0
      %v5724 = vmax.f32 %v5404, 0.0
      %v5725 = vmax.f32 %v5405, 0.0
      %v5726 = vmax.f32 %v5406, 0.0
      %v5727 = vmax.f32 %v5407, 0.0
      %v5728 = vmax.f32 %v5408, 0.0
      %v5729 = vmax.f32 %v5409, 0.0
      %v5730 = vmax.f32 %v5410, 0.0
      %v5731 = vmax.f32 %v5411, 0.0
      %v5732 = vmax.f32 %v5412, 0.0
      %v5733 = vmax.f32 %v5413, 0.0
      %v5734 = vmax.f32 %v5414, 0.0
      %v5735 = vmax.f32 %v5415, 0.0
      %v5736 = vmax.f32 %v5416, 0.0
      %v5737 = vmax.f32 %v5417, 0.0
      %v5738 = vmax.f32 %v5418, 0.0
      %v5739 = vmax.f32 %v5419, 0.0
      %v5740 = vmax.f32 %v5420, 0.0
      %v5741 = vmax.f32 %v5421, 0.0
      %v5742 = vmax.f32 %v5422, 0.0
      %v5743 = vmax.f32 %v5423, 0.0
      %v5744 = vmax.f32 %v5424, 0.0
      %v5745 = vmax.f32 %v5425, 0.0
      %v5746 = vmax.f32 %v5426, 0.0
      %v5747 = vmax.f32 %v5427, 0.0
      %v5748 = vmax.f32 %v5428, 0.0
      %v5749 = vmax.f32 %v5429, 0.0
      %v5750 = vmax.f32 %v5430, 0.0
      %v5751 = vmax.f32 %v5431, 0.0
      %v5752 = vmax.f32 %v5432, 0.0
      %v5753 = vmax.f32 %v5433, 0.0
      %v5754 = vmax.f32 %v5434, 0.0
      %v5755 = vmax.f32 %v5435, 0.0
      %v5756 = vmax.f32 %v5436, 0.0
      %v5757 = vmax.f32 %v5437, 0.0
      %v5758 = vmax.f32 %v5438, 0.0
      %v5759 = vmax.f32 %v5439, 0.0
      %v5760 = vmax.f32 %v5440, 0.0
      %v5761 = vmax.f32 %v5441, 0.0
      %v5762 = vmax.f32 %v5442, 0.0
      %v5763 = vmax.f32 %v5443, 0.0
      %v5764 = vmax.f32 %v5444, 0.0
      %v5765 = vmax.f32 %v5445, 0.0
      %v5766 = vmax.f32 %v5446, 0.0
      %v5767 = vmax.f32 %v5447, 0.0
      %v5768 = vmax.f32 %v5448, 0.0
      %v5769 = vmax.f32 %v5449, 0.0
      %v5770 = vmax.f32 %v5450, 0.0
      %v5771 = vmax.f32 %v5451, 0.0
      %v5772 = vmax.f32 %v5452, 0.0
      %v5773 = vmax.f32 %v5453, 0.0
      %v5774 = vmax.f32 %v5454, 0.0
      %v5775 = vmax.f32 %v5455, 0.0
      %v5776 = vmax.f32 %v5456, 0.0
      %v5777 = vmax.f32 %v5457, 0.0
      %v5778 = vmax.f32 %v5458, 0.0
      %v5779 = vmax.f32 %v5459, 0.0
      %v5780 = vmax.f32 %v5460, 0.0
      %v5781 = vmax.f32 %v5461, 0.0
      %v5782 = vmax.f32 %v5462, 0.0
      %v5783 = vmax.f32 %v5463, 0.0
      %v5784 = vmax.f32 %v5464, 0.0
      %v5785 = vmax.f32 %v5465, 0.0
      %v5786 = vmax.f32 %v5466, 0.0
      %v5787 = vmax.f32 %v5467, 0.0
      %v5788 = vmax.f32 %v5468, 0.0
      %v5789 = vmax.f32 %v5469, 0.0
      %v5790 = vmax.f32 %v5470, 0.0
      %v5791 = vmax.f32 %v5471, 0.0
      %v5792 = vmax.f32 %v5472, 0.0
      %v5793 = vmax.f32 %v5473, 0.0
      %v5794 = vmax.f32 %v5474, 0.0
      %v5795 = vmax.f32 %v5475, 0.0
      %v5796 = vmax.f32 %v5476, 0.0
      %v5797 = vmax.f32 %v5477, 0.0
      %v5798 = vmax.f32 %v5478, 0.0
      %v5799 = vmax.f32 %v5479, 0.0
      %v5800 = vmax.f32 %v5480, 0.0
      %v5801 = vmax.f32 %v5481, 0.0
      %v5802 = vmax.f32 %v5482, 0.0
      %v5803 = vmax.f32 %v5483, 0.0
      %v5804 = vmax.f32 %v5484, 0.0
      %v5805 = vmax.f32 %v5485, 0.0
      %v5806 = vmax.f32 %v5486, 0.0
      %v5807 = vmax.f32 %v5487, 0.0
      %v5808 = vmax.f32 %v5488, 0.0
      %v5809 = vmax.f32 %v5489, 0.0
      %v5810 = vmax.f32 %v5490, 0.0
      %v5811 = vmax.f32 %v5491, 0.0
      %v5812 = vmax.f32 %v5492, 0.0
      %v5813 = vmax.f32 %v5493, 0.0
      %v5814 = vmax.f32 %v5494, 0.0
      %v5815 = vmax.f32 %v5495, 0.0
      %v5816 = vmax.f32 %v5496, 0.0
      %v5817 = vmax.f32 %v5497, 0.0
      %v5818 = vmax.f32 %v5498, 0.0
      %v5819 = vmax.f32 %v5499, 0.0
      %v5820 = vmax.f32 %v5500, 0.0
      %v5821 = vmax.f32 %v5501, 0.0
      %v5822 = vmax.f32 %v5502, 0.0
      %v5823 = vmax.f32 %v5503, 0.0
      %v5824 = vmax.f32 %v5504, 0.0
      %v5825 = vmax.f32 %v5505, 0.0
      %v5826 = vmax.f32 %v5506, 0.0
      %v5827 = vmax.f32 %v5507, 0.0
      %v5828 = vmax.f32 %v5508, 0.0
      %v5829 = vmax.f32 %v5509, 0.0
      %v5830 = vmax.f32 %v5510, 0.0
      %v5831 = vmax.f32 %v5511, 0.0
      %v5832 = vmax.f32 %v5512, 0.0
      %v5833 = vmax.f32 %v5513, 0.0
      %v5834 = vmax.f32 %v5514, 0.0
      %v5835 = vmax.f32 %v5515, 0.0
      %v5836 = vmax.f32 %v5516, 0.0
      %v5837 = vmax.f32 %v5517, 0.0
      %v5838 = vmax.f32 %v5518, 0.0
      %v5839 = vmax.f32 %v5519, 0.0
      %v5840 = vmax.f32 %v5520, 0.0
      %v5841 = vmax.f32 %v5521, 0.0
      %v5842 = vmax.f32 %v5522, 0.0
      %v5843 = vmax.f32 %v5523, 0.0
      %v5844 = vmax.f32 %v5524, 0.0
      %v5845 = vmax.f32 %v5525, 0.0
      %v5846 = vmax.f32 %v5526, 0.0
      %v5847 = vmax.f32 %v5527, 0.0
      %v5848 = vmax.f32 %v5528, 0.0
      %v5849 = vmax.f32 %v5529, 0.0
      %v5850 = vmax.f32 %v5530, 0.0
      %v5851 = vmax.f32 %v5531, 0.0
      %v5852 = vmax.f32 %v5532, 0.0
      %v5853 = vmax.f32 %v5533, 0.0
      %v5854 = vmax.f32 %v5534, 0.0
      %v5855 = vmax.f32 %v5535, 0.0
      %v5856 = vmax.f32 %v5536, 0.0
      %v5857 = vmax.f32 %v5537, 0.0
      %v5858 = vmax.f32 %v5538, 0.0
      %v5859 = vmax.f32 %v5539, 0.0
      %v5860 = vmax.f32 %v5540, 0.0
      %v5861 = vmax.f32 %v5541, 0.0
      %v5862 = vmax.f32 %v5542, 0.0
      %v5863 = vmax.f32 %v5543, 0.0
      %v5864 = vmax.f32 %v5544, 0.0
      %v5865 = vmax.f32 %v5545, 0.0
      %v5866 = vmax.f32 %v5546, 0.0
      %v5867 = vmax.f32 %v5547, 0.0
      %v5868 = vmax.f32 %v5548, 0.0
      %v5869 = vmax.f32 %v5549, 0.0
      %v5870 = vmax.f32 %v5550, 0.0
      %v5871 = vmax.f32 %v5551, 0.0
      %v5872 = vmax.f32 %v5552, 0.0
      %v5873 = vmax.f32 %v5553, 0.0
      %v5874 = vmax.f32 %v5554, 0.0
      %v5875 = vmax.f32 %v5555, 0.0
      %v5876 = vmax.f32 %v5556, 0.0
      %v5877 = vmax.f32 %v5557, 0.0
      %v5878 = vmax.f32 %v5558, 0.0
      %v5879 = vmax.f32 %v5559, 0.0
      %v5880 = vmax.f32 %v5560, 0.0
      %v5881 = vmax.f32 %v5561, 0.0
      %v5882 = vmax.f32 %v5562, 0.0
      %v5883 = vmax.f32 %v5563, 0.0
      %v5884 = vmax.f32 %v5564, 0.0
      %v5885 = vmax.f32 %v5565, 0.0
      %v5886 = vmax.f32 %v5566, 0.0
      %v5887 = vmax.f32 %v5567, 0.0
      %v5888 = vmax.f32 %v5568, 0.0
      %v5889 = vmax.f32 %v5569, 0.0
      %v5890 = vmax.f32 %v5570, 0.0
      %v5891 = vmax.f32 %v5571, 0.0
      %v5892 = vmax.f32 %v5572, 0.0
      %v5893 = vmax.f32 %v5573, 0.0
      %v5894 = vmax.f32 %v5574, 0.0
      %v5895 = vmax.f32 %v5575, 0.0
      %v5896 = vmax.f32 %v5576, 0.0
      %v5897 = vmax.f32 %v5577, 0.0
      %v5898 = vmax.f32 %v5578, 0.0
      %v5899 = vmax.f32 %v5579, 0.0
      %v5900 = vmax.f32 %v5580, 0.0
      %v5901 = vmax.f32 %v5581, 0.0
      %v5902 = vmax.f32 %v5582, 0.0
      %v5903 = vmax.f32 %v5583, 0.0
      %v5904 = vmax.f32 %v5584, 0.0
      %v5905 = vmax.f32 %v5585, 0.0
      %v5906 = vmax.f32 %v5586, 0.0
      %v5907 = vmax.f32 %v5587, 0.0
      %v5908 = vmax.f32 %v5588, 0.0
      %v5909 = vmax.f32 %v5589, 0.0
      %v5910 = vmax.f32 %v5590, 0.0
      %v5911 = vmax.f32 %v5591, 0.0
      %v5912 = vmax.f32 %v5592, 0.0
      %v5913 = vmax.f32 %v5593, 0.0
      %v5914 = vmax.f32 %v5594, 0.0
      %v5915 = vmax.f32 %v5595, 0.0
      %v5916 = vmax.f32 %v5596, 0.0
      %v5917 = vmax.f32 %v5597, 0.0
      %v5918 = vmax.f32 %v5598, 0.0
      %v5919 = vmax.f32 %v5599, 0.0
      %v5920 = vmax.f32 %v5600, 0.0
      %v5921 = vmax.f32 %v5601, 0.0
      %v5922 = vmax.f32 %v5602, 0.0
      %v5923 = vmax.f32 %v5603, 0.0
      %v5924 = vmax.f32 %v5604, 0.0
      %v5925 = vmax.f32 %v5605, 0.0
      %v5926 = vmax.f32 %v5606, 0.0
      %v5927 = vmax.f32 %v5607, 0.0
      %v5928 = vmax.f32 %v5608, 0.0
      %v5929 = vmax.f32 %v5609, 0.0
      %v5930 = vmax.f32 %v5610, 0.0
      %v5931 = vmax.f32 %v5611, 0.0
      %v5932 = vmax.f32 %v5612, 0.0
      %v5933 = vmax.f32 %v5613, 0.0
      %v5934 = vmax.f32 %v5614, 0.0
      %v5935 = vmax.f32 %v5615, 0.0
      %v5936 = vmax.f32 %v5616, 0.0
      %v5937 = vmax.f32 %v5617, 0.0
      %v5938 = vmax.f32 %v5618, 0.0
      %v5939 = vmax.f32 %v5619, 0.0
      %v5940 = vmax.f32 %v5620, 0.0
      %v5941 = vmax.f32 %v5621, 0.0
      %v5942 = vmax.f32 %v5622, 0.0
      %v5943 = vmax.f32 %v5623, 0.0
      %v5944 = vmax.f32 %v5624, 0.0
      %v5945 = vmax.f32 %v5625, 0.0
      %v5946 = vmax.f32 %v5626, 0.0
      %v5947 = vmax.f32 %v5627, 0.0
      %v5948 = vmax.f32 %v5628, 0.0
      %v5949 = vmax.f32 %v5629, 0.0
      %v5950 = vmax.f32 %v5630, 0.0
      %v5951 = vmax.f32 %v5631, 0.0
      %v5952 = vmax.f32 %v5632, 0.0
      %v5953 = vmax.f32 %v5633, 0.0
      %v5954 = vmax.f32 %v5634, 0.0
      %v5955 = vmax.f32 %v5635, 0.0
      %v5956 = vmax.f32 %v5636, 0.0
      %v5957 = vmax.f32 %v5637, 0.0
      %v5958 = vmax.f32 %v5638, 0.0
      %v5959 = vmax.f32 %v5639, 0.0
      %v5960 = vmax.f32 %v5640, 0.0
      %v5961 = vmax.f32 %v5641, 0.0
      %v5962 = vmax.f32 %v5642, 0.0
      %v5963 = vmax.f32 %v5643, 0.0
      %v5964 = vmax.f32 %v5644, 0.0
      %v5965 = vmax.f32 %v5645, 0.0
      %v5966 = vmax.f32 %v5646, 0.0
      %v5967 = vmax.f32 %v5647, 0.0
      %v5968 = vmax.f32 %v5648, 0.0
      %v5969 = vmax.f32 %v5649, 0.0
      %v5970 = vmax.f32 %v5650, 0.0
      %v5971 = vmax.f32 %v5651, 0.0
      %v5972 = vmax.f32 %v5652, 0.0
      %v5973 = vmax.f32 %v5653, 0.0
      %v5974 = vmax.f32 %v5654, 0.0
      %v5975 = vmax.f32 %v5655, 0.0
      %v5976 = vmax.f32 %v5656, 0.0
      %v5977 = vmax.f32 %v5657, 0.0
      %v5978 = vmax.f32 %v5658, 0.0
      %v5979 = vmax.f32 %v5659, 0.0
      %v5980 = vmax.f32 %v5660, 0.0
      %v5981 = vmax.f32 %v5661, 0.0
      %v5982 = vmax.f32 %v5662, 0.0
      %v5983 = vmax.f32 %v5663, 0.0
      %v5984 = vmax.f32 %v5664, 0.0
      %v5985 = vmax.f32 %v5665, 0.0
      %v5986 = vmax.f32 %v5666, 0.0
      %v5987 = vmax.f32 %v5667, 0.0
      %v5988 = vmax.f32 %v5668, 0.0
      %v5989 = vmax.f32 %v5669, 0.0
      %v5990 = vmax.f32 %v5670, 0.0
      %v5991 = vmax.f32 %v5671, 0.0
      %v5992 = vmax.f32 %v5672, 0.0
      %v5993 = vmax.f32 %v5673, 0.0
      %v5994 = vmax.f32 %v5674, 0.0
      %v5995 = vmax.f32 %v5675, 0.0
      %v5996 = vmax.f32 %v5676, 0.0
      %v5997 = vmax.f32 %v5677, 0.0
      %v5998 = vmax.f32 %v5678, 0.0
      %v5999 = vmax.f32 %v5679, 0.0
      %v6000 = vmax.f32 %v5680, 0.0
      %v6001 = vmax.f32 %v5681, 0.0
      %v6002 = vmax.f32 %v5682, 0.0
      %v6003 = vmax.f32 %v5683, 0.0
      %v6004 = vmax.f32 %v5684, 0.0
      %v6005 = vmax.f32 %v5685, 0.0
      %v6006 = vmax.f32 %v5686, 0.0
      %v6007 = vmax.f32 %v5687, 0.0
      %v6008 = vmax.f32 %v5688, 0.0
      %v6009 = vmax.f32 %v5689, 0.0
      %v6010 = vmax.f32 %v5690, 0.0
      %v6011 = vmax.f32 %v5691, 0.0
      %v6012 = vmax.f32 %v5692, 0.0
      %v6013 = vmax.f32 %v5693, 0.0
      %v6014 = vmax.f32 %v5694, 0.0
      %v6015 = vmax.f32 %v5695, 0.0
      %v6016 = vmax.f32 %v5696, 0.0
      %v6017 = vmax.f32 %v5697, 0.0
      %v6018 = vmax.f32 %v5698, 0.0
      %v6019 = vmax.f32 %v5699, 0.0
      %v6020 = vmax.f32 %v5700, 0.0
      %v6021 = vmax.f32 %v5701, 0.0
      %v6022 = vmax.f32 %v5702, 0.0
      %v6023 = vmax.f32 %v5703, 0.0
      %v6024 = vmax.f32 %v5704, 0.0
      %v6025 = vmax.f32 %v5705, 0.0
      %v6026 = vmax.f32 %v5706, 0.0
      %v6027 = vmax.f32 %v5707, 0.0
      %v6028 = vmax.f32 %v5708, 0.0
      %v6029 = vmax.f32 %v5709, 0.0
      %v6030 = vmax.f32 %v5710, 0.0
      %v6031 = vmax.f32 %v5711, 0.0
      %v6032 = vmax.f32 %v5712, 0.0
      %v6033 = vmax.f32 %v5713, 0.0
      %v6034 = vmax.f32 %v5714, 0.0
      %v6035 = vmax.f32 %v5715, 0.0
      %v6036 = vmax.f32 %v5716, 0.0
      %v6037 = vmax.f32 %v5717, 0.0
      %v6038 = vmax.f32 %v5718, 0.0
      %v6039 = vmax.f32 %v5719, 0.0
      %v6040 = vmax.f32 %v5720, 0.0
      %v6041 = vmin.f32 %v5721, 6.0
      %v6042 = vmin.f32 %v5722, 6.0
      %v6043 = vmin.f32 %v5723, 6.0
      %v6044 = vmin.f32 %v5724, 6.0
      %v6045 = vmin.f32 %v5725, 6.0
      %v6046 = vmin.f32 %v5726, 6.0
      %v6047 = vmin.f32 %v5727, 6.0
      %v6048 = vmin.f32 %v5728, 6.0
      %v6049 = vmin.f32 %v5729, 6.0
      %v6050 = vmin.f32 %v5730, 6.0
      %v6051 = vmin.f32 %v5731, 6.0
      %v6052 = vmin.f32 %v5732, 6.0
      %v6053 = vmin.f32 %v5733, 6.0
      %v6054 = vmin.f32 %v5734, 6.0
      %v6055 = vmin.f32 %v5735, 6.0
      %v6056 = vmin.f32 %v5736, 6.0
      %v6057 = vmin.f32 %v5737, 6.0
      %v6058 = vmin.f32 %v5738, 6.0
      %v6059 = vmin.f32 %v5739, 6.0
      %v6060 = vmin.f32 %v5740, 6.0
      %v6061 = vmin.f32 %v5741, 6.0
      %v6062 = vmin.f32 %v5742, 6.0
      %v6063 = vmin.f32 %v5743, 6.0
      %v6064 = vmin.f32 %v5744, 6.0
      %v6065 = vmin.f32 %v5745, 6.0
      %v6066 = vmin.f32 %v5746, 6.0
      %v6067 = vmin.f32 %v5747, 6.0
      %v6068 = vmin.f32 %v5748, 6.0
      %v6069 = vmin.f32 %v5749, 6.0
      %v6070 = vmin.f32 %v5750, 6.0
      %v6071 = vmin.f32 %v5751, 6.0
      %v6072 = vmin.f32 %v5752, 6.0
      %v6073 = vmin.f32 %v5753, 6.0
      %v6074 = vmin.f32 %v5754, 6.0
      %v6075 = vmin.f32 %v5755, 6.0
      %v6076 = vmin.f32 %v5756, 6.0
      %v6077 = vmin.f32 %v5757, 6.0
      %v6078 = vmin.f32 %v5758, 6.0
      %v6079 = vmin.f32 %v5759, 6.0
      %v6080 = vmin.f32 %v5760, 6.0
      %v6081 = vmin.f32 %v5761, 6.0
      %v6082 = vmin.f32 %v5762, 6.0
      %v6083 = vmin.f32 %v5763, 6.0
      %v6084 = vmin.f32 %v5764, 6.0
      %v6085 = vmin.f32 %v5765, 6.0
      %v6086 = vmin.f32 %v5766, 6.0
      %v6087 = vmin.f32 %v5767, 6.0
      %v6088 = vmin.f32 %v5768, 6.0
      %v6089 = vmin.f32 %v5769, 6.0
      %v6090 = vmin.f32 %v5770, 6.0
      %v6091 = vmin.f32 %v5771, 6.0
      %v6092 = vmin.f32 %v5772, 6.0
      %v6093 = vmin.f32 %v5773, 6.0
      %v6094 = vmin.f32 %v5774, 6.0
      %v6095 = vmin.f32 %v5775, 6.0
      %v6096 = vmin.f32 %v5776, 6.0
      %v6097 = vmin.f32 %v5777, 6.0
      %v6098 = vmin.f32 %v5778, 6.0
      %v6099 = vmin.f32 %v5779, 6.0
      %v6100 = vmin.f32 %v5780, 6.0
      %v6101 = vmin.f32 %v5781, 6.0
      %v6102 = vmin.f32 %v5782, 6.0
      %v6103 = vmin.f32 %v5783, 6.0
      %v6104 = vmin.f32 %v5784, 6.0
      %v6105 = vmin.f32 %v5785, 6.0
      %v6106 = vmin.f32 %v5786, 6.0
      %v6107 = vmin.f32 %v5787, 6.0
      %v6108 = vmin.f32 %v5788, 6.0
      %v6109 = vmin.f32 %v5789, 6.0
      %v6110 = vmin.f32 %v5790, 6.0
      %v6111 = vmin.f32 %v5791, 6.0
      %v6112 = vmin.f32 %v5792, 6.0
      %v6113 = vmin.f32 %v5793, 6.0
      %v6114 = vmin.f32 %v5794, 6.0
      %v6115 = vmin.f32 %v5795, 6.0
      %v6116 = vmin.f32 %v5796, 6.0
      %v6117 = vmin.f32 %v5797, 6.0
      %v6118 = vmin.f32 %v5798, 6.0
      %v6119 = vmin.f32 %v5799, 6.0
      %v6120 = vmin.f32 %v5800, 6.0
      %v6121 = vmin.f32 %v5801, 6.0
      %v6122 = vmin.f32 %v5802, 6.0
      %v6123 = vmin.f32 %v5803, 6.0
      %v6124 = vmin.f32 %v5804, 6.0
      %v6125 = vmin.f32 %v5805, 6.0
      %v6126 = vmin.f32 %v5806, 6.0
      %v6127 = vmin.f32 %v5807, 6.0
      %v6128 = vmin.f32 %v5808, 6.0
      %v6129 = vmin.f32 %v5809, 6.0
      %v6130 = vmin.f32 %v5810, 6.0
      %v6131 = vmin.f32 %v5811, 6.0
      %v6132 = vmin.f32 %v5812, 6.0
      %v6133 = vmin.f32 %v5813, 6.0
      %v6134 = vmin.f32 %v5814, 6.0
      %v6135 = vmin.f32 %v5815, 6.0
      %v6136 = vmin.f32 %v5816, 6.0
      %v6137 = vmin.f32 %v5817, 6.0
      %v6138 = vmin.f32 %v5818, 6.0
      %v6139 = vmin.f32 %v5819, 6.0
      %v6140 = vmin.f32 %v5820, 6.0
      %v6141 = vmin.f32 %v5821, 6.0
      %v6142 = vmin.f32 %v5822, 6.0
      %v6143 = vmin.f32 %v5823, 6.0
      %v6144 = vmin.f32 %v5824, 6.0
      %v6145 = vmin.f32 %v5825, 6.0
      %v6146 = vmin.f32 %v5826, 6.0
      %v6147 = vmin.f32 %v5827, 6.0
      %v6148 = vmin.f32 %v5828, 6.0
      %v6149 = vmin.f32 %v5829, 6.0
      %v6150 = vmin.f32 %v5830, 6.0
      %v6151 = vmin.f32 %v5831, 6.0
      %v6152 = vmin.f32 %v5832, 6.0
      %v6153 = vmin.f32 %v5833, 6.0
      %v6154 = vmin.f32 %v5834, 6.0
      %v6155 = vmin.f32 %v5835, 6.0
      %v6156 = vmin.f32 %v5836, 6.0
      %v6157 = vmin.f32 %v5837, 6.0
      %v6158 = vmin.f32 %v5838, 6.0
      %v6159 = vmin.f32 %v5839, 6.0
      %v6160 = vmin.f32 %v5840, 6.0
      %v6161 = vmin.f32 %v5841, 6.0
      %v6162 = vmin.f32 %v5842, 6.0
      %v6163 = vmin.f32 %v5843, 6.0
      %v6164 = vmin.f32 %v5844, 6.0
      %v6165 = vmin.f32 %v5845, 6.0
      %v6166 = vmin.f32 %v5846, 6.0
      %v6167 = vmin.f32 %v5847, 6.0
      %v6168 = vmin.f32 %v5848, 6.0
      %v6169 = vmin.f32 %v5849, 6.0
      %v6170 = vmin.f32 %v5850, 6.0
      %v6171 = vmin.f32 %v5851, 6.0
      %v6172 = vmin.f32 %v5852, 6.0
      %v6173 = vmin.f32 %v5853, 6.0
      %v6174 = vmin.f32 %v5854, 6.0
      %v6175 = vmin.f32 %v5855, 6.0
      %v6176 = vmin.f32 %v5856, 6.0
      %v6177 = vmin.f32 %v5857, 6.0
      %v6178 = vmin.f32 %v5858, 6.0
      %v6179 = vmin.f32 %v5859, 6.0
      %v6180 = vmin.f32 %v5860, 6.0
      %v6181 = vmin.f32 %v5861, 6.0
      %v6182 = vmin.f32 %v5862, 6.0
      %v6183 = vmin.f32 %v5863, 6.0
      %v6184 = vmin.f32 %v5864, 6.0
      %v6185 = vmin.f32 %v5865, 6.0
      %v6186 = vmin.f32 %v5866, 6.0
      %v6187 = vmin.f32 %v5867, 6.0
      %v6188 = vmin.f32 %v5868, 6.0
      %v6189 = vmin.f32 %v5869, 6.0
      %v6190 = vmin.f32 %v5870, 6.0
      %v6191 = vmin.f32 %v5871, 6.0
      %v6192 = vmin.f32 %v5872, 6.0
      %v6193 = vmin.f32 %v5873, 6.0
      %v6194 = vmin.f32 %v5874, 6.0
      %v6195 = vmin.f32 %v5875, 6.0
      %v6196 = vmin.f32 %v5876, 6.0
      %v6197 = vmin.f32 %v5877, 6.0
      %v6198 = vmin.f32 %v5878, 6.0
      %v6199 = vmin.f32 %v5879, 6.0
      %v6200 = vmin.f32 %v5880, 6.0
      %v6201 = vmin.f32 %v5881, 6.0
      %v6202 = vmin.f32 %v5882, 6.0
      %v6203 = vmin.f32 %v5883, 6.0
      %v6204 = vmin.f32 %v5884, 6.0
      %v6205 = vmin.f32 %v5885, 6.0
      %v6206 = vmin.f32 %v5886, 6.0
      %v6207 = vmin.f32 %v5887, 6.0
      %v6208 = vmin.f32 %v5888, 6.0
      %v6209 = vmin.f32 %v5889, 6.0
      %v6210 = vmin.f32 %v5890, 6.0
      %v6211 = vmin.f32 %v5891, 6.0
      %v6212 = vmin.f32 %v5892, 6.0
      %v6213 = vmin.f32 %v5893, 6.0
      %v6214 = vmin.f32 %v5894, 6.0
      %v6215 = vmin.f32 %v5895, 6.0
      %v6216 = vmin.f32 %v5896, 6.0
      %v6217 = vmin.f32 %v5897, 6.0
      %v6218 = vmin.f32 %v5898, 6.0
      %v6219 = vmin.f32 %v5899, 6.0
      %v6220 = vmin.f32 %v5900, 6.0
      %v6221 = vmin.f32 %v5901, 6.0
      %v6222 = vmin.f32 %v5902, 6.0
      %v6223 = vmin.f32 %v5903, 6.0
      %v6224 = vmin.f32 %v5904, 6.0
      %v6225 = vmin.f32 %v5905, 6.0
      %v6226 = vmin.f32 %v5906, 6.0
      %v6227 = vmin.f32 %v5907, 6.0
      %v6228 = vmin.f32 %v5908, 6.0
      %v6229 = vmin.f32 %v5909, 6.0
      %v6230 = vmin.f32 %v5910, 6.0
      %v6231 = vmin.f32 %v5911, 6.0
      %v6232 = vmin.f32 %v5912, 6.0
      %v6233 = vmin.f32 %v5913, 6.0
      %v6234 = vmin.f32 %v5914, 6.0
      %v6235 = vmin.f32 %v5915, 6.0
      %v6236 = vmin.f32 %v5916, 6.0
      %v6237 = vmin.f32 %v5917, 6.0
      %v6238 = vmin.f32 %v5918, 6.0
      %v6239 = vmin.f32 %v5919, 6.0
      %v6240 = vmin.f32 %v5920, 6.0
      %v6241 = vmin.f32 %v5921, 6.0
      %v6242 = vmin.f32 %v5922, 6.0
      %v6243 = vmin.f32 %v5923, 6.0
      %v6244 = vmin.f32 %v5924, 6.0
      %v6245 = vmin.f32 %v5925, 6.0
      %v6246 = vmin.f32 %v5926, 6.0
      %v6247 = vmin.f32 %v5927, 6.0
      %v6248 = vmin.f32 %v5928, 6.0
      %v6249 = vmin.f32 %v5929, 6.0
      %v6250 = vmin.f32 %v5930, 6.0
      %v6251 = vmin.f32 %v5931, 6.0
      %v6252 = vmin.f32 %v5932, 6.0
      %v6253 = vmin.f32 %v5933, 6.0
      %v6254 = vmin.f32 %v5934, 6.0
      %v6255 = vmin.f32 %v5935, 6.0
      %v6256 = vmin.f32 %v5936, 6.0
      %v6257 = vmin.f32 %v5937, 6.0
      %v6258 = vmin.f32 %v5938, 6.0
      %v6259 = vmin.f32 %v5939, 6.0
      %v6260 = vmin.f32 %v5940, 6.0
      %v6261 = vmin.f32 %v5941, 6.0
      %v6262 = vmin.f32 %v5942, 6.0
      %v6263 = vmin.f32 %v5943, 6.0
      %v6264 = vmin.f32 %v5944, 6.0
      %v6265 = vmin.f32 %v5945, 6.0
      %v6266 = vmin.f32 %v5946, 6.0
      %v6267 = vmin.f32 %v5947, 6.0
      %v6268 = vmin.f32 %v5948, 6.0
      %v6269 = vmin.f32 %v5949, 6.0
      %v6270 = vmin.f32 %v5950, 6.0
      %v6271 = vmin.f32 %v5951, 6.0
      %v6272 = vmin.f32 %v5952, 6.0
      %v6273 = vmin.f32 %v5953, 6.0
      %v6274 = vmin.f32 %v5954, 6.0
      %v6275 = vmin.f32 %v5955, 6.0
      %v6276 = vmin.f32 %v5956, 6.0
      %v6277 = vmin.f32 %v5957, 6.0
      %v6278 = vmin.f32 %v5958, 6.0
      %v6279 = vmin.f32 %v5959, 6.0
      %v6280 = vmin.f32 %v5960, 6.0
      %v6281 = vmin.f32 %v5961, 6.0
      %v6282 = vmin.f32 %v5962, 6.0
      %v6283 = vmin.f32 %v5963, 6.0
      %v6284 = vmin.f32 %v5964, 6.0
      %v6285 = vmin.f32 %v5965, 6.0
      %v6286 = vmin.f32 %v5966, 6.0
      %v6287 = vmin.f32 %v5967, 6.0
      %v6288 = vmin.f32 %v5968, 6.0
      %v6289 = vmin.f32 %v5969, 6.0
      %v6290 = vmin.f32 %v5970, 6.0
      %v6291 = vmin.f32 %v5971, 6.0
      %v6292 = vmin.f32 %v5972, 6.0
      %v6293 = vmin.f32 %v5973, 6.0
      %v6294 = vmin.f32 %v5974, 6.0
      %v6295 = vmin.f32 %v5975, 6.0
      %v6296 = vmin.f32 %v5976, 6.0
      %v6297 = vmin.f32 %v5977, 6.0
      %v6298 = vmin.f32 %v5978, 6.0
      %v6299 = vmin.f32 %v5979, 6.0
      %v6300 = vmin.f32 %v5980, 6.0
      %v6301 = vmin.f32 %v5981, 6.0
      %v6302 = vmin.f32 %v5982, 6.0
      %v6303 = vmin.f32 %v5983, 6.0
      %v6304 = vmin.f32 %v5984, 6.0
      %v6305 = vmin.f32 %v5985, 6.0
      %v6306 = vmin.f32 %v5986, 6.0
      %v6307 = vmin.f32 %v5987, 6.0
      %v6308 = vmin.f32 %v5988, 6.0
      %v6309 = vmin.f32 %v5989, 6.0
      %v6310 = vmin.f32 %v5990, 6.0
      %v6311 = vmin.f32 %v5991, 6.0
      %v6312 = vmin.f32 %v5992, 6.0
      %v6313 = vmin.f32 %v5993, 6.0
      %v6314 = vmin.f32 %v5994, 6.0
      %v6315 = vmin.f32 %v5995, 6.0
      %v6316 = vmin.f32 %v5996, 6.0
      %v6317 = vmin.f32 %v5997, 6.0
      %v6318 = vmin.f32 %v5998, 6.0
      %v6319 = vmin.f32 %v5999, 6.0
      %v6320 = vmin.f32 %v6000, 6.0
      %v6321 = vmin.f32 %v6001, 6.0
      %v6322 = vmin.f32 %v6002, 6.0
      %v6323 = vmin.f32 %v6003, 6.0
      %v6324 = vmin.f32 %v6004, 6.0
      %v6325 = vmin.f32 %v6005, 6.0
      %v6326 = vmin.f32 %v6006, 6.0
      %v6327 = vmin.f32 %v6007, 6.0
      %v6328 = vmin.f32 %v6008, 6.0
      %v6329 = vmin.f32 %v6009, 6.0
      %v6330 = vmin.f32 %v6010, 6.0
      %v6331 = vmin.f32 %v6011, 6.0
      %v6332 = vmin.f32 %v6012, 6.0
      %v6333 = vmin.f32 %v6013, 6.0
      %v6334 = vmin.f32 %v6014, 6.0
      %v6335 = vmin.f32 %v6015, 6.0
      %v6336 = vmin.f32 %v6016, 6.0
      %v6337 = vmin.f32 %v6017, 6.0
      %v6338 = vmin.f32 %v6018, 6.0
      %v6339 = vmin.f32 %v6019, 6.0
      %v6340 = vmin.f32 %v6020, 6.0
      %v6341 = vmin.f32 %v6021, 6.0
      %v6342 = vmin.f32 %v6022, 6.0
      %v6343 = vmin.f32 %v6023, 6.0
      %v6344 = vmin.f32 %v6024, 6.0
      %v6345 = vmin.f32 %v6025, 6.0
      %v6346 = vmin.f32 %v6026, 6.0
      %v6347 = vmin.f32 %v6027, 6.0
      %v6348 = vmin.f32 %v6028, 6.0
      %v6349 = vmin.f32 %v6029, 6.0
      %v6350 = vmin.f32 %v6030, 6.0
      %v6351 = vmin.f32 %v6031, 6.0
      %v6352 = vmin.f32 %v6032, 6.0
      %v6353 = vmin.f32 %v6033, 6.0
      %v6354 = vmin.f32 %v6034, 6.0
      %v6355 = vmin.f32 %v6035, 6.0
      %v6356 = vmin.f32 %v6036, 6.0
      %v6357 = vmin.f32 %v6037, 6.0
      %v6358 = vmin.f32 %v6038, 6.0
      %v6359 = vmin.f32 %v6039, 6.0
      %v6360 = vmin.f32 %v6040, 6.0
      %v6361 = vld [vmem:[#allocation2] sm:$0xff]
      %v6362 = vld [vmem:[#allocation2 + $0x8] sm:$0x3]
      %6363 = vmatprep.subr.mxu0 %v6042
      %6364 = vmatpush1.xpose.msra.mxu0 %v6041
      %6365 = vmatprep.subr.mxu0 %v6044
      %6366 = vmatpush1.xpose.msra.mxu0 %v6043
      %6367 = vmatprep.subr.mxu0 %v6046
      %6368 = vmatpush1.xpose.msra.mxu0 %v6045
      %6369 = vmatprep.subr.mxu0 %v6048
      %6370 = vmatpush1.xpose.msra.mxu0 %v6047
      %6371 = vmatprep.subr.mxu0 %v6050
      %6372 = vmatpush1.xpose.msra.mxu0 %v6049
      %6373 = vmatprep.subr.mxu0 %v6052
      %6374 = vmatpush1.xpose.msra.mxu0 %v6051
      %6375 = vmatprep.subr.mxu0 %v6054
      %6376 = vmatpush1.xpose.msra.mxu0 %v6053
      %6377 = vmatprep.subr.mxu0 %v6056
      %6378 = vmatpush1.xpose.msra.mxu0 %v6055
      %6379 = vmatprep.subr.mxu0 %v6058
      %6380 = vmatpush1.xpose.msra.mxu0 %v6057
      %6381 = vmatprep.subr.mxu0 %v6060
      %6382 = vmatpush1.xpose.msra.mxu0 %v6059
      %6383 = vmatprep.subr.mxu0 %v6062
      %6384 = vmatpush1.xpose.msra.mxu0 %v6061
      %6385 = vmatprep.subr.mxu0 %v6064
      %6386 = vmatpush1.xpose.msra.mxu0 %v6063
      %6387 = vmatprep.subr.mxu0 %v6066
      %6388 = vmatpush1.xpose.msra.mxu0 %v6065
      %6389 = vmatprep.subr.mxu0 %v6068
      %6390 = vmatpush1.xpose.msra.mxu0 %v6067
      %6391 = vmatprep.subr.mxu0 %v6070
      %6392 = vmatpush1.xpose.msra.mxu0 %v6069
      %6393 = vmatprep.subr.mxu0 %v6072
      %6394 = vmatpush1.xpose.msra.mxu0 %v6071
      %6395 = vmatprep.subr.mxu0 %v6074
      %6396 = vmatpush1.xpose.msra.mxu0 %v6073
      %6397 = vmatprep.subr.mxu0 %v6076
      %6398 = vmatpush1.xpose.msra.mxu0 %v6075
      %6399 = vmatprep.subr.mxu0 %v6078
      %6400 = vmatpush1.xpose.msra.mxu0 %v6077
      %6401 = vmatprep.subr.mxu0 %v6080
      %6402 = vmatpush1.xpose.msra.mxu0 %v6079
      %6403 = vmatprep.subr.mxu0 %v6082
      %6404 = vmatpush1.xpose.msra.mxu0 %v6081
      %6405 = vmatprep.subr.mxu0 %v6084
      %6406 = vmatpush1.xpose.msra.mxu0 %v6083
      %6407 = vmatprep.subr.mxu0 %v6086
      %6408 = vmatpush1.xpose.msra.mxu0 %v6085
      %6409 = vmatprep.subr.mxu0 %v6088
      %6410 = vmatpush1.xpose.msra.mxu0 %v6087
      %6411 = vmatprep.subr.mxu0 %v6090
      %6412 = vmatpush1.xpose.msra.mxu0 %v6089
      %6413 = vmatprep.subr.mxu0 %v6092
      %6414 = vmatpush1.xpose.msra.mxu0 %v6091
      %6415 = vmatprep.subr.mxu0 %v6094
      %6416 = vmatpush1.xpose.msra.mxu0 %v6093
      %6417 = vmatprep.subr.mxu0 %v6096
      %6418 = vmatpush1.xpose.msra.mxu0 %v6095
      %6419 = vmatprep.subr.mxu0 %v6098
      %6420 = vmatpush1.xpose.msra.mxu0 %v6097
      %6421 = vmatprep.subr.mxu0 %v6100
      %6422 = vmatpush1.xpose.msra.mxu0 %v6099
      %6423 = vmatprep.subr.mxu0 %v6102
      %6424 = vmatpush1.xpose.msra.mxu0 %v6101
      %6425 = vmatprep.subr.mxu0 %v6104
      %6426 = vmatpush1.xpose.msra.mxu0 %v6103
      %6427 = vmatprep.mubr.f32.mxu0 1.0
      %6428 = vmatmul.mubr.f32.gmra.mrb[0].mxu0 1.0
      %v6429 = vpop.f32.mrb[0].mxu0
      %v6430 = vadd.f32 0.0, %v6429
      %v6431 = vpop.f32.mrb[0].mxu0
      %v6432 = vadd.f32 0.0, %v6431
      %6433 = vdwg.mxu0
      %6434 = vmatprep.subr.mxu0 %v6106
      %6435 = vmatpush1.xpose.msra.mxu0 %v6105
      %6436 = vmatprep.subr.mxu0 %v6108
      %6437 = vmatpush1.xpose.msra.mxu0 %v6107
      %6438 = vmatprep.subr.mxu0 %v6110
      %6439 = vmatpush1.xpose.msra.mxu0 %v6109
      %6440 = vmatprep.subr.mxu0 %v6112
      %6441 = vmatpush1.xpose.msra.mxu0 %v6111
      %6442 = vmatprep.subr.mxu0 %v6114
      %6443 = vmatpush1.xpose.msra.mxu0 %v6113
      %6444 = vmatprep.subr.mxu0 %v6116
      %6445 = vmatpush1.xpose.msra.mxu0 %v6115
      %6446 = vmatprep.subr.mxu0 %v6118
      %6447 = vmatpush1.xpose.msra.mxu0 %v6117
      %6448 = vmatprep.subr.mxu0 %v6120
      %6449 = vmatpush1.xpose.msra.mxu0 %v6119
      %6450 = vmatprep.subr.mxu0 %v6122
      %6451 = vmatpush1.xpose.msra.mxu0 %v6121
      %6452 = vmatprep.subr.mxu0 %v6124
      %6453 = vmatpush1.xpose.msra.mxu0 %v6123
      %6454 = vmatprep.subr.mxu0 %v6126
      %6455 = vmatpush1.xpose.msra.mxu0 %v6125
      %6456 = vmatprep.subr.mxu0 %v6128
      %6457 = vmatpush1.xpose.msra.mxu0 %v6127
      %6458 = vmatprep.subr.mxu0 %v6130
      %6459 = vmatpush1.xpose.msra.mxu0 %v6129
      %6460 = vmatprep.subr.mxu0 %v6132
      %6461 = vmatpush1.xpose.msra.mxu0 %v6131
      %6462 = vmatprep.subr.mxu0 %v6134
      %6463 = vmatpush1.xpose.msra.mxu0 %v6133
      %6464 = vmatprep.subr.mxu0 %v6136
      %6465 = vmatpush1.xpose.msra.mxu0 %v6135
      %6466 = vmatprep.subr.mxu0 %v6138
      %6467 = vmatpush1.xpose.msra.mxu0 %v6137
      %6468 = vmatprep.subr.mxu0 %v6140
      %6469 = vmatpush1.xpose.msra.mxu0 %v6139
      %6470 = vmatprep.subr.mxu0 %v6142
      %6471 = vmatpush1.xpose.msra.mxu0 %v6141
      %6472 = vmatprep.subr.mxu0 %v6144
      %6473 = vmatpush1.xpose.msra.mxu0 %v6143
      %6474 = vmatprep.subr.mxu0 %v6146
      %6475 = vmatpush1.xpose.msra.mxu0 %v6145
      %6476 = vmatprep.subr.mxu0 %v6148
      %6477 = vmatpush1.xpose.msra.mxu0 %v6147
      %6478 = vmatprep.subr.mxu0 %v6150
      %6479 = vmatpush1.xpose.msra.mxu0 %v6149
      %6480 = vmatprep.subr.mxu0 %v6152
      %6481 = vmatpush1.xpose.msra.mxu0 %v6151
      %6482 = vmatprep.subr.mxu0 %v6154
      %6483 = vmatpush1.xpose.msra.mxu0 %v6153
      %6484 = vmatprep.subr.mxu0 %v6156
      %6485 = vmatpush1.xpose.msra.mxu0 %v6155
      %6486 = vmatprep.subr.mxu0 %v6158
      %6487 = vmatpush1.xpose.msra.mxu0 %v6157
      %6488 = vmatprep.subr.mxu0 %v6160
      %6489 = vmatpush1.xpose.msra.mxu0 %v6159
      %6490 = vmatprep.subr.mxu0 %v6162
      %6491 = vmatpush1.xpose.msra.mxu0 %v6161
      %6492 = vmatprep.subr.mxu0 %v6164
      %6493 = vmatpush1.xpose.msra.mxu0 %v6163
      %6494 = vmatprep.subr.mxu0 %v6166
      %6495 = vmatpush1.xpose.msra.mxu0 %v6165
      %6496 = vmatprep.subr.mxu0 %v6168
      %6497 = vmatpush1.xpose.msra.mxu0 %v6167
      %6498 = vmatprep.mubr.f32.mxu0 1.0
      %6499 = vmatmul.mubr.f32.gmra.mrb[0].mxu0 1.0
      %v6500 = vpop.f32.mrb[0].mxu0
      %v6501 = vadd.f32 0.0, %v6500
      %v6502 = vpop.f32.mrb[0].mxu0
      %v6503 = vadd.f32 0.0, %v6502
      %6504 = vdwg.mxu0
      %6505 = vmatprep.subr.mxu0 %v6170
      %6506 = vmatpush1.xpose.msra.mxu0 %v6169
      %6507 = vmatprep.subr.mxu0 %v6172
      %6508 = vmatpush1.xpose.msra.mxu0 %v6171
      %6509 = vmatprep.subr.mxu0 %v6174
      %6510 = vmatpush1.xpose.msra.mxu0 %v6173
      %6511 = vmatprep.subr.mxu0 %v6176
      %6512 = vmatpush1.xpose.msra.mxu0 %v6175
      %6513 = vmatprep.subr.mxu0 %v6178
      %6514 = vmatpush1.xpose.msra.mxu0 %v6177
      %6515 = vmatprep.subr.mxu0 %v6180
      %6516 = vmatpush1.xpose.msra.mxu0 %v6179
      %6517 = vmatprep.subr.mxu0 %v6182
      %6518 = vmatpush1.xpose.msra.mxu0 %v6181
      %6519 = vmatprep.subr.mxu0 %v6184
      %6520 = vmatpush1.xpose.msra.mxu0 %v6183
      %6521 = vmatprep.subr.mxu0 %v6186
      %6522 = vmatpush1.xpose.msra.mxu0 %v6185
      %6523 = vmatprep.subr.mxu0 %v6188
      %6524 = vmatpush1.xpose.msra.mxu0 %v6187
      %6525 = vmatprep.subr.mxu0 %v6190
      %6526 = vmatpush1.xpose.msra.mxu0 %v6189
      %6527 = vmatprep.subr.mxu0 %v6192
      %6528 = vmatpush1.xpose.msra.mxu0 %v6191
      %6529 = vmatprep.subr.mxu0 %v6194
      %6530 = vmatpush1.xpose.msra.mxu0 %v6193
      %6531 = vmatprep.subr.mxu0 %v6196
      %6532 = vmatpush1.xpose.msra.mxu0 %v6195
      %6533 = vmatprep.subr.mxu0 %v6198
      %6534 = vmatpush1.xpose.msra.mxu0 %v6197
      %6535 = vmatprep.subr.mxu0 %v6200
      %6536 = vmatpush1.xpose.msra.mxu0 %v6199
      %6537 = vmatprep.subr.mxu0 %v6202
      %6538 = vmatpush1.xpose.msra.mxu0 %v6201
      %6539 = vmatprep.subr.mxu0 %v6204
      %6540 = vmatpush1.xpose.msra.mxu0 %v6203
      %6541 = vmatprep.subr.mxu0 %v6206
      %6542 = vmatpush1.xpose.msra.mxu0 %v6205
      %6543 = vmatprep.subr.mxu0 %v6208
      %6544 = vmatpush1.xpose.msra.mxu0 %v6207
      %6545 = vmatprep.subr.mxu0 %v6210
      %6546 = vmatpush1.xpose.msra.mxu0 %v6209
      %6547 = vmatprep.subr.mxu0 %v6212
      %6548 = vmatpush1.xpose.msra.mxu0 %v6211
      %6549 = vmatprep.subr.mxu0 %v6214
      %6550 = vmatpush1.xpose.msra.mxu0 %v6213
      %6551 = vmatprep.subr.mxu0 %v6216
      %6552 = vmatpush1.xpose.msra.mxu0 %v6215
      %6553 = vmatprep.subr.mxu0 %v6218
      %6554 = vmatpush1.xpose.msra.mxu0 %v6217
      %6555 = vmatprep.subr.mxu0 %v6220
      %6556 = vmatpush1.xpose.msra.mxu0 %v6219
      %6557 = vmatprep.subr.mxu0 %v6222
      %6558 = vmatpush1.xpose.msra.mxu0 %v6221
      %6559 = vmatprep.subr.mxu0 %v6224
      %6560 = vmatpush1.xpose.msra.mxu0 %v6223
      %6561 = vmatprep.subr.mxu0 %v6226
      %6562 = vmatpush1.xpose.msra.mxu0 %v6225
      %6563 = vmatprep.subr.mxu0 %v6228
      %6564 = vmatpush1.xpose.msra.mxu0 %v6227
      %6565 = vmatprep.subr.mxu0 %v6230
      %6566 = vmatpush1.xpose.msra.mxu0 %v6229
      %6567 = vmatprep.subr.mxu0 %v6232
      %6568 = vmatpush1.xpose.msra.mxu0 %v6231
      %6569 = vmatprep.mubr.f32.mxu0 1.0
      %6570 = vmatmul.mubr.f32.gmra.mrb[0].mxu0 1.0
      %v6571 = vpop.f32.mrb[0].mxu0
      %v6572 = vadd.f32 0.0, %v6571
      %v6573 = vpop.f32.mrb[0].mxu0
      %v6574 = vadd.f32 0.0, %v6573
      %6575 = vdwg.mxu0
      %6576 = vmatprep.subr.mxu0 %v6234
      %6577 = vmatpush1.xpose.msra.mxu0 %v6233
      %6578 = vmatprep.subr.mxu0 %v6236
      %6579 = vmatpush1.xpose.msra.mxu0 %v6235
      %6580 = vmatprep.subr.mxu0 %v6238
      %6581 = vmatpush1.xpose.msra.mxu0 %v6237
      %6582 = vmatprep.subr.mxu0 %v6240
      %6583 = vmatpush1.xpose.msra.mxu0 %v6239
      %6584 = vmatprep.subr.mxu0 %v6242
      %6585 = vmatpush1.xpose.msra.mxu0 %v6241
      %6586 = vmatprep.subr.mxu0 %v6244
      %6587 = vmatpush1.xpose.msra.mxu0 %v6243
      %6588 = vmatprep.subr.mxu0 %v6246
      %6589 = vmatpush1.xpose.msra.mxu0 %v6245
      %6590 = vmatprep.subr.mxu0 %v6248
      %6591 = vmatpush1.xpose.msra.mxu0 %v6247
      %6592 = vmatprep.subr.mxu0 %v6250
      %6593 = vmatpush1.xpose.msra.mxu0 %v6249
      %6594 = vmatprep.subr.mxu0 %v6252
      %6595 = vmatpush1.xpose.msra.mxu0 %v6251
      %6596 = vmatprep.subr.mxu0 %v6254
      %6597 = vmatpush1.xpose.msra.mxu0 %v6253
      %6598 = vmatprep.subr.mxu0 %v6256
      %6599 = vmatpush1.xpose.msra.mxu0 %v6255
      %6600 = vmatprep.subr.mxu0 %v6258
      %6601 = vmatpush1.xpose.msra.mxu0 %v6257
      %6602 = vmatprep.subr.mxu0 %v6260
      %6603 = vmatpush1.xpose.msra.mxu0 %v6259
      %6604 = vmatprep.subr.mxu0 %v6262
      %6605 = vmatpush1.xpose.msra.mxu0 %v6261
      %6606 = vmatprep.subr.mxu0 %v6264
      %6607 = vmatpush1.xpose.msra.mxu0 %v6263
      %6608 = vmatprep.subr.mxu0 %v6266
      %6609 = vmatpush1.xpose.msra.mxu0 %v6265
      %6610 = vmatprep.subr.mxu0 %v6268
      %6611 = vmatpush1.xpose.msra.mxu0 %v6267
      %6612 = vmatprep.subr.mxu0 %v6270
      %6613 = vmatpush1.xpose.msra.mxu0 %v6269
      %6614 = vmatprep.subr.mxu0 %v6272
      %6615 = vmatpush1.xpose.msra.mxu0 %v6271
      %6616 = vmatprep.subr.mxu0 %v6274
      %6617 = vmatpush1.xpose.msra.mxu0 %v6273
      %6618 = vmatprep.subr.mxu0 %v6276
      %6619 = vmatpush1.xpose.msra.mxu0 %v6275
      %6620 = vmatprep.subr.mxu0 %v6278
      %6621 = vmatpush1.xpose.msra.mxu0 %v6277
      %6622 = vmatprep.subr.mxu0 %v6280
      %6623 = vmatpush1.xpose.msra.mxu0 %v6279
      %6624 = vmatprep.subr.mxu0 %v6282
      %6625 = vmatpush1.xpose.msra.mxu0 %v6281
      %6626 = vmatprep.subr.mxu0 %v6284
      %6627 = vmatpush1.xpose.msra.mxu0 %v6283
      %6628 = vmatprep.subr.mxu0 %v6286
      %6629 = vmatpush1.xpose.msra.mxu0 %v6285
      %6630 = vmatprep.subr.mxu0 %v6288
      %6631 = vmatpush1.xpose.msra.mxu0 %v6287
      %6632 = vmatprep.subr.mxu0 %v6290
      %6633 = vmatpush1.xpose.msra.mxu0 %v6289
      %6634 = vmatprep.subr.mxu0 %v6292
      %6635 = vmatpush1.xpose.msra.mxu0 %v6291
      %6636 = vmatprep.subr.mxu0 %v6294
      %6637 = vmatpush1.xpose.msra.mxu0 %v6293
      %6638 = vmatprep.subr.mxu0 %v6296
      %6639 = vmatpush1.xpose.msra.mxu0 %v6295
      %6640 = vmatprep.mubr.f32.mxu0 1.0
      %6641 = vmatmul.mubr.f32.gmra.mrb[0].mxu0 1.0
      %v6642 = vpop.f32.mrb[0].mxu0
      %v6643 = vadd.f32 0.0, %v6642
      %v6644 = vpop.f32.mrb[0].mxu0
      %v6645 = vadd.f32 0.0, %v6644
      %6646 = vdwg.mxu0
      %6647 = vmatprep.subr.mxu0 %v6298
      %6648 = vmatpush1.xpose.msra.mxu0 %v6297
      %6649 = vmatprep.subr.mxu0 %v6300
      %6650 = vmatpush1.xpose.msra.mxu0 %v6299
      %6651 = vmatprep.subr.mxu0 %v6302
      %6652 = vmatpush1.xpose.msra.mxu0 %v6301
      %6653 = vmatprep.subr.mxu0 %v6304
      %6654 = vmatpush1.xpose.msra.mxu0 %v6303
      %6655 = vmatprep.subr.mxu0 %v6306
      %6656 = vmatpush1.xpose.msra.mxu0 %v6305
      %6657 = vmatprep.subr.mxu0 %v6308
      %6658 = vmatpush1.xpose.msra.mxu0 %v6307
      %6659 = vmatprep.subr.mxu0 %v6310
      %6660 = vmatpush1.xpose.msra.mxu0 %v6309
      %6661 = vmatprep.subr.mxu0 %v6312
      %6662 = vmatpush1.xpose.msra.mxu0 %v6311
      %6663 = vmatprep.subr.mxu0 %v6314
      %6664 = vmatpush1.xpose.msra.mxu0 %v6313
      %6665 = vmatprep.subr.mxu0 %v6316
      %6666 = vmatpush1.xpose.msra.mxu0 %v6315
      %6667 = vmatprep.subr.mxu0 %v6318
      %6668 = vmatpush1.xpose.msra.mxu0 %v6317
      %6669 = vmatprep.subr.mxu0 %v6320
      %6670 = vmatpush1.xpose.msra.mxu0 %v6319
      %6671 = vmatprep.subr.mxu0 %v6322
      %6672 = vmatpush1.xpose.msra.mxu0 %v6321
      %6673 = vmatprep.subr.mxu0 %v6324
      %6674 = vmatpush1.xpose.msra.mxu0 %v6323
      %6675 = vmatprep.subr.mxu0 %v6326
      %6676 = vmatpush1.xpose.msra.mxu0 %v6325
      %6677 = vmatprep.subr.mxu0 %v6328
      %6678 = vmatpush1.xpose.msra.mxu0 %v6327
      %6679 = vmatprep.subr.mxu0 %v6330
      %6680 = vmatpush1.xpose.msra.mxu0 %v6329
      %6681 = vmatprep.subr.mxu0 %v6332
      %6682 = vmatpush1.xpose.msra.mxu0 %v6331
      %6683 = vmatprep.subr.mxu0 %v6334
      %6684 = vmatpush1.xpose.msra.mxu0 %v6333
      %6685 = vmatprep.subr.mxu0 %v6336
      %6686 = vmatpush1.xpose.msra.mxu0 %v6335
      %6687 = vmatprep.subr.mxu0 %v6338
      %6688 = vmatpush1.xpose.msra.mxu0 %v6337
      %6689 = vmatprep.subr.mxu0 %v6340
      %6690 = vmatpush1.xpose.msra.mxu0 %v6339
      %6691 = vmatprep.subr.mxu0 %v6342
      %6692 = vmatpush1.xpose.msra.mxu0 %v6341
      %6693 = vmatprep.subr.mxu0 %v6344
      %6694 = vmatpush1.xpose.msra.mxu0 %v6343
      %6695 = vmatprep.subr.mxu0 %v6346
      %6696 = vmatpush1.xpose.msra.mxu0 %v6345
      %6697 = vmatprep.subr.mxu0 %v6348
      %6698 = vmatpush1.xpose.msra.mxu0 %v6347
      %6699 = vmatprep.subr.mxu0 %v6350
      %6700 = vmatpush1.xpose.msra.mxu0 %v6349
      %6701 = vmatprep.subr.mxu0 %v6352
      %6702 = vmatpush1.xpose.msra.mxu0 %v6351
      %6703 = vmatprep.subr.mxu0 %v6354
      %6704 = vmatpush1.xpose.msra.mxu0 %v6353
      %6705 = vmatprep.subr.mxu0 %v6356
      %6706 = vmatpush1.xpose.msra.mxu0 %v6355
      %6707 = vmatprep.subr.mxu0 %v6358
      %6708 = vmatpush1.xpose.msra.mxu0 %v6357
      %6709 = vmatprep.subr.mxu0 %v6360
      %6710 = vmatpush1.xpose.msra.mxu0 %v6359
      %6711 = vmatprep.mubr.f32.mxu0 1.0
      %6712 = vmatmul.mubr.f32.gmra.mrb[0].mxu0 1.0
      %v6713 = vpop.f32.mrb[0].mxu0
      %v6714 = vadd.f32 0.0, %v6713
      %v6715 = vpop.f32.mrb[0].mxu0
      %v6716 = vadd.f32 0.0, %v6715
      %6717 = vdwg.mxu0
      %v6728 = vcombine.low %v6430, %v6432
      %v6729 = vcombine.low %v6501, %v6503
      %v6730 = vcombine.low %v6572, %v6574
      %v6731 = vcombine.low %v6643, %v6645
      %v6733 = vunpack.c.l.s4 1966171168
      %v6734 = vunpack.c.0.s8 %v6733
      %v6735 = vlaneseq
      %v6736 = vshrl.u32 %v6735, 7
      %v6737 = vsub.s32 %v6734, %v6736
      %v6738 = vrot.slane %v6728, %v6737
      %v6740 = vunpack.c.l.s4 1966171168
      %v6741 = vunpack.c.0.s8 %v6740
      %v6742 = vlaneseq
      %v6743 = vshrl.u32 %v6742, 7
      %v6744 = vsub.s32 %v6741, %v6743
      %v6745 = vrot.slane %v6729, %v6744
      %v6747 = vunpack.c.l.s4 1966171168
      %v6748 = vunpack.c.0.s8 %v6747
      %v6749 = vlaneseq
      %v6750 = vshrl.u32 %v6749, 7
      %v6751 = vsub.s32 %v6748, %v6750
      %v6752 = vrot.slane %v6730, %v6751
      %v6754 = vunpack.c.l.s4 1966171168
      %v6755 = vunpack.c.0.s8 %v6754
      %v6756 = vlaneseq
      %v6757 = vshrl.u32 %v6756, 7
      %v6758 = vsub.s32 %v6755, %v6757
      %v6759 = vrot.slane %v6731, %v6758
      %v6760 = vcombine.low %v6738, %v6745
      %v6761 = vcombine.low %v6752, %v6759
      %v6763 = vunpack.c.l.s4 1966171168
      %v6764 = vunpack.c.0.s8 %v6763
      %v6765 = vlaneseq
      %v6766 = vshrl.u32 %v6765, 7
      %v6767 = vsub.s32 %v6764, %v6766
      %v6768 = vrot.slane %v6760, %v6767
      %v6770 = vunpack.c.l.s4 1966171168
      %v6771 = vunpack.c.0.s8 %v6770
      %v6772 = vlaneseq
      %v6773 = vshrl.u32 %v6772, 7
      %v6774 = vsub.s32 %v6771, %v6773
      %v6775 = vrot.slane %v6761, %v6774
      %v6776 = vcombine.low %v6768, %v6775
      %v6777 = vcombine.low %v6714, %v6716
      %v6779 = vunpack.c.l.s4 1966171168
      %v6780 = vunpack.c.0.s8 %v6779
      %v6781 = vlaneseq
      %v6782 = vshrl.u32 %v6781, 7
      %v6783 = vsub.s32 %v6780, %v6782
      %v6784 = vrot.slane %v6777, %v6783
      %v6786 = vunpack.c.l.s4 1966171168
      %v6787 = vunpack.c.0.s8 %v6786
      %v6788 = vlaneseq
      %v6789 = vshrl.u32 %v6788, 7
      %v6790 = vsub.s32 %v6787, %v6789
      %v6791 = vrot.slane %v6784, %v6790
      %v6794 = vadd.f32 %v6361, %v6776
      %v6795 = vadd.f32 %v6362, %v6791
      %6796 = vst [vmem:[#allocation2] sm:$0xff] %v6794
      %v6797 = vlaneseq
      %vm6798 = vcmp.ge.s32.totalorder %v6797, 0
      %vm6799 = vcmp.lt.s32.totalorder %v6797, 256
      %vm6800 = vmand %vm6798, %vm6799
      %6801 = vst.msk [vmem:[#allocation2 + $0x8] sm:$0x3] %vm6800, %v6795
      // Predicated region
      $region89: #{multi_input_forward.1} parent=83 // pred_check
        %p6802 = pneg %p535
      $region90: #{multi_input_forward.1} parent=83 // pred_check_branch
        %6804 = sbr.rel (%p6802) target = $region92
      $region91: #{multi_input_forward.1} parent=83 // pred_region
        %v6805 = vld [vmem:[#allocation2] sm:$0xff]
        %v6806 = vld [vmem:[#allocation2 + $0x8] sm:$0x3]
        %v6807 = vmul.f32 %v6805, 0.00390625
        %v6808 = vmul.f32 %v6806, 0.00390625
        %v6809 = vld [vmem:[%s6] sm:$0xff]
        %v6810 = vld [vmem:[%s6 + $0x8] sm:$0x3]
        %v6811 = vadd.f32 %v6809, 0.001
        %v6812 = vadd.f32 %v6810, 0.001
        %v6813 = vrsqrt.pop %v6811
        %v6814 = vrsqrt.pop %v6812
        %v6815 = vld [vmem:[%s5] sm:$0xff]
        %v6816 = vld [vmem:[%s5 + $0x8] sm:$0x3]
        %v6817 = vsub.f32 %v6807, %v6815
        %v6818 = vsub.f32 %v6808, %v6816
        %v6819 = vmul.f32 %v6817, %v6813
        %v6820 = vmul.f32 %v6818, %v6814
        %v6821 = vld [vmem:[%s3] sm:$0xff]
        %v6822 = vld [vmem:[%s3 + $0x8] sm:$0x3]
        %v6823 = vmul.f32 %v6819, %v6821
        %v6824 = vmul.f32 %v6820, %v6822
        %v6825 = vld [vmem:[%s4] sm:$0xff]
        %v6826 = vld [vmem:[%s4 + $0x8] sm:$0x3]
        %v6827 = vadd.f32 %v6823, %v6825
        %v6828 = vadd.f32 %v6824, %v6826
        %s6829 = sshra.s32 %s31, 2
        %s6830 = sand.u32 %s31, 3
        %s6831 = sshra.s32 %s31, 2
        %s6832 = sand.u32 %s31, 3
        %s6833 = smul.u32 %s6829, 10
        %s6834 = smul.u32 %s6833, 4
        %s6835 = sadd.s32 %s6834, %s6832
        %s6836 = scalar_lea.vmem [#allocation3], %s6835
        %6837 = vst [vmem:[%s6836] ss:$4 sm:$0xff] %v6827
        %s6838 = sadd.s32 %s6833, 8
        %s6839 = smul.u32 %s6838, 4
        %s6840 = sadd.s32 %s6839, %s6832
        %s6841 = scalar_lea.vmem [#allocation3], %s6840
        %6842 = vst.msk [vmem:[%s6841] ss:$4 sm:$0x3] %vm6800, %v6828
        %p6843 = scmp.eq.s32.totalorder %s31, 3
        // Predicated region
        $region93: #{multi_input_forward.1} parent=91 // pred_check
          %p6844 = pneg %p6843
        $region94: #{multi_input_forward.1} parent=91 // pred_check_branch
          %6846 = sbr.rel (%p6844) target = $region96
        $region95: #{multi_input_forward.1} parent=91 // pred_region
          %v6847 = vld [vmem:[%s7] sm:$0x3]
          %v6848 = vld [vmem:[%s8] sm:$0xff]
          %v6849 = vld [vmem:[%s9] sm:$0x1]
          %v6851 = vlaneseq
          %v6852 = vshrl.u32 %v6851, 7
          %v6853 = vsub.s32 0, %v6852
          %v6854 = vrot.slane %v6849, %v6853
          %vm6856 = vcmask 64512
          %v6858 = vsel %vm6856, %v6847, 0
          %6860 = vmatprep.subr.mxu0 0.0
          %6861 = vmatpush1.msra.mxu0 %v6848
          %6862 = vmatprep.subr.mxu0 0.0
          %6863 = vmatpush1.msra.mxu0 0.0
          %6864 = vmatprep.subr.mxu0 0.0
          %6865 = vmatpush1.msra.mxu0 0.0
          %6866 = vmatprep.subr.mxu0 0.0
          %6867 = vmatpush1.msra.mxu0 0.0
          %6868 = vmatprep.subr.mxu0 0.0
          %6869 = vmatpush1.msra.mxu0 0.0
          %6870 = vmatprep.subr.mxu0 0.0
          %6871 = vmatpush1.msra.mxu0 0.0
          %6872 = vmatprep.subr.mxu0 0.0
          %6873 = vmatpush1.msra.mxu0 0.0
          %6874 = vmatprep.subr.mxu0 0.0
          %6875 = vmatpush1.msra.mxu0 0.0
          %6876 = vmatprep.subr.mxu0 0.0
          %6877 = vmatpush1.msra.mxu0 0.0
          %6878 = vmatprep.subr.mxu0 0.0
          %6879 = vmatpush1.msra.mxu0 0.0
          %6880 = vmatprep.subr.mxu0 0.0
          %6881 = vmatpush1.msra.mxu0 0.0
          %6882 = vmatprep.subr.mxu0 0.0
          %6883 = vmatpush1.msra.mxu0 0.0
          %6884 = vmatprep.subr.mxu0 0.0
          %6885 = vmatpush1.msra.mxu0 0.0
          %6886 = vmatprep.subr.mxu0 0.0
          %6887 = vmatpush1.msra.mxu0 0.0
          %6888 = vmatprep.subr.mxu0 0.0
          %6889 = vmatpush1.msra.mxu0 0.0
          %6890 = vmatprep.subr.mxu0 0.0
          %6891 = vmatpush1.msra.mxu0 0.0
          %6892 = vmatprep.subr.mxu0 0.0
          %6893 = vmatpush1.msra.mxu0 0.0
          %6894 = vmatprep.subr.mxu0 0.0
          %6895 = vmatpush1.msra.mxu0 0.0
          %6896 = vmatprep.subr.mxu0 0.0
          %6897 = vmatpush1.msra.mxu0 0.0
          %6898 = vmatprep.subr.mxu0 0.0
          %6899 = vmatpush1.msra.mxu0 0.0
          %6900 = vmatprep.subr.mxu0 0.0
          %6901 = vmatpush1.msra.mxu0 0.0
          %6902 = vmatprep.subr.mxu0 0.0
          %6903 = vmatpush1.msra.mxu0 0.0
          %6904 = vmatprep.subr.mxu0 0.0
          %6905 = vmatpush1.msra.mxu0 0.0
          %6906 = vmatprep.subr.mxu0 0.0
          %6907 = vmatpush1.msra.mxu0 0.0
          %6908 = vmatprep.subr.mxu0 0.0
          %6909 = vmatpush1.msra.mxu0 0.0
          %6910 = vmatprep.subr.mxu0 0.0
          %6911 = vmatpush1.msra.mxu0 0.0
          %6912 = vmatprep.subr.mxu0 0.0
          %6913 = vmatpush1.msra.mxu0 0.0
          %6914 = vmatprep.subr.mxu0 0.0
          %6915 = vmatpush1.msra.mxu0 0.0
          %6916 = vmatprep.subr.mxu0 0.0
          %6917 = vmatpush1.msra.mxu0 0.0
          %6918 = vmatprep.subr.mxu0 0.0
          %6919 = vmatpush1.msra.mxu0 0.0
          %6920 = vmatprep.subr.mxu0 0.0
          %6921 = vmatpush1.msra.mxu0 0.0
          %6922 = vmatprep.subr.mxu0 0.0
          %6923 = vmatpush1.msra.mxu0 0.0
          %6924 = vmatprep.mubr.f32.mxu0 0.0
          %6925 = vmatmul.mubr.f32.gmra.mrb[0].mxu0 %v6858
          %v6926 = vpop.f32.mrb[0].mxu0
          %v6927 = vadd.f32 %v6854, %v6926
          %v6928 = vpop.f32.mrb[0].mxu0
          %6929 = vdwg.mxu0
          %v6930 = vmax.f32 %v6927, 0.0
          %v6931 = vld [vmem:[%s13] sm:$0x1]
          %v6932 = vadd.f32 %v6931, 0.001
          %v6933 = vrsqrt.pop %v6932
          %v6934 = vld [vmem:[%s12] sm:$0x1]
          %v6936 = vlaneseq
          %v6937 = vshrl.u32 %v6936, 7
          %v6938 = vsub.s32 0, %v6937
          %v6939 = vrot.slane %v6934, %v6938
          %v6941 = vsub.f32 %v6930, %v6939
          %v6943 = vlaneseq
          %v6944 = vshrl.u32 %v6943, 7
          %v6945 = vsub.s32 0, %v6944
          %v6946 = vrot.slane %v6933, %v6945
          %v6948 = vmul.f32 %v6941, %v6946
          %v6949 = vld [vmem:[%s10] sm:$0x1]
          %v6951 = vlaneseq
          %v6952 = vshrl.u32 %v6951, 7
          %v6953 = vsub.s32 0, %v6952
          %v6954 = vrot.slane %v6949, %v6953
          %v6956 = vmul.f32 %v6948, %v6954
          %v6957 = vld [vmem:[%s11] sm:$0x1]
          %v6959 = vlaneseq
          %v6960 = vshrl.u32 %v6959, 7
          %v6961 = vsub.s32 0, %v6960
          %v6962 = vrot.slane %v6957, %v6961
          %v6964 = vadd.f32 %v6956, %v6962
          %v6965 = vld [vmem:[#allocation3] sm:$0x33]
          %v6966 = vld [vmem:[#allocation3 + $0x8] sm:$0x33]
          %v6967 = vld [vmem:[#allocation3 + $0x10] sm:$0x33]
          %v6968 = vld [vmem:[#allocation3 + $0x18] sm:$0x33]
          %v6969 = vld [vmem:[#allocation3 + $0x20] sm:$0x33]
          %v6970 = vld [vmem:[#allocation3] sm:$0xcc]
          %v6971 = vld [vmem:[#allocation3 + $0x8] sm:$0xcc]
          %v6972 = vld [vmem:[#allocation3 + $0x10] sm:$0xcc]
          %v6973 = vld [vmem:[#allocation3 + $0x18] sm:$0xcc]
          %v6974 = vld [vmem:[#allocation3 + $0x20] sm:$0xcc]
          %v6975 = vld [vmem:[%s14] sm:$0xff]
          %v6976 = vld [vmem:[%s14 + $0x8] sm:$0xff]
          %v6977 = vld [vmem:[%s14 + $0x10] sm:$0xff]
          %v6978 = vld [vmem:[%s14 + $0x18] sm:$0xff]
          %v6979 = vld [vmem:[%s14 + $0x20] sm:$0xff]
          %v6980 = vld [vmem:[%s14 + $0x28] sm:$0xff]
          %v6981 = vld [vmem:[%s14 + $0x30] sm:$0xff]
          %v6982 = vld [vmem:[%s14 + $0x38] sm:$0xff]
          %v6983 = vld [vmem:[%s14 + $0x40] sm:$0xff]
          %v6984 = vld [vmem:[%s14 + $0x48] sm:$0xff]
          %v6985 = vld [vmem:[%s14 + $0x50] sm:$0xff]
          %v6986 = vld [vmem:[%s14 + $0x58] sm:$0xff]
          %v6987 = vld [vmem:[%s14 + $0x60] sm:$0xff]
          %v6988 = vld [vmem:[%s14 + $0x68] sm:$0xff]
          %v6989 = vld [vmem:[%s14 + $0x70] sm:$0xff]
          %v6990 = vld [vmem:[%s14 + $0x78] sm:$0xff]
          %v6991 = vld [vmem:[%s14 + $0x80] sm:$0xff]
          %v6992 = vld [vmem:[%s14 + $0x88] sm:$0xff]
          %v6993 = vld [vmem:[%s14 + $0x90] sm:$0xff]
          %v6994 = vld [vmem:[%s14 + $0x98] sm:$0xff]
          %v6995 = vld [vmem:[%s14 + $0xa0] sm:$0xff]
          %v6996 = vld [vmem:[%s14 + $0xa8] sm:$0xff]
          %v6997 = vld [vmem:[%s14 + $0xb0] sm:$0xff]
          %v6998 = vld [vmem:[%s14 + $0xb8] sm:$0xff]
          %v6999 = vld [vmem:[%s14 + $0xc0] sm:$0xff]
          %v7000 = vld [vmem:[%s14 + $0xc8] sm:$0xff]
          %v7001 = vld [vmem:[%s14 + $0xd0] sm:$0xff]
          %v7002 = vld [vmem:[%s14 + $0xd8] sm:$0xff]
          %v7003 = vld [vmem:[%s14 + $0xe0] sm:$0xff]
          %v7004 = vld [vmem:[%s14 + $0xe8] sm:$0xff]
          %v7005 = vld [vmem:[%s14 + $0xf0] sm:$0xff]
          %v7006 = vld [vmem:[%s14 + $0xf8] sm:$0xff]
          %v7007 = vld [vmem:[%s14 + $0x100] sm:$0xff]
          %v7008 = vld [vmem:[%s14 + $0x108] sm:$0xff]
          %v7009 = vld [vmem:[%s14 + $0x110] sm:$0xff]
          %v7010 = vld [vmem:[%s14 + $0x118] sm:$0xff]
          %v7011 = vld [vmem:[%s14 + $0x120] sm:$0xff]
          %v7012 = vld [vmem:[%s14 + $0x128] sm:$0xff]
          %v7013 = vld [vmem:[%s14 + $0x130] sm:$0xff]
          %v7014 = vld [vmem:[%s14 + $0x138] sm:$0xff]
          %v7015 = vld [vmem:[%s14 + $0x140] sm:$0xff]
          %v7016 = vld [vmem:[%s14 + $0x148] sm:$0xff]
          %v7017 = vld [vmem:[%s14 + $0x150] sm:$0xff]
          %v7018 = vld [vmem:[%s14 + $0x158] sm:$0xff]
          %v7019 = vld [vmem:[%s14 + $0x160] sm:$0xff]
          %v7020 = vld [vmem:[%s14 + $0x168] sm:$0xff]
          %v7021 = vld [vmem:[%s14 + $0x170] sm:$0xff]
          %v7022 = vld [vmem:[%s14 + $0x178] sm:$0xff]
          %v7023 = vld [vmem:[%s14 + $0x180] sm:$0xff]
          %v7024 = vld [vmem:[%s14 + $0x188] sm:$0xff]
          %v7025 = vld [vmem:[%s14 + $0x190] sm:$0xff]
          %v7026 = vld [vmem:[%s14 + $0x198] sm:$0xff]
          %v7027 = vld [vmem:[%s14 + $0x1a0] sm:$0xff]
          %v7028 = vld [vmem:[%s14 + $0x1a8] sm:$0xff]
          %v7029 = vld [vmem:[%s14 + $0x1b0] sm:$0xff]
          %v7030 = vld [vmem:[%s14 + $0x1b8] sm:$0xff]
          %v7031 = vld [vmem:[%s14 + $0x1c0] sm:$0xff]
          %v7032 = vld [vmem:[%s14 + $0x1c8] sm:$0xff]
          %v7033 = vld [vmem:[%s14 + $0x1d0] sm:$0xff]
          %v7034 = vld [vmem:[%s14 + $0x1d8] sm:$0xff]
          %v7035 = vld [vmem:[%s14 + $0x1e0] sm:$0xff]
          %v7036 = vld [vmem:[%s14 + $0x1e8] sm:$0xff]
          %v7037 = vld [vmem:[%s14 + $0x1f0] sm:$0xff]
          %v7038 = vld [vmem:[%s14 + $0x1f8] sm:$0xff]
          %v7039 = vld [vmem:[%s14 + $0x200] sm:$0xff]
          %v7040 = vld [vmem:[%s14 + $0x208] sm:$0xff]
          %v7041 = vld [vmem:[%s14 + $0x210] sm:$0xff]
          %v7042 = vld [vmem:[%s14 + $0x218] sm:$0xff]
          %v7043 = vld [vmem:[%s14 + $0x220] sm:$0xff]
          %v7044 = vld [vmem:[%s14 + $0x228] sm:$0xff]
          %v7045 = vld [vmem:[%s14 + $0x230] sm:$0xff]
          %v7046 = vld [vmem:[%s14 + $0x238] sm:$0xff]
          %v7047 = vld [vmem:[%s14 + $0x240] sm:$0xff]
          %v7048 = vld [vmem:[%s14 + $0x248] sm:$0xff]
          %v7049 = vld [vmem:[%s14 + $0x250] sm:$0xff]
          %v7050 = vld [vmem:[%s14 + $0x258] sm:$0xff]
          %v7051 = vld [vmem:[%s14 + $0x260] sm:$0xff]
          %v7052 = vld [vmem:[%s14 + $0x268] sm:$0xff]
          %v7053 = vld [vmem:[%s14 + $0x270] sm:$0xff]
          %v7054 = vld [vmem:[%s14 + $0x278] sm:$0xff]
          %v7055 = vld [vmem:[%s14 + $0x280] sm:$0xff]
          %v7056 = vld [vmem:[%s14 + $0x288] sm:$0xff]
          %v7057 = vld [vmem:[%s14 + $0x290] sm:$0xff]
          %v7058 = vld [vmem:[%s14 + $0x298] sm:$0xff]
          %v7059 = vld [vmem:[%s14 + $0x2a0] sm:$0xff]
          %v7060 = vld [vmem:[%s14 + $0x2a8] sm:$0xff]
          %v7061 = vld [vmem:[%s14 + $0x2b0] sm:$0xff]
          %v7062 = vld [vmem:[%s14 + $0x2b8] sm:$0xff]
          %v7063 = vld [vmem:[%s14 + $0x2c0] sm:$0xff]
          %v7064 = vld [vmem:[%s14 + $0x2c8] sm:$0xff]
          %v7065 = vld [vmem:[%s14 + $0x2d0] sm:$0xff]
          %v7066 = vld [vmem:[%s14 + $0x2d8] sm:$0xff]
          %v7067 = vld [vmem:[%s14 + $0x2e0] sm:$0xff]
          %v7068 = vld [vmem:[%s14 + $0x2e8] sm:$0xff]
          %v7069 = vld [vmem:[%s14 + $0x2f0] sm:$0xff]
          %v7070 = vld [vmem:[%s14 + $0x2f8] sm:$0xff]
          %v7071 = vld [vmem:[%s14 + $0x300] sm:$0xff]
          %v7072 = vld [vmem:[%s14 + $0x308] sm:$0xff]
          %v7073 = vld [vmem:[%s14 + $0x310] sm:$0xff]
          %v7074 = vld [vmem:[%s14 + $0x318] sm:$0xff]
          %v7075 = vld [vmem:[%s14 + $0x320] sm:$0xff]
          %v7076 = vld [vmem:[%s14 + $0x328] sm:$0xff]
          %v7077 = vld [vmem:[%s14 + $0x330] sm:$0xff]
          %v7078 = vld [vmem:[%s14 + $0x338] sm:$0xff]
          %v7079 = vld [vmem:[%s14 + $0x340] sm:$0xff]
          %v7080 = vld [vmem:[%s14 + $0x348] sm:$0xff]
          %v7081 = vld [vmem:[%s14 + $0x350] sm:$0xff]
          %v7082 = vld [vmem:[%s14 + $0x358] sm:$0xff]
          %v7083 = vld [vmem:[%s14 + $0x360] sm:$0xff]
          %v7084 = vld [vmem:[%s14 + $0x368] sm:$0xff]
          %v7085 = vld [vmem:[%s14 + $0x370] sm:$0xff]
          %v7086 = vld [vmem:[%s14 + $0x378] sm:$0xff]
          %v7087 = vld [vmem:[%s14 + $0x380] sm:$0xff]
          %v7088 = vld [vmem:[%s14 + $0x388] sm:$0xff]
          %v7089 = vld [vmem:[%s14 + $0x390] sm:$0xff]
          %v7090 = vld [vmem:[%s14 + $0x398] sm:$0xff]
          %v7091 = vld [vmem:[%s14 + $0x3a0] sm:$0xff]
          %v7092 = vld [vmem:[%s14 + $0x3a8] sm:$0xff]
          %v7093 = vld [vmem:[%s14 + $0x3b0] sm:$0xff]
          %v7094 = vld [vmem:[%s14 + $0x3b8] sm:$0xff]
          %v7095 = vld [vmem:[%s14 + $0x3c0] sm:$0xff]
          %v7096 = vld [vmem:[%s14 + $0x3c8] sm:$0xff]
          %v7097 = vld [vmem:[%s14 + $0x3d0] sm:$0xff]
          %v7098 = vld [vmem:[%s14 + $0x3d8] sm:$0xff]
          %v7099 = vld [vmem:[%s14 + $0x3e0] sm:$0xff]
          %v7100 = vld [vmem:[%s14 + $0x3e8] sm:$0xff]
          %v7101 = vld [vmem:[%s14 + $0x3f0] sm:$0xff]
          %v7102 = vld [vmem:[%s14 + $0x3f8] sm:$0xff]
          %v7103 = vld [vmem:[%s14 + $0x400] sm:$0xff]
          %v7104 = vld [vmem:[%s14 + $0x408] sm:$0xff]
          %v7105 = vld [vmem:[%s14 + $0x410] sm:$0xff]
          %v7106 = vld [vmem:[%s14 + $0x418] sm:$0xff]
          %v7107 = vld [vmem:[%s14 + $0x420] sm:$0xff]
          %v7108 = vld [vmem:[%s14 + $0x428] sm:$0xff]
          %v7109 = vld [vmem:[%s14 + $0x430] sm:$0xff]
          %v7110 = vld [vmem:[%s14 + $0x438] sm:$0xff]
          %v7111 = vld [vmem:[%s14 + $0x440] sm:$0xff]
          %v7112 = vld [vmem:[%s14 + $0x448] sm:$0xff]
          %v7113 = vld [vmem:[%s14 + $0x450] sm:$0xff]
          %v7114 = vld [vmem:[%s14 + $0x458] sm:$0xff]
          %v7115 = vld [vmem:[%s14 + $0x460] sm:$0xff]
          %v7116 = vld [vmem:[%s14 + $0x468] sm:$0xff]
          %v7117 = vld [vmem:[%s14 + $0x470] sm:$0xff]
          %v7118 = vld [vmem:[%s14 + $0x478] sm:$0xff]
          %v7119 = vld [vmem:[%s14 + $0x480] sm:$0xff]
          %v7120 = vld [vmem:[%s14 + $0x488] sm:$0xff]
          %v7121 = vld [vmem:[%s14 + $0x490] sm:$0xff]
          %v7122 = vld [vmem:[%s14 + $0x498] sm:$0xff]
          %v7123 = vld [vmem:[%s14 + $0x4a0] sm:$0xff]
          %v7124 = vld [vmem:[%s14 + $0x4a8] sm:$0xff]
          %v7125 = vld [vmem:[%s14 + $0x4b0] sm:$0xff]
          %v7126 = vld [vmem:[%s14 + $0x4b8] sm:$0xff]
          %v7127 = vld [vmem:[%s14 + $0x4c0] sm:$0xff]
          %v7128 = vld [vmem:[%s14 + $0x4c8] sm:$0xff]
          %v7129 = vld [vmem:[%s14 + $0x4d0] sm:$0xff]
          %v7130 = vld [vmem:[%s14 + $0x4d8] sm:$0xff]
          %v7131 = vld [vmem:[%s14 + $0x4e0] sm:$0xff]
          %v7132 = vld [vmem:[%s14 + $0x4e8] sm:$0xff]
          %v7133 = vld [vmem:[%s14 + $0x4f0] sm:$0xff]
          %v7134 = vld [vmem:[%s14 + $0x4f8] sm:$0xff]
          %v7135 = vld [vmem:[%s14 + $0x500] sm:$0xff]
          %v7136 = vld [vmem:[%s14 + $0x508] sm:$0xff]
          %v7137 = vld [vmem:[%s14 + $0x510] sm:$0xff]
          %v7138 = vld [vmem:[%s14 + $0x518] sm:$0xff]
          %v7139 = vld [vmem:[%s14 + $0x520] sm:$0xff]
          %v7140 = vld [vmem:[%s14 + $0x528] sm:$0xff]
          %v7141 = vld [vmem:[%s14 + $0x530] sm:$0xff]
          %v7142 = vld [vmem:[%s14 + $0x538] sm:$0xff]
          %v7143 = vld [vmem:[%s14 + $0x540] sm:$0xff]
          %v7144 = vld [vmem:[%s14 + $0x548] sm:$0xff]
          %v7145 = vld [vmem:[%s14 + $0x550] sm:$0xff]
          %v7146 = vld [vmem:[%s14 + $0x558] sm:$0xff]
          %v7147 = vld [vmem:[%s14 + $0x560] sm:$0xff]
          %v7148 = vld [vmem:[%s14 + $0x568] sm:$0xff]
          %v7149 = vld [vmem:[%s14 + $0x570] sm:$0xff]
          %v7150 = vld [vmem:[%s14 + $0x578] sm:$0xff]
          %v7151 = vld [vmem:[%s14 + $0x580] sm:$0xff]
          %v7152 = vld [vmem:[%s14 + $0x588] sm:$0xff]
          %v7153 = vld [vmem:[%s14 + $0x590] sm:$0xff]
          %v7154 = vld [vmem:[%s14 + $0x598] sm:$0xff]
          %v7155 = vld [vmem:[%s14 + $0x5a0] sm:$0xff]
          %v7156 = vld [vmem:[%s14 + $0x5a8] sm:$0xff]
          %v7157 = vld [vmem:[%s14 + $0x5b0] sm:$0xff]
          %v7158 = vld [vmem:[%s14 + $0x5b8] sm:$0xff]
          %v7159 = vld [vmem:[%s14 + $0x5c0] sm:$0xff]
          %v7160 = vld [vmem:[%s14 + $0x5c8] sm:$0xff]
          %v7161 = vld [vmem:[%s14 + $0x5d0] sm:$0xff]
          %v7162 = vld [vmem:[%s14 + $0x5d8] sm:$0xff]
          %v7163 = vld [vmem:[%s14 + $0x5e0] sm:$0xff]
          %v7164 = vld [vmem:[%s14 + $0x5e8] sm:$0xff]
          %v7165 = vld [vmem:[%s14 + $0x5f0] sm:$0xff]
          %v7166 = vld [vmem:[%s14 + $0x5f8] sm:$0xff]
          %v7167 = vld [vmem:[%s14 + $0x600] sm:$0xff]
          %v7168 = vld [vmem:[%s14 + $0x608] sm:$0xff]
          %v7169 = vld [vmem:[%s14 + $0x610] sm:$0xff]
          %v7170 = vld [vmem:[%s14 + $0x618] sm:$0xff]
          %v7171 = vld [vmem:[%s14 + $0x620] sm:$0xff]
          %v7172 = vld [vmem:[%s14 + $0x628] sm:$0xff]
          %v7173 = vld [vmem:[%s14 + $0x630] sm:$0xff]
          %v7174 = vld [vmem:[%s14 + $0x638] sm:$0xff]
          %v7175 = vld [vmem:[%s14 + $0x640] sm:$0xff]
          %v7176 = vld [vmem:[%s14 + $0x648] sm:$0xff]
          %v7177 = vld [vmem:[%s14 + $0x650] sm:$0xff]
          %v7178 = vld [vmem:[%s14 + $0x658] sm:$0xff]
          %v7179 = vld [vmem:[%s14 + $0x660] sm:$0xff]
          %v7180 = vld [vmem:[%s14 + $0x668] sm:$0xff]
          %v7181 = vld [vmem:[%s14 + $0x670] sm:$0xff]
          %v7182 = vld [vmem:[%s14 + $0x678] sm:$0xff]
          %v7183 = vld [vmem:[%s14 + $0x680] sm:$0xff]
          %v7184 = vld [vmem:[%s14 + $0x688] sm:$0xff]
          %v7185 = vld [vmem:[%s14 + $0x690] sm:$0xff]
          %v7186 = vld [vmem:[%s14 + $0x698] sm:$0xff]
          %v7187 = vld [vmem:[%s14 + $0x6a0] sm:$0xff]
          %v7188 = vld [vmem:[%s14 + $0x6a8] sm:$0xff]
          %v7189 = vld [vmem:[%s14 + $0x6b0] sm:$0xff]
          %v7190 = vld [vmem:[%s14 + $0x6b8] sm:$0xff]
          %v7191 = vld [vmem:[%s14 + $0x6c0] sm:$0xff]
          %v7192 = vld [vmem:[%s14 + $0x6c8] sm:$0xff]
          %v7193 = vld [vmem:[%s14 + $0x6d0] sm:$0xff]
          %v7194 = vld [vmem:[%s14 + $0x6d8] sm:$0xff]
          %v7195 = vld [vmem:[%s14 + $0x6e0] sm:$0xff]
          %v7196 = vld [vmem:[%s14 + $0x6e8] sm:$0xff]
          %v7197 = vld [vmem:[%s14 + $0x6f0] sm:$0xff]
          %v7198 = vld [vmem:[%s14 + $0x6f8] sm:$0xff]
          %v7199 = vld [vmem:[%s14 + $0x700] sm:$0xff]
          %v7200 = vld [vmem:[%s14 + $0x708] sm:$0xff]
          %v7201 = vld [vmem:[%s14 + $0x710] sm:$0xff]
          %v7202 = vld [vmem:[%s14 + $0x718] sm:$0xff]
          %v7203 = vld [vmem:[%s14 + $0x720] sm:$0xff]
          %v7204 = vld [vmem:[%s14 + $0x728] sm:$0xff]
          %v7205 = vld [vmem:[%s14 + $0x730] sm:$0xff]
          %v7206 = vld [vmem:[%s14 + $0x738] sm:$0xff]
          %v7207 = vld [vmem:[%s14 + $0x740] sm:$0xff]
          %v7208 = vld [vmem:[%s14 + $0x748] sm:$0xff]
          %v7209 = vld [vmem:[%s14 + $0x750] sm:$0xff]
          %v7210 = vld [vmem:[%s14 + $0x758] sm:$0xff]
          %v7211 = vld [vmem:[%s14 + $0x760] sm:$0xff]
          %v7212 = vld [vmem:[%s14 + $0x768] sm:$0xff]
          %v7213 = vld [vmem:[%s14 + $0x770] sm:$0xff]
          %v7214 = vld [vmem:[%s14 + $0x778] sm:$0xff]
          %v7215 = vld [vmem:[%s14 + $0x780] sm:$0xff]
          %v7216 = vld [vmem:[%s14 + $0x788] sm:$0xff]
          %v7217 = vld [vmem:[%s14 + $0x790] sm:$0xff]
          %v7218 = vld [vmem:[%s14 + $0x798] sm:$0xff]
          %v7219 = vld [vmem:[%s14 + $0x7a0] sm:$0xff]
          %v7220 = vld [vmem:[%s14 + $0x7a8] sm:$0xff]
          %v7221 = vld [vmem:[%s14 + $0x7b0] sm:$0xff]
          %v7222 = vld [vmem:[%s14 + $0x7b8] sm:$0xff]
          %v7223 = vld [vmem:[%s14 + $0x7c0] sm:$0xff]
          %v7224 = vld [vmem:[%s14 + $0x7c8] sm:$0xff]
          %v7225 = vld [vmem:[%s14 + $0x7d0] sm:$0xff]
          %v7226 = vld [vmem:[%s14 + $0x7d8] sm:$0xff]
          %v7227 = vld [vmem:[%s14 + $0x7e0] sm:$0xff]
          %v7228 = vld [vmem:[%s14 + $0x7e8] sm:$0xff]
          %v7229 = vld [vmem:[%s14 + $0x7f0] sm:$0xff]
          %v7230 = vld [vmem:[%s14 + $0x7f8] sm:$0xff]
          %v7231 = vld [vmem:[%s14 + $0x800] sm:$0xff]
          %v7232 = vld [vmem:[%s14 + $0x808] sm:$0xff]
          %v7233 = vld [vmem:[%s14 + $0x810] sm:$0xff]
          %v7234 = vld [vmem:[%s14 + $0x818] sm:$0xff]
          %v7235 = vld [vmem:[%s14 + $0x820] sm:$0xff]
          %v7236 = vld [vmem:[%s14 + $0x828] sm:$0xff]
          %v7237 = vld [vmem:[%s14 + $0x830] sm:$0xff]
          %v7238 = vld [vmem:[%s14 + $0x838] sm:$0xff]
          %v7239 = vld [vmem:[%s14 + $0x840] sm:$0xff]
          %v7240 = vld [vmem:[%s14 + $0x848] sm:$0xff]
          %v7241 = vld [vmem:[%s14 + $0x850] sm:$0xff]
          %v7242 = vld [vmem:[%s14 + $0x858] sm:$0xff]
          %v7243 = vld [vmem:[%s14 + $0x860] sm:$0xff]
          %v7244 = vld [vmem:[%s14 + $0x868] sm:$0xff]
          %v7245 = vld [vmem:[%s14 + $0x870] sm:$0xff]
          %v7246 = vld [vmem:[%s14 + $0x878] sm:$0xff]
          %v7247 = vld [vmem:[%s14 + $0x880] sm:$0xff]
          %v7248 = vld [vmem:[%s14 + $0x888] sm:$0xff]
          %v7249 = vld [vmem:[%s14 + $0x890] sm:$0xff]
          %v7250 = vld [vmem:[%s14 + $0x898] sm:$0xff]
          %v7251 = vld [vmem:[%s14 + $0x8a0] sm:$0xff]
          %v7252 = vld [vmem:[%s14 + $0x8a8] sm:$0xff]
          %v7253 = vld [vmem:[%s14 + $0x8b0] sm:$0xff]
          %v7254 = vld [vmem:[%s14 + $0x8b8] sm:$0xff]
          %v7255 = vld [vmem:[%s14 + $0x8c0] sm:$0xff]
          %v7256 = vld [vmem:[%s14 + $0x8c8] sm:$0xff]
          %v7257 = vld [vmem:[%s14 + $0x8d0] sm:$0xff]
          %v7258 = vld [vmem:[%s14 + $0x8d8] sm:$0xff]
          %v7259 = vld [vmem:[%s14 + $0x8e0] sm:$0xff]
          %v7260 = vld [vmem:[%s14 + $0x8e8] sm:$0xff]
          %v7261 = vld [vmem:[%s14 + $0x8f0] sm:$0xff]
          %v7262 = vld [vmem:[%s14 + $0x8f8] sm:$0xff]
          %v7263 = vld [vmem:[%s14 + $0x900] sm:$0xff]
          %v7264 = vld [vmem:[%s14 + $0x908] sm:$0xff]
          %v7265 = vld [vmem:[%s14 + $0x910] sm:$0xff]
          %v7266 = vld [vmem:[%s14 + $0x918] sm:$0xff]
          %v7267 = vld [vmem:[%s14 + $0x920] sm:$0xff]
          %v7268 = vld [vmem:[%s14 + $0x928] sm:$0xff]
          %v7269 = vld [vmem:[%s14 + $0x930] sm:$0xff]
          %v7270 = vld [vmem:[%s14 + $0x938] sm:$0xff]
          %v7271 = vld [vmem:[%s14 + $0x940] sm:$0xff]
          %v7272 = vld [vmem:[%s14 + $0x948] sm:$0xff]
          %v7273 = vld [vmem:[%s14 + $0x950] sm:$0xff]
          %v7274 = vld [vmem:[%s14 + $0x958] sm:$0xff]
          %v7275 = vld [vmem:[%s14 + $0x960] sm:$0xff]
          %v7276 = vld [vmem:[%s14 + $0x968] sm:$0xff]
          %v7277 = vld [vmem:[%s14 + $0x970] sm:$0xff]
          %v7278 = vld [vmem:[%s14 + $0x978] sm:$0xff]
          %v7279 = vld [vmem:[%s14 + $0x980] sm:$0xff]
          %v7280 = vld [vmem:[%s14 + $0x988] sm:$0xff]
          %v7281 = vld [vmem:[%s14 + $0x990] sm:$0xff]
          %v7282 = vld [vmem:[%s14 + $0x998] sm:$0xff]
          %v7283 = vld [vmem:[%s14 + $0x9a0] sm:$0xff]
          %v7284 = vld [vmem:[%s14 + $0x9a8] sm:$0xff]
          %v7285 = vld [vmem:[%s14 + $0x9b0] sm:$0xff]
          %v7286 = vld [vmem:[%s14 + $0x9b8] sm:$0xff]
          %v7287 = vld [vmem:[%s14 + $0x9c0] sm:$0xff]
          %v7288 = vld [vmem:[%s14 + $0x9c8] sm:$0xff]
          %v7289 = vld [vmem:[%s14 + $0x9d0] sm:$0xff]
          %v7290 = vld [vmem:[%s14 + $0x9d8] sm:$0xff]
          %v7291 = vld [vmem:[%s14 + $0x9e0] sm:$0xff]
          %v7292 = vld [vmem:[%s14 + $0x9e8] sm:$0xff]
          %v7293 = vld [vmem:[%s14 + $0x9f0] sm:$0xff]
          %v7294 = vld [vmem:[%s14 + $0x9f8] sm:$0xff]
          %v7300 = vcombine.high %v6970, %v6970
          %v7301 = vcombine.high %v6971, %v6971
          %v7302 = vcombine.high %v6972, %v6972
          %v7303 = vcombine.high %v6973, %v6973
          %v7304 = vcombine.high %v6974, %v6974
          %v7305 = vrot.slane %v6970, 2
          %v7306 = vrot.slane %v7300, 2
          %v7307 = vrot.slane %v6971, 2
          %v7308 = vrot.slane %v7301, 2
          %v7309 = vrot.slane %v6972, 2
          %v7310 = vrot.slane %v7302, 2
          %v7311 = vrot.slane %v6973, 2
          %v7312 = vrot.slane %v7303, 2
          %v7313 = vrot.slane %v6974, 2
          %v7314 = vrot.slane %v7304, 2
          %7325 = vmatprep.subr.mxu0 0.0
          %7326 = vmatpush1.msra.mxu0 %v7135
          %7327 = vmatprep.subr.mxu0 0.0
          %7328 = vmatpush1.msra.mxu0 %v7136
          %7329 = vmatprep.subr.mxu0 0.0
          %7330 = vmatpush1.msra.mxu0 %v7137
          %7331 = vmatprep.subr.mxu0 0.0
          %7332 = vmatpush1.msra.mxu0 %v7138
          %7333 = vmatprep.subr.mxu0 0.0
          %7334 = vmatpush1.msra.mxu0 %v7139
          %7335 = vmatprep.subr.mxu0 0.0
          %7336 = vmatpush1.msra.mxu0 %v7140
          %7337 = vmatprep.subr.mxu0 0.0
          %7338 = vmatpush1.msra.mxu0 %v7141
          %7339 = vmatprep.subr.mxu0 0.0
          %7340 = vmatpush1.msra.mxu0 %v7142
          %7341 = vmatprep.subr.mxu0 0.0
          %7342 = vmatpush1.msra.mxu0 %v7143
          %7343 = vmatprep.subr.mxu0 0.0
          %7344 = vmatpush1.msra.mxu0 %v7144
          %7345 = vmatprep.subr.mxu0 0.0
          %7346 = vmatpush1.msra.mxu0 %v7145
          %7347 = vmatprep.subr.mxu0 0.0
          %7348 = vmatpush1.msra.mxu0 %v7146
          %7349 = vmatprep.subr.mxu0 0.0
          %7350 = vmatpush1.msra.mxu0 %v7147
          %7351 = vmatprep.subr.mxu0 0.0
          %7352 = vmatpush1.msra.mxu0 %v7148
          %7353 = vmatprep.subr.mxu0 0.0
          %7354 = vmatpush1.msra.mxu0 %v7149
          %7355 = vmatprep.subr.mxu0 0.0
          %7356 = vmatpush1.msra.mxu0 %v7150
          %7357 = vmatprep.subr.mxu0 0.0
          %7358 = vmatpush1.msra.mxu0 %v7151
          %7359 = vmatprep.subr.mxu0 0.0
          %7360 = vmatpush1.msra.mxu0 %v7152
          %7361 = vmatprep.subr.mxu0 0.0
          %7362 = vmatpush1.msra.mxu0 %v7153
          %7363 = vmatprep.subr.mxu0 0.0
          %7364 = vmatpush1.msra.mxu0 %v7154
          %7365 = vmatprep.subr.mxu0 0.0
          %7366 = vmatpush1.msra.mxu0 %v7155
          %7367 = vmatprep.subr.mxu0 0.0
          %7368 = vmatpush1.msra.mxu0 %v7156
          %7369 = vmatprep.subr.mxu0 0.0
          %7370 = vmatpush1.msra.mxu0 %v7157
          %7371 = vmatprep.subr.mxu0 0.0
          %7372 = vmatpush1.msra.mxu0 %v7158
          %7373 = vmatprep.subr.mxu0 0.0
          %7374 = vmatpush1.msra.mxu0 %v7159
          %7375 = vmatprep.subr.mxu0 0.0
          %7376 = vmatpush1.msra.mxu0 %v7160
          %7377 = vmatprep.subr.mxu0 0.0
          %7378 = vmatpush1.msra.mxu0 %v7161
          %7379 = vmatprep.subr.mxu0 0.0
          %7380 = vmatpush1.msra.mxu0 %v7162
          %7381 = vmatprep.subr.mxu0 0.0
          %7382 = vmatpush1.msra.mxu0 %v7163
          %7383 = vmatprep.subr.mxu0 0.0
          %7384 = vmatpush1.msra.mxu0 %v7164
          %7385 = vmatprep.subr.mxu0 0.0
          %7386 = vmatpush1.msra.mxu0 %v7165
          %7387 = vmatprep.subr.mxu0 0.0
          %7388 = vmatpush1.msra.mxu0 %v7166
          %7389 = vmatprep.mubr.f32.mxu0 %v7306
          %7390 = vmatmul.mubr.f32.gmra.mrb[0].mxu0 %v7305
          %v7391 = vpop.f32.mrb[0].mxu0
          %v7392 = vadd.f32 0.0, %v7391
          %v7393 = vpop.f32.mrb[0].mxu0
          %7394 = vdwg.mxu0
          %7395 = vmatprep.subr.mxu0 0.0
          %7396 = vmatpush1.msra.mxu0 %v7167
          %7397 = vmatprep.subr.mxu0 0.0
          %7398 = vmatpush1.msra.mxu0 %v7168
          %7399 = vmatprep.subr.mxu0 0.0
          %7400 = vmatpush1.msra.mxu0 %v7169
          %7401 = vmatprep.subr.mxu0 0.0
          %7402 = vmatpush1.msra.mxu0 %v7170
          %7403 = vmatprep.subr.mxu0 0.0
          %7404 = vmatpush1.msra.mxu0 %v7171
          %7405 = vmatprep.subr.mxu0 0.0
          %7406 = vmatpush1.msra.mxu0 %v7172
          %7407 = vmatprep.subr.mxu0 0.0
          %7408 = vmatpush1.msra.mxu0 %v7173
          %7409 = vmatprep.subr.mxu0 0.0
          %7410 = vmatpush1.msra.mxu0 %v7174
          %7411 = vmatprep.subr.mxu0 0.0
          %7412 = vmatpush1.msra.mxu0 %v7175
          %7413 = vmatprep.subr.mxu0 0.0
          %7414 = vmatpush1.msra.mxu0 %v7176
          %7415 = vmatprep.subr.mxu0 0.0
          %7416 = vmatpush1.msra.mxu0 %v7177
          %7417 = vmatprep.subr.mxu0 0.0
          %7418 = vmatpush1.msra.mxu0 %v7178
          %7419 = vmatprep.subr.mxu0 0.0
          %7420 = vmatpush1.msra.mxu0 %v7179
          %7421 = vmatprep.subr.mxu0 0.0
          %7422 = vmatpush1.msra.mxu0 %v7180
          %7423 = vmatprep.subr.mxu0 0.0
          %7424 = vmatpush1.msra.mxu0 %v7181
          %7425 = vmatprep.subr.mxu0 0.0
          %7426 = vmatpush1.msra.mxu0 %v7182
          %7427 = vmatprep.subr.mxu0 0.0
          %7428 = vmatpush1.msra.mxu0 %v7183
          %7429 = vmatprep.subr.mxu0 0.0
          %7430 = vmatpush1.msra.mxu0 %v7184
          %7431 = vmatprep.subr.mxu0 0.0
          %7432 = vmatpush1.msra.mxu0 %v7185
          %7433 = vmatprep.subr.mxu0 0.0
          %7434 = vmatpush1.msra.mxu0 %v7186
          %7435 = vmatprep.subr.mxu0 0.0
          %7436 = vmatpush1.msra.mxu0 %v7187
          %7437 = vmatprep.subr.mxu0 0.0
          %7438 = vmatpush1.msra.mxu0 %v7188
          %7439 = vmatprep.subr.mxu0 0.0
          %7440 = vmatpush1.msra.mxu0 %v7189
          %7441 = vmatprep.subr.mxu0 0.0
          %7442 = vmatpush1.msra.mxu0 %v7190
          %7443 = vmatprep.subr.mxu0 0.0
          %7444 = vmatpush1.msra.mxu0 %v7191
          %7445 = vmatprep.subr.mxu0 0.0
          %7446 = vmatpush1.msra.mxu0 %v7192
          %7447 = vmatprep.subr.mxu0 0.0
          %7448 = vmatpush1.msra.mxu0 %v7193
          %7449 = vmatprep.subr.mxu0 0.0
          %7450 = vmatpush1.msra.mxu0 %v7194
          %7451 = vmatprep.subr.mxu0 0.0
          %7452 = vmatpush1.msra.mxu0 %v7195
          %7453 = vmatprep.subr.mxu0 0.0
          %7454 = vmatpush1.msra.mxu0 %v7196
          %7455 = vmatprep.subr.mxu0 0.0
          %7456 = vmatpush1.msra.mxu0 %v7197
          %7457 = vmatprep.subr.mxu0 0.0
          %7458 = vmatpush1.msra.mxu0 %v7198
          %7459 = vmatprep.mubr.f32.mxu0 %v7308
          %7460 = vmatmul.mubr.f32.gmra.mrb[0].mxu0 %v7307
          %v7461 = vpop.f32.mrb[0].mxu0
          %v7462 = vadd.f32 %v7392, %v7461
          %v7463 = vpop.f32.mrb[0].mxu0
          %7464 = vdwg.mxu0
          %7465 = vmatprep.subr.mxu0 0.0
          %7466 = vmatpush1.msra.mxu0 %v7199
          %7467 = vmatprep.subr.mxu0 0.0
          %7468 = vmatpush1.msra.mxu0 %v7200
          %7469 = vmatprep.subr.mxu0 0.0
          %7470 = vmatpush1.msra.mxu0 %v7201
          %7471 = vmatprep.subr.mxu0 0.0
          %7472 = vmatpush1.msra.mxu0 %v7202
          %7473 = vmatprep.subr.mxu0 0.0
          %7474 = vmatpush1.msra.mxu0 %v7203
          %7475 = vmatprep.subr.mxu0 0.0
          %7476 = vmatpush1.msra.mxu0 %v7204
          %7477 = vmatprep.subr.mxu0 0.0
          %7478 = vmatpush1.msra.mxu0 %v7205
          %7479 = vmatprep.subr.mxu0 0.0
          %7480 = vmatpush1.msra.mxu0 %v7206
          %7481 = vmatprep.subr.mxu0 0.0
          %7482 = vmatpush1.msra.mxu0 %v7207
          %7483 = vmatprep.subr.mxu0 0.0
          %7484 = vmatpush1.msra.mxu0 %v7208
          %7485 = vmatprep.subr.mxu0 0.0
          %7486 = vmatpush1.msra.mxu0 %v7209
          %7487 = vmatprep.subr.mxu0 0.0
          %7488 = vmatpush1.msra.mxu0 %v7210
          %7489 = vmatprep.subr.mxu0 0.0
          %7490 = vmatpush1.msra.mxu0 %v7211
          %7491 = vmatprep.subr.mxu0 0.0
          %7492 = vmatpush1.msra.mxu0 %v7212
          %7493 = vmatprep.subr.mxu0 0.0
          %7494 = vmatpush1.msra.mxu0 %v7213
          %7495 = vmatprep.subr.mxu0 0.0
          %7496 = vmatpush1.msra.mxu0 %v7214
          %7497 = vmatprep.subr.mxu0 0.0
          %7498 = vmatpush1.msra.mxu0 %v7215
          %7499 = vmatprep.subr.mxu0 0.0
          %7500 = vmatpush1.msra.mxu0 %v7216
          %7501 = vmatprep.subr.mxu0 0.0
          %7502 = vmatpush1.msra.mxu0 %v7217
          %7503 = vmatprep.subr.mxu0 0.0
          %7504 = vmatpush1.msra.mxu0 %v7218
          %7505 = vmatprep.subr.mxu0 0.0
          %7506 = vmatpush1.msra.mxu0 %v7219
          %7507 = vmatprep.subr.mxu0 0.0
          %7508 = vmatpush1.msra.mxu0 %v7220
          %7509 = vmatprep.subr.mxu0 0.0
          %7510 = vmatpush1.msra.mxu0 %v7221
          %7511 = vmatprep.subr.mxu0 0.0
          %7512 = vmatpush1.msra.mxu0 %v7222
          %7513 = vmatprep.subr.mxu0 0.0
          %7514 = vmatpush1.msra.mxu0 %v7223
          %7515 = vmatprep.subr.mxu0 0.0
          %7516 = vmatpush1.msra.mxu0 %v7224
          %7517 = vmatprep.subr.mxu0 0.0
          %7518 = vmatpush1.msra.mxu0 %v7225
          %7519 = vmatprep.subr.mxu0 0.0
          %7520 = vmatpush1.msra.mxu0 %v7226
          %7521 = vmatprep.subr.mxu0 0.0
          %7522 = vmatpush1.msra.mxu0 %v7227
          %7523 = vmatprep.subr.mxu0 0.0
          %7524 = vmatpush1.msra.mxu0 %v7228
          %7525 = vmatprep.subr.mxu0 0.0
          %7526 = vmatpush1.msra.mxu0 %v7229
          %7527 = vmatprep.subr.mxu0 0.0
          %7528 = vmatpush1.msra.mxu0 %v7230
          %7529 = vmatprep.mubr.f32.mxu0 %v7310
          %7530 = vmatmul.mubr.f32.gmra.mrb[0].mxu0 %v7309
          %v7531 = vpop.f32.mrb[0].mxu0
          %v7532 = vadd.f32 %v7462, %v7531
          %v7533 = vpop.f32.mrb[0].mxu0
          %7534 = vdwg.mxu0
          %7535 = vmatprep.subr.mxu0 0.0
          %7536 = vmatpush1.msra.mxu0 %v7231
          %7537 = vmatprep.subr.mxu0 0.0
          %7538 = vmatpush1.msra.mxu0 %v7232
          %7539 = vmatprep.subr.mxu0 0.0
          %7540 = vmatpush1.msra.mxu0 %v7233
          %7541 = vmatprep.subr.mxu0 0.0
          %7542 = vmatpush1.msra.mxu0 %v7234
          %7543 = vmatprep.subr.mxu0 0.0
          %7544 = vmatpush1.msra.mxu0 %v7235
          %7545 = vmatprep.subr.mxu0 0.0
          %7546 = vmatpush1.msra.mxu0 %v7236
          %7547 = vmatprep.subr.mxu0 0.0
          %7548 = vmatpush1.msra.mxu0 %v7237
          %7549 = vmatprep.subr.mxu0 0.0
          %7550 = vmatpush1.msra.mxu0 %v7238
          %7551 = vmatprep.subr.mxu0 0.0
          %7552 = vmatpush1.msra.mxu0 %v7239
          %7553 = vmatprep.subr.mxu0 0.0
          %7554 = vmatpush1.msra.mxu0 %v7240
          %7555 = vmatprep.subr.mxu0 0.0
          %7556 = vmatpush1.msra.mxu0 %v7241
          %7557 = vmatprep.subr.mxu0 0.0
          %7558 = vmatpush1.msra.mxu0 %v7242
          %7559 = vmatprep.subr.mxu0 0.0
          %7560 = vmatpush1.msra.mxu0 %v7243
          %7561 = vmatprep.subr.mxu0 0.0
          %7562 = vmatpush1.msra.mxu0 %v7244
          %7563 = vmatprep.subr.mxu0 0.0
          %7564 = vmatpush1.msra.mxu0 %v7245
          %7565 = vmatprep.subr.mxu0 0.0
          %7566 = vmatpush1.msra.mxu0 %v7246
          %7567 = vmatprep.subr.mxu0 0.0
          %7568 = vmatpush1.msra.mxu0 %v7247
          %7569 = vmatprep.subr.mxu0 0.0
          %7570 = vmatpush1.msra.mxu0 %v7248
          %7571 = vmatprep.subr.mxu0 0.0
          %7572 = vmatpush1.msra.mxu0 %v7249
          %7573 = vmatprep.subr.mxu0 0.0
          %7574 = vmatpush1.msra.mxu0 %v7250
          %7575 = vmatprep.subr.mxu0 0.0
          %7576 = vmatpush1.msra.mxu0 %v7251
          %7577 = vmatprep.subr.mxu0 0.0
          %7578 = vmatpush1.msra.mxu0 %v7252
          %7579 = vmatprep.subr.mxu0 0.0
          %7580 = vmatpush1.msra.mxu0 %v7253
          %7581 = vmatprep.subr.mxu0 0.0
          %7582 = vmatpush1.msra.mxu0 %v7254
          %7583 = vmatprep.subr.mxu0 0.0
          %7584 = vmatpush1.msra.mxu0 %v7255
          %7585 = vmatprep.subr.mxu0 0.0
          %7586 = vmatpush1.msra.mxu0 %v7256
          %7587 = vmatprep.subr.mxu0 0.0
          %7588 = vmatpush1.msra.mxu0 %v7257
          %7589 = vmatprep.subr.mxu0 0.0
          %7590 = vmatpush1.msra.mxu0 %v7258
          %7591 = vmatprep.subr.mxu0 0.0
          %7592 = vmatpush1.msra.mxu0 %v7259
          %7593 = vmatprep.subr.mxu0 0.0
          %7594 = vmatpush1.msra.mxu0 %v7260
          %7595 = vmatprep.subr.mxu0 0.0
          %7596 = vmatpush1.msra.mxu0 %v7261
          %7597 = vmatprep.subr.mxu0 0.0
          %7598 = vmatpush1.msra.mxu0 %v7262
          %7599 = vmatprep.mubr.f32.mxu0 %v7312
          %7600 = vmatmul.mubr.f32.gmra.mrb[0].mxu0 %v7311
          %v7601 = vpop.f32.mrb[0].mxu0
          %v7602 = vadd.f32 %v7532, %v7601
          %v7603 = vpop.f32.mrb[0].mxu0
          %7604 = vdwg.mxu0
          %7605 = vmatprep.subr.mxu0 0.0
          %7606 = vmatpush1.msra.mxu0 %v7263
          %7607 = vmatprep.subr.mxu0 0.0
          %7608 = vmatpush1.msra.mxu0 %v7264
          %7609 = vmatprep.subr.mxu0 0.0
          %7610 = vmatpush1.msra.mxu0 %v7265
          %7611 = vmatprep.subr.mxu0 0.0
          %7612 = vmatpush1.msra.mxu0 %v7266
          %7613 = vmatprep.subr.mxu0 0.0
          %7614 = vmatpush1.msra.mxu0 %v7267
          %7615 = vmatprep.subr.mxu0 0.0
          %7616 = vmatpush1.msra.mxu0 %v7268
          %7617 = vmatprep.subr.mxu0 0.0
          %7618 = vmatpush1.msra.mxu0 %v7269
          %7619 = vmatprep.subr.mxu0 0.0
          %7620 = vmatpush1.msra.mxu0 %v7270
          %7621 = vmatprep.subr.mxu0 0.0
          %7622 = vmatpush1.msra.mxu0 %v7271
          %7623 = vmatprep.subr.mxu0 0.0
          %7624 = vmatpush1.msra.mxu0 %v7272
          %7625 = vmatprep.subr.mxu0 0.0
          %7626 = vmatpush1.msra.mxu0 %v7273
          %7627 = vmatprep.subr.mxu0 0.0
          %7628 = vmatpush1.msra.mxu0 %v7274
          %7629 = vmatprep.subr.mxu0 0.0
          %7630 = vmatpush1.msra.mxu0 %v7275
          %7631 = vmatprep.subr.mxu0 0.0
          %7632 = vmatpush1.msra.mxu0 %v7276
          %7633 = vmatprep.subr.mxu0 0.0
          %7634 = vmatpush1.msra.mxu0 %v7277
          %7635 = vmatprep.subr.mxu0 0.0
          %7636 = vmatpush1.msra.mxu0 %v7278
          %7637 = vmatprep.subr.mxu0 0.0
          %7638 = vmatpush1.msra.mxu0 %v7279
          %7639 = vmatprep.subr.mxu0 0.0
          %7640 = vmatpush1.msra.mxu0 %v7280
          %7641 = vmatprep.subr.mxu0 0.0
          %7642 = vmatpush1.msra.mxu0 %v7281
          %7643 = vmatprep.subr.mxu0 0.0
          %7644 = vmatpush1.msra.mxu0 %v7282
          %7645 = vmatprep.subr.mxu0 0.0
          %7646 = vmatpush1.msra.mxu0 %v7283
          %7647 = vmatprep.subr.mxu0 0.0
          %7648 = vmatpush1.msra.mxu0 %v7284
          %7649 = vmatprep.subr.mxu0 0.0
          %7650 = vmatpush1.msra.mxu0 %v7285
          %7651 = vmatprep.subr.mxu0 0.0
          %7652 = vmatpush1.msra.mxu0 %v7286
          %7653 = vmatprep.subr.mxu0 0.0
          %7654 = vmatpush1.msra.mxu0 %v7287
          %7655 = vmatprep.subr.mxu0 0.0
          %7656 = vmatpush1.msra.mxu0 %v7288
          %7657 = vmatprep.subr.mxu0 0.0
          %7658 = vmatpush1.msra.mxu0 %v7289
          %7659 = vmatprep.subr.mxu0 0.0
          %7660 = vmatpush1.msra.mxu0 %v7290
          %7661 = vmatprep.subr.mxu0 0.0
          %7662 = vmatpush1.msra.mxu0 %v7291
          %7663 = vmatprep.subr.mxu0 0.0
          %7664 = vmatpush1.msra.mxu0 %v7292
          %7665 = vmatprep.subr.mxu0 0.0
          %7666 = vmatpush1.msra.mxu0 %v7293
          %7667 = vmatprep.subr.mxu0 0.0
          %7668 = vmatpush1.msra.mxu0 %v7294
          %7669 = vmatprep.mubr.f32.mxu0 %v7314
          %7670 = vmatmul.mubr.f32.gmra.mrb[0].mxu0 %v7313
          %v7671 = vpop.f32.mrb[0].mxu0
          %v7672 = vadd.f32 %v7602, %v7671
          %v7673 = vpop.f32.mrb[0].mxu0
          %7674 = vdwg.mxu0
          %v7680 = vcombine.high %v6965, %v6965
          %v7681 = vcombine.high %v6966, %v6966
          %v7682 = vcombine.high %v6967, %v6967
          %v7683 = vcombine.high %v6968, %v6968
          %v7684 = vcombine.high %v6969, %v6969
          %7690 = vmatprep.subr.mxu0 0.0
          %7691 = vmatpush1.msra.mxu0 %v6975
          %7692 = vmatprep.subr.mxu0 0.0
          %7693 = vmatpush1.msra.mxu0 %v6976
          %7694 = vmatprep.subr.mxu0 0.0
          %7695 = vmatpush1.msra.mxu0 %v6977
          %7696 = vmatprep.subr.mxu0 0.0
          %7697 = vmatpush1.msra.mxu0 %v6978
          %7698 = vmatprep.subr.mxu0 0.0
          %7699 = vmatpush1.msra.mxu0 %v6979
          %7700 = vmatprep.subr.mxu0 0.0
          %7701 = vmatpush1.msra.mxu0 %v6980
          %7702 = vmatprep.subr.mxu0 0.0
          %7703 = vmatpush1.msra.mxu0 %v6981
          %7704 = vmatprep.subr.mxu0 0.0
          %7705 = vmatpush1.msra.mxu0 %v6982
          %7706 = vmatprep.subr.mxu0 0.0
          %7707 = vmatpush1.msra.mxu0 %v6983
          %7708 = vmatprep.subr.mxu0 0.0
          %7709 = vmatpush1.msra.mxu0 %v6984
          %7710 = vmatprep.subr.mxu0 0.0
          %7711 = vmatpush1.msra.mxu0 %v6985
          %7712 = vmatprep.subr.mxu0 0.0
          %7713 = vmatpush1.msra.mxu0 %v6986
          %7714 = vmatprep.subr.mxu0 0.0
          %7715 = vmatpush1.msra.mxu0 %v6987
          %7716 = vmatprep.subr.mxu0 0.0
          %7717 = vmatpush1.msra.mxu0 %v6988
          %7718 = vmatprep.subr.mxu0 0.0
          %7719 = vmatpush1.msra.mxu0 %v6989
          %7720 = vmatprep.subr.mxu0 0.0
          %7721 = vmatpush1.msra.mxu0 %v6990
          %7722 = vmatprep.subr.mxu0 0.0
          %7723 = vmatpush1.msra.mxu0 %v6991
          %7724 = vmatprep.subr.mxu0 0.0
          %7725 = vmatpush1.msra.mxu0 %v6992
          %7726 = vmatprep.subr.mxu0 0.0
          %7727 = vmatpush1.msra.mxu0 %v6993
          %7728 = vmatprep.subr.mxu0 0.0
          %7729 = vmatpush1.msra.mxu0 %v6994
          %7730 = vmatprep.subr.mxu0 0.0
          %7731 = vmatpush1.msra.mxu0 %v6995
          %7732 = vmatprep.subr.mxu0 0.0
          %7733 = vmatpush1.msra.mxu0 %v6996
          %7734 = vmatprep.subr.mxu0 0.0
          %7735 = vmatpush1.msra.mxu0 %v6997
          %7736 = vmatprep.subr.mxu0 0.0
          %7737 = vmatpush1.msra.mxu0 %v6998
          %7738 = vmatprep.subr.mxu0 0.0
          %7739 = vmatpush1.msra.mxu0 %v6999
          %7740 = vmatprep.subr.mxu0 0.0
          %7741 = vmatpush1.msra.mxu0 %v7000
          %7742 = vmatprep.subr.mxu0 0.0
          %7743 = vmatpush1.msra.mxu0 %v7001
          %7744 = vmatprep.subr.mxu0 0.0
          %7745 = vmatpush1.msra.mxu0 %v7002
          %7746 = vmatprep.subr.mxu0 0.0
          %7747 = vmatpush1.msra.mxu0 %v7003
          %7748 = vmatprep.subr.mxu0 0.0
          %7749 = vmatpush1.msra.mxu0 %v7004
          %7750 = vmatprep.subr.mxu0 0.0
          %7751 = vmatpush1.msra.mxu0 %v7005
          %7752 = vmatprep.subr.mxu0 0.0
          %7753 = vmatpush1.msra.mxu0 %v7006
          %7754 = vmatprep.mubr.f32.mxu0 %v7680
          %7755 = vmatmul.mubr.f32.gmra.mrb[0].mxu0 %v6965
          %v7756 = vpop.f32.mrb[0].mxu0
          %v7757 = vadd.f32 %v7672, %v7756
          %v7758 = vpop.f32.mrb[0].mxu0
          %7759 = vdwg.mxu0
          %7760 = vmatprep.subr.mxu0 0.0
          %7761 = vmatpush1.msra.mxu0 %v7007
          %7762 = vmatprep.subr.mxu0 0.0
          %7763 = vmatpush1.msra.mxu0 %v7008
          %7764 = vmatprep.subr.mxu0 0.0
          %7765 = vmatpush1.msra.mxu0 %v7009
          %7766 = vmatprep.subr.mxu0 0.0
          %7767 = vmatpush1.msra.mxu0 %v7010
          %7768 = vmatprep.subr.mxu0 0.0
          %7769 = vmatpush1.msra.mxu0 %v7011
          %7770 = vmatprep.subr.mxu0 0.0
          %7771 = vmatpush1.msra.mxu0 %v7012
          %7772 = vmatprep.subr.mxu0 0.0
          %7773 = vmatpush1.msra.mxu0 %v7013
          %7774 = vmatprep.subr.mxu0 0.0
          %7775 = vmatpush1.msra.mxu0 %v7014
          %7776 = vmatprep.subr.mxu0 0.0
          %7777 = vmatpush1.msra.mxu0 %v7015
          %7778 = vmatprep.subr.mxu0 0.0
          %7779 = vmatpush1.msra.mxu0 %v7016
          %7780 = vmatprep.subr.mxu0 0.0
          %7781 = vmatpush1.msra.mxu0 %v7017
          %7782 = vmatprep.subr.mxu0 0.0
          %7783 = vmatpush1.msra.mxu0 %v7018
          %7784 = vmatprep.subr.mxu0 0.0
          %7785 = vmatpush1.msra.mxu0 %v7019
          %7786 = vmatprep.subr.mxu0 0.0
          %7787 = vmatpush1.msra.mxu0 %v7020
          %7788 = vmatprep.subr.mxu0 0.0
          %7789 = vmatpush1.msra.mxu0 %v7021
          %7790 = vmatprep.subr.mxu0 0.0
          %7791 = vmatpush1.msra.mxu0 %v7022
          %7792 = vmatprep.subr.mxu0 0.0
          %7793 = vmatpush1.msra.mxu0 %v7023
          %7794 = vmatprep.subr.mxu0 0.0
          %7795 = vmatpush1.msra.mxu0 %v7024
          %7796 = vmatprep.subr.mxu0 0.0
          %7797 = vmatpush1.msra.mxu0 %v7025
          %7798 = vmatprep.subr.mxu0 0.0
          %7799 = vmatpush1.msra.mxu0 %v7026
          %7800 = vmatprep.subr.mxu0 0.0
          %7801 = vmatpush1.msra.mxu0 %v7027
          %7802 = vmatprep.subr.mxu0 0.0
          %7803 = vmatpush1.msra.mxu0 %v7028
          %7804 = vmatprep.subr.mxu0 0.0
          %7805 = vmatpush1.msra.mxu0 %v7029
          %7806 = vmatprep.subr.mxu0 0.0
          %7807 = vmatpush1.msra.mxu0 %v7030
          %7808 = vmatprep.subr.mxu0 0.0
          %7809 = vmatpush1.msra.mxu0 %v7031
          %7810 = vmatprep.subr.mxu0 0.0
          %7811 = vmatpush1.msra.mxu0 %v7032
          %7812 = vmatprep.subr.mxu0 0.0
          %7813 = vmatpush1.msra.mxu0 %v7033
          %7814 = vmatprep.subr.mxu0 0.0
          %7815 = vmatpush1.msra.mxu0 %v7034
          %7816 = vmatprep.subr.mxu0 0.0
          %7817 = vmatpush1.msra.mxu0 %v7035
          %7818 = vmatprep.subr.mxu0 0.0
          %7819 = vmatpush1.msra.mxu0 %v7036
          %7820 = vmatprep.subr.mxu0 0.0
          %7821 = vmatpush1.msra.mxu0 %v7037
          %7822 = vmatprep.subr.mxu0 0.0
          %7823 = vmatpush1.msra.mxu0 %v7038
          %7824 = vmatprep.mubr.f32.mxu0 %v7681
          %7825 = vmatmul.mubr.f32.gmra.mrb[0].mxu0 %v6966
          %v7826 = vpop.f32.mrb[0].mxu0
          %v7827 = vadd.f32 %v7757, %v7826
          %v7828 = vpop.f32.mrb[0].mxu0
          %7829 = vdwg.mxu0
          %7830 = vmatprep.subr.mxu0 0.0
          %7831 = vmatpush1.msra.mxu0 %v7039
          %7832 = vmatprep.subr.mxu0 0.0
          %7833 = vmatpush1.msra.mxu0 %v7040
          %7834 = vmatprep.subr.mxu0 0.0
          %7835 = vmatpush1.msra.mxu0 %v7041
          %7836 = vmatprep.subr.mxu0 0.0
          %7837 = vmatpush1.msra.mxu0 %v7042
          %7838 = vmatprep.subr.mxu0 0.0
          %7839 = vmatpush1.msra.mxu0 %v7043
          %7840 = vmatprep.subr.mxu0 0.0
          %7841 = vmatpush1.msra.mxu0 %v7044
          %7842 = vmatprep.subr.mxu0 0.0
          %7843 = vmatpush1.msra.mxu0 %v7045
          %7844 = vmatprep.subr.mxu0 0.0
          %7845 = vmatpush1.msra.mxu0 %v7046
          %7846 = vmatprep.subr.mxu0 0.0
          %7847 = vmatpush1.msra.mxu0 %v7047
          %7848 = vmatprep.subr.mxu0 0.0
          %7849 = vmatpush1.msra.mxu0 %v7048
          %7850 = vmatprep.subr.mxu0 0.0
          %7851 = vmatpush1.msra.mxu0 %v7049
          %7852 = vmatprep.subr.mxu0 0.0
          %7853 = vmatpush1.msra.mxu0 %v7050
          %7854 = vmatprep.subr.mxu0 0.0
          %7855 = vmatpush1.msra.mxu0 %v7051
          %7856 = vmatprep.subr.mxu0 0.0
          %7857 = vmatpush1.msra.mxu0 %v7052
          %7858 = vmatprep.subr.mxu0 0.0
          %7859 = vmatpush1.msra.mxu0 %v7053
          %7860 = vmatprep.subr.mxu0 0.0
          %7861 = vmatpush1.msra.mxu0 %v7054
          %7862 = vmatprep.subr.mxu0 0.0
          %7863 = vmatpush1.msra.mxu0 %v7055
          %7864 = vmatprep.subr.mxu0 0.0
          %7865 = vmatpush1.msra.mxu0 %v7056
          %7866 = vmatprep.subr.mxu0 0.0
          %7867 = vmatpush1.msra.mxu0 %v7057
          %7868 = vmatprep.subr.mxu0 0.0
          %7869 = vmatpush1.msra.mxu0 %v7058
          %7870 = vmatprep.subr.mxu0 0.0
          %7871 = vmatpush1.msra.mxu0 %v7059
          %7872 = vmatprep.subr.mxu0 0.0
          %7873 = vmatpush1.msra.mxu0 %v7060
          %7874 = vmatprep.subr.mxu0 0.0
          %7875 = vmatpush1.msra.mxu0 %v7061
          %7876 = vmatprep.subr.mxu0 0.0
          %7877 = vmatpush1.msra.mxu0 %v7062
          %7878 = vmatprep.subr.mxu0 0.0
          %7879 = vmatpush1.msra.mxu0 %v7063
          %7880 = vmatprep.subr.mxu0 0.0
          %7881 = vmatpush1.msra.mxu0 %v7064
          %7882 = vmatprep.subr.mxu0 0.0
          %7883 = vmatpush1.msra.mxu0 %v7065
          %7884 = vmatprep.subr.mxu0 0.0
          %7885 = vmatpush1.msra.mxu0 %v7066
          %7886 = vmatprep.subr.mxu0 0.0
          %7887 = vmatpush1.msra.mxu0 %v7067
          %7888 = vmatprep.subr.mxu0 0.0
          %7889 = vmatpush1.msra.mxu0 %v7068
          %7890 = vmatprep.subr.mxu0 0.0
          %7891 = vmatpush1.msra.mxu0 %v7069
          %7892 = vmatprep.subr.mxu0 0.0
          %7893 = vmatpush1.msra.mxu0 %v7070
          %7894 = vmatprep.mubr.f32.mxu0 %v7682
          %7895 = vmatmul.mubr.f32.gmra.mrb[0].mxu0 %v6967
          %v7896 = vpop.f32.mrb[0].mxu0
          %v7897 = vadd.f32 %v7827, %v7896
          %v7898 = vpop.f32.mrb[0].mxu0
          %7899 = vdwg.mxu0
          %7900 = vmatprep.subr.mxu0 0.0
          %7901 = vmatpush1.msra.mxu0 %v7071
          %7902 = vmatprep.subr.mxu0 0.0
          %7903 = vmatpush1.msra.mxu0 %v7072
          %7904 = vmatprep.subr.mxu0 0.0
          %7905 = vmatpush1.msra.mxu0 %v7073
          %7906 = vmatprep.subr.mxu0 0.0
          %7907 = vmatpush1.msra.mxu0 %v7074
          %7908 = vmatprep.subr.mxu0 0.0
          %7909 = vmatpush1.msra.mxu0 %v7075
          %7910 = vmatprep.subr.mxu0 0.0
          %7911 = vmatpush1.msra.mxu0 %v7076
          %7912 = vmatprep.subr.mxu0 0.0
          %7913 = vmatpush1.msra.mxu0 %v7077
          %7914 = vmatprep.subr.mxu0 0.0
          %7915 = vmatpush1.msra.mxu0 %v7078
          %7916 = vmatprep.subr.mxu0 0.0
          %7917 = vmatpush1.msra.mxu0 %v7079
          %7918 = vmatprep.subr.mxu0 0.0
          %7919 = vmatpush1.msra.mxu0 %v7080
          %7920 = vmatprep.subr.mxu0 0.0
          %7921 = vmatpush1.msra.mxu0 %v7081
          %7922 = vmatprep.subr.mxu0 0.0
          %7923 = vmatpush1.msra.mxu0 %v7082
          %7924 = vmatprep.subr.mxu0 0.0
          %7925 = vmatpush1.msra.mxu0 %v7083
          %7926 = vmatprep.subr.mxu0 0.0
          %7927 = vmatpush1.msra.mxu0 %v7084
          %7928 = vmatprep.subr.mxu0 0.0
          %7929 = vmatpush1.msra.mxu0 %v7085
          %7930 = vmatprep.subr.mxu0 0.0
          %7931 = vmatpush1.msra.mxu0 %v7086
          %7932 = vmatprep.subr.mxu0 0.0
          %7933 = vmatpush1.msra.mxu0 %v7087
          %7934 = vmatprep.subr.mxu0 0.0
          %7935 = vmatpush1.msra.mxu0 %v7088
          %7936 = vmatprep.subr.mxu0 0.0
          %7937 = vmatpush1.msra.mxu0 %v7089
          %7938 = vmatprep.subr.mxu0 0.0
          %7939 = vmatpush1.msra.mxu0 %v7090
          %7940 = vmatprep.subr.mxu0 0.0
          %7941 = vmatpush1.msra.mxu0 %v7091
          %7942 = vmatprep.subr.mxu0 0.0
          %7943 = vmatpush1.msra.mxu0 %v7092
          %7944 = vmatprep.subr.mxu0 0.0
          %7945 = vmatpush1.msra.mxu0 %v7093
          %7946 = vmatprep.subr.mxu0 0.0
          %7947 = vmatpush1.msra.mxu0 %v7094
          %7948 = vmatprep.subr.mxu0 0.0
          %7949 = vmatpush1.msra.mxu0 %v7095
          %7950 = vmatprep.subr.mxu0 0.0
          %7951 = vmatpush1.msra.mxu0 %v7096
          %7952 = vmatprep.subr.mxu0 0.0
          %7953 = vmatpush1.msra.mxu0 %v7097
          %7954 = vmatprep.subr.mxu0 0.0
          %7955 = vmatpush1.msra.mxu0 %v7098
          %7956 = vmatprep.subr.mxu0 0.0
          %7957 = vmatpush1.msra.mxu0 %v7099
          %7958 = vmatprep.subr.mxu0 0.0
          %7959 = vmatpush1.msra.mxu0 %v7100
          %7960 = vmatprep.subr.mxu0 0.0
          %7961 = vmatpush1.msra.mxu0 %v7101
          %7962 = vmatprep.subr.mxu0 0.0
          %7963 = vmatpush1.msra.mxu0 %v7102
          %7964 = vmatprep.mubr.f32.mxu0 %v7683
          %7965 = vmatmul.mubr.f32.gmra.mrb[0].mxu0 %v6968
          %v7966 = vpop.f32.mrb[0].mxu0
          %v7967 = vadd.f32 %v7897, %v7966
          %v7968 = vpop.f32.mrb[0].mxu0
          %7969 = vdwg.mxu0
          %7970 = vmatprep.subr.mxu0 0.0
          %7971 = vmatpush1.msra.mxu0 %v7103
          %7972 = vmatprep.subr.mxu0 0.0
          %7973 = vmatpush1.msra.mxu0 %v7104
          %7974 = vmatprep.subr.mxu0 0.0
          %7975 = vmatpush1.msra.mxu0 %v7105
          %7976 = vmatprep.subr.mxu0 0.0
          %7977 = vmatpush1.msra.mxu0 %v7106
          %7978 = vmatprep.subr.mxu0 0.0
          %7979 = vmatpush1.msra.mxu0 %v7107
          %7980 = vmatprep.subr.mxu0 0.0
          %7981 = vmatpush1.msra.mxu0 %v7108
          %7982 = vmatprep.subr.mxu0 0.0
          %7983 = vmatpush1.msra.mxu0 %v7109
          %7984 = vmatprep.subr.mxu0 0.0
          %7985 = vmatpush1.msra.mxu0 %v7110
          %7986 = vmatprep.subr.mxu0 0.0
          %7987 = vmatpush1.msra.mxu0 %v7111
          %7988 = vmatprep.subr.mxu0 0.0
          %7989 = vmatpush1.msra.mxu0 %v7112
          %7990 = vmatprep.subr.mxu0 0.0
          %7991 = vmatpush1.msra.mxu0 %v7113
          %7992 = vmatprep.subr.mxu0 0.0
          %7993 = vmatpush1.msra.mxu0 %v7114
          %7994 = vmatprep.subr.mxu0 0.0
          %7995 = vmatpush1.msra.mxu0 %v7115
          %7996 = vmatprep.subr.mxu0 0.0
          %7997 = vmatpush1.msra.mxu0 %v7116
          %7998 = vmatprep.subr.mxu0 0.0
          %7999 = vmatpush1.msra.mxu0 %v7117
          %8000 = vmatprep.subr.mxu0 0.0
          %8001 = vmatpush1.msra.mxu0 %v7118
          %8002 = vmatprep.subr.mxu0 0.0
          %8003 = vmatpush1.msra.mxu0 %v7119
          %8004 = vmatprep.subr.mxu0 0.0
          %8005 = vmatpush1.msra.mxu0 %v7120
          %8006 = vmatprep.subr.mxu0 0.0
          %8007 = vmatpush1.msra.mxu0 %v7121
          %8008 = vmatprep.subr.mxu0 0.0
          %8009 = vmatpush1.msra.mxu0 %v7122
          %8010 = vmatprep.subr.mxu0 0.0
          %8011 = vmatpush1.msra.mxu0 %v7123
          %8012 = vmatprep.subr.mxu0 0.0
          %8013 = vmatpush1.msra.mxu0 %v7124
          %8014 = vmatprep.subr.mxu0 0.0
          %8015 = vmatpush1.msra.mxu0 %v7125
          %8016 = vmatprep.subr.mxu0 0.0
          %8017 = vmatpush1.msra.mxu0 %v7126
          %8018 = vmatprep.subr.mxu0 0.0
          %8019 = vmatpush1.msra.mxu0 %v7127
          %8020 = vmatprep.subr.mxu0 0.0
          %8021 = vmatpush1.msra.mxu0 %v7128
          %8022 = vmatprep.subr.mxu0 0.0
          %8023 = vmatpush1.msra.mxu0 %v7129
          %8024 = vmatprep.subr.mxu0 0.0
          %8025 = vmatpush1.msra.mxu0 %v7130
          %8026 = vmatprep.subr.mxu0 0.0
          %8027 = vmatpush1.msra.mxu0 %v7131
          %8028 = vmatprep.subr.mxu0 0.0
          %8029 = vmatpush1.msra.mxu0 %v7132
          %8030 = vmatprep.subr.mxu0 0.0
          %8031 = vmatpush1.msra.mxu0 %v7133
          %8032 = vmatprep.subr.mxu0 0.0
          %8033 = vmatpush1.msra.mxu0 %v7134
          %8034 = vmatprep.mubr.f32.mxu0 %v7684
          %8035 = vmatmul.mubr.f32.gmra.mrb[0].mxu0 %v6969
          %v8036 = vpop.f32.mrb[0].mxu0
          %v8037 = vadd.f32 %v7967, %v8036
          %v8038 = vpop.f32.mrb[0].mxu0
          %8039 = vdwg.mxu0
          %v8040 = vld [vmem:[%s14 + $0xa00] sm:$0xff]
          %v8041 = vld [vmem:[%s14 + $0xa08] sm:$0xff]
          %v8042 = vld [vmem:[%s14 + $0xa10] sm:$0xff]
          %v8043 = vld [vmem:[%s14 + $0xa18] sm:$0xff]
          %vm8044 = vcmask 261120
          %v8046 = vsel %vm8044, %v6964, 0
          %8048 = vmatprep.subr.mxu0 0.0
          %8049 = vmatpush1.msra.mxu0 %v8040
          %8050 = vmatprep.subr.mxu0 0.0
          %8051 = vmatpush1.msra.mxu0 %v8041
          %8052 = vmatprep.subr.mxu0 0.0
          %8053 = vmatpush1.msra.mxu0 %v8042
          %8054 = vmatprep.subr.mxu0 0.0
          %8055 = vmatpush1.msra.mxu0 %v8043
          %8056 = vmatprep.subr.mxu0 0.0
          %8057 = vmatpush1.msra.mxu0 0.0
          %8058 = vmatprep.subr.mxu0 0.0
          %8059 = vmatpush1.msra.mxu0 0.0
          %8060 = vmatprep.subr.mxu0 0.0
          %8061 = vmatpush1.msra.mxu0 0.0
          %8062 = vmatprep.subr.mxu0 0.0
          %8063 = vmatpush1.msra.mxu0 0.0
          %8064 = vmatprep.subr.mxu0 0.0
          %8065 = vmatpush1.msra.mxu0 0.0
          %8066 = vmatprep.subr.mxu0 0.0
          %8067 = vmatpush1.msra.mxu0 0.0
          %8068 = vmatprep.subr.mxu0 0.0
          %8069 = vmatpush1.msra.mxu0 0.0
          %8070 = vmatprep.subr.mxu0 0.0
          %8071 = vmatpush1.msra.mxu0 0.0
          %8072 = vmatprep.subr.mxu0 0.0
          %8073 = vmatpush1.msra.mxu0 0.0
          %8074 = vmatprep.subr.mxu0 0.0
          %8075 = vmatpush1.msra.mxu0 0.0
          %8076 = vmatprep.subr.mxu0 0.0
          %8077 = vmatpush1.msra.mxu0 0.0
          %8078 = vmatprep.subr.mxu0 0.0
          %8079 = vmatpush1.msra.mxu0 0.0
          %8080 = vmatprep.subr.mxu0 0.0
          %8081 = vmatpush1.msra.mxu0 0.0
          %8082 = vmatprep.subr.mxu0 0.0
          %8083 = vmatpush1.msra.mxu0 0.0
          %8084 = vmatprep.subr.mxu0 0.0
          %8085 = vmatpush1.msra.mxu0 0.0
          %8086 = vmatprep.subr.mxu0 0.0
          %8087 = vmatpush1.msra.mxu0 0.0
          %8088 = vmatprep.subr.mxu0 0.0
          %8089 = vmatpush1.msra.mxu0 0.0
          %8090 = vmatprep.subr.mxu0 0.0
          %8091 = vmatpush1.msra.mxu0 0.0
          %8092 = vmatprep.subr.mxu0 0.0
          %8093 = vmatpush1.msra.mxu0 0.0
          %8094 = vmatprep.subr.mxu0 0.0
          %8095 = vmatpush1.msra.mxu0 0.0
          %8096 = vmatprep.subr.mxu0 0.0
          %8097 = vmatpush1.msra.mxu0 0.0
          %8098 = vmatprep.subr.mxu0 0.0
          %8099 = vmatpush1.msra.mxu0 0.0
          %8100 = vmatprep.subr.mxu0 0.0
          %8101 = vmatpush1.msra.mxu0 0.0
          %8102 = vmatprep.subr.mxu0 0.0
          %8103 = vmatpush1.msra.mxu0 0.0
          %8104 = vmatprep.subr.mxu0 0.0
          %8105 = vmatpush1.msra.mxu0 0.0
          %8106 = vmatprep.subr.mxu0 0.0
          %8107 = vmatpush1.msra.mxu0 0.0
          %8108 = vmatprep.subr.mxu0 0.0
          %8109 = vmatpush1.msra.mxu0 0.0
          %8110 = vmatprep.subr.mxu0 0.0
          %8111 = vmatpush1.msra.mxu0 0.0
          %8112 = vmatprep.mubr.f32.mxu0 0.0
          %8113 = vmatmul.mubr.f32.gmra.mrb[0].mxu0 %v8046
          %v8114 = vpop.f32.mrb[0].mxu0
          %v8115 = vadd.f32 0.0, %v8114
          %v8116 = vpop.f32.mrb[0].mxu0
          %8117 = vdwg.mxu0
          %v8118 = vadd.f32 %v8037, %v8115
          %v8119 = vld [vmem:[%s15] sm:$0x1]
          %v8121 = vlaneseq
          %v8122 = vshrl.u32 %v8121, 7
          %v8123 = vsub.s32 0, %v8122
          %v8124 = vrot.slane %v8119, %v8123
          %v8126 = vadd.f32 %v8118, %v8124
          %8127 = vst [vmem:[%s16] sm:$0x3] %v8126
        $region96: #{multi_input_forward.1} parent=91 // pred_fallthru
          _
      $region92: #{multi_input_forward.1} parent=83 // pred_fallthru
        _
      // Predicated region
      $region97: #{multi_input_forward.1} parent=83 // pred_check
        %p8128 = pneg %p395
      $region98: #{multi_input_forward.1} parent=83 // pred_check_branch
        %8130 = sbr.rel (%p8128) target = $region100
      $region99: #{multi_input_forward.1} parent=83 // pred_region
        _
      $region100: #{multi_input_forward.1} parent=83 // pred_fallthru
        _
      // Predicated region
      $region101: #{multi_input_forward.1} parent=83 // pred_check
        %p8131 = pneg %p395
      $region102: #{multi_input_forward.1} parent=83 // pred_check_branch
        %8133 = sbr.rel (%p8131) target = $region104
      $region103: #{multi_input_forward.1} parent=83 // pred_region
        _
      $region104: #{multi_input_forward.1} parent=83 // pred_fallthru
        _
    $region84: #{multi_input_forward.1} parent=5 // pred_fallthru
      _
    %p8134 = scmp.le.s32.totalorder 2, %s22
    // Predicated region
    $region105: #{multi_input_forward.1} parent=5 // pred_check
      %p8135 = pneg %p8134
    $region106: #{multi_input_forward.1} parent=5 // pred_check_branch
      %8137 = sbr.rel (%p8135) target = $region108
    $region107: #{multi_input_forward.1} parent=5 // pred_region
      %s8138 = ssub.s32 %s22, 2
    $region108: #{multi_input_forward.1} parent=5 // pred_fallthru
      _
  $region6: #{multi_input_forward.1} parent=0 // loop_footer
    %s26 = sadd.s32 1, %s22
  $region7: #{multi_input_forward.1} parent=0 // loop_footer_branch
    %21 = sbr.rel target = $region3
  $region8: #{multi_input_forward.1} parent=0 // loop_exit
    _

</llo_original>
